<compile_context>
chip_gen: v7x
topology: tpu7x:2x2x1
jax: 0.10.0
libtpu: 0.0.40
codegen_flags: <defaults>
</compile_context>

<pallas_src>
import functools

import jax
import jax.numpy as jnp
from jax.experimental import pallas as pl
from jax.experimental.pallas import tpu as pltpu

# Set to jnp.bfloat16 on v6e/v7x for ~2x MXU throughput and half the matmul
# DMA bytes (accumulation stays f32 via preferred_element_type).  Kept f32 by
# default to match the PyTorch module's float32 numerics exactly.
MATMUL_DTYPE = jnp.float32

_VMEM_LIMIT = 32 * 1024 * 1024


def _cparams(*dims):
    return pltpu.CompilerParams(dimension_semantics=dims,
                                vmem_limit_bytes=_VMEM_LIMIT)


# ----------------------------------------------------------------------------
# Fused 3x3 conv kernel (im2col inside the kernel, multi-input = fused concat,
# affine (BN/bias) + activation epilogue).
# ----------------------------------------------------------------------------
def _conv3x3_kernel(*refs, act):
    # refs = (x_0 .. x_{n-1} padded NHWC, w_taps, scale, shift, out)
    n_in = len(refs) - 4
    xs = refs[:n_in]
    w_ref, scale_ref, shift_ref, o_ref = refs[n_in:]
    Hp, Wp, Cin = xs[0].shape[1], xs[0].shape[2], xs[0].shape[3]
    H, W = Hp - 2, Wp - 2
    Cout = o_ref.shape[3]

    acc = jnp.zeros((H * W, Cout), jnp.float32)
    for j in range(n_in):
        xp = xs[j][0]                                  # (H+2, W+2, Cin), loaded once
        for t in range(9):
            dh, dw = t // 3, t % 3
            patch = xp[dh:dh + H, dw:dw + W, :].reshape(H * W, Cin)
            acc = acc + jnp.dot(patch, w_ref[j * 9 + t],
                                preferred_element_type=jnp.float32)
    y = acc * scale_ref[...] + shift_ref[...]
    if act == "relu":
        y = jnp.maximum(y, 0.0)
    elif act == "relu_sigmoid":
        y = jax.nn.sigmoid(jnp.maximum(y, 0.0))
    o_ref[0] = y.reshape(H, W, Cout)


def conv3x3(xs, w_taps, scale, shift, act="none"):
    """3x3 'same' conv over the channel-concat of the NHWC tensors in `xs`,
    with a fused affine (BN/bias) + activation epilogue.
    w_taps: (len(xs)*9, Cin, Cout), tap order (input, kh, kw)."""
    B, H, W, Cin = xs[0].shape
    Cout = w_taps.shape[-1]
    n_in = len(xs)
    xps = [jnp.pad(x, ((0, 0), (1, 1), (1, 1), (0, 0))).astype(MATMUL_DTYPE)
           for x in xs]
    in_specs = [pl.BlockSpec((1, H + 2, W + 2, Cin), lambda b: (b, 0, 0, 0))
                for _ in range(n_in)]
    in_specs += [
        pl.BlockSpec((n_in * 9, Cin, Cout), lambda b: (0, 0, 0)),
        pl.BlockSpec((1, Cout), lambda b: (0, 0)),
        pl.BlockSpec((1, Cout), lambda b: (0, 0)),
    ]
    # TODO(synk): for large H*W additionally tile over output rows with a
    # manually-DMA'd halo (BlockSpec cannot express overlapping row windows).
    return pl.pallas_call(
        functools.partial(_conv3x3_kernel, act=act),
        out_shape=jax.ShapeDtypeStruct((B, H, W, Cout), jnp.float32),
        grid=(B,),
        in_specs=in_specs,
        out_specs=pl.BlockSpec((1, H, W, Cout), lambda b: (b, 0, 0, 0)),
        compiler_params=_cparams("parallel"),
    )(*xps, w_taps.astype(MATMUL_DTYPE),
      scale.reshape(1, Cout).astype(jnp.float32),
      shift.reshape(1, Cout).astype(jnp.float32))


def _prep_w3x3(w, splits=1):
    """(Cout, Cin_total, 3, 3) torch conv weight -> (splits*9, Cin, Cout) taps."""
    Cout, Cin_tot = w.shape[0], w.shape[1]
    Cin = Cin_tot // splits
    parts = []
    for s in range(splits):
        ws = w[:, s * Cin:(s + 1) * Cin]                       # (Cout, Cin, 3, 3)
        parts.append(jnp.transpose(ws, (2, 3, 1, 0)).reshape(9, Cin, Cout))
    return jnp.concatenate(parts, axis=0)


# ----------------------------------------------------------------------------
# Fused q/k/v 1x1 conv kernel: one pass over the pixel-major activation.
# ----------------------------------------------------------------------------
def _qkv_kernel(x_ref, w_ref, b_ref, q_ref, k_ref, v_ref):
    x = x_ref[...]
    outs = (q_ref, k_ref, v_ref)
    for i in range(3):
        y = jnp.dot(x, w_ref[i], preferred_element_type=jnp.float32)
        outs[i][...] = y + b_ref[i:i + 1, :]


def qkv_project(x, wq, wk, wv, bq, bk, bv):
    M, C = x.shape
    w = jnp.stack([wq, wk, wv], axis=0).astype(MATMUL_DTYPE)   # (3, C, C)
    b = jnp.stack([bq, bk, bv], axis=0).astype(jnp.float32)    # (3, C)
    tm = min(512, M)
    return pl.pallas_call(
        _qkv_kernel,
        out_shape=tuple(jax.ShapeDtypeStruct((M, C), jnp.float32) for _ in range(3)),
        grid=(pl.cdiv(M, tm),),
        in_specs=[
            pl.BlockSpec((tm, C), lambda i: (i, 0)),
            pl.BlockSpec((3, C, C), lambda i: (0, 0, 0)),
            pl.BlockSpec((3, C), lambda i: (0, 0)),
        ],
        out_specs=tuple(pl.BlockSpec((tm, C), lambda i: (i, 0)) for _ in range(3)),
        compiler_params=_cparams("parallel"),
    )(x.astype(MATMUL_DTYPE), w, b)


# ----------------------------------------------------------------------------
# Non-local attention, pixel-major, column-tiled over output pixels:
#   out[:, j, :] = delta[j, :] * (softmax_i(Q K^T)[:, j]^T V) + r[:, j, :]
# ----------------------------------------------------------------------------
def _attn_kernel(q_ref, k_ref, v_ref, delta_ref, r_ref, o_ref):
    q = q_ref[0]                                               # (P,  C)
    k = k_ref[0]                                               # (tj, C)
    v = v_ref[0]                                               # (P,  C)
    # energy[i, j] = sum_c Q[b, i, c] * K[b, c, j]   (torch bmm(ftr_q, ftr_k))
    s = jax.lax.dot_general(q, k, (((1,), (1,)), ((), ())),
                            preferred_element_type=jnp.float32)  # (P, tj)
    # softmax over dim=1 of the (B, P, P) energy == axis 0 here (full axis).
    m = jnp.max(s, axis=0, keepdims=True)
    e = jnp.exp(s - m)
    wts = e / jnp.sum(e, axis=0, keepdims=True)
    # G[b, c, j] = sum_i V[b, c, i] * wts[i, j]  ->  pixel-major (tj, C)
    g = jax.lax.dot_general(wts.astype(v.dtype), v, (((0,), (0,)), ((), ())),
                            preferred_element_type=jnp.float32)
    o_ref[0] = delta_ref[...] * g + r_ref[0]


def attention(q, k, v, delta_pm, r_pm):
    B, P, C = q.shape
    tj = min(512, P)
    return pl.pallas_call(
        _attn_kernel,
        out_shape=jax.ShapeDtypeStruct((B, P, C), jnp.float32),
        grid=(B, pl.cdiv(P, tj)),
        in_specs=[
            pl.BlockSpec((1, P, C), lambda b, j: (b, 0, 0)),    # Q (all rows)
            pl.BlockSpec((1, tj, C), lambda b, j: (b, j, 0)),   # K column block
            pl.BlockSpec((1, P, C), lambda b, j: (b, 0, 0)),    # V (all rows)
            pl.BlockSpec((tj, C), lambda b, j: (j, 0)),         # delta block
            pl.BlockSpec((1, tj, C), lambda b, j: (b, j, 0)),   # r block
        ],
        out_specs=pl.BlockSpec((1, tj, C), lambda b, j: (b, j, 0)),
        compiler_params=_cparams("parallel", "parallel"),
    )(q.astype(MATMUL_DTYPE), k.astype(MATMUL_DTYPE), v.astype(MATMUL_DTYPE),
      delta_pm.astype(jnp.float32), r_pm.astype(jnp.float32))


# ----------------------------------------------------------------------------
# (avg_pool3x3 + max_pool3x3)(x) * gate — halos built in VMEM scratch.
# ----------------------------------------------------------------------------
def _pool_gate_kernel(x_ref, gate_ref, o_ref, p0_ref, pn_ref):
    H, W, C = x_ref.shape[1], x_ref.shape[2], x_ref.shape[3]
    x = x_ref[0]
    neg = -3.0e38
    p0_ref[...] = jnp.zeros((H + 2, W + 2, C), jnp.float32)        # zero pad (avg)
    pn_ref[...] = jnp.full((H + 2, W + 2, C), neg, jnp.float32)    # -inf pad (max)
    p0_ref[1:H + 1, 1:W + 1, :] = x
    pn_ref[1:H + 1, 1:W + 1, :] = x
    ssum = jnp.zeros((H, W, C), jnp.float32)
    smax = jnp.full((H, W, C), neg, jnp.float32)
    for dh in range(3):
        for dw in range(3):
            ssum = ssum + p0_ref[dh:dh + H, dw:dw + W, :]
            smax = jnp.maximum(smax, pn_ref[dh:dh + H, dw:dw + W, :])
    o_ref[0] = (ssum * (1.0 / 9.0) + smax) * gate_ref[0]


def pool_gate(x, gate):
    B, H, W, C = x.shape
    return pl.pallas_call(
        _pool_gate_kernel,
        out_shape=jax.ShapeDtypeStruct((B, H, W, C), jnp.float32),
        grid=(B,),
        in_specs=[pl.BlockSpec((1, H, W, C), lambda b: (b, 0, 0, 0)),
                  pl.BlockSpec((1, H, W, C), lambda b: (b, 0, 0, 0))],
        out_specs=pl.BlockSpec((1, H, W, C), lambda b: (b, 0, 0, 0)),
        scratch_shapes=[pltpu.VMEM((H + 2, W + 2, C), jnp.float32),
                        pltpu.VMEM((H + 2, W + 2, C), jnp.float32)],
        compiler_params=_cparams("parallel"),
    )(x.astype(jnp.float32), gate.astype(jnp.float32))


# ----------------------------------------------------------------------------
# Channel attention: x * sigmoid(fc2(relu(fc1(global_max(x)))))
# ----------------------------------------------------------------------------
def _ca_kernel(x_ref, w1_ref, w2_ref, o_ref):
    x = x_ref[0]                                               # (P, C)
    maxv = jnp.max(x, axis=0, keepdims=True)                   # (1, C) global max pool
    h = jnp.dot(maxv, w1_ref[...], preferred_element_type=jnp.float32)   # fc1 -> (1, C/4)
    h = jnp.maximum(h, 0.0)
    a = jnp.dot(h, w2_ref[...], preferred_element_type=jnp.float32)      # fc2 -> (1, C)
    o_ref[0] = x * jax.nn.sigmoid(a)


def channel_attention(x, w1t, w2t):
    B, H, W, C = x.shape
    P = H * W
    C4 = w1t.shape[1]
    out = pl.pallas_call(
        _ca_kernel,
        out_shape=jax.ShapeDtypeStruct((B, P, C), jnp.float32),
        grid=(B,),
        in_specs=[pl.BlockSpec((1, P, C), lambda b: (b, 0, 0)),
                  pl.BlockSpec((C, C4), lambda b: (0, 0)),
                  pl.BlockSpec((C4, C), lambda b: (0, 0))],
        out_specs=pl.BlockSpec((1, P, C), lambda b: (b, 0, 0)),
        compiler_params=_cparams("parallel"),
    )(x.reshape(B, P, C).astype(jnp.float32),
      w1t.astype(jnp.float32), w2t.astype(jnp.float32))
    return out.reshape(B, H, W, C)


# ----------------------------------------------------------------------------
# Bilinear upsampling (align_corners=True) — tiny, kept as plain-JAX glue.
# ----------------------------------------------------------------------------
def _interp_matrix(out_size, in_size):
    if in_size == out_size:
        return jnp.eye(out_size, dtype=jnp.float32)
    if out_size == 1:
        src = jnp.zeros((1,), jnp.float32)
    else:
        src = jnp.arange(out_size, dtype=jnp.float32) * ((in_size - 1) / (out_size - 1))
    i0 = jnp.clip(jnp.floor(src), 0, max(in_size - 2, 0)).astype(jnp.int32)
    frac = src - i0.astype(jnp.float32)
    i1 = jnp.minimum(i0 + 1, in_size - 1)
    m0 = jax.nn.one_hot(i0, in_size, dtype=jnp.float32) * (1.0 - frac)[:, None]
    m1 = jax.nn.one_hot(i1, in_size, dtype=jnp.float32) * frac[:, None]
    return m0 + m1


def bilinear_align_corners_nhwc(x, H, W):
    Hd, Wd = x.shape[1], x.shape[2]
    Mh = _interp_matrix(H, Hd)
    Mw = _interp_matrix(W, Wd)
    return jnp.einsum("hi,bijc,wj->bhwc", Mh, x, Mw)


# ----------------------------------------------------------------------------
# Parameters (deterministic, shapes per CSSU.__init__, PyTorch weight layout)
# ----------------------------------------------------------------------------
def init_params(key, C, Co, H, W):
    keys = jax.random.split(key, 20)
    it = iter(keys)

    def nrm(shape, std=0.1):
        return std * jax.random.normal(next(it), shape, dtype=jnp.float32)

    C4 = C // 4
    return dict(
        conv1_w=nrm((C, Co, 3, 3)), conv1_b=nrm((C,)),
        conv2_w=nrm((C, 2 * C, 3, 3)),
        convq_w=nrm((C, C, 1, 1)), convq_b=nrm((C,)),
        convk_w=nrm((C, C, 1, 1)), convk_b=nrm((C,)),
        convv_w=nrm((C, C, 1, 1)), convv_b=nrm((C,)),
        delta=nrm((1, C, H, W), std=0.01),
        rbc_w=nrm((C, C, 3, 3)),
        rbc2_w=nrm((C, 2 * C, 3, 3)),
        rbc3_w=nrm((C, C, 3, 3)),
        conv3_w=nrm((C, C, 3, 3)), conv3_b=nrm((C,)),
        ca_fc1_w=nrm((C4, C, 1, 1)), ca_fc2_w=nrm((C, C4, 1, 1)),
    )


# ----------------------------------------------------------------------------
# CSSU forward (inputs/outputs NCHW; NHWC/pixel-major internally)
# ----------------------------------------------------------------------------
def cssu_forward(p, r_nchw, d_nchw):
    B, C, H, W = r_nchw.shape
    eps = 1e-5
    bns = (1.0 + eps) ** -0.5          # eval-mode BN at init: mean=0, var=1, gamma=1, beta=0
    bn_scale = jnp.full((C,), bns, jnp.float32)
    zeros = jnp.zeros((C,), jnp.float32)
    ones = jnp.ones((C,), jnp.float32)

    # NCHW -> NHWC once at the boundary
    r = jnp.transpose(r_nchw, (0, 2, 3, 1))
    d = jnp.transpose(d_nchw, (0, 2, 3, 1))

    # conv1(d) (+bias) then bilinear upsample (align_corners=True) to (H, W)
    y = conv3x3([d], _prep_w3x3(p["conv1_w"]), ones, p["conv1_b"], act="none")
    y = bilinear_align_corners_nhwc(y, H, W)

    # conv2(cat([r, y])) + BN + ReLU — the concat is fused into the conv kernel
    r2 = conv3x3([r, y], _prep_w3x3(p["conv2_w"], splits=2), bn_scale, zeros, act="relu")

    # fused q/k/v 1x1 convs + non-local attention (pixel-major throughout)
    P = H * W
    q, k, v = qkv_project(
        r2.reshape(B * P, C),
        p["convq_w"].reshape(C, C).T, p["convk_w"].reshape(C, C).T,
        p["convv_w"].reshape(C, C).T,
        p["convq_b"], p["convk_b"], p["convv_b"])
    delta_pm = p["delta"].reshape(C, P).T                         # (P, C)
    att = attention(q.reshape(B, P, C), k.reshape(B, P, C), v.reshape(B, P, C),
                    delta_pm, r2.reshape(B, P, C))                # delta * G + r2
    att = att.reshape(B, H, W, C)

    # sigmoid(conv_rbc(.))
    out1 = conv3x3([att], _prep_w3x3(p["rbc_w"]), bn_scale, zeros, act="relu_sigmoid")

    # (avg_pool(r2) + max_pool(r2)) * out1  ->  conv3 + BN + ReLU
    pooled = pool_gate(r2, out1)
    f = conv3x3([pooled], _prep_w3x3(p["conv3_w"]), bn_scale, bns * p["conv3_b"], act="relu")

    # conv_rbc_2(cat([f, r2])) (fused concat), channel attention, conv_rbc_3
    out2 = conv3x3([f, r2], _prep_w3x3(p["rbc2_w"], splits=2), bn_scale, zeros, act="relu")
    C4 = p["ca_fc1_w"].shape[0]
    out3 = channel_attention(out2,
                             p["ca_fc1_w"].reshape(C4, C).T,      # (C, C4)
                             p["ca_fc2_w"].reshape(C, C4).T)      # (C4, C)
    out4 = conv3x3([out3], _prep_w3x3(p["rbc3_w"]), bn_scale, zeros, act="relu")

    # NHWC -> NCHW once at the boundary
    return jnp.transpose(out4, (0, 3, 1, 2))


if __name__ == "__main__":
    key = jax.random.PRNGKey(0)
    kp, kr, kd = jax.random.split(key, 3)
    B, C, Co, H, W = 2, 8, 4, 8, 8        # in_channels=8, ou_channels=4, h=w=8
    params = init_params(kp, C, Co, H, W)
    r = jax.random.normal(kr, (B, C, H, W), dtype=jnp.float32)
    d = jax.random.normal(kd, (B, Co, 4, 4), dtype=jnp.float32)   # low-res depth branch

    fwd = jax.jit(cssu_forward)
    out = jax.block_until_ready(fwd(params, r, d))
    assert out.shape == (B, C, H, W)
    assert bool(jnp.all(jnp.isfinite(out)))
    print("KERNEL_OK")
</pallas_src>

<mosaic_0001>
module attributes {stable_mosaic.version = 11 : i64} {
  func.func @_conv3x3_kernel(%arg0: i32, %arg1: memref<1x6x6x4xf32, #tpu.memory_space<vmem>>, %arg2: memref<9x4x8xf32, #tpu.memory_space<vmem>>, %arg3: memref<1x8xf32, #tpu.memory_space<vmem>>, %arg4: memref<1x8xf32, #tpu.memory_space<vmem>>, %arg5: memref<1x4x4x8xf32, #tpu.memory_space<vmem>>) attributes {dimension_semantics = [#tpu.dimension_semantics<parallel>], iteration_bounds = array<i64: 2>, scalar_prefetch = 0 : i64, scratch_operands = 0 : i64, tpu.core_type = #tpu.core_type<tc>, window_params = [{transform_indices = @transform_0, window_bounds = array<i64: 1, 6, 6, 4>}, {pipeline_mode = #tpu.pipeline_mode<synchronous>, transform_indices = @transform_1, window_bounds = array<i64: 9, 4, 8>}, {pipeline_mode = #tpu.pipeline_mode<synchronous>, transform_indices = @transform_2, window_bounds = array<i64: 1, 8>}, {pipeline_mode = #tpu.pipeline_mode<synchronous>, transform_indices = @transform_3, window_bounds = array<i64: 1, 8>}, {transform_indices = @transform_4, window_bounds = array<i64: 1, 4, 4, 8>}]} {
    %cst = arith.constant 0.000000e+00 : f32
    %0 = vector.broadcast %cst : f32 to vector<16x8xf32>
    %c0 = arith.constant 0 : index
    %c0_0 = arith.constant 0 : index
    %c0_1 = arith.constant 0 : index
    %c0_2 = arith.constant 0 : index
    %1 = vector.load %arg1[%c0, %c0_0, %c0_1, %c0_2] : memref<1x6x6x4xf32, #tpu.memory_space<vmem>>, vector<1x6x6x4xf32>
    %2 = vector.shape_cast %1 : vector<1x6x6x4xf32> to vector<6x6x4xf32>
    %3 = vector.extract_strided_slice %2 {offsets = [0, 0, 0], sizes = [4, 4, 4], strides = [1, 1, 1]} : vector<6x6x4xf32> to vector<4x4x4xf32>
    %4 = vector.shape_cast %3 : vector<4x4x4xf32> to vector<16x4xf32>
    %c0_3 = arith.constant 0 : index
    %c0_4 = arith.constant 0 : index
    %c0_5 = arith.constant 0 : index
    %5 = vector.load %arg2[%c0_3, %c0_4, %c0_5] : memref<9x4x8xf32, #tpu.memory_space<vmem>>, vector<1x4x8xf32>
    %6 = vector.shape_cast %5 : vector<1x4x8xf32> to vector<4x8xf32>
    %cst_6 = arith.constant dense<0.000000e+00> : vector<16x8xf32>
    %7 = tpu.matmul %4, %6, %cst_6 {dimension_numbers = #tpu.dot_dimension_numbers<[1], [0], [0], [1], [0, 0, 1, 1], [], []>} : vector<16x4xf32>, vector<4x8xf32>, vector<16x8xf32> -> vector<16x8xf32>
    %8 = arith.addf %0, %7 : vector<16x8xf32>
    %9 = vector.extract_strided_slice %2 {offsets = [0, 1, 0], sizes = [4, 4, 4], strides = [1, 1, 1]} : vector<6x6x4xf32> to vector<4x4x4xf32>
    %10 = vector.shape_cast %9 : vector<4x4x4xf32> to vector<16x4xf32>
    %c1 = arith.constant 1 : index
    %c0_7 = arith.constant 0 : index
    %c0_8 = arith.constant 0 : index
    %11 = vector.load %arg2[%c1, %c0_7, %c0_8] : memref<9x4x8xf32, #tpu.memory_space<vmem>>, vector<1x4x8xf32>
    %12 = vector.shape_cast %11 : vector<1x4x8xf32> to vector<4x8xf32>
    %cst_9 = arith.constant dense<0.000000e+00> : vector<16x8xf32>
    %13 = tpu.matmul %10, %12, %cst_9 {dimension_numbers = #tpu.dot_dimension_numbers<[1], [0], [0], [1], [0, 0, 1, 1], [], []>} : vector<16x4xf32>, vector<4x8xf32>, vector<16x8xf32> -> vector<16x8xf32>
    %14 = arith.addf %8, %13 : vector<16x8xf32>
    %15 = vector.extract_strided_slice %2 {offsets = [0, 2, 0], sizes = [4, 4, 4], strides = [1, 1, 1]} : vector<6x6x4xf32> to vector<4x4x4xf32>
    %16 = vector.shape_cast %15 : vector<4x4x4xf32> to vector<16x4xf32>
    %c2 = arith.constant 2 : index
    %c0_10 = arith.constant 0 : index
    %c0_11 = arith.constant 0 : index
    %17 = vector.load %arg2[%c2, %c0_10, %c0_11] : memref<9x4x8xf32, #tpu.memory_space<vmem>>, vector<1x4x8xf32>
    %18 = vector.shape_cast %17 : vector<1x4x8xf32> to vector<4x8xf32>
    %cst_12 = arith.constant dense<0.000000e+00> : vector<16x8xf32>
    %19 = tpu.matmul %16, %18, %cst_12 {dimension_numbers = #tpu.dot_dimension_numbers<[1], [0], [0], [1], [0, 0, 1, 1], [], []>} : vector<16x4xf32>, vector<4x8xf32>, vector<16x8xf32> -> vector<16x8xf32>
    %20 = arith.addf %14, %19 : vector<16x8xf32>
    %21 = vector.extract_strided_slice %2 {offsets = [1, 0, 0], sizes = [4, 4, 4], strides = [1, 1, 1]} : vector<6x6x4xf32> to vector<4x4x4xf32>
    %22 = vector.shape_cast %21 : vector<4x4x4xf32> to vector<16x4xf32>
    %c3 = arith.constant 3 : index
    %c0_13 = arith.constant 0 : index
    %c0_14 = arith.constant 0 : index
    %23 = vector.load %arg2[%c3, %c0_13, %c0_14] : memref<9x4x8xf32, #tpu.memory_space<vmem>>, vector<1x4x8xf32>
    %24 = vector.shape_cast %23 : vector<1x4x8xf32> to vector<4x8xf32>
    %cst_15 = arith.constant dense<0.000000e+00> : vector<16x8xf32>
    %25 = tpu.matmul %22, %24, %cst_15 {dimension_numbers = #tpu.dot_dimension_numbers<[1], [0], [0], [1], [0, 0, 1, 1], [], []>} : vector<16x4xf32>, vector<4x8xf32>, vector<16x8xf32> -> vector<16x8xf32>
    %26 = arith.addf %20, %25 : vector<16x8xf32>
    %27 = vector.extract_strided_slice %2 {offsets = [1, 1, 0], sizes = [4, 4, 4], strides = [1, 1, 1]} : vector<6x6x4xf32> to vector<4x4x4xf32>
    %28 = vector.shape_cast %27 : vector<4x4x4xf32> to vector<16x4xf32>
    %c4 = arith.constant 4 : index
    %c0_16 = arith.constant 0 : index
    %c0_17 = arith.constant 0 : index
    %29 = vector.load %arg2[%c4, %c0_16, %c0_17] : memref<9x4x8xf32, #tpu.memory_space<vmem>>, vector<1x4x8xf32>
    %30 = vector.shape_cast %29 : vector<1x4x8xf32> to vector<4x8xf32>
    %cst_18 = arith.constant dense<0.000000e+00> : vector<16x8xf32>
    %31 = tpu.matmul %28, %30, %cst_18 {dimension_numbers = #tpu.dot_dimension_numbers<[1], [0], [0], [1], [0, 0, 1, 1], [], []>} : vector<16x4xf32>, vector<4x8xf32>, vector<16x8xf32> -> vector<16x8xf32>
    %32 = arith.addf %26, %31 : vector<16x8xf32>
    %33 = vector.extract_strided_slice %2 {offsets = [1, 2, 0], sizes = [4, 4, 4], strides = [1, 1, 1]} : vector<6x6x4xf32> to vector<4x4x4xf32>
    %34 = vector.shape_cast %33 : vector<4x4x4xf32> to vector<16x4xf32>
    %c5 = arith.constant 5 : index
    %c0_19 = arith.constant 0 : index
    %c0_20 = arith.constant 0 : index
    %35 = vector.load %arg2[%c5, %c0_19, %c0_20] : memref<9x4x8xf32, #tpu.memory_space<vmem>>, vector<1x4x8xf32>
    %36 = vector.shape_cast %35 : vector<1x4x8xf32> to vector<4x8xf32>
    %cst_21 = arith.constant dense<0.000000e+00> : vector<16x8xf32>
    %37 = tpu.matmul %34, %36, %cst_21 {dimension_numbers = #tpu.dot_dimension_numbers<[1], [0], [0], [1], [0, 0, 1, 1], [], []>} : vector<16x4xf32>, vector<4x8xf32>, vector<16x8xf32> -> vector<16x8xf32>
    %38 = arith.addf %32, %37 : vector<16x8xf32>
    %39 = vector.extract_strided_slice %2 {offsets = [2, 0, 0], sizes = [4, 4, 4], strides = [1, 1, 1]} : vector<6x6x4xf32> to vector<4x4x4xf32>
    %40 = vector.shape_cast %39 : vector<4x4x4xf32> to vector<16x4xf32>
    %c6 = arith.constant 6 : index
    %c0_22 = arith.constant 0 : index
    %c0_23 = arith.constant 0 : index
    %41 = vector.load %arg2[%c6, %c0_22, %c0_23] : memref<9x4x8xf32, #tpu.memory_space<vmem>>, vector<1x4x8xf32>
    %42 = vector.shape_cast %41 : vector<1x4x8xf32> to vector<4x8xf32>
    %cst_24 = arith.constant dense<0.000000e+00> : vector<16x8xf32>
    %43 = tpu.matmul %40, %42, %cst_24 {dimension_numbers = #tpu.dot_dimension_numbers<[1], [0], [0], [1], [0, 0, 1, 1], [], []>} : vector<16x4xf32>, vector<4x8xf32>, vector<16x8xf32> -> vector<16x8xf32>
    %44 = arith.addf %38, %43 : vector<16x8xf32>
    %45 = vector.extract_strided_slice %2 {offsets = [2, 1, 0], sizes = [4, 4, 4], strides = [1, 1, 1]} : vector<6x6x4xf32> to vector<4x4x4xf32>
    %46 = vector.shape_cast %45 : vector<4x4x4xf32> to vector<16x4xf32>
    %c7 = arith.constant 7 : index
    %c0_25 = arith.constant 0 : index
    %c0_26 = arith.constant 0 : index
    %47 = vector.load %arg2[%c7, %c0_25, %c0_26] : memref<9x4x8xf32, #tpu.memory_space<vmem>>, vector<1x4x8xf32>
    %48 = vector.shape_cast %47 : vector<1x4x8xf32> to vector<4x8xf32>
    %cst_27 = arith.constant dense<0.000000e+00> : vector<16x8xf32>
    %49 = tpu.matmul %46, %48, %cst_27 {dimension_numbers = #tpu.dot_dimension_numbers<[1], [0], [0], [1], [0, 0, 1, 1], [], []>} : vector<16x4xf32>, vector<4x8xf32>, vector<16x8xf32> -> vector<16x8xf32>
    %50 = arith.addf %44, %49 : vector<16x8xf32>
    %51 = vector.extract_strided_slice %2 {offsets = [2, 2, 0], sizes = [4, 4, 4], strides = [1, 1, 1]} : vector<6x6x4xf32> to vector<4x4x4xf32>
    %52 = vector.shape_cast %51 : vector<4x4x4xf32> to vector<16x4xf32>
    %c8 = arith.constant 8 : index
    %c0_28 = arith.constant 0 : index
    %c0_29 = arith.constant 0 : index
    %53 = vector.load %arg2[%c8, %c0_28, %c0_29] : memref<9x4x8xf32, #tpu.memory_space<vmem>>, vector<1x4x8xf32>
    %54 = vector.shape_cast %53 : vector<1x4x8xf32> to vector<4x8xf32>
    %cst_30 = arith.constant dense<0.000000e+00> : vector<16x8xf32>
    %55 = tpu.matmul %52, %54, %cst_30 {dimension_numbers = #tpu.dot_dimension_numbers<[1], [0], [0], [1], [0, 0, 1, 1], [], []>} : vector<16x4xf32>, vector<4x8xf32>, vector<16x8xf32> -> vector<16x8xf32>
    %56 = arith.addf %50, %55 : vector<16x8xf32>
    %c0_31 = arith.constant 0 : index
    %c0_32 = arith.constant 0 : index
    %57 = vector.load %arg3[%c0_31, %c0_32] : memref<1x8xf32, #tpu.memory_space<vmem>>, vector<1x8xf32>
    %58 = vector.broadcast %57 : vector<1x8xf32> to vector<16x8xf32>
    %59 = arith.mulf %56, %58 : vector<16x8xf32>
    %c0_33 = arith.constant 0 : index
    %c0_34 = arith.constant 0 : index
    %60 = vector.load %arg4[%c0_33, %c0_34] : memref<1x8xf32, #tpu.memory_space<vmem>>, vector<1x8xf32>
    %61 = vector.broadcast %60 : vector<1x8xf32> to vector<16x8xf32>
    %62 = arith.addf %59, %61 : vector<16x8xf32>
    %63 = vector.shape_cast %62 : vector<16x8xf32> to vector<4x4x8xf32>
    %c0_35 = arith.constant 0 : index
    %c0_36 = arith.constant 0 : index
    %c0_37 = arith.constant 0 : index
    %c0_38 = arith.constant 0 : index
    %64 = vector.load %arg5[%c0_35, %c0_36, %c0_37, %c0_38] : memref<1x4x4x8xf32, #tpu.memory_space<vmem>>, vector<1x4x4x8xf32>
    %65 = vector.shape_cast %64 : vector<1x4x4x8xf32> to vector<4x4x8xf32>
    %66 = vector.shape_cast %63 : vector<4x4x8xf32> to vector<1x4x4x8xf32>
    tpu.vector_store %arg5[%c0_35, %c0_36, %c0_37, %c0_38], %66 {strides = array<i32>} : memref<1x4x4x8xf32, #tpu.memory_space<vmem>>, vector<1x4x4x8xf32>,
    return
  }
  func.func @transform_0(%arg0: i32) -> (i32, i32, i32, i32) {
    %c0_i32 = arith.constant 0 : i32
    %c0_i32_0 = arith.constant 0 : i32
    %c0_i32_1 = arith.constant 0 : i32
    %c0_i32_2 = arith.constant 0 : i32
    return %arg0, %c0_i32, %c0_i32_0, %c0_i32_1 : i32, i32, i32, i32
  }
  func.func @transform_1(%arg0: i32) -> (i32, i32, i32) {
    %c0_i32 = arith.constant 0 : i32
    %c0_i32_0 = arith.constant 0 : i32
    %c0_i32_1 = arith.constant 0 : i32
    %c0_i32_2 = arith.constant 0 : i32
    return %c0_i32, %c0_i32_0, %c0_i32_1 : i32, i32, i32
  }
  func.func @transform_2(%arg0: i32) -> (i32, i32) {
    %c0_i32 = arith.constant 0 : i32
    %c0_i32_0 = arith.constant 0 : i32
    %c0_i32_1 = arith.constant 0 : i32
    return %c0_i32, %c0_i32_0 : i32, i32
  }
  func.func @transform_3(%arg0: i32) -> (i32, i32) {
    %c0_i32 = arith.constant 0 : i32
    %c0_i32_0 = arith.constant 0 : i32
    %c0_i32_1 = arith.constant 0 : i32
    return %c0_i32, %c0_i32_0 : i32, i32
  }
  func.func @transform_4(%arg0: i32) -> (i32, i32, i32, i32) {
    %c0_i32 = arith.constant 0 : i32
    %c0_i32_0 = arith.constant 0 : i32
    %c0_i32_1 = arith.constant 0 : i32
    %c0_i32_2 = arith.constant 0 : i32
    return %arg0, %c0_i32, %c0_i32_0, %c0_i32_1 : i32, i32, i32, i32
  }
}

module attributes {stable_mosaic.version = 11 : i64} {
  func.func @_conv3x3_kernel(%arg0: i32, %arg1: memref<1x10x10x8xf32, #tpu.memory_space<vmem>>, %arg2: memref<1x10x10x8xf32, #tpu.memory_space<vmem>>, %arg3: memref<18x8x8xf32, #tpu.memory_space<vmem>>, %arg4: memref<1x8xf32, #tpu.memory_space<vmem>>, %arg5: memref<1x8xf32, #tpu.memory_space<vmem>>, %arg6: memref<1x8x8x8xf32, #tpu.memory_space<vmem>>) attributes {dimension_semantics = [#tpu.dimension_semantics<parallel>], iteration_bounds = array<i64: 2>, scalar_prefetch = 0 : i64, scratch_operands = 0 : i64, tpu.core_type = #tpu.core_type<tc>, window_params = [{transform_indices = @transform_0, window_bounds = array<i64: 1, 10, 10, 8>}, {transform_indices = @transform_1, window_bounds = array<i64: 1, 10, 10, 8>}, {pipeline_mode = #tpu.pipeline_mode<synchronous>, transform_indices = @transform_2, window_bounds = array<i64: 18, 8, 8>}, {pipeline_mode = #tpu.pipeline_mode<synchronous>, transform_indices = @transform_3, window_bounds = array<i64: 1, 8>}, {pipeline_mode = #tpu.pipeline_mode<synchronous>, transform_indices = @transform_4, window_bounds = array<i64: 1, 8>}, {transform_indices = @transform_5, window_bounds = array<i64: 1, 8, 8, 8>}]} {
    %cst = arith.constant 0.000000e+00 : f32
    %0 = vector.broadcast %cst : f32 to vector<64x8xf32>
    %c0 = arith.constant 0 : index
    %c0_0 = arith.constant 0 : index
    %c0_1 = arith.constant 0 : index
    %c0_2 = arith.constant 0 : index
    %1 = vector.load %arg1[%c0, %c0_0, %c0_1, %c0_2] : memref<1x10x10x8xf32, #tpu.memory_space<vmem>>, vector<1x10x10x8xf32>
    %2 = vector.shape_cast %1 : vector<1x10x10x8xf32> to vector<10x10x8xf32>
    %3 = vector.extract_strided_slice %2 {offsets = [0, 0, 0], sizes = [8, 8, 8], strides = [1, 1, 1]} : vector<10x10x8xf32> to vector<8x8x8xf32>
    %4 = vector.shape_cast %3 : vector<8x8x8xf32> to vector<64x8xf32>
    %c0_3 = arith.constant 0 : index
    %c0_4 = arith.constant 0 : index
    %c0_5 = arith.constant 0 : index
    %5 = vector.load %arg3[%c0_3, %c0_4, %c0_5] : memref<18x8x8xf32, #tpu.memory_space<vmem>>, vector<1x8x8xf32>
    %6 = vector.shape_cast %5 : vector<1x8x8xf32> to vector<8x8xf32>
    %cst_6 = arith.constant dense<0.000000e+00> : vector<64x8xf32>
    %7 = tpu.matmul %4, %6, %cst_6 {dimension_numbers = #tpu.dot_dimension_numbers<[1], [0], [0], [1], [0, 0, 1, 1], [], []>} : vector<64x8xf32>, vector<8x8xf32>, vector<64x8xf32> -> vector<64x8xf32>
    %8 = arith.addf %0, %7 : vector<64x8xf32>
    %9 = vector.extract_strided_slice %2 {offsets = [0, 1, 0], sizes = [8, 8, 8], strides = [1, 1, 1]} : vector<10x10x8xf32> to vector<8x8x8xf32>
    %10 = vector.shape_cast %9 : vector<8x8x8xf32> to vector<64x8xf32>
    %c1 = arith.constant 1 : index
    %c0_7 = arith.constant 0 : index
    %c0_8 = arith.constant 0 : index
    %11 = vector.load %arg3[%c1, %c0_7, %c0_8] : memref<18x8x8xf32, #tpu.memory_space<vmem>>, vector<1x8x8xf32>
    %12 = vector.shape_cast %11 : vector<1x8x8xf32> to vector<8x8xf32>
    %cst_9 = arith.constant dense<0.000000e+00> : vector<64x8xf32>
    %13 = tpu.matmul %10, %12, %cst_9 {dimension_numbers = #tpu.dot_dimension_numbers<[1], [0], [0], [1], [0, 0, 1, 1], [], []>} : vector<64x8xf32>, vector<8x8xf32>, vector<64x8xf32> -> vector<64x8xf32>
    %14 = arith.addf %8, %13 : vector<64x8xf32>
    %15 = vector.extract_strided_slice %2 {offsets = [0, 2, 0], sizes = [8, 8, 8], strides = [1, 1, 1]} : vector<10x10x8xf32> to vector<8x8x8xf32>
    %16 = vector.shape_cast %15 : vector<8x8x8xf32> to vector<64x8xf32>
    %c2 = arith.constant 2 : index
    %c0_10 = arith.constant 0 : index
    %c0_11 = arith.constant 0 : index
    %17 = vector.load %arg3[%c2, %c0_10, %c0_11] : memref<18x8x8xf32, #tpu.memory_space<vmem>>, vector<1x8x8xf32>
    %18 = vector.shape_cast %17 : vector<1x8x8xf32> to vector<8x8xf32>
    %cst_12 = arith.constant dense<0.000000e+00> : vector<64x8xf32>
    %19 = tpu.matmul %16, %18, %cst_12 {dimension_numbers = #tpu.dot_dimension_numbers<[1], [0], [0], [1], [0, 0, 1, 1], [], []>} : vector<64x8xf32>, vector<8x8xf32>, vector<64x8xf32> -> vector<64x8xf32>
    %20 = arith.addf %14, %19 : vector<64x8xf32>
    %21 = vector.extract_strided_slice %2 {offsets = [1, 0, 0], sizes = [8, 8, 8], strides = [1, 1, 1]} : vector<10x10x8xf32> to vector<8x8x8xf32>
    %22 = vector.shape_cast %21 : vector<8x8x8xf32> to vector<64x8xf32>
    %c3 = arith.constant 3 : index
    %c0_13 = arith.constant 0 : index
    %c0_14 = arith.constant 0 : index
    %23 = vector.load %arg3[%c3, %c0_13, %c0_14] : memref<18x8x8xf32, #tpu.memory_space<vmem>>, vector<1x8x8xf32>
    %24 = vector.shape_cast %23 : vector<1x8x8xf32> to vector<8x8xf32>
    %cst_15 = arith.constant dense<0.000000e+00> : vector<64x8xf32>
    %25 = tpu.matmul %22, %24, %cst_15 {dimension_numbers = #tpu.dot_dimension_numbers<[1], [0], [0], [1], [0, 0, 1, 1], [], []>} : vector<64x8xf32>, vector<8x8xf32>, vector<64x8xf32> -> vector<64x8xf32>
    %26 = arith.addf %20, %25 : vector<64x8xf32>
    %27 = vector.extract_strided_slice %2 {offsets = [1, 1, 0], sizes = [8, 8, 8], strides = [1, 1, 1]} : vector<10x10x8xf32> to vector<8x8x8xf32>
    %28 = vector.shape_cast %27 : vector<8x8x8xf32> to vector<64x8xf32>
    %c4 = arith.constant 4 : index
    %c0_16 = arith.constant 0 : index
    %c0_17 = arith.constant 0 : index
    %29 = vector.load %arg3[%c4, %c0_16, %c0_17] : memref<18x8x8xf32, #tpu.memory_space<vmem>>, vector<1x8x8xf32>
    %30 = vector.shape_cast %29 : vector<1x8x8xf32> to vector<8x8xf32>
    %cst_18 = arith.constant dense<0.000000e+00> : vector<64x8xf32>
    %31 = tpu.matmul %28, %30, %cst_18 {dimension_numbers = #tpu.dot_dimension_numbers<[1], [0], [0], [1], [0, 0, 1, 1], [], []>} : vector<64x8xf32>, vector<8x8xf32>, vector<64x8xf32> -> vector<64x8xf32>
    %32 = arith.addf %26, %31 : vector<64x8xf32>
    %33 = vector.extract_strided_slice %2 {offsets = [1, 2, 0], sizes = [8, 8, 8], strides = [1, 1, 1]} : vector<10x10x8xf32> to vector<8x8x8xf32>
    %34 = vector.shape_cast %33 : vector<8x8x8xf32> to vector<64x8xf32>
    %c5 = arith.constant 5 : index
    %c0_19 = arith.constant 0 : index
    %c0_20 = arith.constant 0 : index
    %35 = vector.load %arg3[%c5, %c0_19, %c0_20] : memref<18x8x8xf32, #tpu.memory_space<vmem>>, vector<1x8x8xf32>
    %36 = vector.shape_cast %35 : vector<1x8x8xf32> to vector<8x8xf32>
    %cst_21 = arith.constant dense<0.000000e+00> : vector<64x8xf32>
    %37 = tpu.matmul %34, %36, %cst_21 {dimension_numbers = #tpu.dot_dimension_numbers<[1], [0], [0], [1], [0, 0, 1, 1], [], []>} : vector<64x8xf32>, vector<8x8xf32>, vector<64x8xf32> -> vector<64x8xf32>
    %38 = arith.addf %32, %37 : vector<64x8xf32>
    %39 = vector.extract_strided_slice %2 {offsets = [2, 0, 0], sizes = [8, 8, 8], strides = [1, 1, 1]} : vector<10x10x8xf32> to vector<8x8x8xf32>
    %40 = vector.shape_cast %39 : vector<8x8x8xf32> to vector<64x8xf32>
    %c6 = arith.constant 6 : index
    %c0_22 = arith.constant 0 : index
    %c0_23 = arith.constant 0 : index
    %41 = vector.load %arg3[%c6, %c0_22, %c0_23] : memref<18x8x8xf32, #tpu.memory_space<vmem>>, vector<1x8x8xf32>
    %42 = vector.shape_cast %41 : vector<1x8x8xf32> to vector<8x8xf32>
    %cst_24 = arith.constant dense<0.000000e+00> : vector<64x8xf32>
    %43 = tpu.matmul %40, %42, %cst_24 {dimension_numbers = #tpu.dot_dimension_numbers<[1], [0], [0], [1], [0, 0, 1, 1], [], []>} : vector<64x8xf32>, vector<8x8xf32>, vector<64x8xf32> -> vector<64x8xf32>
    %44 = arith.addf %38, %43 : vector<64x8xf32>
    %45 = vector.extract_strided_slice %2 {offsets = [2, 1, 0], sizes = [8, 8, 8], strides = [1, 1, 1]} : vector<10x10x8xf32> to vector<8x8x8xf32>
    %46 = vector.shape_cast %45 : vector<8x8x8xf32> to vector<64x8xf32>
    %c7 = arith.constant 7 : index
    %c0_25 = arith.constant 0 : index
    %c0_26 = arith.constant 0 : index
    %47 = vector.load %arg3[%c7, %c0_25, %c0_26] : memref<18x8x8xf32, #tpu.memory_space<vmem>>, vector<1x8x8xf32>
    %48 = vector.shape_cast %47 : vector<1x8x8xf32> to vector<8x8xf32>
    %cst_27 = arith.constant dense<0.000000e+00> : vector<64x8xf32>
    %49 = tpu.matmul %46, %48, %cst_27 {dimension_numbers = #tpu.dot_dimension_numbers<[1], [0], [0], [1], [0, 0, 1, 1], [], []>} : vector<64x8xf32>, vector<8x8xf32>, vector<64x8xf32> -> vector<64x8xf32>
    %50 = arith.addf %44, %49 : vector<64x8xf32>
    %51 = vector.extract_strided_slice %2 {offsets = [2, 2, 0], sizes = [8, 8, 8], strides = [1, 1, 1]} : vector<10x10x8xf32> to vector<8x8x8xf32>
    %52 = vector.shape_cast %51 : vector<8x8x8xf32> to vector<64x8xf32>
    %c8 = arith.constant 8 : index
    %c0_28 = arith.constant 0 : index
    %c0_29 = arith.constant 0 : index
    %53 = vector.load %arg3[%c8, %c0_28, %c0_29] : memref<18x8x8xf32, #tpu.memory_space<vmem>>, vector<1x8x8xf32>
    %54 = vector.shape_cast %53 : vector<1x8x8xf32> to vector<8x8xf32>
    %cst_30 = arith.constant dense<0.000000e+00> : vector<64x8xf32>
    %55 = tpu.matmul %52, %54, %cst_30 {dimension_numbers = #tpu.dot_dimension_numbers<[1], [0], [0], [1], [0, 0, 1, 1], [], []>} : vector<64x8xf32>, vector<8x8xf32>, vector<64x8xf32> -> vector<64x8xf32>
    %56 = arith.addf %50, %55 : vector<64x8xf32>
    %c0_31 = arith.constant 0 : index
    %c0_32 = arith.constant 0 : index
    %c0_33 = arith.constant 0 : index
    %c0_34 = arith.constant 0 : index
    %57 = vector.load %arg2[%c0_31, %c0_32, %c0_33, %c0_34] : memref<1x10x10x8xf32, #tpu.memory_space<vmem>>, vector<1x10x10x8xf32>
    %58 = vector.shape_cast %57 : vector<1x10x10x8xf32> to vector<10x10x8xf32>
    %59 = vector.extract_strided_slice %58 {offsets = [0, 0, 0], sizes = [8, 8, 8], strides = [1, 1, 1]} : vector<10x10x8xf32> to vector<8x8x8xf32>
    %60 = vector.shape_cast %59 : vector<8x8x8xf32> to vector<64x8xf32>
    %c9 = arith.constant 9 : index
    %c0_35 = arith.constant 0 : index
    %c0_36 = arith.constant 0 : index
    %61 = vector.load %arg3[%c9, %c0_35, %c0_36] : memref<18x8x8xf32, #tpu.memory_space<vmem>>, vector<1x8x8xf32>
    %62 = vector.shape_cast %61 : vector<1x8x8xf32> to vector<8x8xf32>
    %cst_37 = arith.constant dense<0.000000e+00> : vector<64x8xf32>
    %63 = tpu.matmul %60, %62, %cst_37 {dimension_numbers = #tpu.dot_dimension_numbers<[1], [0], [0], [1], [0, 0, 1, 1], [], []>} : vector<64x8xf32>, vector<8x8xf32>, vector<64x8xf32> -> vector<64x8xf32>
    %64 = arith.addf %56, %63 : vector<64x8xf32>
    %65 = vector.extract_strided_slice %58 {offsets = [0, 1, 0], sizes = [8, 8, 8], strides = [1, 1, 1]} : vector<10x10x8xf32> to vector<8x8x8xf32>
    %66 = vector.shape_cast %65 : vector<8x8x8xf32> to vector<64x8xf32>
    %c10 = arith.constant 10 : index
    %c0_38 = arith.constant 0 : index
    %c0_39 = arith.constant 0 : index
    %67 = vector.load %arg3[%c10, %c0_38, %c0_39] : memref<18x8x8xf32, #tpu.memory_space<vmem>>, vector<1x8x8xf32>
    %68 = vector.shape_cast %67 : vector<1x8x8xf32> to vector<8x8xf32>
    %cst_40 = arith.constant dense<0.000000e+00> : vector<64x8xf32>
    %69 = tpu.matmul %66, %68, %cst_40 {dimension_numbers = #tpu.dot_dimension_numbers<[1], [0], [0], [1], [0, 0, 1, 1], [], []>} : vector<64x8xf32>, vector<8x8xf32>, vector<64x8xf32> -> vector<64x8xf32>
    %70 = arith.addf %64, %69 : vector<64x8xf32>
    %71 = vector.extract_strided_slice %58 {offsets = [0, 2, 0], sizes = [8, 8, 8], strides = [1, 1, 1]} : vector<10x10x8xf32> to vector<8x8x8xf32>
    %72 = vector.shape_cast %71 : vector<8x8x8xf32> to vector<64x8xf32>
    %c11 = arith.constant 11 : index
    %c0_41 = arith.constant 0 : index
    %c0_42 = arith.constant 0 : index
    %73 = vector.load %arg3[%c11, %c0_41, %c0_42] : memref<18x8x8xf32, #tpu.memory_space<vmem>>, vector<1x8x8xf32>
    %74 = vector.shape_cast %73 : vector<1x8x8xf32> to vector<8x8xf32>
    %cst_43 = arith.constant dense<0.000000e+00> : vector<64x8xf32>
    %75 = tpu.matmul %72, %74, %cst_43 {dimension_numbers = #tpu.dot_dimension_numbers<[1], [0], [0], [1], [0, 0, 1, 1], [], []>} : vector<64x8xf32>, vector<8x8xf32>, vector<64x8xf32> -> vector<64x8xf32>
    %76 = arith.addf %70, %75 : vector<64x8xf32>
    %77 = vector.extract_strided_slice %58 {offsets = [1, 0, 0], sizes = [8, 8, 8], strides = [1, 1, 1]} : vector<10x10x8xf32> to vector<8x8x8xf32>
    %78 = vector.shape_cast %77 : vector<8x8x8xf32> to vector<64x8xf32>
    %c12 = arith.constant 12 : index
    %c0_44 = arith.constant 0 : index
    %c0_45 = arith.constant 0 : index
    %79 = vector.load %arg3[%c12, %c0_44, %c0_45] : memref<18x8x8xf32, #tpu.memory_space<vmem>>, vector<1x8x8xf32>
    %80 = vector.shape_cast %79 : vector<1x8x8xf32> to vector<8x8xf32>
    %cst_46 = arith.constant dense<0.000000e+00> : vector<64x8xf32>
    %81 = tpu.matmul %78, %80, %cst_46 {dimension_numbers = #tpu.dot_dimension_numbers<[1], [0], [0], [1], [0, 0, 1, 1], [], []>} : vector<64x8xf32>, vector<8x8xf32>, vector<64x8xf32> -> vector<64x8xf32>
    %82 = arith.addf %76, %81 : vector<64x8xf32>
    %83 = vector.extract_strided_slice %58 {offsets = [1, 1, 0], sizes = [8, 8, 8], strides = [1, 1, 1]} : vector<10x10x8xf32> to vector<8x8x8xf32>
    %84 = vector.shape_cast %83 : vector<8x8x8xf32> to vector<64x8xf32>
    %c13 = arith.constant 13 : index
    %c0_47 = arith.constant 0 : index
    %c0_48 = arith.constant 0 : index
    %85 = vector.load %arg3[%c13, %c0_47, %c0_48] : memref<18x8x8xf32, #tpu.memory_space<vmem>>, vector<1x8x8xf32>
    %86 = vector.shape_cast %85 : vector<1x8x8xf32> to vector<8x8xf32>
    %cst_49 = arith.constant dense<0.000000e+00> : vector<64x8xf32>
    %87 = tpu.matmul %84, %86, %cst_49 {dimension_numbers = #tpu.dot_dimension_numbers<[1], [0], [0], [1], [0, 0, 1, 1], [], []>} : vector<64x8xf32>, vector<8x8xf32>, vector<64x8xf32> -> vector<64x8xf32>
    %88 = arith.addf %82, %87 : vector<64x8xf32>
    %89 = vector.extract_strided_slice %58 {offsets = [1, 2, 0], sizes = [8, 8, 8], strides = [1, 1, 1]} : vector<10x10x8xf32> to vector<8x8x8xf32>
    %90 = vector.shape_cast %89 : vector<8x8x8xf32> to vector<64x8xf32>
    %c14 = arith.constant 14 : index
    %c0_50 = arith.constant 0 : index
    %c0_51 = arith.constant 0 : index
    %91 = vector.load %arg3[%c14, %c0_50, %c0_51] : memref<18x8x8xf32, #tpu.memory_space<vmem>>, vector<1x8x8xf32>
    %92 = vector.shape_cast %91 : vector<1x8x8xf32> to vector<8x8xf32>
    %cst_52 = arith.constant dense<0.000000e+00> : vector<64x8xf32>
    %93 = tpu.matmul %90, %92, %cst_52 {dimension_numbers = #tpu.dot_dimension_numbers<[1], [0], [0], [1], [0, 0, 1, 1], [], []>} : vector<64x8xf32>, vector<8x8xf32>, vector<64x8xf32> -> vector<64x8xf32>
    %94 = arith.addf %88, %93 : vector<64x8xf32>
    %95 = vector.extract_strided_slice %58 {offsets = [2, 0, 0], sizes = [8, 8, 8], strides = [1, 1, 1]} : vector<10x10x8xf32> to vector<8x8x8xf32>
    %96 = vector.shape_cast %95 : vector<8x8x8xf32> to vector<64x8xf32>
    %c15 = arith.constant 15 : index
    %c0_53 = arith.constant 0 : index
    %c0_54 = arith.constant 0 : index
    %97 = vector.load %arg3[%c15, %c0_53, %c0_54] : memref<18x8x8xf32, #tpu.memory_space<vmem>>, vector<1x8x8xf32>
    %98 = vector.shape_cast %97 : vector<1x8x8xf32> to vector<8x8xf32>
    %cst_55 = arith.constant dense<0.000000e+00> : vector<64x8xf32>
    %99 = tpu.matmul %96, %98, %cst_55 {dimension_numbers = #tpu.dot_dimension_numbers<[1], [0], [0], [1], [0, 0, 1, 1], [], []>} : vector<64x8xf32>, vector<8x8xf32>, vector<64x8xf32> -> vector<64x8xf32>
    %100 = arith.addf %94, %99 : vector<64x8xf32>
    %101 = vector.extract_strided_slice %58 {offsets = [2, 1, 0], sizes = [8, 8, 8], strides = [1, 1, 1]} : vector<10x10x8xf32> to vector<8x8x8xf32>
    %102 = vector.shape_cast %101 : vector<8x8x8xf32> to vector<64x8xf32>
    %c16 = arith.constant 16 : index
    %c0_56 = arith.constant 0 : index
    %c0_57 = arith.constant 0 : index
    %103 = vector.load %arg3[%c16, %c0_56, %c0_57] : memref<18x8x8xf32, #tpu.memory_space<vmem>>, vector<1x8x8xf32>
    %104 = vector.shape_cast %103 : vector<1x8x8xf32> to vector<8x8xf32>
    %cst_58 = arith.constant dense<0.000000e+00> : vector<64x8xf32>
    %105 = tpu.matmul %102, %104, %cst_58 {dimension_numbers = #tpu.dot_dimension_numbers<[1], [0], [0], [1], [0, 0, 1, 1], [], []>} : vector<64x8xf32>, vector<8x8xf32>, vector<64x8xf32> -> vector<64x8xf32>
    %106 = arith.addf %100, %105 : vector<64x8xf32>
    %107 = vector.extract_strided_slice %58 {offsets = [2, 2, 0], sizes = [8, 8, 8], strides = [1, 1, 1]} : vector<10x10x8xf32> to vector<8x8x8xf32>
    %108 = vector.shape_cast %107 : vector<8x8x8xf32> to vector<64x8xf32>
    %c17 = arith.constant 17 : index
    %c0_59 = arith.constant 0 : index
    %c0_60 = arith.constant 0 : index
    %109 = vector.load %arg3[%c17, %c0_59, %c0_60] : memref<18x8x8xf32, #tpu.memory_space<vmem>>, vector<1x8x8xf32>
    %110 = vector.shape_cast %109 : vector<1x8x8xf32> to vector<8x8xf32>
    %cst_61 = arith.constant dense<0.000000e+00> : vector<64x8xf32>
    %111 = tpu.matmul %108, %110, %cst_61 {dimension_numbers = #tpu.dot_dimension_numbers<[1], [0], [0], [1], [0, 0, 1, 1], [], []>} : vector<64x8xf32>, vector<8x8xf32>, vector<64x8xf32> -> vector<64x8xf32>
    %112 = arith.addf %106, %111 : vector<64x8xf32>
    %c0_62 = arith.constant 0 : index
    %c0_63 = arith.constant 0 : index
    %113 = vector.load %arg4[%c0_62, %c0_63] : memref<1x8xf32, #tpu.memory_space<vmem>>, vector<1x8xf32>
    %114 = vector.broadcast %113 : vector<1x8xf32> to vector<64x8xf32>
    %115 = arith.mulf %112, %114 : vector<64x8xf32>
    %c0_64 = arith.constant 0 : index
    %c0_65 = arith.constant 0 : index
    %116 = vector.load %arg5[%c0_64, %c0_65] : memref<1x8xf32, #tpu.memory_space<vmem>>, vector<1x8xf32>
    %117 = vector.broadcast %116 : vector<1x8xf32> to vector<64x8xf32>
    %118 = arith.addf %115, %117 : vector<64x8xf32>
    %cst_66 = arith.constant 0.000000e+00 : f32
    %119 = vector.broadcast %cst_66 : f32 to vector<64x8xf32>
    %120 = arith.maximumf %118, %119 : vector<64x8xf32>
    %121 = vector.shape_cast %120 : vector<64x8xf32> to vector<8x8x8xf32>
    %c0_67 = arith.constant 0 : index
    %c0_68 = arith.constant 0 : index
    %c0_69 = arith.constant 0 : index
    %c0_70 = arith.constant 0 : index
    %122 = vector.load %arg6[%c0_67, %c0_68, %c0_69, %c0_70] : memref<1x8x8x8xf32, #tpu.memory_space<vmem>>, vector<1x8x8x8xf32>
    %123 = vector.shape_cast %122 : vector<1x8x8x8xf32> to vector<8x8x8xf32>
    %124 = vector.shape_cast %121 : vector<8x8x8xf32> to vector<1x8x8x8xf32>
    tpu.vector_store %arg6[%c0_67, %c0_68, %c0_69, %c0_70], %124 {strides = array<i32>} : memref<1x8x8x8xf32, #tpu.memory_space<vmem>>, vector<1x8x8x8xf32>,
    return
  }
  func.func @transform_0(%arg0: i32) -> (i32, i32, i32, i32) {
    %c0_i32 = arith.constant 0 : i32
    %c0_i32_0 = arith.constant 0 : i32
    %c0_i32_1 = arith.constant 0 : i32
    %c0_i32_2 = arith.constant 0 : i32
    return %arg0, %c0_i32, %c0_i32_0, %c0_i32_1 : i32, i32, i32, i32
  }
  func.func @transform_1(%arg0: i32) -> (i32, i32, i32, i32) {
    %c0_i32 = arith.constant 0 : i32
    %c0_i32_0 = arith.constant 0 : i32
    %c0_i32_1 = arith.constant 0 : i32
    %c0_i32_2 = arith.constant 0 : i32
    return %arg0, %c0_i32, %c0_i32_0, %c0_i32_1 : i32, i32, i32, i32
  }
  func.func @transform_2(%arg0: i32) -> (i32, i32, i32) {
    %c0_i32 = arith.constant 0 : i32
    %c0_i32_0 = arith.constant 0 : i32
    %c0_i32_1 = arith.constant 0 : i32
    %c0_i32_2 = arith.constant 0 : i32
    return %c0_i32, %c0_i32_0, %c0_i32_1 : i32, i32, i32
  }
  func.func @transform_3(%arg0: i32) -> (i32, i32) {
    %c0_i32 = arith.constant 0 : i32
    %c0_i32_0 = arith.constant 0 : i32
    %c0_i32_1 = arith.constant 0 : i32
    return %c0_i32, %c0_i32_0 : i32, i32
  }
  func.func @transform_4(%arg0: i32) -> (i32, i32) {
    %c0_i32 = arith.constant 0 : i32
    %c0_i32_0 = arith.constant 0 : i32
    %c0_i32_1 = arith.constant 0 : i32
    return %c0_i32, %c0_i32_0 : i32, i32
  }
  func.func @transform_5(%arg0: i32) -> (i32, i32, i32, i32) {
    %c0_i32 = arith.constant 0 : i32
    %c0_i32_0 = arith.constant 0 : i32
    %c0_i32_1 = arith.constant 0 : i32
    %c0_i32_2 = arith.constant 0 : i32
    return %arg0, %c0_i32, %c0_i32_0, %c0_i32_1 : i32, i32, i32, i32
  }
}

module attributes {stable_mosaic.version = 11 : i64} {
  func.func @_qkv_kernel(%arg0: i32, %arg1: memref<128x8xf32, #tpu.memory_space<vmem>>, %arg2: memref<3x8x8xf32, #tpu.memory_space<vmem>>, %arg3: memref<3x8xf32, #tpu.memory_space<vmem>>, %arg4: memref<128x8xf32, #tpu.memory_space<vmem>>, %arg5: memref<128x8xf32, #tpu.memory_space<vmem>>, %arg6: memref<128x8xf32, #tpu.memory_space<vmem>>) attributes {dimension_semantics = [#tpu.dimension_semantics<parallel>], iteration_bounds = array<i64: 1>, scalar_prefetch = 0 : i64, scratch_operands = 0 : i64, tpu.core_type = #tpu.core_type<tc>, window_params = [{transform_indices = @transform_0, window_bounds = array<i64: 128, 8>}, {pipeline_mode = #tpu.pipeline_mode<synchronous>, transform_indices = @transform_1, window_bounds = array<i64: 3, 8, 8>}, {pipeline_mode = #tpu.pipeline_mode<synchronous>, transform_indices = @transform_2, window_bounds = array<i64: 3, 8>}, {transform_indices = @transform_3, window_bounds = array<i64: 128, 8>}, {transform_indices = @transform_4, window_bounds = array<i64: 128, 8>}, {transform_indices = @transform_5, window_bounds = array<i64: 128, 8>}]} {
    %c0 = arith.constant 0 : index
    %c0_0 = arith.constant 0 : index
    %0 = vector.load %arg1[%c0, %c0_0] : memref<128x8xf32, #tpu.memory_space<vmem>>, vector<128x8xf32>
    %c0_1 = arith.constant 0 : index
    %c0_2 = arith.constant 0 : index
    %c0_3 = arith.constant 0 : index
    %1 = vector.load %arg2[%c0_1, %c0_2, %c0_3] : memref<3x8x8xf32, #tpu.memory_space<vmem>>, vector<1x8x8xf32>
    %2 = vector.shape_cast %1 : vector<1x8x8xf32> to vector<8x8xf32>
    %cst = arith.constant dense<0.000000e+00> : vector<128x8xf32>
    %3 = tpu.matmul %0, %2, %cst {dimension_numbers = #tpu.dot_dimension_numbers<[1], [0], [0], [1], [0, 0, 1, 1], [], []>} : vector<128x8xf32>, vector<8x8xf32>, vector<128x8xf32> -> vector<128x8xf32>
    %c0_4 = arith.constant 0 : index
    %c0_5 = arith.constant 0 : index
    %4 = vector.load %arg3[%c0_4, %c0_5] : memref<3x8xf32, #tpu.memory_space<vmem>>, vector<1x8xf32>
    %5 = vector.broadcast %4 : vector<1x8xf32> to vector<128x8xf32>
    %6 = arith.addf %3, %5 : vector<128x8xf32>
    %c0_6 = arith.constant 0 : index
    %c0_7 = arith.constant 0 : index
    %7 = vector.load %arg4[%c0_6, %c0_7] : memref<128x8xf32, #tpu.memory_space<vmem>>, vector<128x8xf32>
    tpu.vector_store %arg4[%c0_6, %c0_7], %6 {strides = array<i32>} : memref<128x8xf32, #tpu.memory_space<vmem>>, vector<128x8xf32>,
    %c1 = arith.constant 1 : index
    %c0_8 = arith.constant 0 : index
    %c0_9 = arith.constant 0 : index
    %8 = vector.load %arg2[%c1, %c0_8, %c0_9] : memref<3x8x8xf32, #tpu.memory_space<vmem>>, vector<1x8x8xf32>
    %9 = vector.shape_cast %8 : vector<1x8x8xf32> to vector<8x8xf32>
    %cst_10 = arith.constant dense<0.000000e+00> : vector<128x8xf32>
    %10 = tpu.matmul %0, %9, %cst_10 {dimension_numbers = #tpu.dot_dimension_numbers<[1], [0], [0], [1], [0, 0, 1, 1], [], []>} : vector<128x8xf32>, vector<8x8xf32>, vector<128x8xf32> -> vector<128x8xf32>
    %c1_11 = arith.constant 1 : index
    %c0_12 = arith.constant 0 : index
    %11 = vector.load %arg3[%c1_11, %c0_12] : memref<3x8xf32, #tpu.memory_space<vmem>>, vector<1x8xf32>
    %12 = vector.broadcast %11 : vector<1x8xf32> to vector<128x8xf32>
    %13 = arith.addf %10, %12 : vector<128x8xf32>
    %c0_13 = arith.constant 0 : index
    %c0_14 = arith.constant 0 : index
    %14 = vector.load %arg5[%c0_13, %c0_14] : memref<128x8xf32, #tpu.memory_space<vmem>>, vector<128x8xf32>
    tpu.vector_store %arg5[%c0_13, %c0_14], %13 {strides = array<i32>} : memref<128x8xf32, #tpu.memory_space<vmem>>, vector<128x8xf32>,
    %c2 = arith.constant 2 : index
    %c0_15 = arith.constant 0 : index
    %c0_16 = arith.constant 0 : index
    %15 = vector.load %arg2[%c2, %c0_15, %c0_16] : memref<3x8x8xf32, #tpu.memory_space<vmem>>, vector<1x8x8xf32>
    %16 = vector.shape_cast %15 : vector<1x8x8xf32> to vector<8x8xf32>
    %cst_17 = arith.constant dense<0.000000e+00> : vector<128x8xf32>
    %17 = tpu.matmul %0, %16, %cst_17 {dimension_numbers = #tpu.dot_dimension_numbers<[1], [0], [0], [1], [0, 0, 1, 1], [], []>} : vector<128x8xf32>, vector<8x8xf32>, vector<128x8xf32> -> vector<128x8xf32>
    %c2_18 = arith.constant 2 : index
    %c0_19 = arith.constant 0 : index
    %18 = vector.load %arg3[%c2_18, %c0_19] : memref<3x8xf32, #tpu.memory_space<vmem>>, vector<1x8xf32>
    %19 = vector.broadcast %18 : vector<1x8xf32> to vector<128x8xf32>
    %20 = arith.addf %17, %19 : vector<128x8xf32>
    %c0_20 = arith.constant 0 : index
    %c0_21 = arith.constant 0 : index
    %21 = vector.load %arg6[%c0_20, %c0_21] : memref<128x8xf32, #tpu.memory_space<vmem>>, vector<128x8xf32>
    tpu.vector_store %arg6[%c0_20, %c0_21], %20 {strides = array<i32>} : memref<128x8xf32, #tpu.memory_space<vmem>>, vector<128x8xf32>,
    return
  }
  func.func @transform_0(%arg0: i32) -> (i32, i32) {
    %c0_i32 = arith.constant 0 : i32
    %c0_i32_0 = arith.constant 0 : i32
    return %arg0, %c0_i32 : i32, i32
  }
  func.func @transform_1(%arg0: i32) -> (i32, i32, i32) {
    %c0_i32 = arith.constant 0 : i32
    %c0_i32_0 = arith.constant 0 : i32
    %c0_i32_1 = arith.constant 0 : i32
    %c0_i32_2 = arith.constant 0 : i32
    return %c0_i32, %c0_i32_0, %c0_i32_1 : i32, i32, i32
  }
  func.func @transform_2(%arg0: i32) -> (i32, i32) {
    %c0_i32 = arith.constant 0 : i32
    %c0_i32_0 = arith.constant 0 : i32
    %c0_i32_1 = arith.constant 0 : i32
    return %c0_i32, %c0_i32_0 : i32, i32
  }
  func.func @transform_3(%arg0: i32) -> (i32, i32) {
    %c0_i32 = arith.constant 0 : i32
    %c0_i32_0 = arith.constant 0 : i32
    return %arg0, %c0_i32 : i32, i32
  }
  func.func @transform_4(%arg0: i32) -> (i32, i32) {
    %c0_i32 = arith.constant 0 : i32
    %c0_i32_0 = arith.constant 0 : i32
    return %arg0, %c0_i32 : i32, i32
  }
  func.func @transform_5(%arg0: i32) -> (i32, i32) {
    %c0_i32 = arith.constant 0 : i32
    %c0_i32_0 = arith.constant 0 : i32
    return %arg0, %c0_i32 : i32, i32
  }
}

module attributes {stable_mosaic.version = 11 : i64} {
  func.func @_attn_kernel(%arg0: i32, %arg1: i32, %arg2: memref<1x64x8xf32, #tpu.memory_space<vmem>>, %arg3: memref<1x64x8xf32, #tpu.memory_space<vmem>>, %arg4: memref<1x64x8xf32, #tpu.memory_space<vmem>>, %arg5: memref<64x8xf32, #tpu.memory_space<vmem>>, %arg6: memref<1x64x8xf32, #tpu.memory_space<vmem>>, %arg7: memref<1x64x8xf32, #tpu.memory_space<vmem>>) attributes {dimension_semantics = [#tpu.dimension_semantics<parallel>, #tpu.dimension_semantics<parallel>], iteration_bounds = array<i64: 2, 1>, scalar_prefetch = 0 : i64, scratch_operands = 0 : i64, tpu.core_type = #tpu.core_type<tc>, window_params = [{transform_indices = @transform_0, window_bounds = array<i64: 1, 64, 8>}, {transform_indices = @transform_1, window_bounds = array<i64: 1, 64, 8>}, {transform_indices = @transform_2, window_bounds = array<i64: 1, 64, 8>}, {transform_indices = @transform_3, window_bounds = array<i64: 64, 8>}, {transform_indices = @transform_4, window_bounds = array<i64: 1, 64, 8>}, {transform_indices = @transform_5, window_bounds = array<i64: 1, 64, 8>}]} {
    %c0 = arith.constant 0 : index
    %c0_0 = arith.constant 0 : index
    %c0_1 = arith.constant 0 : index
    %0 = vector.load %arg2[%c0, %c0_0, %c0_1] : memref<1x64x8xf32, #tpu.memory_space<vmem>>, vector<1x64x8xf32>
    %1 = vector.shape_cast %0 : vector<1x64x8xf32> to vector<64x8xf32>
    %c0_2 = arith.constant 0 : index
    %c0_3 = arith.constant 0 : index
    %c0_4 = arith.constant 0 : index
    %2 = vector.load %arg3[%c0_2, %c0_3, %c0_4] : memref<1x64x8xf32, #tpu.memory_space<vmem>>, vector<1x64x8xf32>
    %3 = vector.shape_cast %2 : vector<1x64x8xf32> to vector<64x8xf32>
    %c0_5 = arith.constant 0 : index
    %c0_6 = arith.constant 0 : index
    %c0_7 = arith.constant 0 : index
    %4 = vector.load %arg4[%c0_5, %c0_6, %c0_7] : memref<1x64x8xf32, #tpu.memory_space<vmem>>, vector<1x64x8xf32>
    %5 = vector.shape_cast %4 : vector<1x64x8xf32> to vector<64x8xf32>
    %cst = arith.constant dense<0.000000e+00> : vector<64x64xf32>
    %6 = tpu.matmul %1, %3, %cst {dimension_numbers = #tpu.dot_dimension_numbers<[1], [1], [0], [0], [0, 0, 1, 0], [], []>} : vector<64x8xf32>, vector<64x8xf32>, vector<64x64xf32> -> vector<64x64xf32>
    %cst_8 = arith.constant dense<0xFF800000> : vector<64xf32>
    %7 = vector.multi_reduction <maximumf>, %6, %cst_8 [0] : vector<64x64xf32> to vector<64xf32>
    %8 = vector.shape_cast %7 : vector<64xf32> to vector<1x64xf32>
    %9 = vector.broadcast %8 : vector<1x64xf32> to vector<64x64xf32>
    %10 = arith.subf %6, %9 : vector<64x64xf32>
    %11 = math.exp %10 : vector<64x64xf32>
    %cst_9 = arith.constant dense<0.000000e+00> : vector<64xf32>
    %12 = vector.multi_reduction <add>, %11, %cst_9 [0] : vector<64x64xf32> to vector<64xf32>
    %13 = vector.shape_cast %12 : vector<64xf32> to vector<1x64xf32>
    %14 = vector.broadcast %13 : vector<1x64xf32> to vector<64x64xf32>
    %15 = arith.divf %11, %14 : vector<64x64xf32>
    %cst_10 = arith.constant dense<0.000000e+00> : vector<64x8xf32>
    %16 = tpu.matmul %15, %5, %cst_10 {dimension_numbers = #tpu.dot_dimension_numbers<[0], [0], [1], [1], [0, 1, 1, 1], [], []>} : vector<64x64xf32>, vector<64x8xf32>, vector<64x8xf32> -> vector<64x8xf32>
    %c0_11 = arith.constant 0 : index
    %c0_12 = arith.constant 0 : index
    %17 = vector.load %arg5[%c0_11, %c0_12] : memref<64x8xf32, #tpu.memory_space<vmem>>, vector<64x8xf32>
    %18 = arith.mulf %17, %16 : vector<64x8xf32>
    %c0_13 = arith.constant 0 : index
    %c0_14 = arith.constant 0 : index
    %c0_15 = arith.constant 0 : index
    %19 = vector.load %arg6[%c0_13, %c0_14, %c0_15] : memref<1x64x8xf32, #tpu.memory_space<vmem>>, vector<1x64x8xf32>
    %20 = vector.shape_cast %19 : vector<1x64x8xf32> to vector<64x8xf32>
    %21 = arith.addf %18, %20 : vector<64x8xf32>
    %c0_16 = arith.constant 0 : index
    %c0_17 = arith.constant 0 : index
    %c0_18 = arith.constant 0 : index
    %22 = vector.load %arg7[%c0_16, %c0_17, %c0_18] : memref<1x64x8xf32, #tpu.memory_space<vmem>>, vector<1x64x8xf32>
    %23 = vector.shape_cast %22 : vector<1x64x8xf32> to vector<64x8xf32>
    %24 = vector.shape_cast %21 : vector<64x8xf32> to vector<1x64x8xf32>
    tpu.vector_store %arg7[%c0_16, %c0_17, %c0_18], %24 {strides = array<i32>} : memref<1x64x8xf32, #tpu.memory_space<vmem>>, vector<1x64x8xf32>,
    return
  }
  func.func @transform_0(%arg0: i32, %arg1: i32) -> (i32, i32, i32) {
    %c0_i32 = arith.constant 0 : i32
    %c0_i32_0 = arith.constant 0 : i32
    %c0_i32_1 = arith.constant 0 : i32
    return %arg0, %c0_i32, %c0_i32_0 : i32, i32, i32
  }
  func.func @transform_1(%arg0: i32, %arg1: i32) -> (i32, i32, i32) {
    %c0_i32 = arith.constant 0 : i32
    %c0_i32_0 = arith.constant 0 : i32
    return %arg0, %arg1, %c0_i32 : i32, i32, i32
  }
  func.func @transform_2(%arg0: i32, %arg1: i32) -> (i32, i32, i32) {
    %c0_i32 = arith.constant 0 : i32
    %c0_i32_0 = arith.constant 0 : i32
    %c0_i32_1 = arith.constant 0 : i32
    return %arg0, %c0_i32, %c0_i32_0 : i32, i32, i32
  }
  func.func @transform_3(%arg0: i32, %arg1: i32) -> (i32, i32) {
    %c0_i32 = arith.constant 0 : i32
    %c0_i32_0 = arith.constant 0 : i32
    return %arg1, %c0_i32 : i32, i32
  }
  func.func @transform_4(%arg0: i32, %arg1: i32) -> (i32, i32, i32) {
    %c0_i32 = arith.constant 0 : i32
    %c0_i32_0 = arith.constant 0 : i32
    return %arg0, %arg1, %c0_i32 : i32, i32, i32
  }
  func.func @transform_5(%arg0: i32, %arg1: i32) -> (i32, i32, i32) {
    %c0_i32 = arith.constant 0 : i32
    %c0_i32_0 = arith.constant 0 : i32
    return %arg0, %arg1, %c0_i32 : i32, i32, i32
  }
}

module attributes {stable_mosaic.version = 11 : i64} {
  func.func @_conv3x3_kernel(%arg0: i32, %arg1: memref<1x10x10x8xf32, #tpu.memory_space<vmem>>, %arg2: memref<9x8x8xf32, #tpu.memory_space<vmem>>, %arg3: memref<1x8xf32, #tpu.memory_space<vmem>>, %arg4: memref<1x8xf32, #tpu.memory_space<vmem>>, %arg5: memref<1x8x8x8xf32, #tpu.memory_space<vmem>>) attributes {dimension_semantics = [#tpu.dimension_semantics<parallel>], iteration_bounds = array<i64: 2>, scalar_prefetch = 0 : i64, scratch_operands = 0 : i64, tpu.core_type = #tpu.core_type<tc>, window_params = [{transform_indices = @transform_0, window_bounds = array<i64: 1, 10, 10, 8>}, {pipeline_mode = #tpu.pipeline_mode<synchronous>, transform_indices = @transform_1, window_bounds = array<i64: 9, 8, 8>}, {pipeline_mode = #tpu.pipeline_mode<synchronous>, transform_indices = @transform_2, window_bounds = array<i64: 1, 8>}, {pipeline_mode = #tpu.pipeline_mode<synchronous>, transform_indices = @transform_3, window_bounds = array<i64: 1, 8>}, {transform_indices = @transform_4, window_bounds = array<i64: 1, 8, 8, 8>}]} {
    %cst = arith.constant 0.000000e+00 : f32
    %0 = vector.broadcast %cst : f32 to vector<64x8xf32>
    %c0 = arith.constant 0 : index
    %c0_0 = arith.constant 0 : index
    %c0_1 = arith.constant 0 : index
    %c0_2 = arith.constant 0 : index
    %1 = vector.load %arg1[%c0, %c0_0, %c0_1, %c0_2] : memref<1x10x10x8xf32, #tpu.memory_space<vmem>>, vector<1x10x10x8xf32>
    %2 = vector.shape_cast %1 : vector<1x10x10x8xf32> to vector<10x10x8xf32>
    %3 = vector.extract_strided_slice %2 {offsets = [0, 0, 0], sizes = [8, 8, 8], strides = [1, 1, 1]} : vector<10x10x8xf32> to vector<8x8x8xf32>
    %4 = vector.shape_cast %3 : vector<8x8x8xf32> to vector<64x8xf32>
    %c0_3 = arith.constant 0 : index
    %c0_4 = arith.constant 0 : index
    %c0_5 = arith.constant 0 : index
    %5 = vector.load %arg2[%c0_3, %c0_4, %c0_5] : memref<9x8x8xf32, #tpu.memory_space<vmem>>, vector<1x8x8xf32>
    %6 = vector.shape_cast %5 : vector<1x8x8xf32> to vector<8x8xf32>
    %cst_6 = arith.constant dense<0.000000e+00> : vector<64x8xf32>
    %7 = tpu.matmul %4, %6, %cst_6 {dimension_numbers = #tpu.dot_dimension_numbers<[1], [0], [0], [1], [0, 0, 1, 1], [], []>} : vector<64x8xf32>, vector<8x8xf32>, vector<64x8xf32> -> vector<64x8xf32>
    %8 = arith.addf %0, %7 : vector<64x8xf32>
    %9 = vector.extract_strided_slice %2 {offsets = [0, 1, 0], sizes = [8, 8, 8], strides = [1, 1, 1]} : vector<10x10x8xf32> to vector<8x8x8xf32>
    %10 = vector.shape_cast %9 : vector<8x8x8xf32> to vector<64x8xf32>
    %c1 = arith.constant 1 : index
    %c0_7 = arith.constant 0 : index
    %c0_8 = arith.constant 0 : index
    %11 = vector.load %arg2[%c1, %c0_7, %c0_8] : memref<9x8x8xf32, #tpu.memory_space<vmem>>, vector<1x8x8xf32>
    %12 = vector.shape_cast %11 : vector<1x8x8xf32> to vector<8x8xf32>
    %cst_9 = arith.constant dense<0.000000e+00> : vector<64x8xf32>
    %13 = tpu.matmul %10, %12, %cst_9 {dimension_numbers = #tpu.dot_dimension_numbers<[1], [0], [0], [1], [0, 0, 1, 1], [], []>} : vector<64x8xf32>, vector<8x8xf32>, vector<64x8xf32> -> vector<64x8xf32>
    %14 = arith.addf %8, %13 : vector<64x8xf32>
    %15 = vector.extract_strided_slice %2 {offsets = [0, 2, 0], sizes = [8, 8, 8], strides = [1, 1, 1]} : vector<10x10x8xf32> to vector<8x8x8xf32>
    %16 = vector.shape_cast %15 : vector<8x8x8xf32> to vector<64x8xf32>
    %c2 = arith.constant 2 : index
    %c0_10 = arith.constant 0 : index
    %c0_11 = arith.constant 0 : index
    %17 = vector.load %arg2[%c2, %c0_10, %c0_11] : memref<9x8x8xf32, #tpu.memory_space<vmem>>, vector<1x8x8xf32>
    %18 = vector.shape_cast %17 : vector<1x8x8xf32> to vector<8x8xf32>
    %cst_12 = arith.constant dense<0.000000e+00> : vector<64x8xf32>
    %19 = tpu.matmul %16, %18, %cst_12 {dimension_numbers = #tpu.dot_dimension_numbers<[1], [0], [0], [1], [0, 0, 1, 1], [], []>} : vector<64x8xf32>, vector<8x8xf32>, vector<64x8xf32> -> vector<64x8xf32>
    %20 = arith.addf %14, %19 : vector<64x8xf32>
    %21 = vector.extract_strided_slice %2 {offsets = [1, 0, 0], sizes = [8, 8, 8], strides = [1, 1, 1]} : vector<10x10x8xf32> to vector<8x8x8xf32>
    %22 = vector.shape_cast %21 : vector<8x8x8xf32> to vector<64x8xf32>
    %c3 = arith.constant 3 : index
    %c0_13 = arith.constant 0 : index
    %c0_14 = arith.constant 0 : index
    %23 = vector.load %arg2[%c3, %c0_13, %c0_14] : memref<9x8x8xf32, #tpu.memory_space<vmem>>, vector<1x8x8xf32>
    %24 = vector.shape_cast %23 : vector<1x8x8xf32> to vector<8x8xf32>
    %cst_15 = arith.constant dense<0.000000e+00> : vector<64x8xf32>
    %25 = tpu.matmul %22, %24, %cst_15 {dimension_numbers = #tpu.dot_dimension_numbers<[1], [0], [0], [1], [0, 0, 1, 1], [], []>} : vector<64x8xf32>, vector<8x8xf32>, vector<64x8xf32> -> vector<64x8xf32>
    %26 = arith.addf %20, %25 : vector<64x8xf32>
    %27 = vector.extract_strided_slice %2 {offsets = [1, 1, 0], sizes = [8, 8, 8], strides = [1, 1, 1]} : vector<10x10x8xf32> to vector<8x8x8xf32>
    %28 = vector.shape_cast %27 : vector<8x8x8xf32> to vector<64x8xf32>
    %c4 = arith.constant 4 : index
    %c0_16 = arith.constant 0 : index
    %c0_17 = arith.constant 0 : index
    %29 = vector.load %arg2[%c4, %c0_16, %c0_17] : memref<9x8x8xf32, #tpu.memory_space<vmem>>, vector<1x8x8xf32>
    %30 = vector.shape_cast %29 : vector<1x8x8xf32> to vector<8x8xf32>
    %cst_18 = arith.constant dense<0.000000e+00> : vector<64x8xf32>
    %31 = tpu.matmul %28, %30, %cst_18 {dimension_numbers = #tpu.dot_dimension_numbers<[1], [0], [0], [1], [0, 0, 1, 1], [], []>} : vector<64x8xf32>, vector<8x8xf32>, vector<64x8xf32> -> vector<64x8xf32>
    %32 = arith.addf %26, %31 : vector<64x8xf32>
    %33 = vector.extract_strided_slice %2 {offsets = [1, 2, 0], sizes = [8, 8, 8], strides = [1, 1, 1]} : vector<10x10x8xf32> to vector<8x8x8xf32>
    %34 = vector.shape_cast %33 : vector<8x8x8xf32> to vector<64x8xf32>
    %c5 = arith.constant 5 : index
    %c0_19 = arith.constant 0 : index
    %c0_20 = arith.constant 0 : index
    %35 = vector.load %arg2[%c5, %c0_19, %c0_20] : memref<9x8x8xf32, #tpu.memory_space<vmem>>, vector<1x8x8xf32>
    %36 = vector.shape_cast %35 : vector<1x8x8xf32> to vector<8x8xf32>
    %cst_21 = arith.constant dense<0.000000e+00> : vector<64x8xf32>
    %37 = tpu.matmul %34, %36, %cst_21 {dimension_numbers = #tpu.dot_dimension_numbers<[1], [0], [0], [1], [0, 0, 1, 1], [], []>} : vector<64x8xf32>, vector<8x8xf32>, vector<64x8xf32> -> vector<64x8xf32>
    %38 = arith.addf %32, %37 : vector<64x8xf32>
    %39 = vector.extract_strided_slice %2 {offsets = [2, 0, 0], sizes = [8, 8, 8], strides = [1, 1, 1]} : vector<10x10x8xf32> to vector<8x8x8xf32>
    %40 = vector.shape_cast %39 : vector<8x8x8xf32> to vector<64x8xf32>
    %c6 = arith.constant 6 : index
    %c0_22 = arith.constant 0 : index
    %c0_23 = arith.constant 0 : index
    %41 = vector.load %arg2[%c6, %c0_22, %c0_23] : memref<9x8x8xf32, #tpu.memory_space<vmem>>, vector<1x8x8xf32>
    %42 = vector.shape_cast %41 : vector<1x8x8xf32> to vector<8x8xf32>
    %cst_24 = arith.constant dense<0.000000e+00> : vector<64x8xf32>
    %43 = tpu.matmul %40, %42, %cst_24 {dimension_numbers = #tpu.dot_dimension_numbers<[1], [0], [0], [1], [0, 0, 1, 1], [], []>} : vector<64x8xf32>, vector<8x8xf32>, vector<64x8xf32> -> vector<64x8xf32>
    %44 = arith.addf %38, %43 : vector<64x8xf32>
    %45 = vector.extract_strided_slice %2 {offsets = [2, 1, 0], sizes = [8, 8, 8], strides = [1, 1, 1]} : vector<10x10x8xf32> to vector<8x8x8xf32>
    %46 = vector.shape_cast %45 : vector<8x8x8xf32> to vector<64x8xf32>
    %c7 = arith.constant 7 : index
    %c0_25 = arith.constant 0 : index
    %c0_26 = arith.constant 0 : index
    %47 = vector.load %arg2[%c7, %c0_25, %c0_26] : memref<9x8x8xf32, #tpu.memory_space<vmem>>, vector<1x8x8xf32>
    %48 = vector.shape_cast %47 : vector<1x8x8xf32> to vector<8x8xf32>
    %cst_27 = arith.constant dense<0.000000e+00> : vector<64x8xf32>
    %49 = tpu.matmul %46, %48, %cst_27 {dimension_numbers = #tpu.dot_dimension_numbers<[1], [0], [0], [1], [0, 0, 1, 1], [], []>} : vector<64x8xf32>, vector<8x8xf32>, vector<64x8xf32> -> vector<64x8xf32>
    %50 = arith.addf %44, %49 : vector<64x8xf32>
    %51 = vector.extract_strided_slice %2 {offsets = [2, 2, 0], sizes = [8, 8, 8], strides = [1, 1, 1]} : vector<10x10x8xf32> to vector<8x8x8xf32>
    %52 = vector.shape_cast %51 : vector<8x8x8xf32> to vector<64x8xf32>
    %c8 = arith.constant 8 : index
    %c0_28 = arith.constant 0 : index
    %c0_29 = arith.constant 0 : index
    %53 = vector.load %arg2[%c8, %c0_28, %c0_29] : memref<9x8x8xf32, #tpu.memory_space<vmem>>, vector<1x8x8xf32>
    %54 = vector.shape_cast %53 : vector<1x8x8xf32> to vector<8x8xf32>
    %cst_30 = arith.constant dense<0.000000e+00> : vector<64x8xf32>
    %55 = tpu.matmul %52, %54, %cst_30 {dimension_numbers = #tpu.dot_dimension_numbers<[1], [0], [0], [1], [0, 0, 1, 1], [], []>} : vector<64x8xf32>, vector<8x8xf32>, vector<64x8xf32> -> vector<64x8xf32>
    %56 = arith.addf %50, %55 : vector<64x8xf32>
    %c0_31 = arith.constant 0 : index
    %c0_32 = arith.constant 0 : index
    %57 = vector.load %arg3[%c0_31, %c0_32] : memref<1x8xf32, #tpu.memory_space<vmem>>, vector<1x8xf32>
    %58 = vector.broadcast %57 : vector<1x8xf32> to vector<64x8xf32>
    %59 = arith.mulf %56, %58 : vector<64x8xf32>
    %c0_33 = arith.constant 0 : index
    %c0_34 = arith.constant 0 : index
    %60 = vector.load %arg4[%c0_33, %c0_34] : memref<1x8xf32, #tpu.memory_space<vmem>>, vector<1x8xf32>
    %61 = vector.broadcast %60 : vector<1x8xf32> to vector<64x8xf32>
    %62 = arith.addf %59, %61 : vector<64x8xf32>
    %cst_35 = arith.constant 0.000000e+00 : f32
    %63 = vector.broadcast %cst_35 : f32 to vector<64x8xf32>
    %64 = arith.maximumf %62, %63 : vector<64x8xf32>
    %65 = arith.negf %64 : vector<64x8xf32>
    %66 = math.exp %65 : vector<64x8xf32>
    %cst_36 = arith.constant 1.000000e+00 : f32
    %67 = vector.broadcast %cst_36 : f32 to vector<64x8xf32>
    %68 = arith.addf %67, %66 : vector<64x8xf32>
    %69 = arith.divf %67, %68 : vector<64x8xf32>
    %70 = vector.shape_cast %69 : vector<64x8xf32> to vector<8x8x8xf32>
    %c0_37 = arith.constant 0 : index
    %c0_38 = arith.constant 0 : index
    %c0_39 = arith.constant 0 : index
    %c0_40 = arith.constant 0 : index
    %71 = vector.load %arg5[%c0_37, %c0_38, %c0_39, %c0_40] : memref<1x8x8x8xf32, #tpu.memory_space<vmem>>, vector<1x8x8x8xf32>
    %72 = vector.shape_cast %71 : vector<1x8x8x8xf32> to vector<8x8x8xf32>
    %73 = vector.shape_cast %70 : vector<8x8x8xf32> to vector<1x8x8x8xf32>
    tpu.vector_store %arg5[%c0_37, %c0_38, %c0_39, %c0_40], %73 {strides = array<i32>} : memref<1x8x8x8xf32, #tpu.memory_space<vmem>>, vector<1x8x8x8xf32>,
    return
  }
  func.func @transform_0(%arg0: i32) -> (i32, i32, i32, i32) {
    %c0_i32 = arith.constant 0 : i32
    %c0_i32_0 = arith.constant 0 : i32
    %c0_i32_1 = arith.constant 0 : i32
    %c0_i32_2 = arith.constant 0 : i32
    return %arg0, %c0_i32, %c0_i32_0, %c0_i32_1 : i32, i32, i32, i32
  }
  func.func @transform_1(%arg0: i32) -> (i32, i32, i32) {
    %c0_i32 = arith.constant 0 : i32
    %c0_i32_0 = arith.constant 0 : i32
    %c0_i32_1 = arith.constant 0 : i32
    %c0_i32_2 = arith.constant 0 : i32
    return %c0_i32, %c0_i32_0, %c0_i32_1 : i32, i32, i32
  }
  func.func @transform_2(%arg0: i32) -> (i32, i32) {
    %c0_i32 = arith.constant 0 : i32
    %c0_i32_0 = arith.constant 0 : i32
    %c0_i32_1 = arith.constant 0 : i32
    return %c0_i32, %c0_i32_0 : i32, i32
  }
  func.func @transform_3(%arg0: i32) -> (i32, i32) {
    %c0_i32 = arith.constant 0 : i32
    %c0_i32_0 = arith.constant 0 : i32
    %c0_i32_1 = arith.constant 0 : i32
    return %c0_i32, %c0_i32_0 : i32, i32
  }
  func.func @transform_4(%arg0: i32) -> (i32, i32, i32, i32) {
    %c0_i32 = arith.constant 0 : i32
    %c0_i32_0 = arith.constant 0 : i32
    %c0_i32_1 = arith.constant 0 : i32
    %c0_i32_2 = arith.constant 0 : i32
    return %arg0, %c0_i32, %c0_i32_0, %c0_i32_1 : i32, i32, i32, i32
  }
}

module attributes {stable_mosaic.version = 11 : i64} {
  func.func @_pool_gate_kernel(%arg0: i32, %arg1: memref<1x8x8x8xf32, #tpu.memory_space<vmem>>, %arg2: memref<1x8x8x8xf32, #tpu.memory_space<vmem>>, %arg3: memref<1x8x8x8xf32, #tpu.memory_space<vmem>>, %arg4: memref<10x10x8xf32, #tpu.memory_space<vmem>>, %arg5: memref<10x10x8xf32, #tpu.memory_space<vmem>>) attributes {dimension_semantics = [#tpu.dimension_semantics<parallel>], iteration_bounds = array<i64: 2>, scalar_prefetch = 0 : i64, scratch_operands = 2 : i64, tpu.core_type = #tpu.core_type<tc>, window_params = [{transform_indices = @transform_0, window_bounds = array<i64: 1, 8, 8, 8>}, {transform_indices = @transform_1, window_bounds = array<i64: 1, 8, 8, 8>}, {transform_indices = @transform_2, window_bounds = array<i64: 1, 8, 8, 8>}]} {
    %c0 = arith.constant 0 : index
    %c0_0 = arith.constant 0 : index
    %c0_1 = arith.constant 0 : index
    %c0_2 = arith.constant 0 : index
    %0 = vector.load %arg1[%c0, %c0_0, %c0_1, %c0_2] : memref<1x8x8x8xf32, #tpu.memory_space<vmem>>, vector<1x8x8x8xf32>
    %1 = vector.shape_cast %0 : vector<1x8x8x8xf32> to vector<8x8x8xf32>
    %cst = arith.constant 0.000000e+00 : f32
    %2 = vector.broadcast %cst : f32 to vector<10x10x8xf32>
    %c0_3 = arith.constant 0 : index
    %c0_4 = arith.constant 0 : index
    %c0_5 = arith.constant 0 : index
    %3 = vector.load %arg4[%c0_3, %c0_4, %c0_5] : memref<10x10x8xf32, #tpu.memory_space<vmem>>, vector<10x10x8xf32>
    tpu.vector_store %arg4[%c0_3, %c0_4, %c0_5], %2 {strides = array<i32>} : memref<10x10x8xf32, #tpu.memory_space<vmem>>, vector<10x10x8xf32>,
    %cst_6 = arith.constant -3.000000e+38 : f32
    %4 = vector.broadcast %cst_6 : f32 to vector<10x10x8xf32>
    %c0_7 = arith.constant 0 : index
    %c0_8 = arith.constant 0 : index
    %c0_9 = arith.constant 0 : index
    %5 = vector.load %arg5[%c0_7, %c0_8, %c0_9] : memref<10x10x8xf32, #tpu.memory_space<vmem>>, vector<10x10x8xf32>
    tpu.vector_store %arg5[%c0_7, %c0_8, %c0_9], %4 {strides = array<i32>} : memref<10x10x8xf32, #tpu.memory_space<vmem>>, vector<10x10x8xf32>,
    %c1 = arith.constant 1 : index
    %c1_10 = arith.constant 1 : index
    %c0_11 = arith.constant 0 : index
    %6 = vector.load %arg4[%c1, %c1_10, %c0_11] : memref<10x10x8xf32, #tpu.memory_space<vmem>>, vector<8x8x8xf32>
    tpu.vector_store %arg4[%c1, %c1_10, %c0_11], %1 {strides = array<i32>} : memref<10x10x8xf32, #tpu.memory_space<vmem>>, vector<8x8x8xf32>,
    %c1_12 = arith.constant 1 : index
    %c1_13 = arith.constant 1 : index
    %c0_14 = arith.constant 0 : index
    %7 = vector.load %arg5[%c1_12, %c1_13, %c0_14] : memref<10x10x8xf32, #tpu.memory_space<vmem>>, vector<8x8x8xf32>
    tpu.vector_store %arg5[%c1_12, %c1_13, %c0_14], %1 {strides = array<i32>} : memref<10x10x8xf32, #tpu.memory_space<vmem>>, vector<8x8x8xf32>,
    %cst_15 = arith.constant 0.000000e+00 : f32
    %8 = vector.broadcast %cst_15 : f32 to vector<8x8x8xf32>
    %cst_16 = arith.constant -3.000000e+38 : f32
    %9 = vector.broadcast %cst_16 : f32 to vector<8x8x8xf32>
    %c0_17 = arith.constant 0 : index
    %c0_18 = arith.constant 0 : index
    %c0_19 = arith.constant 0 : index
    %10 = vector.load %arg4[%c0_17, %c0_18, %c0_19] : memref<10x10x8xf32, #tpu.memory_space<vmem>>, vector<8x8x8xf32>
    %11 = arith.addf %8, %10 : vector<8x8x8xf32>
    %c0_20 = arith.constant 0 : index
    %c0_21 = arith.constant 0 : index
    %c0_22 = arith.constant 0 : index
    %12 = vector.load %arg5[%c0_20, %c0_21, %c0_22] : memref<10x10x8xf32, #tpu.memory_space<vmem>>, vector<8x8x8xf32>
    %13 = arith.maximumf %9, %12 : vector<8x8x8xf32>
    %c0_23 = arith.constant 0 : index
    %c1_24 = arith.constant 1 : index
    %c0_25 = arith.constant 0 : index
    %14 = vector.load %arg4[%c0_23, %c1_24, %c0_25] : memref<10x10x8xf32, #tpu.memory_space<vmem>>, vector<8x8x8xf32>
    %15 = arith.addf %11, %14 : vector<8x8x8xf32>
    %c0_26 = arith.constant 0 : index
    %c1_27 = arith.constant 1 : index
    %c0_28 = arith.constant 0 : index
    %16 = vector.load %arg5[%c0_26, %c1_27, %c0_28] : memref<10x10x8xf32, #tpu.memory_space<vmem>>, vector<8x8x8xf32>
    %17 = arith.maximumf %13, %16 : vector<8x8x8xf32>
    %c0_29 = arith.constant 0 : index
    %c2 = arith.constant 2 : index
    %c0_30 = arith.constant 0 : index
    %18 = vector.load %arg4[%c0_29, %c2, %c0_30] : memref<10x10x8xf32, #tpu.memory_space<vmem>>, vector<8x8x8xf32>
    %19 = arith.addf %15, %18 : vector<8x8x8xf32>
    %c0_31 = arith.constant 0 : index
    %c2_32 = arith.constant 2 : index
    %c0_33 = arith.constant 0 : index
    %20 = vector.load %arg5[%c0_31, %c2_32, %c0_33] : memref<10x10x8xf32, #tpu.memory_space<vmem>>, vector<8x8x8xf32>
    %21 = arith.maximumf %17, %20 : vector<8x8x8xf32>
    %c1_34 = arith.constant 1 : index
    %c0_35 = arith.constant 0 : index
    %c0_36 = arith.constant 0 : index
    %22 = vector.load %arg4[%c1_34, %c0_35, %c0_36] : memref<10x10x8xf32, #tpu.memory_space<vmem>>, vector<8x8x8xf32>
    %23 = arith.addf %19, %22 : vector<8x8x8xf32>
    %c1_37 = arith.constant 1 : index
    %c0_38 = arith.constant 0 : index
    %c0_39 = arith.constant 0 : index
    %24 = vector.load %arg5[%c1_37, %c0_38, %c0_39] : memref<10x10x8xf32, #tpu.memory_space<vmem>>, vector<8x8x8xf32>
    %25 = arith.maximumf %21, %24 : vector<8x8x8xf32>
    %c1_40 = arith.constant 1 : index
    %c1_41 = arith.constant 1 : index
    %c0_42 = arith.constant 0 : index
    %26 = vector.load %arg4[%c1_40, %c1_41, %c0_42] : memref<10x10x8xf32, #tpu.memory_space<vmem>>, vector<8x8x8xf32>
    %27 = arith.addf %23, %26 : vector<8x8x8xf32>
    %c1_43 = arith.constant 1 : index
    %c1_44 = arith.constant 1 : index
    %c0_45 = arith.constant 0 : index
    %28 = vector.load %arg5[%c1_43, %c1_44, %c0_45] : memref<10x10x8xf32, #tpu.memory_space<vmem>>, vector<8x8x8xf32>
    %29 = arith.maximumf %25, %28 : vector<8x8x8xf32>
    %c1_46 = arith.constant 1 : index
    %c2_47 = arith.constant 2 : index
    %c0_48 = arith.constant 0 : index
    %30 = vector.load %arg4[%c1_46, %c2_47, %c0_48] : memref<10x10x8xf32, #tpu.memory_space<vmem>>, vector<8x8x8xf32>
    %31 = arith.addf %27, %30 : vector<8x8x8xf32>
    %c1_49 = arith.constant 1 : index
    %c2_50 = arith.constant 2 : index
    %c0_51 = arith.constant 0 : index
    %32 = vector.load %arg5[%c1_49, %c2_50, %c0_51] : memref<10x10x8xf32, #tpu.memory_space<vmem>>, vector<8x8x8xf32>
    %33 = arith.maximumf %29, %32 : vector<8x8x8xf32>
    %c2_52 = arith.constant 2 : index
    %c0_53 = arith.constant 0 : index
    %c0_54 = arith.constant 0 : index
    %34 = vector.load %arg4[%c2_52, %c0_53, %c0_54] : memref<10x10x8xf32, #tpu.memory_space<vmem>>, vector<8x8x8xf32>
    %35 = arith.addf %31, %34 : vector<8x8x8xf32>
    %c2_55 = arith.constant 2 : index
    %c0_56 = arith.constant 0 : index
    %c0_57 = arith.constant 0 : index
    %36 = vector.load %arg5[%c2_55, %c0_56, %c0_57] : memref<10x10x8xf32, #tpu.memory_space<vmem>>, vector<8x8x8xf32>
    %37 = arith.maximumf %33, %36 : vector<8x8x8xf32>
    %c2_58 = arith.constant 2 : index
    %c1_59 = arith.constant 1 : index
    %c0_60 = arith.constant 0 : index
    %38 = vector.load %arg4[%c2_58, %c1_59, %c0_60] : memref<10x10x8xf32, #tpu.memory_space<vmem>>, vector<8x8x8xf32>
    %39 = arith.addf %35, %38 : vector<8x8x8xf32>
    %c2_61 = arith.constant 2 : index
    %c1_62 = arith.constant 1 : index
    %c0_63 = arith.constant 0 : index
    %40 = vector.load %arg5[%c2_61, %c1_62, %c0_63] : memref<10x10x8xf32, #tpu.memory_space<vmem>>, vector<8x8x8xf32>
    %41 = arith.maximumf %37, %40 : vector<8x8x8xf32>
    %c2_64 = arith.constant 2 : index
    %c2_65 = arith.constant 2 : index
    %c0_66 = arith.constant 0 : index
    %42 = vector.load %arg4[%c2_64, %c2_65, %c0_66] : memref<10x10x8xf32, #tpu.memory_space<vmem>>, vector<8x8x8xf32>
    %43 = arith.addf %39, %42 : vector<8x8x8xf32>
    %c2_67 = arith.constant 2 : index
    %c2_68 = arith.constant 2 : index
    %c0_69 = arith.constant 0 : index
    %44 = vector.load %arg5[%c2_67, %c2_68, %c0_69] : memref<10x10x8xf32, #tpu.memory_space<vmem>>, vector<8x8x8xf32>
    %45 = arith.maximumf %41, %44 : vector<8x8x8xf32>
    %cst_70 = arith.constant 0.111111112 : f32
    %46 = vector.broadcast %cst_70 : f32 to vector<8x8x8xf32>
    %47 = arith.mulf %43, %46 : vector<8x8x8xf32>
    %48 = arith.addf %47, %45 : vector<8x8x8xf32>
    %c0_71 = arith.constant 0 : index
    %c0_72 = arith.constant 0 : index
    %c0_73 = arith.constant 0 : index
    %c0_74 = arith.constant 0 : index
    %49 = vector.load %arg2[%c0_71, %c0_72, %c0_73, %c0_74] : memref<1x8x8x8xf32, #tpu.memory_space<vmem>>, vector<1x8x8x8xf32>
    %50 = vector.shape_cast %49 : vector<1x8x8x8xf32> to vector<8x8x8xf32>
    %51 = arith.mulf %48, %50 : vector<8x8x8xf32>
    %c0_75 = arith.constant 0 : index
    %c0_76 = arith.constant 0 : index
    %c0_77 = arith.constant 0 : index
    %c0_78 = arith.constant 0 : index
    %52 = vector.load %arg3[%c0_75, %c0_76, %c0_77, %c0_78] : memref<1x8x8x8xf32, #tpu.memory_space<vmem>>, vector<1x8x8x8xf32>
    %53 = vector.shape_cast %52 : vector<1x8x8x8xf32> to vector<8x8x8xf32>
    %54 = vector.shape_cast %51 : vector<8x8x8xf32> to vector<1x8x8x8xf32>
    tpu.vector_store %arg3[%c0_75, %c0_76, %c0_77, %c0_78], %54 {strides = array<i32>} : memref<1x8x8x8xf32, #tpu.memory_space<vmem>>, vector<1x8x8x8xf32>,
    return
  }
  func.func @transform_0(%arg0: i32) -> (i32, i32, i32, i32) {
    %c0_i32 = arith.constant 0 : i32
    %c0_i32_0 = arith.constant 0 : i32
    %c0_i32_1 = arith.constant 0 : i32
    %c0_i32_2 = arith.constant 0 : i32
    return %arg0, %c0_i32, %c0_i32_0, %c0_i32_1 : i32, i32, i32, i32
  }
  func.func @transform_1(%arg0: i32) -> (i32, i32, i32, i32) {
    %c0_i32 = arith.constant 0 : i32
    %c0_i32_0 = arith.constant 0 : i32
    %c0_i32_1 = arith.constant 0 : i32
    %c0_i32_2 = arith.constant 0 : i32
    return %arg0, %c0_i32, %c0_i32_0, %c0_i32_1 : i32, i32, i32, i32
  }
  func.func @transform_2(%arg0: i32) -> (i32, i32, i32, i32) {
    %c0_i32 = arith.constant 0 : i32
    %c0_i32_0 = arith.constant 0 : i32
    %c0_i32_1 = arith.constant 0 : i32
    %c0_i32_2 = arith.constant 0 : i32
    return %arg0, %c0_i32, %c0_i32_0, %c0_i32_1 : i32, i32, i32, i32
  }
}

module attributes {stable_mosaic.version = 11 : i64} {
  func.func @_conv3x3_kernel(%arg0: i32, %arg1: memref<1x10x10x8xf32, #tpu.memory_space<vmem>>, %arg2: memref<9x8x8xf32, #tpu.memory_space<vmem>>, %arg3: memref<1x8xf32, #tpu.memory_space<vmem>>, %arg4: memref<1x8xf32, #tpu.memory_space<vmem>>, %arg5: memref<1x8x8x8xf32, #tpu.memory_space<vmem>>) attributes {dimension_semantics = [#tpu.dimension_semantics<parallel>], iteration_bounds = array<i64: 2>, scalar_prefetch = 0 : i64, scratch_operands = 0 : i64, tpu.core_type = #tpu.core_type<tc>, window_params = [{transform_indices = @transform_0, window_bounds = array<i64: 1, 10, 10, 8>}, {pipeline_mode = #tpu.pipeline_mode<synchronous>, transform_indices = @transform_1, window_bounds = array<i64: 9, 8, 8>}, {pipeline_mode = #tpu.pipeline_mode<synchronous>, transform_indices = @transform_2, window_bounds = array<i64: 1, 8>}, {pipeline_mode = #tpu.pipeline_mode<synchronous>, transform_indices = @transform_3, window_bounds = array<i64: 1, 8>}, {transform_indices = @transform_4, window_bounds = array<i64: 1, 8, 8, 8>}]} {
    %cst = arith.constant 0.000000e+00 : f32
    %0 = vector.broadcast %cst : f32 to vector<64x8xf32>
    %c0 = arith.constant 0 : index
    %c0_0 = arith.constant 0 : index
    %c0_1 = arith.constant 0 : index
    %c0_2 = arith.constant 0 : index
    %1 = vector.load %arg1[%c0, %c0_0, %c0_1, %c0_2] : memref<1x10x10x8xf32, #tpu.memory_space<vmem>>, vector<1x10x10x8xf32>
    %2 = vector.shape_cast %1 : vector<1x10x10x8xf32> to vector<10x10x8xf32>
    %3 = vector.extract_strided_slice %2 {offsets = [0, 0, 0], sizes = [8, 8, 8], strides = [1, 1, 1]} : vector<10x10x8xf32> to vector<8x8x8xf32>
    %4 = vector.shape_cast %3 : vector<8x8x8xf32> to vector<64x8xf32>
    %c0_3 = arith.constant 0 : index
    %c0_4 = arith.constant 0 : index
    %c0_5 = arith.constant 0 : index
    %5 = vector.load %arg2[%c0_3, %c0_4, %c0_5] : memref<9x8x8xf32, #tpu.memory_space<vmem>>, vector<1x8x8xf32>
    %6 = vector.shape_cast %5 : vector<1x8x8xf32> to vector<8x8xf32>
    %cst_6 = arith.constant dense<0.000000e+00> : vector<64x8xf32>
    %7 = tpu.matmul %4, %6, %cst_6 {dimension_numbers = #tpu.dot_dimension_numbers<[1], [0], [0], [1], [0, 0, 1, 1], [], []>} : vector<64x8xf32>, vector<8x8xf32>, vector<64x8xf32> -> vector<64x8xf32>
    %8 = arith.addf %0, %7 : vector<64x8xf32>
    %9 = vector.extract_strided_slice %2 {offsets = [0, 1, 0], sizes = [8, 8, 8], strides = [1, 1, 1]} : vector<10x10x8xf32> to vector<8x8x8xf32>
    %10 = vector.shape_cast %9 : vector<8x8x8xf32> to vector<64x8xf32>
    %c1 = arith.constant 1 : index
    %c0_7 = arith.constant 0 : index
    %c0_8 = arith.constant 0 : index
    %11 = vector.load %arg2[%c1, %c0_7, %c0_8] : memref<9x8x8xf32, #tpu.memory_space<vmem>>, vector<1x8x8xf32>
    %12 = vector.shape_cast %11 : vector<1x8x8xf32> to vector<8x8xf32>
    %cst_9 = arith.constant dense<0.000000e+00> : vector<64x8xf32>
    %13 = tpu.matmul %10, %12, %cst_9 {dimension_numbers = #tpu.dot_dimension_numbers<[1], [0], [0], [1], [0, 0, 1, 1], [], []>} : vector<64x8xf32>, vector<8x8xf32>, vector<64x8xf32> -> vector<64x8xf32>
    %14 = arith.addf %8, %13 : vector<64x8xf32>
    %15 = vector.extract_strided_slice %2 {offsets = [0, 2, 0], sizes = [8, 8, 8], strides = [1, 1, 1]} : vector<10x10x8xf32> to vector<8x8x8xf32>
    %16 = vector.shape_cast %15 : vector<8x8x8xf32> to vector<64x8xf32>
    %c2 = arith.constant 2 : index
    %c0_10 = arith.constant 0 : index
    %c0_11 = arith.constant 0 : index
    %17 = vector.load %arg2[%c2, %c0_10, %c0_11] : memref<9x8x8xf32, #tpu.memory_space<vmem>>, vector<1x8x8xf32>
    %18 = vector.shape_cast %17 : vector<1x8x8xf32> to vector<8x8xf32>
    %cst_12 = arith.constant dense<0.000000e+00> : vector<64x8xf32>
    %19 = tpu.matmul %16, %18, %cst_12 {dimension_numbers = #tpu.dot_dimension_numbers<[1], [0], [0], [1], [0, 0, 1, 1], [], []>} : vector<64x8xf32>, vector<8x8xf32>, vector<64x8xf32> -> vector<64x8xf32>
    %20 = arith.addf %14, %19 : vector<64x8xf32>
    %21 = vector.extract_strided_slice %2 {offsets = [1, 0, 0], sizes = [8, 8, 8], strides = [1, 1, 1]} : vector<10x10x8xf32> to vector<8x8x8xf32>
    %22 = vector.shape_cast %21 : vector<8x8x8xf32> to vector<64x8xf32>
    %c3 = arith.constant 3 : index
    %c0_13 = arith.constant 0 : index
    %c0_14 = arith.constant 0 : index
    %23 = vector.load %arg2[%c3, %c0_13, %c0_14] : memref<9x8x8xf32, #tpu.memory_space<vmem>>, vector<1x8x8xf32>
    %24 = vector.shape_cast %23 : vector<1x8x8xf32> to vector<8x8xf32>
    %cst_15 = arith.constant dense<0.000000e+00> : vector<64x8xf32>
    %25 = tpu.matmul %22, %24, %cst_15 {dimension_numbers = #tpu.dot_dimension_numbers<[1], [0], [0], [1], [0, 0, 1, 1], [], []>} : vector<64x8xf32>, vector<8x8xf32>, vector<64x8xf32> -> vector<64x8xf32>
    %26 = arith.addf %20, %25 : vector<64x8xf32>
    %27 = vector.extract_strided_slice %2 {offsets = [1, 1, 0], sizes = [8, 8, 8], strides = [1, 1, 1]} : vector<10x10x8xf32> to vector<8x8x8xf32>
    %28 = vector.shape_cast %27 : vector<8x8x8xf32> to vector<64x8xf32>
    %c4 = arith.constant 4 : index
    %c0_16 = arith.constant 0 : index
    %c0_17 = arith.constant 0 : index
    %29 = vector.load %arg2[%c4, %c0_16, %c0_17] : memref<9x8x8xf32, #tpu.memory_space<vmem>>, vector<1x8x8xf32>
    %30 = vector.shape_cast %29 : vector<1x8x8xf32> to vector<8x8xf32>
    %cst_18 = arith.constant dense<0.000000e+00> : vector<64x8xf32>
    %31 = tpu.matmul %28, %30, %cst_18 {dimension_numbers = #tpu.dot_dimension_numbers<[1], [0], [0], [1], [0, 0, 1, 1], [], []>} : vector<64x8xf32>, vector<8x8xf32>, vector<64x8xf32> -> vector<64x8xf32>
    %32 = arith.addf %26, %31 : vector<64x8xf32>
    %33 = vector.extract_strided_slice %2 {offsets = [1, 2, 0], sizes = [8, 8, 8], strides = [1, 1, 1]} : vector<10x10x8xf32> to vector<8x8x8xf32>
    %34 = vector.shape_cast %33 : vector<8x8x8xf32> to vector<64x8xf32>
    %c5 = arith.constant 5 : index
    %c0_19 = arith.constant 0 : index
    %c0_20 = arith.constant 0 : index
    %35 = vector.load %arg2[%c5, %c0_19, %c0_20] : memref<9x8x8xf32, #tpu.memory_space<vmem>>, vector<1x8x8xf32>
    %36 = vector.shape_cast %35 : vector<1x8x8xf32> to vector<8x8xf32>
    %cst_21 = arith.constant dense<0.000000e+00> : vector<64x8xf32>
    %37 = tpu.matmul %34, %36, %cst_21 {dimension_numbers = #tpu.dot_dimension_numbers<[1], [0], [0], [1], [0, 0, 1, 1], [], []>} : vector<64x8xf32>, vector<8x8xf32>, vector<64x8xf32> -> vector<64x8xf32>
    %38 = arith.addf %32, %37 : vector<64x8xf32>
    %39 = vector.extract_strided_slice %2 {offsets = [2, 0, 0], sizes = [8, 8, 8], strides = [1, 1, 1]} : vector<10x10x8xf32> to vector<8x8x8xf32>
    %40 = vector.shape_cast %39 : vector<8x8x8xf32> to vector<64x8xf32>
    %c6 = arith.constant 6 : index
    %c0_22 = arith.constant 0 : index
    %c0_23 = arith.constant 0 : index
    %41 = vector.load %arg2[%c6, %c0_22, %c0_23] : memref<9x8x8xf32, #tpu.memory_space<vmem>>, vector<1x8x8xf32>
    %42 = vector.shape_cast %41 : vector<1x8x8xf32> to vector<8x8xf32>
    %cst_24 = arith.constant dense<0.000000e+00> : vector<64x8xf32>
    %43 = tpu.matmul %40, %42, %cst_24 {dimension_numbers = #tpu.dot_dimension_numbers<[1], [0], [0], [1], [0, 0, 1, 1], [], []>} : vector<64x8xf32>, vector<8x8xf32>, vector<64x8xf32> -> vector<64x8xf32>
    %44 = arith.addf %38, %43 : vector<64x8xf32>
    %45 = vector.extract_strided_slice %2 {offsets = [2, 1, 0], sizes = [8, 8, 8], strides = [1, 1, 1]} : vector<10x10x8xf32> to vector<8x8x8xf32>
    %46 = vector.shape_cast %45 : vector<8x8x8xf32> to vector<64x8xf32>
    %c7 = arith.constant 7 : index
    %c0_25 = arith.constant 0 : index
    %c0_26 = arith.constant 0 : index
    %47 = vector.load %arg2[%c7, %c0_25, %c0_26] : memref<9x8x8xf32, #tpu.memory_space<vmem>>, vector<1x8x8xf32>
    %48 = vector.shape_cast %47 : vector<1x8x8xf32> to vector<8x8xf32>
    %cst_27 = arith.constant dense<0.000000e+00> : vector<64x8xf32>
    %49 = tpu.matmul %46, %48, %cst_27 {dimension_numbers = #tpu.dot_dimension_numbers<[1], [0], [0], [1], [0, 0, 1, 1], [], []>} : vector<64x8xf32>, vector<8x8xf32>, vector<64x8xf32> -> vector<64x8xf32>
    %50 = arith.addf %44, %49 : vector<64x8xf32>
    %51 = vector.extract_strided_slice %2 {offsets = [2, 2, 0], sizes = [8, 8, 8], strides = [1, 1, 1]} : vector<10x10x8xf32> to vector<8x8x8xf32>
    %52 = vector.shape_cast %51 : vector<8x8x8xf32> to vector<64x8xf32>
    %c8 = arith.constant 8 : index
    %c0_28 = arith.constant 0 : index
    %c0_29 = arith.constant 0 : index
    %53 = vector.load %arg2[%c8, %c0_28, %c0_29] : memref<9x8x8xf32, #tpu.memory_space<vmem>>, vector<1x8x8xf32>
    %54 = vector.shape_cast %53 : vector<1x8x8xf32> to vector<8x8xf32>
    %cst_30 = arith.constant dense<0.000000e+00> : vector<64x8xf32>
    %55 = tpu.matmul %52, %54, %cst_30 {dimension_numbers = #tpu.dot_dimension_numbers<[1], [0], [0], [1], [0, 0, 1, 1], [], []>} : vector<64x8xf32>, vector<8x8xf32>, vector<64x8xf32> -> vector<64x8xf32>
    %56 = arith.addf %50, %55 : vector<64x8xf32>
    %c0_31 = arith.constant 0 : index
    %c0_32 = arith.constant 0 : index
    %57 = vector.load %arg3[%c0_31, %c0_32] : memref<1x8xf32, #tpu.memory_space<vmem>>, vector<1x8xf32>
    %58 = vector.broadcast %57 : vector<1x8xf32> to vector<64x8xf32>
    %59 = arith.mulf %56, %58 : vector<64x8xf32>
    %c0_33 = arith.constant 0 : index
    %c0_34 = arith.constant 0 : index
    %60 = vector.load %arg4[%c0_33, %c0_34] : memref<1x8xf32, #tpu.memory_space<vmem>>, vector<1x8xf32>
    %61 = vector.broadcast %60 : vector<1x8xf32> to vector<64x8xf32>
    %62 = arith.addf %59, %61 : vector<64x8xf32>
    %cst_35 = arith.constant 0.000000e+00 : f32
    %63 = vector.broadcast %cst_35 : f32 to vector<64x8xf32>
    %64 = arith.maximumf %62, %63 : vector<64x8xf32>
    %65 = vector.shape_cast %64 : vector<64x8xf32> to vector<8x8x8xf32>
    %c0_36 = arith.constant 0 : index
    %c0_37 = arith.constant 0 : index
    %c0_38 = arith.constant 0 : index
    %c0_39 = arith.constant 0 : index
    %66 = vector.load %arg5[%c0_36, %c0_37, %c0_38, %c0_39] : memref<1x8x8x8xf32, #tpu.memory_space<vmem>>, vector<1x8x8x8xf32>
    %67 = vector.shape_cast %66 : vector<1x8x8x8xf32> to vector<8x8x8xf32>
    %68 = vector.shape_cast %65 : vector<8x8x8xf32> to vector<1x8x8x8xf32>
    tpu.vector_store %arg5[%c0_36, %c0_37, %c0_38, %c0_39], %68 {strides = array<i32>} : memref<1x8x8x8xf32, #tpu.memory_space<vmem>>, vector<1x8x8x8xf32>,
    return
  }
  func.func @transform_0(%arg0: i32) -> (i32, i32, i32, i32) {
    %c0_i32 = arith.constant 0 : i32
    %c0_i32_0 = arith.constant 0 : i32
    %c0_i32_1 = arith.constant 0 : i32
    %c0_i32_2 = arith.constant 0 : i32
    return %arg0, %c0_i32, %c0_i32_0, %c0_i32_1 : i32, i32, i32, i32
  }
  func.func @transform_1(%arg0: i32) -> (i32, i32, i32) {
    %c0_i32 = arith.constant 0 : i32
    %c0_i32_0 = arith.constant 0 : i32
    %c0_i32_1 = arith.constant 0 : i32
    %c0_i32_2 = arith.constant 0 : i32
    return %c0_i32, %c0_i32_0, %c0_i32_1 : i32, i32, i32
  }
  func.func @transform_2(%arg0: i32) -> (i32, i32) {
    %c0_i32 = arith.constant 0 : i32
    %c0_i32_0 = arith.constant 0 : i32
    %c0_i32_1 = arith.constant 0 : i32
    return %c0_i32, %c0_i32_0 : i32, i32
  }
  func.func @transform_3(%arg0: i32) -> (i32, i32) {
    %c0_i32 = arith.constant 0 : i32
    %c0_i32_0 = arith.constant 0 : i32
    %c0_i32_1 = arith.constant 0 : i32
    return %c0_i32, %c0_i32_0 : i32, i32
  }
  func.func @transform_4(%arg0: i32) -> (i32, i32, i32, i32) {
    %c0_i32 = arith.constant 0 : i32
    %c0_i32_0 = arith.constant 0 : i32
    %c0_i32_1 = arith.constant 0 : i32
    %c0_i32_2 = arith.constant 0 : i32
    return %arg0, %c0_i32, %c0_i32_0, %c0_i32_1 : i32, i32, i32, i32
  }
}

module attributes {stable_mosaic.version = 11 : i64} {
  func.func @_ca_kernel(%arg0: i32, %arg1: memref<1x64x8xf32, #tpu.memory_space<vmem>>, %arg2: memref<8x2xf32, #tpu.memory_space<vmem>>, %arg3: memref<2x8xf32, #tpu.memory_space<vmem>>, %arg4: memref<1x64x8xf32, #tpu.memory_space<vmem>>) attributes {dimension_semantics = [#tpu.dimension_semantics<parallel>], iteration_bounds = array<i64: 2>, scalar_prefetch = 0 : i64, scratch_operands = 0 : i64, tpu.core_type = #tpu.core_type<tc>, window_params = [{transform_indices = @transform_0, window_bounds = array<i64: 1, 64, 8>}, {pipeline_mode = #tpu.pipeline_mode<synchronous>, transform_indices = @transform_1, window_bounds = array<i64: 8, 2>}, {pipeline_mode = #tpu.pipeline_mode<synchronous>, transform_indices = @transform_2, window_bounds = array<i64: 2, 8>}, {transform_indices = @transform_3, window_bounds = array<i64: 1, 64, 8>}]} {
    %c0 = arith.constant 0 : index
    %c0_0 = arith.constant 0 : index
    %c0_1 = arith.constant 0 : index
    %0 = vector.load %arg1[%c0, %c0_0, %c0_1] : memref<1x64x8xf32, #tpu.memory_space<vmem>>, vector<1x64x8xf32>
    %1 = vector.shape_cast %0 : vector<1x64x8xf32> to vector<64x8xf32>
    %cst = arith.constant dense<0xFF800000> : vector<8xf32>
    %2 = vector.multi_reduction <maximumf>, %1, %cst [0] : vector<64x8xf32> to vector<8xf32>
    %3 = vector.shape_cast %2 : vector<8xf32> to vector<1x8xf32>
    %c0_2 = arith.constant 0 : index
    %c0_3 = arith.constant 0 : index
    %4 = vector.load %arg2[%c0_2, %c0_3] : memref<8x2xf32, #tpu.memory_space<vmem>>, vector<8x2xf32>
    %cst_4 = arith.constant dense<0.000000e+00> : vector<1x2xf32>
    %5 = tpu.matmul %3, %4, %cst_4 {dimension_numbers = #tpu.dot_dimension_numbers<[1], [0], [0], [1], [0, 0, 1, 1], [], []>} : vector<1x8xf32>, vector<8x2xf32>, vector<1x2xf32> -> vector<1x2xf32>
    %cst_5 = arith.constant 0.000000e+00 : f32
    %6 = vector.broadcast %cst_5 : f32 to vector<1x2xf32>
    %7 = arith.maximumf %5, %6 : vector<1x2xf32>
    %c0_6 = arith.constant 0 : index
    %c0_7 = arith.constant 0 : index
    %8 = vector.load %arg3[%c0_6, %c0_7] : memref<2x8xf32, #tpu.memory_space<vmem>>, vector<2x8xf32>
    %cst_8 = arith.constant dense<0.000000e+00> : vector<1x8xf32>
    %9 = tpu.matmul %7, %8, %cst_8 {dimension_numbers = #tpu.dot_dimension_numbers<[1], [0], [0], [1], [0, 0, 1, 1], [], []>} : vector<1x2xf32>, vector<2x8xf32>, vector<1x8xf32> -> vector<1x8xf32>
    %10 = arith.negf %9 : vector<1x8xf32>
    %11 = math.exp %10 : vector<1x8xf32>
    %cst_9 = arith.constant 1.000000e+00 : f32
    %12 = vector.broadcast %cst_9 : f32 to vector<1x8xf32>
    %13 = arith.addf %12, %11 : vector<1x8xf32>
    %14 = arith.divf %12, %13 : vector<1x8xf32>
    %15 = vector.broadcast %14 : vector<1x8xf32> to vector<64x8xf32>
    %16 = arith.mulf %1, %15 : vector<64x8xf32>
    %c0_10 = arith.constant 0 : index
    %c0_11 = arith.constant 0 : index
    %c0_12 = arith.constant 0 : index
    %17 = vector.load %arg4[%c0_10, %c0_11, %c0_12] : memref<1x64x8xf32, #tpu.memory_space<vmem>>, vector<1x64x8xf32>
    %18 = vector.shape_cast %17 : vector<1x64x8xf32> to vector<64x8xf32>
    %19 = vector.shape_cast %16 : vector<64x8xf32> to vector<1x64x8xf32>
    tpu.vector_store %arg4[%c0_10, %c0_11, %c0_12], %19 {strides = array<i32>} : memref<1x64x8xf32, #tpu.memory_space<vmem>>, vector<1x64x8xf32>,
    return
  }
  func.func @transform_0(%arg0: i32) -> (i32, i32, i32) {
    %c0_i32 = arith.constant 0 : i32
    %c0_i32_0 = arith.constant 0 : i32
    %c0_i32_1 = arith.constant 0 : i32
    return %arg0, %c0_i32, %c0_i32_0 : i32, i32, i32
  }
  func.func @transform_1(%arg0: i32) -> (i32, i32) {
    %c0_i32 = arith.constant 0 : i32
    %c0_i32_0 = arith.constant 0 : i32
    %c0_i32_1 = arith.constant 0 : i32
    return %c0_i32, %c0_i32_0 : i32, i32
  }
  func.func @transform_2(%arg0: i32) -> (i32, i32) {
    %c0_i32 = arith.constant 0 : i32
    %c0_i32_0 = arith.constant 0 : i32
    %c0_i32_1 = arith.constant 0 : i32
    return %c0_i32, %c0_i32_0 : i32, i32
  }
  func.func @transform_3(%arg0: i32) -> (i32, i32, i32) {
    %c0_i32 = arith.constant 0 : i32
    %c0_i32_0 = arith.constant 0 : i32
    %c0_i32_1 = arith.constant 0 : i32
    return %arg0, %c0_i32, %c0_i32_0 : i32, i32, i32
  }
}

</mosaic_0001>

<llo_original>
// kernel: cssu_forward.10
$region0: #{cssu_forward.10}
  #allocation0 [shape = 'u32[]', space=smem, size = 0x4, offset = 0x4, fixed_abs, tag = 'smem constant byte address 0x4 - core index']
  #allocation1 [shape = 'u32[144,128]{1,0:T(1,128)}', space=vmem, size = 0x12000, scoped, tag = 'internal scratch']
  %s0 = inlined_call_operand.vmem [shape: f32[2,6,6,4], index: 0, kind: input, shape index: {}]
  %s1 = inlined_call_operand.vmem [shape: f32[9,4,8], index: 1, kind: input, shape index: {}]
  %s2 = inlined_call_operand.vmem [shape: f32[1,8], index: 2, kind: input, shape index: {}]
  %s3 = inlined_call_operand.vmem [shape: f32[1,8], index: 3, kind: input, shape index: {}]
  %s4 = inlined_call_operand.vmem [shape: f32[2,4,4,8], index: 4, kind: output, shape index: {}]
  %s5 = sld [smem:[#allocation0]]
  $region49: #{cssu_forward.10} parent=0
    _
  %s7 = ssub.s32 1, %s5
  %s8 = scalar_select 0, %s7, %s5
  loop: start=0, step=1, limit=4
  $region2: #{cssu_forward.10} parent=0 // loop_pre_header
    _
  $region3: #{cssu_forward.10} parent=0 // loop_header
    %s10 = sphi 0, %s14
    %p11 = scmp.ge.s32.totalorder %s10, 4
    %s20 = sphi 0, %s22
    %s23 = sphi 0, %s20
    %s24 = sphi 0, %s23
    %s40 = sphi 0, %s24
    %s44 = sphi 0, %s44
    %s46 = sphi 0, %s44
    %s47 = sphi 0, %s46
    %s61 = sphi 0, %s47
    %s65 = sphi 0, %s65
    %s67 = sphi 0, %s65
    %s68 = sphi 0, %s67
    %s82 = sphi 0, %s68
    %s86 = sphi 0, %s86
    %s88 = sphi 0, %s86
    %s89 = sphi 0, %s88
    %s103 = sphi 0, %s89
    %s109 = sphi 0, %s111
    %s112 = sphi 0, %s109
    %s113 = sphi 0, %s112
    %s129 = sphi 0, %s113
  $region4: #{cssu_forward.10} parent=0 // loop_header_branch
    %13 = sbr.rel (%p11) target = $region8
  $region5: #{cssu_forward.10} parent=0 // loop_body
    %s15 = ssub.s32 %s10, 1
    %s16 = ssub.s32 %s10, 2
    %s17 = sadd.s32 %s10, 1
    %s18 = ssub.s32 %s10, %s17
    %p19 = scmp.eq.s32.totalorder %s18, 0
    %s21 = sadd.s32 %s20, 1
    %s22 = scalar_select %p19, %s20, %s21
    %p25 = pneg %p19
    %p26 = scmp.eq.s32.totalorder %s10, 1
    %p27 = por %p25, %p26
    %p28 = scmp.ne.s32.totalorder %s20, %s23
    %p29 = scmp.eq.s32.totalorder %s10, 0
    %p30 = por %p28, %p29
    %p31 = scmp.ne.s32.totalorder %s20, %s23
    %p32 = scmp.eq.s32.totalorder %s15, 1
    %p33 = por %p31, %p32
    %p34 = scmp.ne.s32.totalorder %s23, %s24
    %p35 = scmp.eq.s32.totalorder %s15, 0
    %p36 = por %p34, %p35
    %p37 = scmp.ne.s32.totalorder %s23, %s24
    %p38 = scmp.eq.s32.totalorder %s16, 1
    %p39 = por %p37, %p38
    %p41 = scmp.ne.s32.totalorder %s24, %s40
    %p42 = scmp.eq.s32.totalorder %s16, 0
    %p43 = por %p41, %p42
    %s45 = sadd.s32 %s44, 1
    %p48 = scmp.eq.s32.totalorder %s10, 1
    %p49 = scmp.ne.s32.totalorder %s44, %s46
    %p50 = scmp.eq.s32.totalorder %s10, 0
    %p51 = por %p49, %p50
    %p52 = scmp.ne.s32.totalorder %s44, %s46
    %p53 = scmp.eq.s32.totalorder %s15, 1
    %p54 = por %p52, %p53
    %p55 = scmp.ne.s32.totalorder %s46, %s47
    %p56 = scmp.eq.s32.totalorder %s15, 0
    %p57 = por %p55, %p56
    %p58 = scmp.ne.s32.totalorder %s46, %s47
    %p59 = scmp.eq.s32.totalorder %s16, 1
    %p60 = por %p58, %p59
    %p62 = scmp.ne.s32.totalorder %s47, %s61
    %p63 = scmp.eq.s32.totalorder %s16, 0
    %p64 = por %p62, %p63
    %s66 = sadd.s32 %s65, 1
    %p69 = scmp.eq.s32.totalorder %s10, 1
    %p70 = scmp.ne.s32.totalorder %s65, %s67
    %p71 = scmp.eq.s32.totalorder %s10, 0
    %p72 = por %p70, %p71
    %p73 = scmp.ne.s32.totalorder %s65, %s67
    %p74 = scmp.eq.s32.totalorder %s15, 1
    %p75 = por %p73, %p74
    %p76 = scmp.ne.s32.totalorder %s67, %s68
    %p77 = scmp.eq.s32.totalorder %s15, 0
    %p78 = por %p76, %p77
    %p79 = scmp.ne.s32.totalorder %s67, %s68
    %p80 = scmp.eq.s32.totalorder %s16, 1
    %p81 = por %p79, %p80
    %p83 = scmp.ne.s32.totalorder %s68, %s82
    %p84 = scmp.eq.s32.totalorder %s16, 0
    %p85 = por %p83, %p84
    %s87 = sadd.s32 %s86, 1
    %p90 = scmp.eq.s32.totalorder %s10, 1
    %p91 = scmp.ne.s32.totalorder %s86, %s88
    %p92 = scmp.eq.s32.totalorder %s10, 0
    %p93 = por %p91, %p92
    %p94 = scmp.ne.s32.totalorder %s86, %s88
    %p95 = scmp.eq.s32.totalorder %s15, 1
    %p96 = por %p94, %p95
    %p97 = scmp.ne.s32.totalorder %s88, %s89
    %p98 = scmp.eq.s32.totalorder %s15, 0
    %p99 = por %p97, %p98
    %p100 = scmp.ne.s32.totalorder %s88, %s89
    %p101 = scmp.eq.s32.totalorder %s16, 1
    %p102 = por %p100, %p101
    %p104 = scmp.ne.s32.totalorder %s89, %s103
    %p105 = scmp.eq.s32.totalorder %s16, 0
    %p106 = por %p104, %p105
    %s107 = ssub.s32 %s10, %s17
    %p108 = scmp.eq.s32.totalorder %s107, 0
    %s110 = sadd.s32 %s109, 1
    %s111 = scalar_select %p108, %s109, %s110
    %p114 = pneg %p108
    %p115 = scmp.eq.s32.totalorder %s10, 1
    %p116 = por %p114, %p115
    %p117 = scmp.ne.s32.totalorder %s109, %s112
    %p118 = scmp.eq.s32.totalorder %s10, 0
    %p119 = por %p117, %p118
    %p120 = scmp.ne.s32.totalorder %s109, %s112
    %p121 = scmp.eq.s32.totalorder %s15, 1
    %p122 = por %p120, %p121
    %p123 = scmp.ne.s32.totalorder %s112, %s113
    %p124 = scmp.eq.s32.totalorder %s15, 0
    %p125 = por %p123, %p124
    %p126 = scmp.ne.s32.totalorder %s112, %s113
    %p127 = scmp.eq.s32.totalorder %s16, 1
    %p128 = por %p126, %p127
    %p130 = scmp.ne.s32.totalorder %s113, %s129
    %p131 = scmp.eq.s32.totalorder %s16, 0
    %p132 = por %p130, %p131
    %p133 = scmp.le.s32.totalorder 1, %s10
    %p134 = scmp.lt.s32.totalorder %s10, 3
    %p135 = pnand %p133, %p134
    %p136 = pneg %p135
    // Predicated region
    $region9: #{cssu_forward.10} parent=5 // pred_check
      _
    $region10: #{cssu_forward.10} parent=5 // pred_check_branch
      %138 = sbr.rel (%p135) target = $region12
    $region11: #{cssu_forward.10} parent=5 // pred_region
      %s139 = ssub.s32 %s10, 1
      // Predicated region
      $region13: #{cssu_forward.10} parent=11 // pred_check
        %p140 = pneg %p57
      $region14: #{cssu_forward.10} parent=11 // pred_check_branch
        %142 = sbr.rel (%p140) target = $region16
      $region15: #{cssu_forward.10} parent=11 // pred_region
        _
      $region16: #{cssu_forward.10} parent=11 // pred_fallthru
        _
      // Predicated region
      $region17: #{cssu_forward.10} parent=11 // pred_check
        %p143 = pneg %p78
      $region18: #{cssu_forward.10} parent=11 // pred_check_branch
        %145 = sbr.rel (%p143) target = $region20
      $region19: #{cssu_forward.10} parent=11 // pred_region
        _
      $region20: #{cssu_forward.10} parent=11 // pred_fallthru
        _
      // Predicated region
      $region21: #{cssu_forward.10} parent=11 // pred_check
        %p146 = pneg %p99
      $region22: #{cssu_forward.10} parent=11 // pred_check_branch
        %148 = sbr.rel (%p146) target = $region24
      $region23: #{cssu_forward.10} parent=11 // pred_region
        _
      $region24: #{cssu_forward.10} parent=11 // pred_fallthru
        _
    $region12: #{cssu_forward.10} parent=5 // pred_fallthru
      _
    %p149 = scmp.lt.s32.totalorder %s10, 2
    // Predicated region
    $region25: #{cssu_forward.10} parent=5 // pred_check
      %p150 = pneg %p149
    $region26: #{cssu_forward.10} parent=5 // pred_check_branch
      %152 = sbr.rel (%p150) target = $region28
    $region27: #{cssu_forward.10} parent=5 // pred_region
      // Predicated region
      $region29: #{cssu_forward.10} parent=27 // pred_check
        %p153 = pneg %p30
      $region30: #{cssu_forward.10} parent=27 // pred_check_branch
        %155 = sbr.rel (%p153) target = $region32
      $region31: #{cssu_forward.10} parent=27 // pred_region
        %p156 = scmp.lt.s32.totalorder %s10, 1
        %s157 = scalar_select %p156, %s10, 1
        %s158 = smul.addr %s157, 6
        %s159 = smul.addr %s158, 8
        %s160 = scalar_lea.vmem %s0, %s159
      $region32: #{cssu_forward.10} parent=27 // pred_fallthru
        _
    $region28: #{cssu_forward.10} parent=5 // pred_fallthru
      _
    %p161 = scmp.le.s32.totalorder 1, %s10
    %p162 = scmp.lt.s32.totalorder %s10, 3
    %p163 = pnand %p161, %p162
    %p164 = pneg %p163
    // Predicated region
    $region33: #{cssu_forward.10} parent=5 // pred_check
      _
    $region34: #{cssu_forward.10} parent=5 // pred_check_branch
      %166 = sbr.rel (%p163) target = $region36
    $region35: #{cssu_forward.10} parent=5 // pred_region
      %s167 = ssub.s32 %s10, 1
      %p168 = scmp.lt.s32.totalorder %s15, 1
      %s169 = scalar_select %p168, %s15, 1
      %s170 = smul.addr %s169, 6
      %s171 = smul.addr %s170, 8
      %s172 = scalar_lea.vmem %s0, %s171
      %p173 = pneg %p36
      %p174 = pneg %p33
      %p175 = pneg %p57
      %p176 = pneg %p54
      %p177 = pneg %p78
      %p178 = pneg %p75
      %p179 = pneg %p99
      %p180 = pneg %p96
      %p181 = pneg %p125
      %p182 = pneg %p122
      %p183 = scmp.lt.s32.totalorder %s15, 1
      %s184 = scalar_select %p183, %s15, 1
      %s185 = smul.addr %s184, 4
      %s186 = smul.addr %s185, 4
      %s187 = scalar_lea.vmem %s4, %s186
      %p188 = scmp.lt.s32.totalorder %s15, 1
      %s189 = scalar_select %p188, %s15, 1
      %s190 = smul.addr %s189, 6
      %s191 = smul.addr %s190, 8
      %s192 = scalar_lea.vmem %s0, %s191
      %p193 = scmp.lt.s32.totalorder %s15, 1
      %s194 = scalar_select %p193, %s15, 1
      %s195 = smul.addr %s194, 4
      %s196 = smul.addr %s195, 4
      %s197 = scalar_lea.vmem %s4, %s196
      %v198 = vld [vmem:[%s192] sm:$0x3f]
      %v199 = vld [vmem:[%s192 + $0x8] sm:$0x3f]
      %v200 = vld [vmem:[%s192 + $0x10] sm:$0x3f]
      %v201 = vld [vmem:[%s192 + $0x18] sm:$0x3f]
      %v202 = vld [vmem:[%s192 + $0x20] sm:$0x3f]
      %v203 = vld [vmem:[%s192 + $0x28] sm:$0x3f]
      %v204 = vld [vmem:[%s1] sm:$0xf]
      %v209 = vcombine.high %v198, %v198
      %v210 = vcombine.high %v199, %v199
      %v211 = vcombine.high %v200, %v200
      %v212 = vcombine.high %v201, %v201
      %vm213 = vcmask 1042432
      %vm214 = vcmask 1046532
      %vm215 = vmor %vm213, %vm214
      %v216 = vrot.slane %v198, 5
      %v217 = vrot.slane %v216, 4
      %v218 = vrot.slane %v209, 5
      %v219 = vsel %vm215, %v217, %v218
      %v220 = vrot.slane %v199, 5
      %v221 = vrot.slane %v220, 4
      %v222 = vrot.slane %v210, 5
      %v223 = vsel %vm215, %v221, %v222
      %v224 = vrot.slane %v200, 5
      %v225 = vrot.slane %v224, 4
      %v226 = vrot.slane %v211, 5
      %v227 = vsel %vm215, %v225, %v226
      %v228 = vrot.slane %v201, 5
      %v229 = vrot.slane %v228, 4
      %v230 = vrot.slane %v212, 5
      %v231 = vsel %vm215, %v229, %v230
      %s232 = scalar_lea.vmem %s1, 4
      %v233 = vld [vmem:[%s232] sm:$0xf]
      %v234 = vcombine.low %v219, %v223
      %v235 = vcombine.low %v227, %v231
      %vm236 = vcmask 31744
      %v237 = vsel %vm236, %v234, 0
      %v239 = vsel %vm236, %v235, 0
      %vm241 = vcmask 1043456
      %v243 = vsel %vm241, %v233, 0
      %245 = vmatprep.subr.mxu0 0.0
      %246 = vmatpush1.msra.mxu0 %v243
      %247 = vmatprep.subr.mxu0 0.0
      %248 = vmatpush1.msra.mxu0 0.0
      %249 = vmatprep.subr.mxu0 0.0
      %250 = vmatpush1.msra.mxu0 0.0
      %251 = vmatprep.subr.mxu0 0.0
      %252 = vmatpush1.msra.mxu0 0.0
      %253 = vmatprep.subr.mxu0 0.0
      %254 = vmatpush1.msra.mxu0 0.0
      %255 = vmatprep.subr.mxu0 0.0
      %256 = vmatpush1.msra.mxu0 0.0
      %257 = vmatprep.subr.mxu0 0.0
      %258 = vmatpush1.msra.mxu0 0.0
      %259 = vmatprep.subr.mxu0 0.0
      %260 = vmatpush1.msra.mxu0 0.0
      %261 = vmatprep.subr.mxu0 0.0
      %262 = vmatpush1.msra.mxu0 0.0
      %263 = vmatprep.subr.mxu0 0.0
      %264 = vmatpush1.msra.mxu0 0.0
      %265 = vmatprep.subr.mxu0 0.0
      %266 = vmatpush1.msra.mxu0 0.0
      %267 = vmatprep.subr.mxu0 0.0
      %268 = vmatpush1.msra.mxu0 0.0
      %269 = vmatprep.subr.mxu0 0.0
      %270 = vmatpush1.msra.mxu0 0.0
      %271 = vmatprep.subr.mxu0 0.0
      %272 = vmatpush1.msra.mxu0 0.0
      %273 = vmatprep.subr.mxu0 0.0
      %274 = vmatpush1.msra.mxu0 0.0
      %275 = vmatprep.subr.mxu0 0.0
      %276 = vmatpush1.msra.mxu0 0.0
      %277 = vmatprep.subr.mxu0 0.0
      %278 = vmatpush1.msra.mxu0 0.0
      %279 = vmatprep.subr.mxu0 0.0
      %280 = vmatpush1.msra.mxu0 0.0
      %281 = vmatprep.subr.mxu0 0.0
      %282 = vmatpush1.msra.mxu0 0.0
      %283 = vmatprep.subr.mxu0 0.0
      %284 = vmatpush1.msra.mxu0 0.0
      %285 = vmatprep.subr.mxu0 0.0
      %286 = vmatpush1.msra.mxu0 0.0
      %287 = vmatprep.subr.mxu0 0.0
      %288 = vmatpush1.msra.mxu0 0.0
      %289 = vmatprep.subr.mxu0 0.0
      %290 = vmatpush1.msra.mxu0 0.0
      %291 = vmatprep.subr.mxu0 0.0
      %292 = vmatpush1.msra.mxu0 0.0
      %293 = vmatprep.subr.mxu0 0.0
      %294 = vmatpush1.msra.mxu0 0.0
      %295 = vmatprep.subr.mxu0 0.0
      %296 = vmatpush1.msra.mxu0 0.0
      %297 = vmatprep.subr.mxu0 0.0
      %298 = vmatpush1.msra.mxu0 0.0
      %299 = vmatprep.subr.mxu0 0.0
      %300 = vmatpush1.msra.mxu0 0.0
      %301 = vmatprep.subr.mxu0 0.0
      %302 = vmatpush1.msra.mxu0 0.0
      %303 = vmatprep.subr.mxu0 0.0
      %304 = vmatpush1.msra.mxu0 0.0
      %305 = vmatprep.subr.mxu0 0.0
      %306 = vmatpush1.msra.mxu0 0.0
      %307 = vmatprep.subr.mxu0 0.0
      %308 = vmatpush1.msra.mxu0 0.0
      %309 = vmatprep.mubr.f32.mxu0 0.0
      %310 = vmatmul.mubr.f32.gmra.mrb[0].mxu0 %v237
      %v311 = vpop.f32.mrb[0].mxu0
      %v312 = vadd.f32 0.0, %v311
      %v313 = vpop.f32.mrb[0].mxu0
      %314 = vmatprep.mubr.f32.mxu0 0.0
      %315 = vmatmul.mubr.f32.gmra.mrb[0].mxu0 %v239
      %v316 = vpop.f32.mrb[0].mxu0
      %v317 = vadd.f32 0.0, %v316
      %v318 = vpop.f32.mrb[0].mxu0
      %319 = vdwg.mxu0
      %v320 = vcombine.low %v198, %v199
      %v321 = vcombine.low %v200, %v201
      %v322 = vsel %vm236, %v320, 0
      %v324 = vsel %vm236, %v321, 0
      %v327 = vsel %vm241, %v204, 0
      %329 = vmatprep.subr.mxu0 0.0
      %330 = vmatpush1.msra.mxu0 %v327
      %331 = vmatprep.subr.mxu0 0.0
      %332 = vmatpush1.msra.mxu0 0.0
      %333 = vmatprep.subr.mxu0 0.0
      %334 = vmatpush1.msra.mxu0 0.0
      %335 = vmatprep.subr.mxu0 0.0
      %336 = vmatpush1.msra.mxu0 0.0
      %337 = vmatprep.subr.mxu0 0.0
      %338 = vmatpush1.msra.mxu0 0.0
      %339 = vmatprep.subr.mxu0 0.0
      %340 = vmatpush1.msra.mxu0 0.0
      %341 = vmatprep.subr.mxu0 0.0
      %342 = vmatpush1.msra.mxu0 0.0
      %343 = vmatprep.subr.mxu0 0.0
      %344 = vmatpush1.msra.mxu0 0.0
      %345 = vmatprep.subr.mxu0 0.0
      %346 = vmatpush1.msra.mxu0 0.0
      %347 = vmatprep.subr.mxu0 0.0
      %348 = vmatpush1.msra.mxu0 0.0
      %349 = vmatprep.subr.mxu0 0.0
      %350 = vmatpush1.msra.mxu0 0.0
      %351 = vmatprep.subr.mxu0 0.0
      %352 = vmatpush1.msra.mxu0 0.0
      %353 = vmatprep.subr.mxu0 0.0
      %354 = vmatpush1.msra.mxu0 0.0
      %355 = vmatprep.subr.mxu0 0.0
      %356 = vmatpush1.msra.mxu0 0.0
      %357 = vmatprep.subr.mxu0 0.0
      %358 = vmatpush1.msra.mxu0 0.0
      %359 = vmatprep.subr.mxu0 0.0
      %360 = vmatpush1.msra.mxu0 0.0
      %361 = vmatprep.subr.mxu0 0.0
      %362 = vmatpush1.msra.mxu0 0.0
      %363 = vmatprep.subr.mxu0 0.0
      %364 = vmatpush1.msra.mxu0 0.0
      %365 = vmatprep.subr.mxu0 0.0
      %366 = vmatpush1.msra.mxu0 0.0
      %367 = vmatprep.subr.mxu0 0.0
      %368 = vmatpush1.msra.mxu0 0.0
      %369 = vmatprep.subr.mxu0 0.0
      %370 = vmatpush1.msra.mxu0 0.0
      %371 = vmatprep.subr.mxu0 0.0
      %372 = vmatpush1.msra.mxu0 0.0
      %373 = vmatprep.subr.mxu0 0.0
      %374 = vmatpush1.msra.mxu0 0.0
      %375 = vmatprep.subr.mxu0 0.0
      %376 = vmatpush1.msra.mxu0 0.0
      %377 = vmatprep.subr.mxu0 0.0
      %378 = vmatpush1.msra.mxu0 0.0
      %379 = vmatprep.subr.mxu0 0.0
      %380 = vmatpush1.msra.mxu0 0.0
      %381 = vmatprep.subr.mxu0 0.0
      %382 = vmatpush1.msra.mxu0 0.0
      %383 = vmatprep.subr.mxu0 0.0
      %384 = vmatpush1.msra.mxu0 0.0
      %385 = vmatprep.subr.mxu0 0.0
      %386 = vmatpush1.msra.mxu0 0.0
      %387 = vmatprep.subr.mxu0 0.0
      %388 = vmatpush1.msra.mxu0 0.0
      %389 = vmatprep.subr.mxu0 0.0
      %390 = vmatpush1.msra.mxu0 0.0
      %391 = vmatprep.subr.mxu0 0.0
      %392 = vmatpush1.msra.mxu0 0.0
      %393 = vmatprep.mubr.f32.mxu0 0.0
      %394 = vmatmul.mubr.f32.gmra.mrb[0].mxu0 %v322
      %v395 = vpop.f32.mrb[0].mxu0
      %v396 = vadd.f32 %v312, %v395
      %v397 = vpop.f32.mrb[0].mxu0
      %398 = vmatprep.mubr.f32.mxu0 0.0
      %399 = vmatmul.mubr.f32.gmra.mrb[0].mxu0 %v324
      %v400 = vpop.f32.mrb[0].mxu0
      %v401 = vadd.f32 %v317, %v400
      %v402 = vpop.f32.mrb[0].mxu0
      %403 = vdwg.mxu0
      %vm404 = vcmask 1041408
      %vm405 = vcmask 1045508
      %vm406 = vmor %vm404, %vm405
      %v407 = vrot.slane %v198, 6
      %v408 = vrot.slane %v407, 4
      %v409 = vrot.slane %v209, 6
      %v410 = vsel %vm406, %v408, %v409
      %v411 = vrot.slane %v199, 6
      %v412 = vrot.slane %v411, 4
      %v413 = vrot.slane %v210, 6
      %v414 = vsel %vm406, %v412, %v413
      %v415 = vrot.slane %v200, 6
      %v416 = vrot.slane %v415, 4
      %v417 = vrot.slane %v211, 6
      %v418 = vsel %vm406, %v416, %v417
      %v419 = vrot.slane %v201, 6
      %v420 = vrot.slane %v419, 4
      %v421 = vrot.slane %v212, 6
      %v422 = vsel %vm406, %v420, %v421
      %s423 = scalar_lea.vmem %s1, 8
      %v424 = vld [vmem:[%s423] sm:$0xf]
      %v425 = vcombine.low %v410, %v414
      %v426 = vcombine.low %v418, %v422
      %v427 = vsel %vm236, %v425, 0
      %v429 = vsel %vm236, %v426, 0
      %v432 = vsel %vm241, %v424, 0
      %434 = vmatprep.subr.mxu0 0.0
      %435 = vmatpush1.msra.mxu0 %v432
      %436 = vmatprep.subr.mxu0 0.0
      %437 = vmatpush1.msra.mxu0 0.0
      %438 = vmatprep.subr.mxu0 0.0
      %439 = vmatpush1.msra.mxu0 0.0
      %440 = vmatprep.subr.mxu0 0.0
      %441 = vmatpush1.msra.mxu0 0.0
      %442 = vmatprep.subr.mxu0 0.0
      %443 = vmatpush1.msra.mxu0 0.0
      %444 = vmatprep.subr.mxu0 0.0
      %445 = vmatpush1.msra.mxu0 0.0
      %446 = vmatprep.subr.mxu0 0.0
      %447 = vmatpush1.msra.mxu0 0.0
      %448 = vmatprep.subr.mxu0 0.0
      %449 = vmatpush1.msra.mxu0 0.0
      %450 = vmatprep.subr.mxu0 0.0
      %451 = vmatpush1.msra.mxu0 0.0
      %452 = vmatprep.subr.mxu0 0.0
      %453 = vmatpush1.msra.mxu0 0.0
      %454 = vmatprep.subr.mxu0 0.0
      %455 = vmatpush1.msra.mxu0 0.0
      %456 = vmatprep.subr.mxu0 0.0
      %457 = vmatpush1.msra.mxu0 0.0
      %458 = vmatprep.subr.mxu0 0.0
      %459 = vmatpush1.msra.mxu0 0.0
      %460 = vmatprep.subr.mxu0 0.0
      %461 = vmatpush1.msra.mxu0 0.0
      %462 = vmatprep.subr.mxu0 0.0
      %463 = vmatpush1.msra.mxu0 0.0
      %464 = vmatprep.subr.mxu0 0.0
      %465 = vmatpush1.msra.mxu0 0.0
      %466 = vmatprep.subr.mxu0 0.0
      %467 = vmatpush1.msra.mxu0 0.0
      %468 = vmatprep.subr.mxu0 0.0
      %469 = vmatpush1.msra.mxu0 0.0
      %470 = vmatprep.subr.mxu0 0.0
      %471 = vmatpush1.msra.mxu0 0.0
      %472 = vmatprep.subr.mxu0 0.0
      %473 = vmatpush1.msra.mxu0 0.0
      %474 = vmatprep.subr.mxu0 0.0
      %475 = vmatpush1.msra.mxu0 0.0
      %476 = vmatprep.subr.mxu0 0.0
      %477 = vmatpush1.msra.mxu0 0.0
      %478 = vmatprep.subr.mxu0 0.0
      %479 = vmatpush1.msra.mxu0 0.0
      %480 = vmatprep.subr.mxu0 0.0
      %481 = vmatpush1.msra.mxu0 0.0
      %482 = vmatprep.subr.mxu0 0.0
      %483 = vmatpush1.msra.mxu0 0.0
      %484 = vmatprep.subr.mxu0 0.0
      %485 = vmatpush1.msra.mxu0 0.0
      %486 = vmatprep.subr.mxu0 0.0
      %487 = vmatpush1.msra.mxu0 0.0
      %488 = vmatprep.subr.mxu0 0.0
      %489 = vmatpush1.msra.mxu0 0.0
      %490 = vmatprep.subr.mxu0 0.0
      %491 = vmatpush1.msra.mxu0 0.0
      %492 = vmatprep.subr.mxu0 0.0
      %493 = vmatpush1.msra.mxu0 0.0
      %494 = vmatprep.subr.mxu0 0.0
      %495 = vmatpush1.msra.mxu0 0.0
      %496 = vmatprep.subr.mxu0 0.0
      %497 = vmatpush1.msra.mxu0 0.0
      %498 = vmatprep.mubr.f32.mxu0 0.0
      %499 = vmatmul.mubr.f32.gmra.mrb[0].mxu0 %v427
      %v500 = vpop.f32.mrb[0].mxu0
      %v501 = vadd.f32 0.0, %v500
      %v502 = vpop.f32.mrb[0].mxu0
      %503 = vmatprep.mubr.f32.mxu0 0.0
      %504 = vmatmul.mubr.f32.gmra.mrb[0].mxu0 %v429
      %v505 = vpop.f32.mrb[0].mxu0
      %v506 = vadd.f32 0.0, %v505
      %v507 = vpop.f32.mrb[0].mxu0
      %508 = vdwg.mxu0
      %v509 = vadd.f32 %v396, %v501
      %v510 = vadd.f32 %v401, %v506
      %s511 = scalar_lea.vmem %s1, 12
      %v512 = vld [vmem:[%s511] sm:$0xf]
      %v514 = vcombine.low %v199, %v200
      %v515 = vcombine.low %v201, %v202
      %v516 = vsel %vm236, %v514, 0
      %v518 = vsel %vm236, %v515, 0
      %v521 = vsel %vm241, %v512, 0
      %523 = vmatprep.subr.mxu0 0.0
      %524 = vmatpush1.msra.mxu0 %v521
      %525 = vmatprep.subr.mxu0 0.0
      %526 = vmatpush1.msra.mxu0 0.0
      %527 = vmatprep.subr.mxu0 0.0
      %528 = vmatpush1.msra.mxu0 0.0
      %529 = vmatprep.subr.mxu0 0.0
      %530 = vmatpush1.msra.mxu0 0.0
      %531 = vmatprep.subr.mxu0 0.0
      %532 = vmatpush1.msra.mxu0 0.0
      %533 = vmatprep.subr.mxu0 0.0
      %534 = vmatpush1.msra.mxu0 0.0
      %535 = vmatprep.subr.mxu0 0.0
      %536 = vmatpush1.msra.mxu0 0.0
      %537 = vmatprep.subr.mxu0 0.0
      %538 = vmatpush1.msra.mxu0 0.0
      %539 = vmatprep.subr.mxu0 0.0
      %540 = vmatpush1.msra.mxu0 0.0
      %541 = vmatprep.subr.mxu0 0.0
      %542 = vmatpush1.msra.mxu0 0.0
      %543 = vmatprep.subr.mxu0 0.0
      %544 = vmatpush1.msra.mxu0 0.0
      %545 = vmatprep.subr.mxu0 0.0
      %546 = vmatpush1.msra.mxu0 0.0
      %547 = vmatprep.subr.mxu0 0.0
      %548 = vmatpush1.msra.mxu0 0.0
      %549 = vmatprep.subr.mxu0 0.0
      %550 = vmatpush1.msra.mxu0 0.0
      %551 = vmatprep.subr.mxu0 0.0
      %552 = vmatpush1.msra.mxu0 0.0
      %553 = vmatprep.subr.mxu0 0.0
      %554 = vmatpush1.msra.mxu0 0.0
      %555 = vmatprep.subr.mxu0 0.0
      %556 = vmatpush1.msra.mxu0 0.0
      %557 = vmatprep.subr.mxu0 0.0
      %558 = vmatpush1.msra.mxu0 0.0
      %559 = vmatprep.subr.mxu0 0.0
      %560 = vmatpush1.msra.mxu0 0.0
      %561 = vmatprep.subr.mxu0 0.0
      %562 = vmatpush1.msra.mxu0 0.0
      %563 = vmatprep.subr.mxu0 0.0
      %564 = vmatpush1.msra.mxu0 0.0
      %565 = vmatprep.subr.mxu0 0.0
      %566 = vmatpush1.msra.mxu0 0.0
      %567 = vmatprep.subr.mxu0 0.0
      %568 = vmatpush1.msra.mxu0 0.0
      %569 = vmatprep.subr.mxu0 0.0
      %570 = vmatpush1.msra.mxu0 0.0
      %571 = vmatprep.subr.mxu0 0.0
      %572 = vmatpush1.msra.mxu0 0.0
      %573 = vmatprep.subr.mxu0 0.0
      %574 = vmatpush1.msra.mxu0 0.0
      %575 = vmatprep.subr.mxu0 0.0
      %576 = vmatpush1.msra.mxu0 0.0
      %577 = vmatprep.subr.mxu0 0.0
      %578 = vmatpush1.msra.mxu0 0.0
      %579 = vmatprep.subr.mxu0 0.0
      %580 = vmatpush1.msra.mxu0 0.0
      %581 = vmatprep.subr.mxu0 0.0
      %582 = vmatpush1.msra.mxu0 0.0
      %583 = vmatprep.subr.mxu0 0.0
      %584 = vmatpush1.msra.mxu0 0.0
      %585 = vmatprep.subr.mxu0 0.0
      %586 = vmatpush1.msra.mxu0 0.0
      %587 = vmatprep.mubr.f32.mxu0 0.0
      %588 = vmatmul.mubr.f32.gmra.mrb[0].mxu0 %v516
      %v589 = vpop.f32.mrb[0].mxu0
      %v590 = vadd.f32 0.0, %v589
      %v591 = vpop.f32.mrb[0].mxu0
      %592 = vmatprep.mubr.f32.mxu0 0.0
      %593 = vmatmul.mubr.f32.gmra.mrb[0].mxu0 %v518
      %v594 = vpop.f32.mrb[0].mxu0
      %v595 = vadd.f32 0.0, %v594
      %v596 = vpop.f32.mrb[0].mxu0
      %597 = vdwg.mxu0
      %v598 = vadd.f32 %v509, %v590
      %v599 = vadd.f32 %v510, %v595
      %v600 = vcombine.high %v202, %v202
      %v601 = vrot.slane %v202, 5
      %v602 = vrot.slane %v601, 4
      %v603 = vrot.slane %v600, 5
      %v604 = vsel %vm215, %v602, %v603
      %s605 = scalar_lea.vmem %s1, 16
      %v606 = vld [vmem:[%s605] sm:$0xf]
      %v607 = vcombine.low %v223, %v227
      %v608 = vcombine.low %v231, %v604
      %v609 = vsel %vm236, %v607, 0
      %v611 = vsel %vm236, %v608, 0
      %v614 = vsel %vm241, %v606, 0
      %616 = vmatprep.subr.mxu0 0.0
      %617 = vmatpush1.msra.mxu0 %v614
      %618 = vmatprep.subr.mxu0 0.0
      %619 = vmatpush1.msra.mxu0 0.0
      %620 = vmatprep.subr.mxu0 0.0
      %621 = vmatpush1.msra.mxu0 0.0
      %622 = vmatprep.subr.mxu0 0.0
      %623 = vmatpush1.msra.mxu0 0.0
      %624 = vmatprep.subr.mxu0 0.0
      %625 = vmatpush1.msra.mxu0 0.0
      %626 = vmatprep.subr.mxu0 0.0
      %627 = vmatpush1.msra.mxu0 0.0
      %628 = vmatprep.subr.mxu0 0.0
      %629 = vmatpush1.msra.mxu0 0.0
      %630 = vmatprep.subr.mxu0 0.0
      %631 = vmatpush1.msra.mxu0 0.0
      %632 = vmatprep.subr.mxu0 0.0
      %633 = vmatpush1.msra.mxu0 0.0
      %634 = vmatprep.subr.mxu0 0.0
      %635 = vmatpush1.msra.mxu0 0.0
      %636 = vmatprep.subr.mxu0 0.0
      %637 = vmatpush1.msra.mxu0 0.0
      %638 = vmatprep.subr.mxu0 0.0
      %639 = vmatpush1.msra.mxu0 0.0
      %640 = vmatprep.subr.mxu0 0.0
      %641 = vmatpush1.msra.mxu0 0.0
      %642 = vmatprep.subr.mxu0 0.0
      %643 = vmatpush1.msra.mxu0 0.0
      %644 = vmatprep.subr.mxu0 0.0
      %645 = vmatpush1.msra.mxu0 0.0
      %646 = vmatprep.subr.mxu0 0.0
      %647 = vmatpush1.msra.mxu0 0.0
      %648 = vmatprep.subr.mxu0 0.0
      %649 = vmatpush1.msra.mxu0 0.0
      %650 = vmatprep.subr.mxu0 0.0
      %651 = vmatpush1.msra.mxu0 0.0
      %652 = vmatprep.subr.mxu0 0.0
      %653 = vmatpush1.msra.mxu0 0.0
      %654 = vmatprep.subr.mxu0 0.0
      %655 = vmatpush1.msra.mxu0 0.0
      %656 = vmatprep.subr.mxu0 0.0
      %657 = vmatpush1.msra.mxu0 0.0
      %658 = vmatprep.subr.mxu0 0.0
      %659 = vmatpush1.msra.mxu0 0.0
      %660 = vmatprep.subr.mxu0 0.0
      %661 = vmatpush1.msra.mxu0 0.0
      %662 = vmatprep.subr.mxu0 0.0
      %663 = vmatpush1.msra.mxu0 0.0
      %664 = vmatprep.subr.mxu0 0.0
      %665 = vmatpush1.msra.mxu0 0.0
      %666 = vmatprep.subr.mxu0 0.0
      %667 = vmatpush1.msra.mxu0 0.0
      %668 = vmatprep.subr.mxu0 0.0
      %669 = vmatpush1.msra.mxu0 0.0
      %670 = vmatprep.subr.mxu0 0.0
      %671 = vmatpush1.msra.mxu0 0.0
      %672 = vmatprep.subr.mxu0 0.0
      %673 = vmatpush1.msra.mxu0 0.0
      %674 = vmatprep.subr.mxu0 0.0
      %675 = vmatpush1.msra.mxu0 0.0
      %676 = vmatprep.subr.mxu0 0.0
      %677 = vmatpush1.msra.mxu0 0.0
      %678 = vmatprep.subr.mxu0 0.0
      %679 = vmatpush1.msra.mxu0 0.0
      %680 = vmatprep.mubr.f32.mxu0 0.0
      %681 = vmatmul.mubr.f32.gmra.mrb[0].mxu0 %v609
      %v682 = vpop.f32.mrb[0].mxu0
      %v683 = vadd.f32 0.0, %v682
      %v684 = vpop.f32.mrb[0].mxu0
      %685 = vmatprep.mubr.f32.mxu0 0.0
      %686 = vmatmul.mubr.f32.gmra.mrb[0].mxu0 %v611
      %v687 = vpop.f32.mrb[0].mxu0
      %v688 = vadd.f32 0.0, %v687
      %v689 = vpop.f32.mrb[0].mxu0
      %690 = vdwg.mxu0
      %v691 = vadd.f32 %v598, %v683
      %v692 = vadd.f32 %v599, %v688
      %v693 = vrot.slane %v202, 6
      %v694 = vrot.slane %v693, 4
      %v695 = vrot.slane %v600, 6
      %v696 = vsel %vm406, %v694, %v695
      %s697 = scalar_lea.vmem %s1, 20
      %v698 = vld [vmem:[%s697] sm:$0xf]
      %v699 = vcombine.low %v414, %v418
      %v700 = vcombine.low %v422, %v696
      %v701 = vsel %vm236, %v699, 0
      %v703 = vsel %vm236, %v700, 0
      %v706 = vsel %vm241, %v698, 0
      %708 = vmatprep.subr.mxu0 0.0
      %709 = vmatpush1.msra.mxu0 %v706
      %710 = vmatprep.subr.mxu0 0.0
      %711 = vmatpush1.msra.mxu0 0.0
      %712 = vmatprep.subr.mxu0 0.0
      %713 = vmatpush1.msra.mxu0 0.0
      %714 = vmatprep.subr.mxu0 0.0
      %715 = vmatpush1.msra.mxu0 0.0
      %716 = vmatprep.subr.mxu0 0.0
      %717 = vmatpush1.msra.mxu0 0.0
      %718 = vmatprep.subr.mxu0 0.0
      %719 = vmatpush1.msra.mxu0 0.0
      %720 = vmatprep.subr.mxu0 0.0
      %721 = vmatpush1.msra.mxu0 0.0
      %722 = vmatprep.subr.mxu0 0.0
      %723 = vmatpush1.msra.mxu0 0.0
      %724 = vmatprep.subr.mxu0 0.0
      %725 = vmatpush1.msra.mxu0 0.0
      %726 = vmatprep.subr.mxu0 0.0
      %727 = vmatpush1.msra.mxu0 0.0
      %728 = vmatprep.subr.mxu0 0.0
      %729 = vmatpush1.msra.mxu0 0.0
      %730 = vmatprep.subr.mxu0 0.0
      %731 = vmatpush1.msra.mxu0 0.0
      %732 = vmatprep.subr.mxu0 0.0
      %733 = vmatpush1.msra.mxu0 0.0
      %734 = vmatprep.subr.mxu0 0.0
      %735 = vmatpush1.msra.mxu0 0.0
      %736 = vmatprep.subr.mxu0 0.0
      %737 = vmatpush1.msra.mxu0 0.0
      %738 = vmatprep.subr.mxu0 0.0
      %739 = vmatpush1.msra.mxu0 0.0
      %740 = vmatprep.subr.mxu0 0.0
      %741 = vmatpush1.msra.mxu0 0.0
      %742 = vmatprep.subr.mxu0 0.0
      %743 = vmatpush1.msra.mxu0 0.0
      %744 = vmatprep.subr.mxu0 0.0
      %745 = vmatpush1.msra.mxu0 0.0
      %746 = vmatprep.subr.mxu0 0.0
      %747 = vmatpush1.msra.mxu0 0.0
      %748 = vmatprep.subr.mxu0 0.0
      %749 = vmatpush1.msra.mxu0 0.0
      %750 = vmatprep.subr.mxu0 0.0
      %751 = vmatpush1.msra.mxu0 0.0
      %752 = vmatprep.subr.mxu0 0.0
      %753 = vmatpush1.msra.mxu0 0.0
      %754 = vmatprep.subr.mxu0 0.0
      %755 = vmatpush1.msra.mxu0 0.0
      %756 = vmatprep.subr.mxu0 0.0
      %757 = vmatpush1.msra.mxu0 0.0
      %758 = vmatprep.subr.mxu0 0.0
      %759 = vmatpush1.msra.mxu0 0.0
      %760 = vmatprep.subr.mxu0 0.0
      %761 = vmatpush1.msra.mxu0 0.0
      %762 = vmatprep.subr.mxu0 0.0
      %763 = vmatpush1.msra.mxu0 0.0
      %764 = vmatprep.subr.mxu0 0.0
      %765 = vmatpush1.msra.mxu0 0.0
      %766 = vmatprep.subr.mxu0 0.0
      %767 = vmatpush1.msra.mxu0 0.0
      %768 = vmatprep.subr.mxu0 0.0
      %769 = vmatpush1.msra.mxu0 0.0
      %770 = vmatprep.subr.mxu0 0.0
      %771 = vmatpush1.msra.mxu0 0.0
      %772 = vmatprep.mubr.f32.mxu0 0.0
      %773 = vmatmul.mubr.f32.gmra.mrb[0].mxu0 %v701
      %v774 = vpop.f32.mrb[0].mxu0
      %v775 = vadd.f32 0.0, %v774
      %v776 = vpop.f32.mrb[0].mxu0
      %777 = vmatprep.mubr.f32.mxu0 0.0
      %778 = vmatmul.mubr.f32.gmra.mrb[0].mxu0 %v703
      %v779 = vpop.f32.mrb[0].mxu0
      %v780 = vadd.f32 0.0, %v779
      %v781 = vpop.f32.mrb[0].mxu0
      %782 = vdwg.mxu0
      %v783 = vadd.f32 %v691, %v775
      %v784 = vadd.f32 %v692, %v780
      %s785 = scalar_lea.vmem %s1, 24
      %v786 = vld [vmem:[%s785] sm:$0xf]
      %v788 = vcombine.low %v202, %v203
      %v789 = vsel %vm236, %v788, 0
      %v792 = vsel %vm241, %v786, 0
      %794 = vmatprep.subr.mxu0 0.0
      %795 = vmatpush1.msra.mxu0 %v792
      %796 = vmatprep.subr.mxu0 0.0
      %797 = vmatpush1.msra.mxu0 0.0
      %798 = vmatprep.subr.mxu0 0.0
      %799 = vmatpush1.msra.mxu0 0.0
      %800 = vmatprep.subr.mxu0 0.0
      %801 = vmatpush1.msra.mxu0 0.0
      %802 = vmatprep.subr.mxu0 0.0
      %803 = vmatpush1.msra.mxu0 0.0
      %804 = vmatprep.subr.mxu0 0.0
      %805 = vmatpush1.msra.mxu0 0.0
      %806 = vmatprep.subr.mxu0 0.0
      %807 = vmatpush1.msra.mxu0 0.0
      %808 = vmatprep.subr.mxu0 0.0
      %809 = vmatpush1.msra.mxu0 0.0
      %810 = vmatprep.subr.mxu0 0.0
      %811 = vmatpush1.msra.mxu0 0.0
      %812 = vmatprep.subr.mxu0 0.0
      %813 = vmatpush1.msra.mxu0 0.0
      %814 = vmatprep.subr.mxu0 0.0
      %815 = vmatpush1.msra.mxu0 0.0
      %816 = vmatprep.subr.mxu0 0.0
      %817 = vmatpush1.msra.mxu0 0.0
      %818 = vmatprep.subr.mxu0 0.0
      %819 = vmatpush1.msra.mxu0 0.0
      %820 = vmatprep.subr.mxu0 0.0
      %821 = vmatpush1.msra.mxu0 0.0
      %822 = vmatprep.subr.mxu0 0.0
      %823 = vmatpush1.msra.mxu0 0.0
      %824 = vmatprep.subr.mxu0 0.0
      %825 = vmatpush1.msra.mxu0 0.0
      %826 = vmatprep.subr.mxu0 0.0
      %827 = vmatpush1.msra.mxu0 0.0
      %828 = vmatprep.subr.mxu0 0.0
      %829 = vmatpush1.msra.mxu0 0.0
      %830 = vmatprep.subr.mxu0 0.0
      %831 = vmatpush1.msra.mxu0 0.0
      %832 = vmatprep.subr.mxu0 0.0
      %833 = vmatpush1.msra.mxu0 0.0
      %834 = vmatprep.subr.mxu0 0.0
      %835 = vmatpush1.msra.mxu0 0.0
      %836 = vmatprep.subr.mxu0 0.0
      %837 = vmatpush1.msra.mxu0 0.0
      %838 = vmatprep.subr.mxu0 0.0
      %839 = vmatpush1.msra.mxu0 0.0
      %840 = vmatprep.subr.mxu0 0.0
      %841 = vmatpush1.msra.mxu0 0.0
      %842 = vmatprep.subr.mxu0 0.0
      %843 = vmatpush1.msra.mxu0 0.0
      %844 = vmatprep.subr.mxu0 0.0
      %845 = vmatpush1.msra.mxu0 0.0
      %846 = vmatprep.subr.mxu0 0.0
      %847 = vmatpush1.msra.mxu0 0.0
      %848 = vmatprep.subr.mxu0 0.0
      %849 = vmatpush1.msra.mxu0 0.0
      %850 = vmatprep.subr.mxu0 0.0
      %851 = vmatpush1.msra.mxu0 0.0
      %852 = vmatprep.subr.mxu0 0.0
      %853 = vmatpush1.msra.mxu0 0.0
      %854 = vmatprep.subr.mxu0 0.0
      %855 = vmatpush1.msra.mxu0 0.0
      %856 = vmatprep.subr.mxu0 0.0
      %857 = vmatpush1.msra.mxu0 0.0
      %858 = vmatprep.mubr.f32.mxu0 0.0
      %859 = vmatmul.mubr.f32.gmra.mrb[0].mxu0 %v324
      %v860 = vpop.f32.mrb[0].mxu0
      %v861 = vadd.f32 0.0, %v860
      %v862 = vpop.f32.mrb[0].mxu0
      %863 = vmatprep.mubr.f32.mxu0 0.0
      %864 = vmatmul.mubr.f32.gmra.mrb[0].mxu0 %v789
      %v865 = vpop.f32.mrb[0].mxu0
      %v866 = vadd.f32 0.0, %v865
      %v867 = vpop.f32.mrb[0].mxu0
      %868 = vdwg.mxu0
      %v869 = vadd.f32 %v783, %v861
      %v870 = vadd.f32 %v784, %v866
      %v871 = vcombine.high %v203, %v203
      %v872 = vrot.slane %v203, 5
      %v873 = vrot.slane %v872, 4
      %v874 = vrot.slane %v871, 5
      %v875 = vsel %vm215, %v873, %v874
      %s876 = scalar_lea.vmem %s1, 28
      %v877 = vld [vmem:[%s876] sm:$0xf]
      %v878 = vcombine.low %v604, %v875
      %v879 = vsel %vm236, %v878, 0
      %v882 = vsel %vm241, %v877, 0
      %884 = vmatprep.subr.mxu0 0.0
      %885 = vmatpush1.msra.mxu0 %v882
      %886 = vmatprep.subr.mxu0 0.0
      %887 = vmatpush1.msra.mxu0 0.0
      %888 = vmatprep.subr.mxu0 0.0
      %889 = vmatpush1.msra.mxu0 0.0
      %890 = vmatprep.subr.mxu0 0.0
      %891 = vmatpush1.msra.mxu0 0.0
      %892 = vmatprep.subr.mxu0 0.0
      %893 = vmatpush1.msra.mxu0 0.0
      %894 = vmatprep.subr.mxu0 0.0
      %895 = vmatpush1.msra.mxu0 0.0
      %896 = vmatprep.subr.mxu0 0.0
      %897 = vmatpush1.msra.mxu0 0.0
      %898 = vmatprep.subr.mxu0 0.0
      %899 = vmatpush1.msra.mxu0 0.0
      %900 = vmatprep.subr.mxu0 0.0
      %901 = vmatpush1.msra.mxu0 0.0
      %902 = vmatprep.subr.mxu0 0.0
      %903 = vmatpush1.msra.mxu0 0.0
      %904 = vmatprep.subr.mxu0 0.0
      %905 = vmatpush1.msra.mxu0 0.0
      %906 = vmatprep.subr.mxu0 0.0
      %907 = vmatpush1.msra.mxu0 0.0
      %908 = vmatprep.subr.mxu0 0.0
      %909 = vmatpush1.msra.mxu0 0.0
      %910 = vmatprep.subr.mxu0 0.0
      %911 = vmatpush1.msra.mxu0 0.0
      %912 = vmatprep.subr.mxu0 0.0
      %913 = vmatpush1.msra.mxu0 0.0
      %914 = vmatprep.subr.mxu0 0.0
      %915 = vmatpush1.msra.mxu0 0.0
      %916 = vmatprep.subr.mxu0 0.0
      %917 = vmatpush1.msra.mxu0 0.0
      %918 = vmatprep.subr.mxu0 0.0
      %919 = vmatpush1.msra.mxu0 0.0
      %920 = vmatprep.subr.mxu0 0.0
      %921 = vmatpush1.msra.mxu0 0.0
      %922 = vmatprep.subr.mxu0 0.0
      %923 = vmatpush1.msra.mxu0 0.0
      %924 = vmatprep.subr.mxu0 0.0
      %925 = vmatpush1.msra.mxu0 0.0
      %926 = vmatprep.subr.mxu0 0.0
      %927 = vmatpush1.msra.mxu0 0.0
      %928 = vmatprep.subr.mxu0 0.0
      %929 = vmatpush1.msra.mxu0 0.0
      %930 = vmatprep.subr.mxu0 0.0
      %931 = vmatpush1.msra.mxu0 0.0
      %932 = vmatprep.subr.mxu0 0.0
      %933 = vmatpush1.msra.mxu0 0.0
      %934 = vmatprep.subr.mxu0 0.0
      %935 = vmatpush1.msra.mxu0 0.0
      %936 = vmatprep.subr.mxu0 0.0
      %937 = vmatpush1.msra.mxu0 0.0
      %938 = vmatprep.subr.mxu0 0.0
      %939 = vmatpush1.msra.mxu0 0.0
      %940 = vmatprep.subr.mxu0 0.0
      %941 = vmatpush1.msra.mxu0 0.0
      %942 = vmatprep.subr.mxu0 0.0
      %943 = vmatpush1.msra.mxu0 0.0
      %944 = vmatprep.subr.mxu0 0.0
      %945 = vmatpush1.msra.mxu0 0.0
      %946 = vmatprep.subr.mxu0 0.0
      %947 = vmatpush1.msra.mxu0 0.0
      %948 = vmatprep.mubr.f32.mxu0 0.0
      %949 = vmatmul.mubr.f32.gmra.mrb[0].mxu0 %v239
      %v950 = vpop.f32.mrb[0].mxu0
      %v951 = vadd.f32 0.0, %v950
      %v952 = vpop.f32.mrb[0].mxu0
      %953 = vmatprep.mubr.f32.mxu0 0.0
      %954 = vmatmul.mubr.f32.gmra.mrb[0].mxu0 %v879
      %v955 = vpop.f32.mrb[0].mxu0
      %v956 = vadd.f32 0.0, %v955
      %v957 = vpop.f32.mrb[0].mxu0
      %958 = vdwg.mxu0
      %v959 = vadd.f32 %v869, %v951
      %v960 = vadd.f32 %v870, %v956
      %v961 = vrot.slane %v203, 6
      %v962 = vrot.slane %v961, 4
      %v963 = vrot.slane %v871, 6
      %v964 = vsel %vm406, %v962, %v963
      %s965 = scalar_lea.vmem %s1, 32
      %v966 = vld [vmem:[%s965] sm:$0xf]
      %v967 = vcombine.low %v696, %v964
      %v968 = vsel %vm236, %v967, 0
      %v971 = vsel %vm241, %v966, 0
      %973 = vmatprep.subr.mxu0 0.0
      %974 = vmatpush1.msra.mxu0 %v971
      %975 = vmatprep.subr.mxu0 0.0
      %976 = vmatpush1.msra.mxu0 0.0
      %977 = vmatprep.subr.mxu0 0.0
      %978 = vmatpush1.msra.mxu0 0.0
      %979 = vmatprep.subr.mxu0 0.0
      %980 = vmatpush1.msra.mxu0 0.0
      %981 = vmatprep.subr.mxu0 0.0
      %982 = vmatpush1.msra.mxu0 0.0
      %983 = vmatprep.subr.mxu0 0.0
      %984 = vmatpush1.msra.mxu0 0.0
      %985 = vmatprep.subr.mxu0 0.0
      %986 = vmatpush1.msra.mxu0 0.0
      %987 = vmatprep.subr.mxu0 0.0
      %988 = vmatpush1.msra.mxu0 0.0
      %989 = vmatprep.subr.mxu0 0.0
      %990 = vmatpush1.msra.mxu0 0.0
      %991 = vmatprep.subr.mxu0 0.0
      %992 = vmatpush1.msra.mxu0 0.0
      %993 = vmatprep.subr.mxu0 0.0
      %994 = vmatpush1.msra.mxu0 0.0
      %995 = vmatprep.subr.mxu0 0.0
      %996 = vmatpush1.msra.mxu0 0.0
      %997 = vmatprep.subr.mxu0 0.0
      %998 = vmatpush1.msra.mxu0 0.0
      %999 = vmatprep.subr.mxu0 0.0
      %1000 = vmatpush1.msra.mxu0 0.0
      %1001 = vmatprep.subr.mxu0 0.0
      %1002 = vmatpush1.msra.mxu0 0.0
      %1003 = vmatprep.subr.mxu0 0.0
      %1004 = vmatpush1.msra.mxu0 0.0
      %1005 = vmatprep.subr.mxu0 0.0
      %1006 = vmatpush1.msra.mxu0 0.0
      %1007 = vmatprep.subr.mxu0 0.0
      %1008 = vmatpush1.msra.mxu0 0.0
      %1009 = vmatprep.subr.mxu0 0.0
      %1010 = vmatpush1.msra.mxu0 0.0
      %1011 = vmatprep.subr.mxu0 0.0
      %1012 = vmatpush1.msra.mxu0 0.0
      %1013 = vmatprep.subr.mxu0 0.0
      %1014 = vmatpush1.msra.mxu0 0.0
      %1015 = vmatprep.subr.mxu0 0.0
      %1016 = vmatpush1.msra.mxu0 0.0
      %1017 = vmatprep.subr.mxu0 0.0
      %1018 = vmatpush1.msra.mxu0 0.0
      %1019 = vmatprep.subr.mxu0 0.0
      %1020 = vmatpush1.msra.mxu0 0.0
      %1021 = vmatprep.subr.mxu0 0.0
      %1022 = vmatpush1.msra.mxu0 0.0
      %1023 = vmatprep.subr.mxu0 0.0
      %1024 = vmatpush1.msra.mxu0 0.0
      %1025 = vmatprep.subr.mxu0 0.0
      %1026 = vmatpush1.msra.mxu0 0.0
      %1027 = vmatprep.subr.mxu0 0.0
      %1028 = vmatpush1.msra.mxu0 0.0
      %1029 = vmatprep.subr.mxu0 0.0
      %1030 = vmatpush1.msra.mxu0 0.0
      %1031 = vmatprep.subr.mxu0 0.0
      %1032 = vmatpush1.msra.mxu0 0.0
      %1033 = vmatprep.subr.mxu0 0.0
      %1034 = vmatpush1.msra.mxu0 0.0
      %1035 = vmatprep.subr.mxu0 0.0
      %1036 = vmatpush1.msra.mxu0 0.0
      %1037 = vmatprep.mubr.f32.mxu0 0.0
      %1038 = vmatmul.mubr.f32.gmra.mrb[0].mxu0 %v429
      %v1039 = vpop.f32.mrb[0].mxu0
      %v1040 = vadd.f32 0.0, %v1039
      %v1041 = vpop.f32.mrb[0].mxu0
      %1042 = vmatprep.mubr.f32.mxu0 0.0
      %1043 = vmatmul.mubr.f32.gmra.mrb[0].mxu0 %v968
      %v1044 = vpop.f32.mrb[0].mxu0
      %v1045 = vadd.f32 0.0, %v1044
      %v1046 = vpop.f32.mrb[0].mxu0
      %1047 = vdwg.mxu0
      %v1048 = vadd.f32 %v959, %v1040
      %v1049 = vadd.f32 %v960, %v1045
      %v1050 = vld [vmem:[%s2] sm:$0x1]
      %v1052 = vlaneseq
      %v1053 = vshrl.u32 %v1052, 7
      %v1054 = vsub.s32 0, %v1053
      %v1055 = vrot.slane %v1050, %v1054
      %v1057 = vmul.f32 %v1048, %v1055
      %v1058 = vmul.f32 %v1049, %v1055
      %v1059 = vld [vmem:[%s3] sm:$0x1]
      %v1061 = vlaneseq
      %v1062 = vshrl.u32 %v1061, 7
      %v1063 = vsub.s32 0, %v1062
      %v1064 = vrot.slane %v1059, %v1063
      %v1066 = vadd.f32 %v1057, %v1064
      %v1067 = vadd.f32 %v1058, %v1064
      %v1070 = vcombine.high %v1066, %v1066
      %v1071 = vcombine.high %v1067, %v1067
      %vm1074 = vcmask 60416
      %1075 = vst.msk [vmem:[%s197] sm:$0xf] %vm1074, %v1066
      %1076 = vst.msk [vmem:[%s197 + $0x4] sm:$0xf] %vm1074, %v1070
      %1077 = vst.msk [vmem:[%s197 + $0x8] sm:$0xf] %vm1074, %v1067
      %1078 = vst.msk [vmem:[%s197 + $0xc] sm:$0xf] %vm1074, %v1071
      %p1079 = scmp.lt.s32.totalorder %s15, 1
      %s1080 = scalar_select %p1079, %s15, 1
      %s1081 = smul.addr %s1080, 4
      %s1082 = smul.addr %s1081, 4
      %s1083 = scalar_lea.vmem %s4, %s1082
      // Predicated region
      $region37: #{cssu_forward.10} parent=35 // pred_check
        %p1084 = pneg %p122
      $region38: #{cssu_forward.10} parent=35 // pred_check_branch
        %1086 = sbr.rel (%p1084) target = $region40
      $region39: #{cssu_forward.10} parent=35 // pred_region
        _
      $region40: #{cssu_forward.10} parent=35 // pred_fallthru
        _
    $region36: #{cssu_forward.10} parent=5 // pred_fallthru
      _
    %p1087 = scmp.le.s32.totalorder 2, %s10
    // Predicated region
    $region41: #{cssu_forward.10} parent=5 // pred_check
      %p1088 = pneg %p1087
    $region42: #{cssu_forward.10} parent=5 // pred_check_branch
      %1090 = sbr.rel (%p1088) target = $region44
    $region43: #{cssu_forward.10} parent=5 // pred_region
      %s1091 = ssub.s32 %s10, 2
      // Predicated region
      $region45: #{cssu_forward.10} parent=43 // pred_check
        %p1092 = pneg %p128
      $region46: #{cssu_forward.10} parent=43 // pred_check_branch
        %1094 = sbr.rel (%p1092) target = $region48
      $region47: #{cssu_forward.10} parent=43 // pred_region
        %p1095 = scmp.lt.s32.totalorder %s16, 1
        %s1096 = scalar_select %p1095, %s16, 1
        %s1097 = smul.addr %s1096, 4
        %s1098 = smul.addr %s1097, 4
        %s1099 = scalar_lea.vmem %s4, %s1098
      $region48: #{cssu_forward.10} parent=43 // pred_fallthru
        _
    $region44: #{cssu_forward.10} parent=5 // pred_fallthru
      _
  $region6: #{cssu_forward.10} parent=0 // loop_footer
    %s14 = sadd.s32 1, %s10
  $region7: #{cssu_forward.10} parent=0 // loop_footer_branch
    %9 = sbr.rel target = $region3
  $region8: #{cssu_forward.10} parent=0 // loop_exit
    _

// kernel: cssu_forward.12
$region0: #{cssu_forward.12}
  #allocation0 [shape = 'u32[]', space=smem, size = 0x4, offset = 0x4, fixed_abs, tag = 'smem constant byte address 0x4 - core index']
  #allocation1 [shape = 'u32[144,128]{1,0:T(1,128)}', space=vmem, size = 0x12000, scoped, tag = 'internal scratch']
  %s0 = inlined_call_operand.vmem [shape: f32[128,8], index: 0, kind: input, shape index: {}]
  %s1 = inlined_call_operand.vmem [shape: f32[3,8,8], index: 1, kind: input, shape index: {}]
  %s2 = inlined_call_operand.vmem [shape: f32[3,8], index: 2, kind: input, shape index: {}]
  %s3 = inlined_call_operand.vmem [shape: f32[128,8], index: 3, kind: output, shape index: {0}]
  %s4 = inlined_call_operand.vmem [shape: f32[128,8], index: 4, kind: output, shape index: {1}]
  %s5 = inlined_call_operand.vmem [shape: f32[128,8], index: 5, kind: output, shape index: {2}]
  %6 = xla_tuple %s3, %s4, %s5
  %s7 = sld [smem:[#allocation0]]
  $region38: #{cssu_forward.12} parent=0
    _
  %s9 = ssub.s32 1, %s7
  %s10 = scalar_select 0, %s9, %s7
  // Predicated region
  $region2: #{cssu_forward.12} parent=0 // pred_check
    _
  $region3: #{cssu_forward.12} parent=0 // pred_check_branch
    %12 = sbr.rel (0) target = $region5
  $region4: #{cssu_forward.12} parent=0 // pred_region
    _
  $region5: #{cssu_forward.12} parent=0 // pred_fallthru
    _
  // Predicated region
  $region6: #{cssu_forward.12} parent=0 // pred_check
    _
  $region7: #{cssu_forward.12} parent=0 // pred_check_branch
    %14 = sbr.rel (0) target = $region9
  $region8: #{cssu_forward.12} parent=0 // pred_region
    _
  $region9: #{cssu_forward.12} parent=0 // pred_fallthru
    _
  // Predicated region
  $region10: #{cssu_forward.12} parent=0 // pred_check
    _
  $region11: #{cssu_forward.12} parent=0 // pred_check_branch
    %16 = sbr.rel (0) target = $region13
  $region12: #{cssu_forward.12} parent=0 // pred_region
    _
  $region13: #{cssu_forward.12} parent=0 // pred_fallthru
    _
  %v17 = vld [vmem:[%s0] sm:$0xff]
  %v18 = vld [vmem:[%s0 + $0x8] sm:$0xff]
  %v19 = vld [vmem:[%s0 + $0x10] sm:$0xff]
  %v20 = vld [vmem:[%s0 + $0x18] sm:$0xff]
  %v21 = vld [vmem:[%s0 + $0x20] sm:$0xff]
  %v22 = vld [vmem:[%s0 + $0x28] sm:$0xff]
  %v23 = vld [vmem:[%s0 + $0x30] sm:$0xff]
  %v24 = vld [vmem:[%s0 + $0x38] sm:$0xff]
  %v25 = vld [vmem:[%s0 + $0x40] sm:$0xff]
  %v26 = vld [vmem:[%s0 + $0x48] sm:$0xff]
  %v27 = vld [vmem:[%s0 + $0x50] sm:$0xff]
  %v28 = vld [vmem:[%s0 + $0x58] sm:$0xff]
  %v29 = vld [vmem:[%s0 + $0x60] sm:$0xff]
  %v30 = vld [vmem:[%s0 + $0x68] sm:$0xff]
  %v31 = vld [vmem:[%s0 + $0x70] sm:$0xff]
  %v32 = vld [vmem:[%s0 + $0x78] sm:$0xff]
  %v33 = vld [vmem:[%s1] sm:$0xff]
  %v34 = vld [vmem:[%s2] sm:$0x1]
  %v35 = vlaneseq
  %v36 = vshrl.u32 %v35, 7
  %v37 = vsub.s32 0, %v36
  %v38 = vrot.slane %v34, %v37
  %vm39 = vcmask 64512
  %v41 = vsel %vm39, %v17, 0
  %v44 = vsel %vm39, %v18, 0
  %v47 = vsel %vm39, %v19, 0
  %v50 = vsel %vm39, %v20, 0
  %v53 = vsel %vm39, %v21, 0
  %v56 = vsel %vm39, %v22, 0
  %v59 = vsel %vm39, %v23, 0
  %v62 = vsel %vm39, %v24, 0
  %v65 = vsel %vm39, %v25, 0
  %v68 = vsel %vm39, %v26, 0
  %v71 = vsel %vm39, %v27, 0
  %v74 = vsel %vm39, %v28, 0
  %v77 = vsel %vm39, %v29, 0
  %v80 = vsel %vm39, %v30, 0
  %v83 = vsel %vm39, %v31, 0
  %v86 = vsel %vm39, %v32, 0
  %88 = vmatprep.subr.mxu0 0.0
  %89 = vmatpush1.msra.mxu0 %v33
  %90 = vmatprep.subr.mxu0 0.0
  %91 = vmatpush1.msra.mxu0 0.0
  %92 = vmatprep.subr.mxu0 0.0
  %93 = vmatpush1.msra.mxu0 0.0
  %94 = vmatprep.subr.mxu0 0.0
  %95 = vmatpush1.msra.mxu0 0.0
  %96 = vmatprep.subr.mxu0 0.0
  %97 = vmatpush1.msra.mxu0 0.0
  %98 = vmatprep.subr.mxu0 0.0
  %99 = vmatpush1.msra.mxu0 0.0
  %100 = vmatprep.subr.mxu0 0.0
  %101 = vmatpush1.msra.mxu0 0.0
  %102 = vmatprep.subr.mxu0 0.0
  %103 = vmatpush1.msra.mxu0 0.0
  %104 = vmatprep.subr.mxu0 0.0
  %105 = vmatpush1.msra.mxu0 0.0
  %106 = vmatprep.subr.mxu0 0.0
  %107 = vmatpush1.msra.mxu0 0.0
  %108 = vmatprep.subr.mxu0 0.0
  %109 = vmatpush1.msra.mxu0 0.0
  %110 = vmatprep.subr.mxu0 0.0
  %111 = vmatpush1.msra.mxu0 0.0
  %112 = vmatprep.subr.mxu0 0.0
  %113 = vmatpush1.msra.mxu0 0.0
  %114 = vmatprep.subr.mxu0 0.0
  %115 = vmatpush1.msra.mxu0 0.0
  %116 = vmatprep.subr.mxu0 0.0
  %117 = vmatpush1.msra.mxu0 0.0
  %118 = vmatprep.subr.mxu0 0.0
  %119 = vmatpush1.msra.mxu0 0.0
  %120 = vmatprep.subr.mxu0 0.0
  %121 = vmatpush1.msra.mxu0 0.0
  %122 = vmatprep.subr.mxu0 0.0
  %123 = vmatpush1.msra.mxu0 0.0
  %124 = vmatprep.subr.mxu0 0.0
  %125 = vmatpush1.msra.mxu0 0.0
  %126 = vmatprep.subr.mxu0 0.0
  %127 = vmatpush1.msra.mxu0 0.0
  %128 = vmatprep.subr.mxu0 0.0
  %129 = vmatpush1.msra.mxu0 0.0
  %130 = vmatprep.subr.mxu0 0.0
  %131 = vmatpush1.msra.mxu0 0.0
  %132 = vmatprep.subr.mxu0 0.0
  %133 = vmatpush1.msra.mxu0 0.0
  %134 = vmatprep.subr.mxu0 0.0
  %135 = vmatpush1.msra.mxu0 0.0
  %136 = vmatprep.subr.mxu0 0.0
  %137 = vmatpush1.msra.mxu0 0.0
  %138 = vmatprep.subr.mxu0 0.0
  %139 = vmatpush1.msra.mxu0 0.0
  %140 = vmatprep.subr.mxu0 0.0
  %141 = vmatpush1.msra.mxu0 0.0
  %142 = vmatprep.subr.mxu0 0.0
  %143 = vmatpush1.msra.mxu0 0.0
  %144 = vmatprep.subr.mxu0 0.0
  %145 = vmatpush1.msra.mxu0 0.0
  %146 = vmatprep.subr.mxu0 0.0
  %147 = vmatpush1.msra.mxu0 0.0
  %148 = vmatprep.subr.mxu0 0.0
  %149 = vmatpush1.msra.mxu0 0.0
  %150 = vmatprep.subr.mxu0 0.0
  %151 = vmatpush1.msra.mxu0 0.0
  %152 = vmatprep.mubr.f32.mxu0 0.0
  %153 = vmatmul.mubr.f32.gmra.mrb[0].mxu0 %v41
  %v154 = vpop.f32.mrb[0].mxu0
  %v155 = vadd.f32 %v38, %v154
  %v156 = vpop.f32.mrb[0].mxu0
  %157 = vmatprep.mubr.f32.mxu0 0.0
  %158 = vmatmul.mubr.f32.gmra.mrb[0].mxu0 %v44
  %v159 = vpop.f32.mrb[0].mxu0
  %v160 = vadd.f32 %v38, %v159
  %v161 = vpop.f32.mrb[0].mxu0
  %162 = vmatprep.mubr.f32.mxu0 0.0
  %163 = vmatmul.mubr.f32.gmra.mrb[0].mxu0 %v47
  %v164 = vpop.f32.mrb[0].mxu0
  %v165 = vadd.f32 %v38, %v164
  %v166 = vpop.f32.mrb[0].mxu0
  %167 = vmatprep.mubr.f32.mxu0 0.0
  %168 = vmatmul.mubr.f32.gmra.mrb[0].mxu0 %v50
  %v169 = vpop.f32.mrb[0].mxu0
  %v170 = vadd.f32 %v38, %v169
  %v171 = vpop.f32.mrb[0].mxu0
  %172 = vmatprep.mubr.f32.mxu0 0.0
  %173 = vmatmul.mubr.f32.gmra.mrb[0].mxu0 %v53
  %v174 = vpop.f32.mrb[0].mxu0
  %v175 = vadd.f32 %v38, %v174
  %v176 = vpop.f32.mrb[0].mxu0
  %177 = vmatprep.mubr.f32.mxu0 0.0
  %178 = vmatmul.mubr.f32.gmra.mrb[0].mxu0 %v56
  %v179 = vpop.f32.mrb[0].mxu0
  %v180 = vadd.f32 %v38, %v179
  %v181 = vpop.f32.mrb[0].mxu0
  %182 = vmatprep.mubr.f32.mxu0 0.0
  %183 = vmatmul.mubr.f32.gmra.mrb[0].mxu0 %v59
  %v184 = vpop.f32.mrb[0].mxu0
  %v185 = vadd.f32 %v38, %v184
  %v186 = vpop.f32.mrb[0].mxu0
  %187 = vmatprep.mubr.f32.mxu0 0.0
  %188 = vmatmul.mubr.f32.gmra.mrb[0].mxu0 %v62
  %v189 = vpop.f32.mrb[0].mxu0
  %v190 = vadd.f32 %v38, %v189
  %v191 = vpop.f32.mrb[0].mxu0
  %192 = vmatprep.mubr.f32.mxu0 0.0
  %193 = vmatmul.mubr.f32.gmra.mrb[0].mxu0 %v65
  %v194 = vpop.f32.mrb[0].mxu0
  %v195 = vadd.f32 %v38, %v194
  %v196 = vpop.f32.mrb[0].mxu0
  %197 = vmatprep.mubr.f32.mxu0 0.0
  %198 = vmatmul.mubr.f32.gmra.mrb[0].mxu0 %v68
  %v199 = vpop.f32.mrb[0].mxu0
  %v200 = vadd.f32 %v38, %v199
  %v201 = vpop.f32.mrb[0].mxu0
  %202 = vmatprep.mubr.f32.mxu0 0.0
  %203 = vmatmul.mubr.f32.gmra.mrb[0].mxu0 %v71
  %v204 = vpop.f32.mrb[0].mxu0
  %v205 = vadd.f32 %v38, %v204
  %v206 = vpop.f32.mrb[0].mxu0
  %207 = vmatprep.mubr.f32.mxu0 0.0
  %208 = vmatmul.mubr.f32.gmra.mrb[0].mxu0 %v74
  %v209 = vpop.f32.mrb[0].mxu0
  %v210 = vadd.f32 %v38, %v209
  %v211 = vpop.f32.mrb[0].mxu0
  %212 = vmatprep.mubr.f32.mxu0 0.0
  %213 = vmatmul.mubr.f32.gmra.mrb[0].mxu0 %v77
  %v214 = vpop.f32.mrb[0].mxu0
  %v215 = vadd.f32 %v38, %v214
  %v216 = vpop.f32.mrb[0].mxu0
  %217 = vmatprep.mubr.f32.mxu0 0.0
  %218 = vmatmul.mubr.f32.gmra.mrb[0].mxu0 %v80
  %v219 = vpop.f32.mrb[0].mxu0
  %v220 = vadd.f32 %v38, %v219
  %v221 = vpop.f32.mrb[0].mxu0
  %222 = vmatprep.mubr.f32.mxu0 0.0
  %223 = vmatmul.mubr.f32.gmra.mrb[0].mxu0 %v83
  %v224 = vpop.f32.mrb[0].mxu0
  %v225 = vadd.f32 %v38, %v224
  %v226 = vpop.f32.mrb[0].mxu0
  %227 = vmatprep.mubr.f32.mxu0 0.0
  %228 = vmatmul.mubr.f32.gmra.mrb[0].mxu0 %v86
  %v229 = vpop.f32.mrb[0].mxu0
  %v230 = vadd.f32 %v38, %v229
  %v231 = vpop.f32.mrb[0].mxu0
  %232 = vdwg.mxu0
  %233 = vst.msk [vmem:[%s3] sm:$0xff] %vm39, %v155
  %234 = vst.msk [vmem:[%s3 + $0x8] sm:$0xff] %vm39, %v160
  %235 = vst.msk [vmem:[%s3 + $0x10] sm:$0xff] %vm39, %v165
  %236 = vst.msk [vmem:[%s3 + $0x18] sm:$0xff] %vm39, %v170
  %237 = vst.msk [vmem:[%s3 + $0x20] sm:$0xff] %vm39, %v175
  %238 = vst.msk [vmem:[%s3 + $0x28] sm:$0xff] %vm39, %v180
  %239 = vst.msk [vmem:[%s3 + $0x30] sm:$0xff] %vm39, %v185
  %240 = vst.msk [vmem:[%s3 + $0x38] sm:$0xff] %vm39, %v190
  %241 = vst.msk [vmem:[%s3 + $0x40] sm:$0xff] %vm39, %v195
  %242 = vst.msk [vmem:[%s3 + $0x48] sm:$0xff] %vm39, %v200
  %243 = vst.msk [vmem:[%s3 + $0x50] sm:$0xff] %vm39, %v205
  %244 = vst.msk [vmem:[%s3 + $0x58] sm:$0xff] %vm39, %v210
  %245 = vst.msk [vmem:[%s3 + $0x60] sm:$0xff] %vm39, %v215
  %246 = vst.msk [vmem:[%s3 + $0x68] sm:$0xff] %vm39, %v220
  %247 = vst.msk [vmem:[%s3 + $0x70] sm:$0xff] %vm39, %v225
  %248 = vst.msk [vmem:[%s3 + $0x78] sm:$0xff] %vm39, %v230
  %s249 = scalar_lea.vmem %s1, 8
  %v250 = vld [vmem:[%s249] sm:$0xff]
  %v251 = vld [vmem:[%s2 + $0x1] sm:$0x1]
  %v252 = vlaneseq
  %v253 = vshrl.u32 %v252, 7
  %v254 = vsub.s32 0, %v253
  %v255 = vrot.slane %v251, %v254
  %256 = vmatprep.subr.mxu0 0.0
  %257 = vmatpush1.msra.mxu0 %v250
  %258 = vmatprep.subr.mxu0 0.0
  %259 = vmatpush1.msra.mxu0 0.0
  %260 = vmatprep.subr.mxu0 0.0
  %261 = vmatpush1.msra.mxu0 0.0
  %262 = vmatprep.subr.mxu0 0.0
  %263 = vmatpush1.msra.mxu0 0.0
  %264 = vmatprep.subr.mxu0 0.0
  %265 = vmatpush1.msra.mxu0 0.0
  %266 = vmatprep.subr.mxu0 0.0
  %267 = vmatpush1.msra.mxu0 0.0
  %268 = vmatprep.subr.mxu0 0.0
  %269 = vmatpush1.msra.mxu0 0.0
  %270 = vmatprep.subr.mxu0 0.0
  %271 = vmatpush1.msra.mxu0 0.0
  %272 = vmatprep.subr.mxu0 0.0
  %273 = vmatpush1.msra.mxu0 0.0
  %274 = vmatprep.subr.mxu0 0.0
  %275 = vmatpush1.msra.mxu0 0.0
  %276 = vmatprep.subr.mxu0 0.0
  %277 = vmatpush1.msra.mxu0 0.0
  %278 = vmatprep.subr.mxu0 0.0
  %279 = vmatpush1.msra.mxu0 0.0
  %280 = vmatprep.subr.mxu0 0.0
  %281 = vmatpush1.msra.mxu0 0.0
  %282 = vmatprep.subr.mxu0 0.0
  %283 = vmatpush1.msra.mxu0 0.0
  %284 = vmatprep.subr.mxu0 0.0
  %285 = vmatpush1.msra.mxu0 0.0
  %286 = vmatprep.subr.mxu0 0.0
  %287 = vmatpush1.msra.mxu0 0.0
  %288 = vmatprep.subr.mxu0 0.0
  %289 = vmatpush1.msra.mxu0 0.0
  %290 = vmatprep.subr.mxu0 0.0
  %291 = vmatpush1.msra.mxu0 0.0
  %292 = vmatprep.subr.mxu0 0.0
  %293 = vmatpush1.msra.mxu0 0.0
  %294 = vmatprep.subr.mxu0 0.0
  %295 = vmatpush1.msra.mxu0 0.0
  %296 = vmatprep.subr.mxu0 0.0
  %297 = vmatpush1.msra.mxu0 0.0
  %298 = vmatprep.subr.mxu0 0.0
  %299 = vmatpush1.msra.mxu0 0.0
  %300 = vmatprep.subr.mxu0 0.0
  %301 = vmatpush1.msra.mxu0 0.0
  %302 = vmatprep.subr.mxu0 0.0
  %303 = vmatpush1.msra.mxu0 0.0
  %304 = vmatprep.subr.mxu0 0.0
  %305 = vmatpush1.msra.mxu0 0.0
  %306 = vmatprep.subr.mxu0 0.0
  %307 = vmatpush1.msra.mxu0 0.0
  %308 = vmatprep.subr.mxu0 0.0
  %309 = vmatpush1.msra.mxu0 0.0
  %310 = vmatprep.subr.mxu0 0.0
  %311 = vmatpush1.msra.mxu0 0.0
  %312 = vmatprep.subr.mxu0 0.0
  %313 = vmatpush1.msra.mxu0 0.0
  %314 = vmatprep.subr.mxu0 0.0
  %315 = vmatpush1.msra.mxu0 0.0
  %316 = vmatprep.subr.mxu0 0.0
  %317 = vmatpush1.msra.mxu0 0.0
  %318 = vmatprep.subr.mxu0 0.0
  %319 = vmatpush1.msra.mxu0 0.0
  %320 = vmatprep.mubr.f32.mxu0 0.0
  %321 = vmatmul.mubr.f32.gmra.mrb[0].mxu0 %v41
  %v322 = vpop.f32.mrb[0].mxu0
  %v323 = vadd.f32 %v255, %v322
  %v324 = vpop.f32.mrb[0].mxu0
  %325 = vmatprep.mubr.f32.mxu0 0.0
  %326 = vmatmul.mubr.f32.gmra.mrb[0].mxu0 %v44
  %v327 = vpop.f32.mrb[0].mxu0
  %v328 = vadd.f32 %v255, %v327
  %v329 = vpop.f32.mrb[0].mxu0
  %330 = vmatprep.mubr.f32.mxu0 0.0
  %331 = vmatmul.mubr.f32.gmra.mrb[0].mxu0 %v47
  %v332 = vpop.f32.mrb[0].mxu0
  %v333 = vadd.f32 %v255, %v332
  %v334 = vpop.f32.mrb[0].mxu0
  %335 = vmatprep.mubr.f32.mxu0 0.0
  %336 = vmatmul.mubr.f32.gmra.mrb[0].mxu0 %v50
  %v337 = vpop.f32.mrb[0].mxu0
  %v338 = vadd.f32 %v255, %v337
  %v339 = vpop.f32.mrb[0].mxu0
  %340 = vmatprep.mubr.f32.mxu0 0.0
  %341 = vmatmul.mubr.f32.gmra.mrb[0].mxu0 %v53
  %v342 = vpop.f32.mrb[0].mxu0
  %v343 = vadd.f32 %v255, %v342
  %v344 = vpop.f32.mrb[0].mxu0
  %345 = vmatprep.mubr.f32.mxu0 0.0
  %346 = vmatmul.mubr.f32.gmra.mrb[0].mxu0 %v56
  %v347 = vpop.f32.mrb[0].mxu0
  %v348 = vadd.f32 %v255, %v347
  %v349 = vpop.f32.mrb[0].mxu0
  %350 = vmatprep.mubr.f32.mxu0 0.0
  %351 = vmatmul.mubr.f32.gmra.mrb[0].mxu0 %v59
  %v352 = vpop.f32.mrb[0].mxu0
  %v353 = vadd.f32 %v255, %v352
  %v354 = vpop.f32.mrb[0].mxu0
  %355 = vmatprep.mubr.f32.mxu0 0.0
  %356 = vmatmul.mubr.f32.gmra.mrb[0].mxu0 %v62
  %v357 = vpop.f32.mrb[0].mxu0
  %v358 = vadd.f32 %v255, %v357
  %v359 = vpop.f32.mrb[0].mxu0
  %360 = vmatprep.mubr.f32.mxu0 0.0
  %361 = vmatmul.mubr.f32.gmra.mrb[0].mxu0 %v65
  %v362 = vpop.f32.mrb[0].mxu0
  %v363 = vadd.f32 %v255, %v362
  %v364 = vpop.f32.mrb[0].mxu0
  %365 = vmatprep.mubr.f32.mxu0 0.0
  %366 = vmatmul.mubr.f32.gmra.mrb[0].mxu0 %v68
  %v367 = vpop.f32.mrb[0].mxu0
  %v368 = vadd.f32 %v255, %v367
  %v369 = vpop.f32.mrb[0].mxu0
  %370 = vmatprep.mubr.f32.mxu0 0.0
  %371 = vmatmul.mubr.f32.gmra.mrb[0].mxu0 %v71
  %v372 = vpop.f32.mrb[0].mxu0
  %v373 = vadd.f32 %v255, %v372
  %v374 = vpop.f32.mrb[0].mxu0
  %375 = vmatprep.mubr.f32.mxu0 0.0
  %376 = vmatmul.mubr.f32.gmra.mrb[0].mxu0 %v74
  %v377 = vpop.f32.mrb[0].mxu0
  %v378 = vadd.f32 %v255, %v377
  %v379 = vpop.f32.mrb[0].mxu0
  %380 = vmatprep.mubr.f32.mxu0 0.0
  %381 = vmatmul.mubr.f32.gmra.mrb[0].mxu0 %v77
  %v382 = vpop.f32.mrb[0].mxu0
  %v383 = vadd.f32 %v255, %v382
  %v384 = vpop.f32.mrb[0].mxu0
  %385 = vmatprep.mubr.f32.mxu0 0.0
  %386 = vmatmul.mubr.f32.gmra.mrb[0].mxu0 %v80
  %v387 = vpop.f32.mrb[0].mxu0
  %v388 = vadd.f32 %v255, %v387
  %v389 = vpop.f32.mrb[0].mxu0
  %390 = vmatprep.mubr.f32.mxu0 0.0
  %391 = vmatmul.mubr.f32.gmra.mrb[0].mxu0 %v83
  %v392 = vpop.f32.mrb[0].mxu0
  %v393 = vadd.f32 %v255, %v392
  %v394 = vpop.f32.mrb[0].mxu0
  %395 = vmatprep.mubr.f32.mxu0 0.0
  %396 = vmatmul.mubr.f32.gmra.mrb[0].mxu0 %v86
  %v397 = vpop.f32.mrb[0].mxu0
  %v398 = vadd.f32 %v255, %v397
  %v399 = vpop.f32.mrb[0].mxu0
  %400 = vdwg.mxu0
  %401 = vst.msk [vmem:[%s4] sm:$0xff] %vm39, %v323
  %402 = vst.msk [vmem:[%s4 + $0x8] sm:$0xff] %vm39, %v328
  %403 = vst.msk [vmem:[%s4 + $0x10] sm:$0xff] %vm39, %v333
  %404 = vst.msk [vmem:[%s4 + $0x18] sm:$0xff] %vm39, %v338
  %405 = vst.msk [vmem:[%s4 + $0x20] sm:$0xff] %vm39, %v343
  %406 = vst.msk [vmem:[%s4 + $0x28] sm:$0xff] %vm39, %v348
  %407 = vst.msk [vmem:[%s4 + $0x30] sm:$0xff] %vm39, %v353
  %408 = vst.msk [vmem:[%s4 + $0x38] sm:$0xff] %vm39, %v358
  %409 = vst.msk [vmem:[%s4 + $0x40] sm:$0xff] %vm39, %v363
  %410 = vst.msk [vmem:[%s4 + $0x48] sm:$0xff] %vm39, %v368
  %411 = vst.msk [vmem:[%s4 + $0x50] sm:$0xff] %vm39, %v373
  %412 = vst.msk [vmem:[%s4 + $0x58] sm:$0xff] %vm39, %v378
  %413 = vst.msk [vmem:[%s4 + $0x60] sm:$0xff] %vm39, %v383
  %414 = vst.msk [vmem:[%s4 + $0x68] sm:$0xff] %vm39, %v388
  %415 = vst.msk [vmem:[%s4 + $0x70] sm:$0xff] %vm39, %v393
  %416 = vst.msk [vmem:[%s4 + $0x78] sm:$0xff] %vm39, %v398
  %s417 = scalar_lea.vmem %s1, 16
  %v418 = vld [vmem:[%s417] sm:$0xff]
  %v419 = vld [vmem:[%s2 + $0x2] sm:$0x1]
  %v420 = vlaneseq
  %v421 = vshrl.u32 %v420, 7
  %v422 = vsub.s32 0, %v421
  %v423 = vrot.slane %v419, %v422
  %424 = vmatprep.subr.mxu0 0.0
  %425 = vmatpush1.msra.mxu0 %v418
  %426 = vmatprep.subr.mxu0 0.0
  %427 = vmatpush1.msra.mxu0 0.0
  %428 = vmatprep.subr.mxu0 0.0
  %429 = vmatpush1.msra.mxu0 0.0
  %430 = vmatprep.subr.mxu0 0.0
  %431 = vmatpush1.msra.mxu0 0.0
  %432 = vmatprep.subr.mxu0 0.0
  %433 = vmatpush1.msra.mxu0 0.0
  %434 = vmatprep.subr.mxu0 0.0
  %435 = vmatpush1.msra.mxu0 0.0
  %436 = vmatprep.subr.mxu0 0.0
  %437 = vmatpush1.msra.mxu0 0.0
  %438 = vmatprep.subr.mxu0 0.0
  %439 = vmatpush1.msra.mxu0 0.0
  %440 = vmatprep.subr.mxu0 0.0
  %441 = vmatpush1.msra.mxu0 0.0
  %442 = vmatprep.subr.mxu0 0.0
  %443 = vmatpush1.msra.mxu0 0.0
  %444 = vmatprep.subr.mxu0 0.0
  %445 = vmatpush1.msra.mxu0 0.0
  %446 = vmatprep.subr.mxu0 0.0
  %447 = vmatpush1.msra.mxu0 0.0
  %448 = vmatprep.subr.mxu0 0.0
  %449 = vmatpush1.msra.mxu0 0.0
  %450 = vmatprep.subr.mxu0 0.0
  %451 = vmatpush1.msra.mxu0 0.0
  %452 = vmatprep.subr.mxu0 0.0
  %453 = vmatpush1.msra.mxu0 0.0
  %454 = vmatprep.subr.mxu0 0.0
  %455 = vmatpush1.msra.mxu0 0.0
  %456 = vmatprep.subr.mxu0 0.0
  %457 = vmatpush1.msra.mxu0 0.0
  %458 = vmatprep.subr.mxu0 0.0
  %459 = vmatpush1.msra.mxu0 0.0
  %460 = vmatprep.subr.mxu0 0.0
  %461 = vmatpush1.msra.mxu0 0.0
  %462 = vmatprep.subr.mxu0 0.0
  %463 = vmatpush1.msra.mxu0 0.0
  %464 = vmatprep.subr.mxu0 0.0
  %465 = vmatpush1.msra.mxu0 0.0
  %466 = vmatprep.subr.mxu0 0.0
  %467 = vmatpush1.msra.mxu0 0.0
  %468 = vmatprep.subr.mxu0 0.0
  %469 = vmatpush1.msra.mxu0 0.0
  %470 = vmatprep.subr.mxu0 0.0
  %471 = vmatpush1.msra.mxu0 0.0
  %472 = vmatprep.subr.mxu0 0.0
  %473 = vmatpush1.msra.mxu0 0.0
  %474 = vmatprep.subr.mxu0 0.0
  %475 = vmatpush1.msra.mxu0 0.0
  %476 = vmatprep.subr.mxu0 0.0
  %477 = vmatpush1.msra.mxu0 0.0
  %478 = vmatprep.subr.mxu0 0.0
  %479 = vmatpush1.msra.mxu0 0.0
  %480 = vmatprep.subr.mxu0 0.0
  %481 = vmatpush1.msra.mxu0 0.0
  %482 = vmatprep.subr.mxu0 0.0
  %483 = vmatpush1.msra.mxu0 0.0
  %484 = vmatprep.subr.mxu0 0.0
  %485 = vmatpush1.msra.mxu0 0.0
  %486 = vmatprep.subr.mxu0 0.0
  %487 = vmatpush1.msra.mxu0 0.0
  %488 = vmatprep.mubr.f32.mxu0 0.0
  %489 = vmatmul.mubr.f32.gmra.mrb[0].mxu0 %v41
  %v490 = vpop.f32.mrb[0].mxu0
  %v491 = vadd.f32 %v423, %v490
  %v492 = vpop.f32.mrb[0].mxu0
  %493 = vmatprep.mubr.f32.mxu0 0.0
  %494 = vmatmul.mubr.f32.gmra.mrb[0].mxu0 %v44
  %v495 = vpop.f32.mrb[0].mxu0
  %v496 = vadd.f32 %v423, %v495
  %v497 = vpop.f32.mrb[0].mxu0
  %498 = vmatprep.mubr.f32.mxu0 0.0
  %499 = vmatmul.mubr.f32.gmra.mrb[0].mxu0 %v47
  %v500 = vpop.f32.mrb[0].mxu0
  %v501 = vadd.f32 %v423, %v500
  %v502 = vpop.f32.mrb[0].mxu0
  %503 = vmatprep.mubr.f32.mxu0 0.0
  %504 = vmatmul.mubr.f32.gmra.mrb[0].mxu0 %v50
  %v505 = vpop.f32.mrb[0].mxu0
  %v506 = vadd.f32 %v423, %v505
  %v507 = vpop.f32.mrb[0].mxu0
  %508 = vmatprep.mubr.f32.mxu0 0.0
  %509 = vmatmul.mubr.f32.gmra.mrb[0].mxu0 %v53
  %v510 = vpop.f32.mrb[0].mxu0
  %v511 = vadd.f32 %v423, %v510
  %v512 = vpop.f32.mrb[0].mxu0
  %513 = vmatprep.mubr.f32.mxu0 0.0
  %514 = vmatmul.mubr.f32.gmra.mrb[0].mxu0 %v56
  %v515 = vpop.f32.mrb[0].mxu0
  %v516 = vadd.f32 %v423, %v515
  %v517 = vpop.f32.mrb[0].mxu0
  %518 = vmatprep.mubr.f32.mxu0 0.0
  %519 = vmatmul.mubr.f32.gmra.mrb[0].mxu0 %v59
  %v520 = vpop.f32.mrb[0].mxu0
  %v521 = vadd.f32 %v423, %v520
  %v522 = vpop.f32.mrb[0].mxu0
  %523 = vmatprep.mubr.f32.mxu0 0.0
  %524 = vmatmul.mubr.f32.gmra.mrb[0].mxu0 %v62
  %v525 = vpop.f32.mrb[0].mxu0
  %v526 = vadd.f32 %v423, %v525
  %v527 = vpop.f32.mrb[0].mxu0
  %528 = vmatprep.mubr.f32.mxu0 0.0
  %529 = vmatmul.mubr.f32.gmra.mrb[0].mxu0 %v65
  %v530 = vpop.f32.mrb[0].mxu0
  %v531 = vadd.f32 %v423, %v530
  %v532 = vpop.f32.mrb[0].mxu0
  %533 = vmatprep.mubr.f32.mxu0 0.0
  %534 = vmatmul.mubr.f32.gmra.mrb[0].mxu0 %v68
  %v535 = vpop.f32.mrb[0].mxu0
  %v536 = vadd.f32 %v423, %v535
  %v537 = vpop.f32.mrb[0].mxu0
  %538 = vmatprep.mubr.f32.mxu0 0.0
  %539 = vmatmul.mubr.f32.gmra.mrb[0].mxu0 %v71
  %v540 = vpop.f32.mrb[0].mxu0
  %v541 = vadd.f32 %v423, %v540
  %v542 = vpop.f32.mrb[0].mxu0
  %543 = vmatprep.mubr.f32.mxu0 0.0
  %544 = vmatmul.mubr.f32.gmra.mrb[0].mxu0 %v74
  %v545 = vpop.f32.mrb[0].mxu0
  %v546 = vadd.f32 %v423, %v545
  %v547 = vpop.f32.mrb[0].mxu0
  %548 = vmatprep.mubr.f32.mxu0 0.0
  %549 = vmatmul.mubr.f32.gmra.mrb[0].mxu0 %v77
  %v550 = vpop.f32.mrb[0].mxu0
  %v551 = vadd.f32 %v423, %v550
  %v552 = vpop.f32.mrb[0].mxu0
  %553 = vmatprep.mubr.f32.mxu0 0.0
  %554 = vmatmul.mubr.f32.gmra.mrb[0].mxu0 %v80
  %v555 = vpop.f32.mrb[0].mxu0
  %v556 = vadd.f32 %v423, %v555
  %v557 = vpop.f32.mrb[0].mxu0
  %558 = vmatprep.mubr.f32.mxu0 0.0
  %559 = vmatmul.mubr.f32.gmra.mrb[0].mxu0 %v83
  %v560 = vpop.f32.mrb[0].mxu0
  %v561 = vadd.f32 %v423, %v560
  %v562 = vpop.f32.mrb[0].mxu0
  %563 = vmatprep.mubr.f32.mxu0 0.0
  %564 = vmatmul.mubr.f32.gmra.mrb[0].mxu0 %v86
  %v565 = vpop.f32.mrb[0].mxu0
  %v566 = vadd.f32 %v423, %v565
  %v567 = vpop.f32.mrb[0].mxu0
  %568 = vdwg.mxu0
  %569 = vst.msk [vmem:[%s5] sm:$0xff] %vm39, %v491
  %570 = vst.msk [vmem:[%s5 + $0x8] sm:$0xff] %vm39, %v496
  %571 = vst.msk [vmem:[%s5 + $0x10] sm:$0xff] %vm39, %v501
  %572 = vst.msk [vmem:[%s5 + $0x18] sm:$0xff] %vm39, %v506
  %573 = vst.msk [vmem:[%s5 + $0x20] sm:$0xff] %vm39, %v511
  %574 = vst.msk [vmem:[%s5 + $0x28] sm:$0xff] %vm39, %v516
  %575 = vst.msk [vmem:[%s5 + $0x30] sm:$0xff] %vm39, %v521
  %576 = vst.msk [vmem:[%s5 + $0x38] sm:$0xff] %vm39, %v526
  %577 = vst.msk [vmem:[%s5 + $0x40] sm:$0xff] %vm39, %v531
  %578 = vst.msk [vmem:[%s5 + $0x48] sm:$0xff] %vm39, %v536
  %579 = vst.msk [vmem:[%s5 + $0x50] sm:$0xff] %vm39, %v541
  %580 = vst.msk [vmem:[%s5 + $0x58] sm:$0xff] %vm39, %v546
  %581 = vst.msk [vmem:[%s5 + $0x60] sm:$0xff] %vm39, %v551
  %582 = vst.msk [vmem:[%s5 + $0x68] sm:$0xff] %vm39, %v556
  %583 = vst.msk [vmem:[%s5 + $0x70] sm:$0xff] %vm39, %v561
  %584 = vst.msk [vmem:[%s5 + $0x78] sm:$0xff] %vm39, %v566
  // Predicated region
  $region14: #{cssu_forward.12} parent=0 // pred_check
    _
  $region15: #{cssu_forward.12} parent=0 // pred_check_branch
    %586 = sbr.rel (0) target = $region17
  $region16: #{cssu_forward.12} parent=0 // pred_region
    _
  $region17: #{cssu_forward.12} parent=0 // pred_fallthru
    _
  // Predicated region
  $region18: #{cssu_forward.12} parent=0 // pred_check
    _
  $region19: #{cssu_forward.12} parent=0 // pred_check_branch
    %588 = sbr.rel (0) target = $region21
  $region20: #{cssu_forward.12} parent=0 // pred_region
    _
  $region21: #{cssu_forward.12} parent=0 // pred_fallthru
    _
  // Predicated region
  $region22: #{cssu_forward.12} parent=0 // pred_check
    _
  $region23: #{cssu_forward.12} parent=0 // pred_check_branch
    %590 = sbr.rel (0) target = $region25
  $region24: #{cssu_forward.12} parent=0 // pred_region
    _
  $region25: #{cssu_forward.12} parent=0 // pred_fallthru
    _
  // Predicated region
  $region26: #{cssu_forward.12} parent=0 // pred_check
    _
  $region27: #{cssu_forward.12} parent=0 // pred_check_branch
    %592 = sbr.rel (0) target = $region29
  $region28: #{cssu_forward.12} parent=0 // pred_region
    _
  $region29: #{cssu_forward.12} parent=0 // pred_fallthru
    _
  // Predicated region
  $region30: #{cssu_forward.12} parent=0 // pred_check
    _
  $region31: #{cssu_forward.12} parent=0 // pred_check_branch
    %594 = sbr.rel (0) target = $region33
  $region32: #{cssu_forward.12} parent=0 // pred_region
    _
  $region33: #{cssu_forward.12} parent=0 // pred_fallthru
    _
  // Predicated region
  $region34: #{cssu_forward.12} parent=0 // pred_check
    _
  $region35: #{cssu_forward.12} parent=0 // pred_check_branch
    %596 = sbr.rel (0) target = $region37
  $region36: #{cssu_forward.12} parent=0 // pred_region
    _
  $region37: #{cssu_forward.12} parent=0 // pred_fallthru
    _

// kernel: cssu_forward.13
$region0: #{cssu_forward.13}
  #allocation0 [shape = 'u32[]', space=smem, size = 0x4, offset = 0x4, fixed_abs, tag = 'smem constant byte address 0x4 - core index']
  #allocation1 [shape = 'u32[144,128]{1,0:T(1,128)}', space=vmem, size = 0x12000, scoped, tag = 'internal scratch']
  %s0 = inlined_call_operand.vmem [shape: f32[2,64,8], index: 0, kind: input, shape index: {}]
  %s1 = inlined_call_operand.vmem [shape: f32[2,64,8], index: 1, kind: input, shape index: {}]
  %s2 = inlined_call_operand.vmem [shape: f32[2,64,8], index: 2, kind: input, shape index: {}]
  %s3 = inlined_call_operand.vmem [shape: f32[64,8], index: 3, kind: input, shape index: {}]
  %s4 = inlined_call_operand.vmem [shape: f32[2,64,8], index: 4, kind: input, shape index: {}]
  %s5 = inlined_call_operand.vmem [shape: f32[2,64,8], index: 5, kind: output, shape index: {}]
  %s6 = sld [smem:[#allocation0]]
  $region53: #{cssu_forward.13} parent=0
    _
  %s8 = ssub.s32 1, %s6
  %s9 = scalar_select 0, %s8, %s6
  loop: start=0, step=1, limit=4
  $region2: #{cssu_forward.13} parent=0 // loop_pre_header
    _
  $region3: #{cssu_forward.13} parent=0 // loop_header
    %s11 = sphi 0, %s15
    %p12 = scmp.ge.s32.totalorder %s11, 4
    %s18 = sphi 0, %s30
    %s19 = sphi 0, %s26
    %s20 = sphi 0, %s18
    %s21 = sphi 0, %s19
    %s22 = sphi 0, %s20
    %s23 = sphi 0, %s21
    %s33 = sphi 0, %s35
    %s36 = sphi 0, %s33
    %s37 = sphi 0, %s36
    %s53 = sphi 0, %s37
    %s61 = sphi 0, %s63
    %s64 = sphi 0, %s61
    %s65 = sphi 0, %s64
    %s81 = sphi 0, %s65
    %s87 = sphi 0, %s89
    %s90 = sphi 0, %s87
    %s91 = sphi 0, %s90
    %s107 = sphi 0, %s91
    %s113 = sphi 0, %s115
    %s116 = sphi 0, %s113
    %s117 = sphi 0, %s116
    %s133 = sphi 0, %s117
    %s141 = sphi 0, %s143
    %s144 = sphi 0, %s141
    %s145 = sphi 0, %s144
    %s161 = sphi 0, %s145
    %s169 = sphi 0, %s171
    %s172 = sphi 0, %s169
    %s173 = sphi 0, %s172
    %s189 = sphi 0, %s173
  $region4: #{cssu_forward.13} parent=0 // loop_header_branch
    %14 = sbr.rel (%p12) target = $region8
  $region5: #{cssu_forward.13} parent=0 // loop_body
    %s16 = ssub.s32 %s11, 1
    %s17 = ssub.s32 %s11, 2
    %s24 = sadd.s32 1, %s19
    %p25 = scmp.ge.s32.totalorder %s24, 1
    %s26 = scalar_select %p25, 0, %s24
    %s27 = sadd.s32 1, %s18
    %s28 = scalar_select %p25, %s27, %s18
    %p29 = scmp.ge.s32.totalorder %s28, 2
    %s30 = scalar_select %p29, 0, %s28
    %s31 = ssub.s32 %s18, %s30
    %p32 = scmp.eq.s32.totalorder %s31, 0
    %s34 = sadd.s32 %s33, 1
    %s35 = scalar_select %p32, %s33, %s34
    %p38 = pneg %p32
    %p39 = scmp.eq.s32.totalorder %s11, 1
    %p40 = por %p38, %p39
    %p41 = scmp.ne.s32.totalorder %s33, %s36
    %p42 = scmp.eq.s32.totalorder %s11, 0
    %p43 = por %p41, %p42
    %p44 = scmp.ne.s32.totalorder %s33, %s36
    %p45 = scmp.eq.s32.totalorder %s16, 1
    %p46 = por %p44, %p45
    %p47 = scmp.ne.s32.totalorder %s36, %s37
    %p48 = scmp.eq.s32.totalorder %s16, 0
    %p49 = por %p47, %p48
    %p50 = scmp.ne.s32.totalorder %s36, %s37
    %p51 = scmp.eq.s32.totalorder %s17, 1
    %p52 = por %p50, %p51
    %p54 = scmp.ne.s32.totalorder %s37, %s53
    %p55 = scmp.eq.s32.totalorder %s17, 0
    %p56 = por %p54, %p55
    %s57 = ssub.s32 %s18, %s30
    %s58 = ssub.s32 %s19, %s26
    %s59 = sor.u32 %s57, %s58
    %p60 = scmp.eq.s32.totalorder %s59, 0
    %s62 = sadd.s32 %s61, 1
    %s63 = scalar_select %p60, %s61, %s62
    %p66 = pneg %p60
    %p67 = scmp.eq.s32.totalorder %s11, 1
    %p68 = por %p66, %p67
    %p69 = scmp.ne.s32.totalorder %s61, %s64
    %p70 = scmp.eq.s32.totalorder %s11, 0
    %p71 = por %p69, %p70
    %p72 = scmp.ne.s32.totalorder %s61, %s64
    %p73 = scmp.eq.s32.totalorder %s16, 1
    %p74 = por %p72, %p73
    %p75 = scmp.ne.s32.totalorder %s64, %s65
    %p76 = scmp.eq.s32.totalorder %s16, 0
    %p77 = por %p75, %p76
    %p78 = scmp.ne.s32.totalorder %s64, %s65
    %p79 = scmp.eq.s32.totalorder %s17, 1
    %p80 = por %p78, %p79
    %p82 = scmp.ne.s32.totalorder %s65, %s81
    %p83 = scmp.eq.s32.totalorder %s17, 0
    %p84 = por %p82, %p83
    %s85 = ssub.s32 %s18, %s30
    %p86 = scmp.eq.s32.totalorder %s85, 0
    %s88 = sadd.s32 %s87, 1
    %s89 = scalar_select %p86, %s87, %s88
    %p92 = pneg %p86
    %p93 = scmp.eq.s32.totalorder %s11, 1
    %p94 = por %p92, %p93
    %p95 = scmp.ne.s32.totalorder %s87, %s90
    %p96 = scmp.eq.s32.totalorder %s11, 0
    %p97 = por %p95, %p96
    %p98 = scmp.ne.s32.totalorder %s87, %s90
    %p99 = scmp.eq.s32.totalorder %s16, 1
    %p100 = por %p98, %p99
    %p101 = scmp.ne.s32.totalorder %s90, %s91
    %p102 = scmp.eq.s32.totalorder %s16, 0
    %p103 = por %p101, %p102
    %p104 = scmp.ne.s32.totalorder %s90, %s91
    %p105 = scmp.eq.s32.totalorder %s17, 1
    %p106 = por %p104, %p105
    %p108 = scmp.ne.s32.totalorder %s91, %s107
    %p109 = scmp.eq.s32.totalorder %s17, 0
    %p110 = por %p108, %p109
    %s111 = ssub.s32 %s19, %s26
    %p112 = scmp.eq.s32.totalorder %s111, 0
    %s114 = sadd.s32 %s113, 1
    %s115 = scalar_select %p112, %s113, %s114
    %p118 = pneg %p112
    %p119 = scmp.eq.s32.totalorder %s11, 1
    %p120 = por %p118, %p119
    %p121 = scmp.ne.s32.totalorder %s113, %s116
    %p122 = scmp.eq.s32.totalorder %s11, 0
    %p123 = por %p121, %p122
    %p124 = scmp.ne.s32.totalorder %s113, %s116
    %p125 = scmp.eq.s32.totalorder %s16, 1
    %p126 = por %p124, %p125
    %p127 = scmp.ne.s32.totalorder %s116, %s117
    %p128 = scmp.eq.s32.totalorder %s16, 0
    %p129 = por %p127, %p128
    %p130 = scmp.ne.s32.totalorder %s116, %s117
    %p131 = scmp.eq.s32.totalorder %s17, 1
    %p132 = por %p130, %p131
    %p134 = scmp.ne.s32.totalorder %s117, %s133
    %p135 = scmp.eq.s32.totalorder %s17, 0
    %p136 = por %p134, %p135
    %s137 = ssub.s32 %s18, %s30
    %s138 = ssub.s32 %s19, %s26
    %s139 = sor.u32 %s137, %s138
    %p140 = scmp.eq.s32.totalorder %s139, 0
    %s142 = sadd.s32 %s141, 1
    %s143 = scalar_select %p140, %s141, %s142
    %p146 = pneg %p140
    %p147 = scmp.eq.s32.totalorder %s11, 1
    %p148 = por %p146, %p147
    %p149 = scmp.ne.s32.totalorder %s141, %s144
    %p150 = scmp.eq.s32.totalorder %s11, 0
    %p151 = por %p149, %p150
    %p152 = scmp.ne.s32.totalorder %s141, %s144
    %p153 = scmp.eq.s32.totalorder %s16, 1
    %p154 = por %p152, %p153
    %p155 = scmp.ne.s32.totalorder %s144, %s145
    %p156 = scmp.eq.s32.totalorder %s16, 0
    %p157 = por %p155, %p156
    %p158 = scmp.ne.s32.totalorder %s144, %s145
    %p159 = scmp.eq.s32.totalorder %s17, 1
    %p160 = por %p158, %p159
    %p162 = scmp.ne.s32.totalorder %s145, %s161
    %p163 = scmp.eq.s32.totalorder %s17, 0
    %p164 = por %p162, %p163
    %s165 = ssub.s32 %s18, %s30
    %s166 = ssub.s32 %s19, %s26
    %s167 = sor.u32 %s165, %s166
    %p168 = scmp.eq.s32.totalorder %s167, 0
    %s170 = sadd.s32 %s169, 1
    %s171 = scalar_select %p168, %s169, %s170
    %p174 = pneg %p168
    %p175 = scmp.eq.s32.totalorder %s11, 1
    %p176 = por %p174, %p175
    %p177 = scmp.ne.s32.totalorder %s169, %s172
    %p178 = scmp.eq.s32.totalorder %s11, 0
    %p179 = por %p177, %p178
    %p180 = scmp.ne.s32.totalorder %s169, %s172
    %p181 = scmp.eq.s32.totalorder %s16, 1
    %p182 = por %p180, %p181
    %p183 = scmp.ne.s32.totalorder %s172, %s173
    %p184 = scmp.eq.s32.totalorder %s16, 0
    %p185 = por %p183, %p184
    %p186 = scmp.ne.s32.totalorder %s172, %s173
    %p187 = scmp.eq.s32.totalorder %s17, 1
    %p188 = por %p186, %p187
    %p190 = scmp.ne.s32.totalorder %s173, %s189
    %p191 = scmp.eq.s32.totalorder %s17, 0
    %p192 = por %p190, %p191
    %p193 = scmp.le.s32.totalorder 1, %s11
    %p194 = scmp.lt.s32.totalorder %s11, 3
    %p195 = pnand %p193, %p194
    %p196 = pneg %p195
    // Predicated region
    $region9: #{cssu_forward.13} parent=5 // pred_check
      _
    $region10: #{cssu_forward.13} parent=5 // pred_check_branch
      %198 = sbr.rel (%p195) target = $region12
    $region11: #{cssu_forward.13} parent=5 // pred_region
      %s199 = ssub.s32 %s11, 1
      // Predicated region
      $region13: #{cssu_forward.13} parent=11 // pred_check
        %p200 = pneg %p129
      $region14: #{cssu_forward.13} parent=11 // pred_check_branch
        %202 = sbr.rel (%p200) target = $region16
      $region15: #{cssu_forward.13} parent=11 // pred_region
        %s203 = smul.u32 8, %s21
        %p204 = scmp.lt.s32.totalorder %s203, 7
        %s205 = scalar_select %p204, %s203, 7
        %s206 = smul.addr %s205, 8
        %s207 = scalar_lea.vmem %s3, %s206
        %s208 = smul.u32 8, %s21
      $region16: #{cssu_forward.13} parent=11 // pred_fallthru
        _
    $region12: #{cssu_forward.13} parent=5 // pred_fallthru
      _
    %p209 = scmp.lt.s32.totalorder %s11, 2
    // Predicated region
    $region17: #{cssu_forward.13} parent=5 // pred_check
      %p210 = pneg %p209
    $region18: #{cssu_forward.13} parent=5 // pred_check_branch
      %212 = sbr.rel (%p210) target = $region20
    $region19: #{cssu_forward.13} parent=5 // pred_region
      // Predicated region
      $region21: #{cssu_forward.13} parent=19 // pred_check
        %p213 = pneg %p43
      $region22: #{cssu_forward.13} parent=19 // pred_check_branch
        %215 = sbr.rel (%p213) target = $region24
      $region23: #{cssu_forward.13} parent=19 // pred_region
        %p216 = scmp.lt.s32.totalorder %s18, 1
        %s217 = scalar_select %p216, %s18, 1
        %s218 = smul.addr %s217, 8
        %s219 = smul.addr %s218, 8
        %s220 = scalar_lea.vmem %s0, %s219
      $region24: #{cssu_forward.13} parent=19 // pred_fallthru
        _
      // Predicated region
      $region25: #{cssu_forward.13} parent=19 // pred_check
        %p221 = pneg %p71
      $region26: #{cssu_forward.13} parent=19 // pred_check_branch
        %223 = sbr.rel (%p221) target = $region28
      $region27: #{cssu_forward.13} parent=19 // pred_region
        %s224 = smul.u32 8, %s19
        %p225 = scmp.lt.s32.totalorder %s18, 1
        %s226 = scalar_select %p225, %s18, 1
        %p227 = scmp.lt.s32.totalorder %s224, 7
        %s228 = scalar_select %p227, %s224, 7
        %s229 = smul.addr %s226, 8
        %s230 = sadd.s32 %s228, %s229
        %s231 = smul.addr %s230, 8
        %s232 = scalar_lea.vmem %s1, %s231
        %s233 = smul.u32 8, %s19
      $region28: #{cssu_forward.13} parent=19 // pred_fallthru
        _
      // Predicated region
      $region29: #{cssu_forward.13} parent=19 // pred_check
        %p234 = pneg %p97
      $region30: #{cssu_forward.13} parent=19 // pred_check_branch
        %236 = sbr.rel (%p234) target = $region32
      $region31: #{cssu_forward.13} parent=19 // pred_region
        %p237 = scmp.lt.s32.totalorder %s18, 1
        %s238 = scalar_select %p237, %s18, 1
        %s239 = smul.addr %s238, 8
        %s240 = smul.addr %s239, 8
        %s241 = scalar_lea.vmem %s2, %s240
      $region32: #{cssu_forward.13} parent=19 // pred_fallthru
        _
      // Predicated region
      $region33: #{cssu_forward.13} parent=19 // pred_check
        %p242 = pneg %p151
      $region34: #{cssu_forward.13} parent=19 // pred_check_branch
        %244 = sbr.rel (%p242) target = $region36
      $region35: #{cssu_forward.13} parent=19 // pred_region
        %s245 = smul.u32 8, %s19
        %p246 = scmp.lt.s32.totalorder %s18, 1
        %s247 = scalar_select %p246, %s18, 1
        %p248 = scmp.lt.s32.totalorder %s245, 7
        %s249 = scalar_select %p248, %s245, 7
        %s250 = smul.addr %s247, 8
        %s251 = sadd.s32 %s249, %s250
        %s252 = smul.addr %s251, 8
        %s253 = scalar_lea.vmem %s4, %s252
        %s254 = smul.u32 8, %s19
      $region36: #{cssu_forward.13} parent=19 // pred_fallthru
        _
    $region20: #{cssu_forward.13} parent=5 // pred_fallthru
      _
    %p255 = scmp.le.s32.totalorder 1, %s11
    %p256 = scmp.lt.s32.totalorder %s11, 3
    %p257 = pnand %p255, %p256
    %p258 = pneg %p257
    // Predicated region
    $region37: #{cssu_forward.13} parent=5 // pred_check
      _
    $region38: #{cssu_forward.13} parent=5 // pred_check_branch
      %260 = sbr.rel (%p257) target = $region40
    $region39: #{cssu_forward.13} parent=5 // pred_region
      %s261 = ssub.s32 %s11, 1
      %p262 = scmp.lt.s32.totalorder %s20, 1
      %s263 = scalar_select %p262, %s20, 1
      %s264 = smul.addr %s263, 8
      %s265 = smul.addr %s264, 8
      %s266 = scalar_lea.vmem %s0, %s265
      %p267 = pneg %p49
      %p268 = pneg %p46
      %s269 = smul.u32 8, %s21
      %p270 = scmp.lt.s32.totalorder %s20, 1
      %s271 = scalar_select %p270, %s20, 1
      %p272 = scmp.lt.s32.totalorder %s269, 7
      %s273 = scalar_select %p272, %s269, 7
      %s274 = smul.addr %s271, 8
      %s275 = sadd.s32 %s273, %s274
      %s276 = smul.addr %s275, 8
      %s277 = scalar_lea.vmem %s1, %s276
      %p278 = pneg %p77
      %p279 = pneg %p74
      %p280 = scmp.lt.s32.totalorder %s20, 1
      %s281 = scalar_select %p280, %s20, 1
      %s282 = smul.addr %s281, 8
      %s283 = smul.addr %s282, 8
      %s284 = scalar_lea.vmem %s2, %s283
      %p285 = pneg %p103
      %p286 = pneg %p100
      %s287 = smul.u32 8, %s21
      %p288 = scmp.lt.s32.totalorder %s287, 7
      %s289 = scalar_select %p288, %s287, 7
      %s290 = smul.addr %s289, 8
      %s291 = scalar_lea.vmem %s3, %s290
      %p292 = pneg %p129
      %p293 = pneg %p126
      %s294 = smul.u32 8, %s21
      %p295 = scmp.lt.s32.totalorder %s20, 1
      %s296 = scalar_select %p295, %s20, 1
      %p297 = scmp.lt.s32.totalorder %s294, 7
      %s298 = scalar_select %p297, %s294, 7
      %s299 = smul.addr %s296, 8
      %s300 = sadd.s32 %s298, %s299
      %s301 = smul.addr %s300, 8
      %s302 = scalar_lea.vmem %s4, %s301
      %p303 = pneg %p157
      %p304 = pneg %p154
      %p305 = pneg %p185
      %p306 = pneg %p182
      %s307 = smul.u32 8, %s21
      %p308 = scmp.lt.s32.totalorder %s20, 1
      %s309 = scalar_select %p308, %s20, 1
      %p310 = scmp.lt.s32.totalorder %s307, 7
      %s311 = scalar_select %p310, %s307, 7
      %s312 = smul.addr %s309, 8
      %s313 = sadd.s32 %s311, %s312
      %s314 = smul.addr %s313, 8
      %s315 = scalar_lea.vmem %s5, %s314
      %p316 = scmp.lt.s32.totalorder %s20, 1
      %s317 = scalar_select %p316, %s20, 1
      %s318 = smul.addr %s317, 8
      %s319 = smul.addr %s318, 8
      %s320 = scalar_lea.vmem %s0, %s319
      %s321 = smul.u32 8, %s21
      %p322 = scmp.lt.s32.totalorder %s20, 1
      %s323 = scalar_select %p322, %s20, 1
      %p324 = scmp.lt.s32.totalorder %s321, 7
      %s325 = scalar_select %p324, %s321, 7
      %s326 = smul.addr %s323, 8
      %s327 = sadd.s32 %s325, %s326
      %s328 = smul.addr %s327, 8
      %s329 = scalar_lea.vmem %s1, %s328
      %s330 = smul.u32 8, %s21
      %p331 = scmp.lt.s32.totalorder %s20, 1
      %s332 = scalar_select %p331, %s20, 1
      %s333 = smul.addr %s332, 8
      %s334 = smul.addr %s333, 8
      %s335 = scalar_lea.vmem %s2, %s334
      %s336 = smul.u32 8, %s21
      %p337 = scmp.lt.s32.totalorder %s336, 7
      %s338 = scalar_select %p337, %s336, 7
      %s339 = smul.addr %s338, 8
      %s340 = scalar_lea.vmem %s3, %s339
      %s341 = smul.u32 8, %s21
      %s342 = smul.u32 8, %s21
      %p343 = scmp.lt.s32.totalorder %s20, 1
      %s344 = scalar_select %p343, %s20, 1
      %p345 = scmp.lt.s32.totalorder %s342, 7
      %s346 = scalar_select %p345, %s342, 7
      %s347 = smul.addr %s344, 8
      %s348 = sadd.s32 %s346, %s347
      %s349 = smul.addr %s348, 8
      %s350 = scalar_lea.vmem %s4, %s349
      %s351 = smul.u32 8, %s21
      %s352 = smul.u32 8, %s21
      %p353 = scmp.lt.s32.totalorder %s20, 1
      %s354 = scalar_select %p353, %s20, 1
      %p355 = scmp.lt.s32.totalorder %s352, 7
      %s356 = scalar_select %p355, %s352, 7
      %s357 = smul.addr %s354, 8
      %s358 = sadd.s32 %s356, %s357
      %s359 = smul.addr %s358, 8
      %s360 = scalar_lea.vmem %s5, %s359
      %s361 = smul.u32 8, %s21
      %v362 = vld [vmem:[%s320] sm:$0xff]
      %v363 = vld [vmem:[%s320 + $0x8] sm:$0xff]
      %v364 = vld [vmem:[%s320 + $0x10] sm:$0xff]
      %v365 = vld [vmem:[%s320 + $0x18] sm:$0xff]
      %v366 = vld [vmem:[%s320 + $0x20] sm:$0xff]
      %v367 = vld [vmem:[%s320 + $0x28] sm:$0xff]
      %v368 = vld [vmem:[%s320 + $0x30] sm:$0xff]
      %v369 = vld [vmem:[%s320 + $0x38] sm:$0xff]
      %v370 = vld [vmem:[%s329] sm:$0xff]
      %v371 = vld [vmem:[%s329 + $0x8] sm:$0xff]
      %v372 = vld [vmem:[%s329 + $0x10] sm:$0xff]
      %v373 = vld [vmem:[%s329 + $0x18] sm:$0xff]
      %v374 = vld [vmem:[%s329 + $0x20] sm:$0xff]
      %v375 = vld [vmem:[%s329 + $0x28] sm:$0xff]
      %v376 = vld [vmem:[%s329 + $0x30] sm:$0xff]
      %v377 = vld [vmem:[%s329 + $0x38] sm:$0xff]
      %v378 = vld [vmem:[%s335] sm:$0xff]
      %v379 = vld [vmem:[%s335 + $0x8] sm:$0xff]
      %v380 = vld [vmem:[%s335 + $0x10] sm:$0xff]
      %v381 = vld [vmem:[%s335 + $0x18] sm:$0xff]
      %v382 = vld [vmem:[%s335 + $0x20] sm:$0xff]
      %v383 = vld [vmem:[%s335 + $0x28] sm:$0xff]
      %v384 = vld [vmem:[%s335 + $0x30] sm:$0xff]
      %v385 = vld [vmem:[%s335 + $0x38] sm:$0xff]
      %vm386 = vcmask 64512
      %v388 = vsel %vm386, %v362, 0
      %v391 = vsel %vm386, %v363, 0
      %v394 = vsel %vm386, %v364, 0
      %v397 = vsel %vm386, %v365, 0
      %v400 = vsel %vm386, %v366, 0
      %v403 = vsel %vm386, %v367, 0
      %v406 = vsel %vm386, %v368, 0
      %v409 = vsel %vm386, %v369, 0
      %v412 = vsel %vm386, %v370, 0
      %v415 = vsel %vm386, %v371, 0
      %v418 = vsel %vm386, %v372, 0
      %v421 = vsel %vm386, %v373, 0
      %v424 = vsel %vm386, %v374, 0
      %v427 = vsel %vm386, %v375, 0
      %v430 = vsel %vm386, %v376, 0
      %v433 = vsel %vm386, %v377, 0
      %435 = vmatprep.subr.mxu0 0.0
      %436 = vmatpush1.xpose.msra.mxu0 %v412
      %437 = vmatprep.subr.mxu0 0.0
      %438 = vmatpush1.xpose.msra.mxu0 %v415
      %439 = vmatprep.subr.mxu0 0.0
      %440 = vmatpush1.xpose.msra.mxu0 %v418
      %441 = vmatprep.subr.mxu0 0.0
      %442 = vmatpush1.xpose.msra.mxu0 %v421
      %443 = vmatprep.subr.mxu0 0.0
      %444 = vmatpush1.xpose.msra.mxu0 %v424
      %445 = vmatprep.subr.mxu0 0.0
      %446 = vmatpush1.xpose.msra.mxu0 %v427
      %447 = vmatprep.subr.mxu0 0.0
      %448 = vmatpush1.xpose.msra.mxu0 %v430
      %449 = vmatprep.subr.mxu0 0.0
      %450 = vmatpush1.xpose.msra.mxu0 %v433
      %451 = vmatprep.subr.mxu0 0.0
      %452 = vmatpush1.xpose.msra.mxu0 0.0
      %453 = vmatprep.subr.mxu0 0.0
      %454 = vmatpush1.xpose.msra.mxu0 0.0
      %455 = vmatprep.subr.mxu0 0.0
      %456 = vmatpush1.xpose.msra.mxu0 0.0
      %457 = vmatprep.subr.mxu0 0.0
      %458 = vmatpush1.xpose.msra.mxu0 0.0
      %459 = vmatprep.subr.mxu0 0.0
      %460 = vmatpush1.xpose.msra.mxu0 0.0
      %461 = vmatprep.subr.mxu0 0.0
      %462 = vmatpush1.xpose.msra.mxu0 0.0
      %463 = vmatprep.subr.mxu0 0.0
      %464 = vmatpush1.xpose.msra.mxu0 0.0
      %465 = vmatprep.subr.mxu0 0.0
      %466 = vmatpush1.xpose.msra.mxu0 0.0
      %467 = vmatprep.subr.mxu0 0.0
      %468 = vmatpush1.xpose.msra.mxu0 0.0
      %469 = vmatprep.subr.mxu0 0.0
      %470 = vmatpush1.xpose.msra.mxu0 0.0
      %471 = vmatprep.subr.mxu0 0.0
      %472 = vmatpush1.xpose.msra.mxu0 0.0
      %473 = vmatprep.subr.mxu0 0.0
      %474 = vmatpush1.xpose.msra.mxu0 0.0
      %475 = vmatprep.subr.mxu0 0.0
      %476 = vmatpush1.xpose.msra.mxu0 0.0
      %477 = vmatprep.subr.mxu0 0.0
      %478 = vmatpush1.xpose.msra.mxu0 0.0
      %479 = vmatprep.subr.mxu0 0.0
      %480 = vmatpush1.xpose.msra.mxu0 0.0
      %481 = vmatprep.subr.mxu0 0.0
      %482 = vmatpush1.xpose.msra.mxu0 0.0
      %483 = vmatprep.subr.mxu0 0.0
      %484 = vmatpush1.xpose.msra.mxu0 0.0
      %485 = vmatprep.subr.mxu0 0.0
      %486 = vmatpush1.xpose.msra.mxu0 0.0
      %487 = vmatprep.subr.mxu0 0.0
      %488 = vmatpush1.xpose.msra.mxu0 0.0
      %489 = vmatprep.subr.mxu0 0.0
      %490 = vmatpush1.xpose.msra.mxu0 0.0
      %491 = vmatprep.subr.mxu0 0.0
      %492 = vmatpush1.xpose.msra.mxu0 0.0
      %493 = vmatprep.subr.mxu0 0.0
      %494 = vmatpush1.xpose.msra.mxu0 0.0
      %495 = vmatprep.subr.mxu0 0.0
      %496 = vmatpush1.xpose.msra.mxu0 0.0
      %497 = vmatprep.subr.mxu0 0.0
      %498 = vmatpush1.xpose.msra.mxu0 0.0
      %499 = vmatprep.mubr.f32.mxu0 0.0
      %500 = vmatmul.mubr.f32.gmra.mrb[0].mxu0 %v388
      %v501 = vpop.f32.mrb[0].mxu0
      %v502 = vadd.f32 0.0, %v501
      %v503 = vpop.f32.mrb[0].mxu0
      %504 = vmatprep.mubr.f32.mxu0 0.0
      %505 = vmatmul.mubr.f32.gmra.mrb[0].mxu0 %v391
      %v506 = vpop.f32.mrb[0].mxu0
      %v507 = vadd.f32 0.0, %v506
      %v508 = vpop.f32.mrb[0].mxu0
      %509 = vmatprep.mubr.f32.mxu0 0.0
      %510 = vmatmul.mubr.f32.gmra.mrb[0].mxu0 %v394
      %v511 = vpop.f32.mrb[0].mxu0
      %v512 = vadd.f32 0.0, %v511
      %v513 = vpop.f32.mrb[0].mxu0
      %514 = vmatprep.mubr.f32.mxu0 0.0
      %515 = vmatmul.mubr.f32.gmra.mrb[0].mxu0 %v397
      %v516 = vpop.f32.mrb[0].mxu0
      %v517 = vadd.f32 0.0, %v516
      %v518 = vpop.f32.mrb[0].mxu0
      %519 = vmatprep.mubr.f32.mxu0 0.0
      %520 = vmatmul.mubr.f32.gmra.mrb[0].mxu0 %v400
      %v521 = vpop.f32.mrb[0].mxu0
      %v522 = vadd.f32 0.0, %v521
      %v523 = vpop.f32.mrb[0].mxu0
      %524 = vmatprep.mubr.f32.mxu0 0.0
      %525 = vmatmul.mubr.f32.gmra.mrb[0].mxu0 %v403
      %v526 = vpop.f32.mrb[0].mxu0
      %v527 = vadd.f32 0.0, %v526
      %v528 = vpop.f32.mrb[0].mxu0
      %529 = vmatprep.mubr.f32.mxu0 0.0
      %530 = vmatmul.mubr.f32.gmra.mrb[0].mxu0 %v406
      %v531 = vpop.f32.mrb[0].mxu0
      %v532 = vadd.f32 0.0, %v531
      %v533 = vpop.f32.mrb[0].mxu0
      %534 = vmatprep.mubr.f32.mxu0 0.0
      %535 = vmatmul.mubr.f32.gmra.mrb[0].mxu0 %v409
      %v536 = vpop.f32.mrb[0].mxu0
      %v537 = vadd.f32 0.0, %v536
      %v538 = vpop.f32.mrb[0].mxu0
      %539 = vdwg.mxu0
      %vm540 = vcmask 523264
      %v541 = vsel %vm540, %v502, -inf
      %v542 = vsel %vm540, %v507, -inf
      %v543 = vsel %vm540, %v512, -inf
      %v544 = vsel %vm540, %v517, -inf
      %v545 = vsel %vm540, %v522, -inf
      %v546 = vmax.f32 %v541, %v545
      %v547 = vsel %vm540, %v527, -inf
      %v548 = vmax.f32 %v542, %v547
      %v549 = vsel %vm540, %v532, -inf
      %v550 = vmax.f32 %v543, %v549
      %v551 = vsel %vm540, %v537, -inf
      %v552 = vmax.f32 %v544, %v551
      %v553 = vmax.f32 %v546, %v548
      %v554 = vmax.f32 %v550, %v552
      %v555 = vmax.f32 %v553, %v554
      %v556 = vrot.slane %v555, 4
      %v557 = vmax.f32 %v555, %v556
      %v558 = vrot.slane %v557, 2
      %v559 = vmax.f32 %v557, %v558
      %v560 = vrot.slane %v559, 1
      %v561 = vmax.f32 %v559, %v560
      %v562 = vsub.f32 %v502, %v561
      %v563 = vsub.f32 %v507, %v561
      %v564 = vsub.f32 %v512, %v561
      %v565 = vsub.f32 %v517, %v561
      %v566 = vsub.f32 %v522, %v561
      %v567 = vsub.f32 %v527, %v561
      %v568 = vsub.f32 %v532, %v561
      %v569 = vsub.f32 %v537, %v561
      %v570 = vmul.f32 %v562, 1.442695
      %v571 = vpow.pop %v570
      %v572 = vmul.f32 %v563, 1.442695
      %v573 = vpow.pop %v572
      %v574 = vmul.f32 %v564, 1.442695
      %v575 = vpow.pop %v574
      %v576 = vmul.f32 %v565, 1.442695
      %v577 = vpow.pop %v576
      %v578 = vmul.f32 %v566, 1.442695
      %v579 = vpow.pop %v578
      %v580 = vmul.f32 %v567, 1.442695
      %v581 = vpow.pop %v580
      %v582 = vmul.f32 %v568, 1.442695
      %v583 = vpow.pop %v582
      %v584 = vmul.f32 %v569, 1.442695
      %v585 = vpow.pop %v584
      %v586 = vsel %vm540, %v571, 0.0
      %v587 = vsel %vm540, %v573, 0.0
      %v588 = vadd.f32 %v586, %v587
      %v589 = vsel %vm540, %v575, 0.0
      %v590 = vadd.f32 %v588, %v589
      %v591 = vsel %vm540, %v577, 0.0
      %v592 = vadd.f32 %v590, %v591
      %v593 = vsel %vm540, %v579, 0.0
      %v594 = vadd.f32 %v592, %v593
      %v595 = vsel %vm540, %v581, 0.0
      %v596 = vadd.f32 %v594, %v595
      %v597 = vsel %vm540, %v583, 0.0
      %v598 = vadd.f32 %v596, %v597
      %v599 = vsel %vm540, %v585, 0.0
      %v600 = vadd.f32 %v598, %v599
      %v601 = vrot.slane %v600, 4
      %v602 = vadd.f32 %v600, %v601
      %v603 = vrot.slane %v602, 2
      %v604 = vadd.f32 %v602, %v603
      %v605 = vrot.slane %v604, 1
      %v606 = vadd.f32 %v604, %v605
      %v607 = vrcp.pop %v606
      %v608 = vmul.f32 %v571, %v607
      %v609 = vmul.f32 %v573, %v607
      %v610 = vmul.f32 %v575, %v607
      %v611 = vmul.f32 %v577, %v607
      %v612 = vmul.f32 %v579, %v607
      %v613 = vmul.f32 %v581, %v607
      %v614 = vmul.f32 %v583, %v607
      %v615 = vmul.f32 %v585, %v607
      %616 = vxpose.xlu0.b32.start [1/16] %v608, 128
      %617 = vxpose.xlu0.b32.cont [2/16] %v609, 128
      %618 = vxpose.xlu0.b32.cont [3/16] %v610, 128
      %619 = vxpose.xlu0.b32.cont [4/16] %v611, 128
      %620 = vxpose.xlu0.b32.cont [5/16] %v612, 128
      %621 = vxpose.xlu0.b32.cont [6/16] %v613, 128
      %622 = vxpose.xlu0.b32.cont [7/16] %v614, 128
      %623 = vxpose.xlu0.b32.cont [8/16] %v615, 128
      %624 = vxpose.xlu0.b32.cont [9/16] 0.0, 128
      %625 = vxpose.xlu0.b32.cont [10/16] 0.0, 128
      %626 = vxpose.xlu0.b32.cont [11/16] 0.0, 128
      %627 = vxpose.xlu0.b32.cont [12/16] 0.0, 128
      %628 = vxpose.xlu0.b32.cont [13/16] 0.0, 128
      %629 = vxpose.xlu0.b32.cont [14/16] 0.0, 128
      %630 = vxpose.xlu0.b32.cont [15/16] 0.0, 128
      %631 = vxpose.xlu0.b32.end [16/16] 0.0, 128
      %v632 = vpop.trf.xlu0
      %v633 = vpop.trf.xlu0
      %v634 = vpop.trf.xlu0
      %v635 = vpop.trf.xlu0
      %v636 = vpop.trf.xlu0
      %v637 = vpop.trf.xlu0
      %v638 = vpop.trf.xlu0
      %v639 = vpop.trf.xlu0
      %v640 = vpop.trf.xlu0
      %v641 = vpop.trf.xlu0
      %v642 = vpop.trf.xlu0
      %v643 = vpop.trf.xlu0
      %v644 = vpop.trf.xlu0
      %v645 = vpop.trf.xlu0
      %v646 = vpop.trf.xlu0
      %v647 = vpop.trf.xlu0
      %v649 = vsel %vm540, %v632, 0
      %v652 = vsel %vm540, %v633, 0
      %v655 = vsel %vm540, %v634, 0
      %v658 = vsel %vm540, %v635, 0
      %v661 = vsel %vm540, %v636, 0
      %v664 = vsel %vm540, %v637, 0
      %v667 = vsel %vm540, %v638, 0
      %v670 = vsel %vm540, %v639, 0
      %672 = vmatprep.subr.mxu0 0.0
      %673 = vmatpush1.msra.mxu0 %v378
      %674 = vmatprep.subr.mxu0 0.0
      %675 = vmatpush1.msra.mxu0 %v379
      %676 = vmatprep.subr.mxu0 0.0
      %677 = vmatpush1.msra.mxu0 %v380
      %678 = vmatprep.subr.mxu0 0.0
      %679 = vmatpush1.msra.mxu0 %v381
      %680 = vmatprep.subr.mxu0 0.0
      %681 = vmatpush1.msra.mxu0 %v382
      %682 = vmatprep.subr.mxu0 0.0
      %683 = vmatpush1.msra.mxu0 %v383
      %684 = vmatprep.subr.mxu0 0.0
      %685 = vmatpush1.msra.mxu0 %v384
      %686 = vmatprep.subr.mxu0 0.0
      %687 = vmatpush1.msra.mxu0 %v385
      %688 = vmatprep.subr.mxu0 0.0
      %689 = vmatpush1.msra.mxu0 0.0
      %690 = vmatprep.subr.mxu0 0.0
      %691 = vmatpush1.msra.mxu0 0.0
      %692 = vmatprep.subr.mxu0 0.0
      %693 = vmatpush1.msra.mxu0 0.0
      %694 = vmatprep.subr.mxu0 0.0
      %695 = vmatpush1.msra.mxu0 0.0
      %696 = vmatprep.subr.mxu0 0.0
      %697 = vmatpush1.msra.mxu0 0.0
      %698 = vmatprep.subr.mxu0 0.0
      %699 = vmatpush1.msra.mxu0 0.0
      %700 = vmatprep.subr.mxu0 0.0
      %701 = vmatpush1.msra.mxu0 0.0
      %702 = vmatprep.subr.mxu0 0.0
      %703 = vmatpush1.msra.mxu0 0.0
      %704 = vmatprep.subr.mxu0 0.0
      %705 = vmatpush1.msra.mxu0 0.0
      %706 = vmatprep.subr.mxu0 0.0
      %707 = vmatpush1.msra.mxu0 0.0
      %708 = vmatprep.subr.mxu0 0.0
      %709 = vmatpush1.msra.mxu0 0.0
      %710 = vmatprep.subr.mxu0 0.0
      %711 = vmatpush1.msra.mxu0 0.0
      %712 = vmatprep.subr.mxu0 0.0
      %713 = vmatpush1.msra.mxu0 0.0
      %714 = vmatprep.subr.mxu0 0.0
      %715 = vmatpush1.msra.mxu0 0.0
      %716 = vmatprep.subr.mxu0 0.0
      %717 = vmatpush1.msra.mxu0 0.0
      %718 = vmatprep.subr.mxu0 0.0
      %719 = vmatpush1.msra.mxu0 0.0
      %720 = vmatprep.subr.mxu0 0.0
      %721 = vmatpush1.msra.mxu0 0.0
      %722 = vmatprep.subr.mxu0 0.0
      %723 = vmatpush1.msra.mxu0 0.0
      %724 = vmatprep.subr.mxu0 0.0
      %725 = vmatpush1.msra.mxu0 0.0
      %726 = vmatprep.subr.mxu0 0.0
      %727 = vmatpush1.msra.mxu0 0.0
      %728 = vmatprep.subr.mxu0 0.0
      %729 = vmatpush1.msra.mxu0 0.0
      %730 = vmatprep.subr.mxu0 0.0
      %731 = vmatpush1.msra.mxu0 0.0
      %732 = vmatprep.subr.mxu0 0.0
      %733 = vmatpush1.msra.mxu0 0.0
      %734 = vmatprep.subr.mxu0 0.0
      %735 = vmatpush1.msra.mxu0 0.0
      %736 = vmatprep.mubr.f32.mxu0 0.0
      %737 = vmatmul.mubr.f32.gmra.mrb[0].mxu0 %v649
      %v738 = vpop.f32.mrb[0].mxu0
      %v739 = vadd.f32 0.0, %v738
      %v740 = vpop.f32.mrb[0].mxu0
      %741 = vmatprep.mubr.f32.mxu0 0.0
      %742 = vmatmul.mubr.f32.gmra.mrb[0].mxu0 %v652
      %v743 = vpop.f32.mrb[0].mxu0
      %v744 = vadd.f32 0.0, %v743
      %v745 = vpop.f32.mrb[0].mxu0
      %746 = vmatprep.mubr.f32.mxu0 0.0
      %747 = vmatmul.mubr.f32.gmra.mrb[0].mxu0 %v655
      %v748 = vpop.f32.mrb[0].mxu0
      %v749 = vadd.f32 0.0, %v748
      %v750 = vpop.f32.mrb[0].mxu0
      %751 = vmatprep.mubr.f32.mxu0 0.0
      %752 = vmatmul.mubr.f32.gmra.mrb[0].mxu0 %v658
      %v753 = vpop.f32.mrb[0].mxu0
      %v754 = vadd.f32 0.0, %v753
      %v755 = vpop.f32.mrb[0].mxu0
      %756 = vmatprep.mubr.f32.mxu0 0.0
      %757 = vmatmul.mubr.f32.gmra.mrb[0].mxu0 %v661
      %v758 = vpop.f32.mrb[0].mxu0
      %v759 = vadd.f32 0.0, %v758
      %v760 = vpop.f32.mrb[0].mxu0
      %761 = vmatprep.mubr.f32.mxu0 0.0
      %762 = vmatmul.mubr.f32.gmra.mrb[0].mxu0 %v664
      %v763 = vpop.f32.mrb[0].mxu0
      %v764 = vadd.f32 0.0, %v763
      %v765 = vpop.f32.mrb[0].mxu0
      %766 = vmatprep.mubr.f32.mxu0 0.0
      %767 = vmatmul.mubr.f32.gmra.mrb[0].mxu0 %v667
      %v768 = vpop.f32.mrb[0].mxu0
      %v769 = vadd.f32 0.0, %v768
      %v770 = vpop.f32.mrb[0].mxu0
      %771 = vmatprep.mubr.f32.mxu0 0.0
      %772 = vmatmul.mubr.f32.gmra.mrb[0].mxu0 %v670
      %v773 = vpop.f32.mrb[0].mxu0
      %v774 = vadd.f32 0.0, %v773
      %v775 = vpop.f32.mrb[0].mxu0
      %776 = vdwg.mxu0
      %v777 = vld [vmem:[%s340] sm:$0xff]
      %v778 = vld [vmem:[%s340 + $0x8] sm:$0xff]
      %v779 = vld [vmem:[%s340 + $0x10] sm:$0xff]
      %v780 = vld [vmem:[%s340 + $0x18] sm:$0xff]
      %v781 = vld [vmem:[%s340 + $0x20] sm:$0xff]
      %v782 = vld [vmem:[%s340 + $0x28] sm:$0xff]
      %v783 = vld [vmem:[%s340 + $0x30] sm:$0xff]
      %v784 = vld [vmem:[%s340 + $0x38] sm:$0xff]
      %v785 = vmul.f32 %v777, %v739
      %v786 = vmul.f32 %v778, %v744
      %v787 = vmul.f32 %v779, %v749
      %v788 = vmul.f32 %v780, %v754
      %v789 = vmul.f32 %v781, %v759
      %v790 = vmul.f32 %v782, %v764
      %v791 = vmul.f32 %v783, %v769
      %v792 = vmul.f32 %v784, %v774
      %v793 = vld [vmem:[%s350] sm:$0xff]
      %v794 = vld [vmem:[%s350 + $0x8] sm:$0xff]
      %v795 = vld [vmem:[%s350 + $0x10] sm:$0xff]
      %v796 = vld [vmem:[%s350 + $0x18] sm:$0xff]
      %v797 = vld [vmem:[%s350 + $0x20] sm:$0xff]
      %v798 = vld [vmem:[%s350 + $0x28] sm:$0xff]
      %v799 = vld [vmem:[%s350 + $0x30] sm:$0xff]
      %v800 = vld [vmem:[%s350 + $0x38] sm:$0xff]
      %v801 = vadd.f32 %v785, %v793
      %v802 = vadd.f32 %v786, %v794
      %v803 = vadd.f32 %v787, %v795
      %v804 = vadd.f32 %v788, %v796
      %v805 = vadd.f32 %v789, %v797
      %v806 = vadd.f32 %v790, %v798
      %v807 = vadd.f32 %v791, %v799
      %v808 = vadd.f32 %v792, %v800
      %809 = vst.msk [vmem:[%s360] sm:$0xff] %vm386, %v801
      %810 = vst.msk [vmem:[%s360 + $0x8] sm:$0xff] %vm386, %v802
      %811 = vst.msk [vmem:[%s360 + $0x10] sm:$0xff] %vm386, %v803
      %812 = vst.msk [vmem:[%s360 + $0x18] sm:$0xff] %vm386, %v804
      %813 = vst.msk [vmem:[%s360 + $0x20] sm:$0xff] %vm386, %v805
      %814 = vst.msk [vmem:[%s360 + $0x28] sm:$0xff] %vm386, %v806
      %815 = vst.msk [vmem:[%s360 + $0x30] sm:$0xff] %vm386, %v807
      %816 = vst.msk [vmem:[%s360 + $0x38] sm:$0xff] %vm386, %v808
      %s817 = smul.u32 8, %s21
      %p818 = scmp.lt.s32.totalorder %s20, 1
      %s819 = scalar_select %p818, %s20, 1
      %p820 = scmp.lt.s32.totalorder %s817, 7
      %s821 = scalar_select %p820, %s817, 7
      %s822 = smul.addr %s819, 8
      %s823 = sadd.s32 %s821, %s822
      %s824 = smul.addr %s823, 8
      %s825 = scalar_lea.vmem %s5, %s824
      // Predicated region
      $region41: #{cssu_forward.13} parent=39 // pred_check
        %p826 = pneg %p182
      $region42: #{cssu_forward.13} parent=39 // pred_check_branch
        %828 = sbr.rel (%p826) target = $region44
      $region43: #{cssu_forward.13} parent=39 // pred_region
        %s829 = smul.u32 8, %s21
      $region44: #{cssu_forward.13} parent=39 // pred_fallthru
        _
    $region40: #{cssu_forward.13} parent=5 // pred_fallthru
      _
    %p830 = scmp.le.s32.totalorder 2, %s11
    // Predicated region
    $region45: #{cssu_forward.13} parent=5 // pred_check
      %p831 = pneg %p830
    $region46: #{cssu_forward.13} parent=5 // pred_check_branch
      %833 = sbr.rel (%p831) target = $region48
    $region47: #{cssu_forward.13} parent=5 // pred_region
      %s834 = ssub.s32 %s11, 2
      // Predicated region
      $region49: #{cssu_forward.13} parent=47 // pred_check
        %p835 = pneg %p188
      $region50: #{cssu_forward.13} parent=47 // pred_check_branch
        %837 = sbr.rel (%p835) target = $region52
      $region51: #{cssu_forward.13} parent=47 // pred_region
        %s838 = smul.u32 8, %s23
        %p839 = scmp.lt.s32.totalorder %s22, 1
        %s840 = scalar_select %p839, %s22, 1
        %p841 = scmp.lt.s32.totalorder %s838, 7
        %s842 = scalar_select %p841, %s838, 7
        %s843 = smul.addr %s840, 8
        %s844 = sadd.s32 %s842, %s843
        %s845 = smul.addr %s844, 8
        %s846 = scalar_lea.vmem %s5, %s845
      $region52: #{cssu_forward.13} parent=47 // pred_fallthru
        _
    $region48: #{cssu_forward.13} parent=5 // pred_fallthru
      _
  $region6: #{cssu_forward.13} parent=0 // loop_footer
    %s15 = sadd.s32 1, %s11
  $region7: #{cssu_forward.13} parent=0 // loop_footer_branch
    %10 = sbr.rel target = $region3
  $region8: #{cssu_forward.13} parent=0 // loop_exit
    _

// kernel: cssu_forward.11
$region0: #{cssu_forward.11}
  #allocation0 [shape = 'u32[]', space=smem, size = 0x4, offset = 0x4, fixed_abs, tag = 'smem constant byte address 0x4 - core index']
  #allocation1 [shape = 'u32[144,128]{1,0:T(1,128)}', space=vmem, size = 0x12000, scoped, tag = 'internal scratch']
  %s0 = inlined_call_operand.vmem [shape: f32[2,10,10,8], index: 0, kind: input, shape index: {}]
  %s1 = inlined_call_operand.vmem [shape: f32[2,10,10,8], index: 1, kind: input, shape index: {}]
  %s2 = inlined_call_operand.vmem [shape: f32[18,8,8], index: 2, kind: input, shape index: {}]
  %s3 = inlined_call_operand.vmem [shape: f32[1,8], index: 3, kind: input, shape index: {}]
  %s4 = inlined_call_operand.vmem [shape: f32[1,8], index: 4, kind: input, shape index: {}]
  %s5 = inlined_call_operand.vmem [shape: f32[2,8,8,8], index: 5, kind: output, shape index: {}]
  %s6 = sld [smem:[#allocation0]]
  $region53: #{cssu_forward.11} parent=0
    _
  %s8 = ssub.s32 1, %s6
  %s9 = scalar_select 0, %s8, %s6
  loop: start=0, step=1, limit=4
  $region2: #{cssu_forward.11} parent=0 // loop_pre_header
    _
  $region3: #{cssu_forward.11} parent=0 // loop_header
    %s11 = sphi 0, %s15
    %p12 = scmp.ge.s32.totalorder %s11, 4
    %s21 = sphi 0, %s23
    %s24 = sphi 0, %s21
    %s25 = sphi 0, %s24
    %s41 = sphi 0, %s25
    %s47 = sphi 0, %s49
    %s50 = sphi 0, %s47
    %s51 = sphi 0, %s50
    %s67 = sphi 0, %s51
    %s71 = sphi 0, %s71
    %s73 = sphi 0, %s71
    %s74 = sphi 0, %s73
    %s88 = sphi 0, %s74
    %s92 = sphi 0, %s92
    %s94 = sphi 0, %s92
    %s95 = sphi 0, %s94
    %s109 = sphi 0, %s95
    %s113 = sphi 0, %s113
    %s115 = sphi 0, %s113
    %s116 = sphi 0, %s115
    %s130 = sphi 0, %s116
    %s136 = sphi 0, %s138
    %s139 = sphi 0, %s136
    %s140 = sphi 0, %s139
    %s156 = sphi 0, %s140
  $region4: #{cssu_forward.11} parent=0 // loop_header_branch
    %14 = sbr.rel (%p12) target = $region8
  $region5: #{cssu_forward.11} parent=0 // loop_body
    %s16 = ssub.s32 %s11, 1
    %s17 = ssub.s32 %s11, 2
    %s18 = sadd.s32 %s11, 1
    %s19 = ssub.s32 %s11, %s18
    %p20 = scmp.eq.s32.totalorder %s19, 0
    %s22 = sadd.s32 %s21, 1
    %s23 = scalar_select %p20, %s21, %s22
    %p26 = pneg %p20
    %p27 = scmp.eq.s32.totalorder %s11, 1
    %p28 = por %p26, %p27
    %p29 = scmp.ne.s32.totalorder %s21, %s24
    %p30 = scmp.eq.s32.totalorder %s11, 0
    %p31 = por %p29, %p30
    %p32 = scmp.ne.s32.totalorder %s21, %s24
    %p33 = scmp.eq.s32.totalorder %s16, 1
    %p34 = por %p32, %p33
    %p35 = scmp.ne.s32.totalorder %s24, %s25
    %p36 = scmp.eq.s32.totalorder %s16, 0
    %p37 = por %p35, %p36
    %p38 = scmp.ne.s32.totalorder %s24, %s25
    %p39 = scmp.eq.s32.totalorder %s17, 1
    %p40 = por %p38, %p39
    %p42 = scmp.ne.s32.totalorder %s25, %s41
    %p43 = scmp.eq.s32.totalorder %s17, 0
    %p44 = por %p42, %p43
    %s45 = ssub.s32 %s11, %s18
    %p46 = scmp.eq.s32.totalorder %s45, 0
    %s48 = sadd.s32 %s47, 1
    %s49 = scalar_select %p46, %s47, %s48
    %p52 = pneg %p46
    %p53 = scmp.eq.s32.totalorder %s11, 1
    %p54 = por %p52, %p53
    %p55 = scmp.ne.s32.totalorder %s47, %s50
    %p56 = scmp.eq.s32.totalorder %s11, 0
    %p57 = por %p55, %p56
    %p58 = scmp.ne.s32.totalorder %s47, %s50
    %p59 = scmp.eq.s32.totalorder %s16, 1
    %p60 = por %p58, %p59
    %p61 = scmp.ne.s32.totalorder %s50, %s51
    %p62 = scmp.eq.s32.totalorder %s16, 0
    %p63 = por %p61, %p62
    %p64 = scmp.ne.s32.totalorder %s50, %s51
    %p65 = scmp.eq.s32.totalorder %s17, 1
    %p66 = por %p64, %p65
    %p68 = scmp.ne.s32.totalorder %s51, %s67
    %p69 = scmp.eq.s32.totalorder %s17, 0
    %p70 = por %p68, %p69
    %s72 = sadd.s32 %s71, 1
    %p75 = scmp.eq.s32.totalorder %s11, 1
    %p76 = scmp.ne.s32.totalorder %s71, %s73
    %p77 = scmp.eq.s32.totalorder %s11, 0
    %p78 = por %p76, %p77
    %p79 = scmp.ne.s32.totalorder %s71, %s73
    %p80 = scmp.eq.s32.totalorder %s16, 1
    %p81 = por %p79, %p80
    %p82 = scmp.ne.s32.totalorder %s73, %s74
    %p83 = scmp.eq.s32.totalorder %s16, 0
    %p84 = por %p82, %p83
    %p85 = scmp.ne.s32.totalorder %s73, %s74
    %p86 = scmp.eq.s32.totalorder %s17, 1
    %p87 = por %p85, %p86
    %p89 = scmp.ne.s32.totalorder %s74, %s88
    %p90 = scmp.eq.s32.totalorder %s17, 0
    %p91 = por %p89, %p90
    %s93 = sadd.s32 %s92, 1
    %p96 = scmp.eq.s32.totalorder %s11, 1
    %p97 = scmp.ne.s32.totalorder %s92, %s94
    %p98 = scmp.eq.s32.totalorder %s11, 0
    %p99 = por %p97, %p98
    %p100 = scmp.ne.s32.totalorder %s92, %s94
    %p101 = scmp.eq.s32.totalorder %s16, 1
    %p102 = por %p100, %p101
    %p103 = scmp.ne.s32.totalorder %s94, %s95
    %p104 = scmp.eq.s32.totalorder %s16, 0
    %p105 = por %p103, %p104
    %p106 = scmp.ne.s32.totalorder %s94, %s95
    %p107 = scmp.eq.s32.totalorder %s17, 1
    %p108 = por %p106, %p107
    %p110 = scmp.ne.s32.totalorder %s95, %s109
    %p111 = scmp.eq.s32.totalorder %s17, 0
    %p112 = por %p110, %p111
    %s114 = sadd.s32 %s113, 1
    %p117 = scmp.eq.s32.totalorder %s11, 1
    %p118 = scmp.ne.s32.totalorder %s113, %s115
    %p119 = scmp.eq.s32.totalorder %s11, 0
    %p120 = por %p118, %p119
    %p121 = scmp.ne.s32.totalorder %s113, %s115
    %p122 = scmp.eq.s32.totalorder %s16, 1
    %p123 = por %p121, %p122
    %p124 = scmp.ne.s32.totalorder %s115, %s116
    %p125 = scmp.eq.s32.totalorder %s16, 0
    %p126 = por %p124, %p125
    %p127 = scmp.ne.s32.totalorder %s115, %s116
    %p128 = scmp.eq.s32.totalorder %s17, 1
    %p129 = por %p127, %p128
    %p131 = scmp.ne.s32.totalorder %s116, %s130
    %p132 = scmp.eq.s32.totalorder %s17, 0
    %p133 = por %p131, %p132
    %s134 = ssub.s32 %s11, %s18
    %p135 = scmp.eq.s32.totalorder %s134, 0
    %s137 = sadd.s32 %s136, 1
    %s138 = scalar_select %p135, %s136, %s137
    %p141 = pneg %p135
    %p142 = scmp.eq.s32.totalorder %s11, 1
    %p143 = por %p141, %p142
    %p144 = scmp.ne.s32.totalorder %s136, %s139
    %p145 = scmp.eq.s32.totalorder %s11, 0
    %p146 = por %p144, %p145
    %p147 = scmp.ne.s32.totalorder %s136, %s139
    %p148 = scmp.eq.s32.totalorder %s16, 1
    %p149 = por %p147, %p148
    %p150 = scmp.ne.s32.totalorder %s139, %s140
    %p151 = scmp.eq.s32.totalorder %s16, 0
    %p152 = por %p150, %p151
    %p153 = scmp.ne.s32.totalorder %s139, %s140
    %p154 = scmp.eq.s32.totalorder %s17, 1
    %p155 = por %p153, %p154
    %p157 = scmp.ne.s32.totalorder %s140, %s156
    %p158 = scmp.eq.s32.totalorder %s17, 0
    %p159 = por %p157, %p158
    %p160 = scmp.le.s32.totalorder 1, %s11
    %p161 = scmp.lt.s32.totalorder %s11, 3
    %p162 = pnand %p160, %p161
    %p163 = pneg %p162
    // Predicated region
    $region9: #{cssu_forward.11} parent=5 // pred_check
      _
    $region10: #{cssu_forward.11} parent=5 // pred_check_branch
      %165 = sbr.rel (%p162) target = $region12
    $region11: #{cssu_forward.11} parent=5 // pred_region
      %s166 = ssub.s32 %s11, 1
      // Predicated region
      $region13: #{cssu_forward.11} parent=11 // pred_check
        %p167 = pneg %p84
      $region14: #{cssu_forward.11} parent=11 // pred_check_branch
        %169 = sbr.rel (%p167) target = $region16
      $region15: #{cssu_forward.11} parent=11 // pred_region
        _
      $region16: #{cssu_forward.11} parent=11 // pred_fallthru
        _
      // Predicated region
      $region17: #{cssu_forward.11} parent=11 // pred_check
        %p170 = pneg %p105
      $region18: #{cssu_forward.11} parent=11 // pred_check_branch
        %172 = sbr.rel (%p170) target = $region20
      $region19: #{cssu_forward.11} parent=11 // pred_region
        _
      $region20: #{cssu_forward.11} parent=11 // pred_fallthru
        _
      // Predicated region
      $region21: #{cssu_forward.11} parent=11 // pred_check
        %p173 = pneg %p126
      $region22: #{cssu_forward.11} parent=11 // pred_check_branch
        %175 = sbr.rel (%p173) target = $region24
      $region23: #{cssu_forward.11} parent=11 // pred_region
        _
      $region24: #{cssu_forward.11} parent=11 // pred_fallthru
        _
    $region12: #{cssu_forward.11} parent=5 // pred_fallthru
      _
    %p176 = scmp.lt.s32.totalorder %s11, 2
    // Predicated region
    $region25: #{cssu_forward.11} parent=5 // pred_check
      %p177 = pneg %p176
    $region26: #{cssu_forward.11} parent=5 // pred_check_branch
      %179 = sbr.rel (%p177) target = $region28
    $region27: #{cssu_forward.11} parent=5 // pred_region
      // Predicated region
      $region29: #{cssu_forward.11} parent=27 // pred_check
        %p180 = pneg %p31
      $region30: #{cssu_forward.11} parent=27 // pred_check_branch
        %182 = sbr.rel (%p180) target = $region32
      $region31: #{cssu_forward.11} parent=27 // pred_region
        %p183 = scmp.lt.s32.totalorder %s11, 1
        %s184 = scalar_select %p183, %s11, 1
        %s185 = smul.addr %s184, 20
        %s186 = smul.addr %s185, 8
        %s187 = scalar_lea.vmem %s0, %s186
      $region32: #{cssu_forward.11} parent=27 // pred_fallthru
        _
      // Predicated region
      $region33: #{cssu_forward.11} parent=27 // pred_check
        %p188 = pneg %p57
      $region34: #{cssu_forward.11} parent=27 // pred_check_branch
        %190 = sbr.rel (%p188) target = $region36
      $region35: #{cssu_forward.11} parent=27 // pred_region
        %p191 = scmp.lt.s32.totalorder %s11, 1
        %s192 = scalar_select %p191, %s11, 1
        %s193 = smul.addr %s192, 20
        %s194 = smul.addr %s193, 8
        %s195 = scalar_lea.vmem %s1, %s194
      $region36: #{cssu_forward.11} parent=27 // pred_fallthru
        _
    $region28: #{cssu_forward.11} parent=5 // pred_fallthru
      _
    %p196 = scmp.le.s32.totalorder 1, %s11
    %p197 = scmp.lt.s32.totalorder %s11, 3
    %p198 = pnand %p196, %p197
    %p199 = pneg %p198
    // Predicated region
    $region37: #{cssu_forward.11} parent=5 // pred_check
      _
    $region38: #{cssu_forward.11} parent=5 // pred_check_branch
      %201 = sbr.rel (%p198) target = $region40
    $region39: #{cssu_forward.11} parent=5 // pred_region
      %s202 = ssub.s32 %s11, 1
      %p203 = scmp.lt.s32.totalorder %s16, 1
      %s204 = scalar_select %p203, %s16, 1
      %s205 = smul.addr %s204, 20
      %s206 = smul.addr %s205, 8
      %s207 = scalar_lea.vmem %s0, %s206
      %p208 = pneg %p37
      %p209 = pneg %p34
      %p210 = scmp.lt.s32.totalorder %s16, 1
      %s211 = scalar_select %p210, %s16, 1
      %s212 = smul.addr %s211, 20
      %s213 = smul.addr %s212, 8
      %s214 = scalar_lea.vmem %s1, %s213
      %p215 = pneg %p63
      %p216 = pneg %p60
      %p217 = pneg %p84
      %p218 = pneg %p81
      %p219 = pneg %p105
      %p220 = pneg %p102
      %p221 = pneg %p126
      %p222 = pneg %p123
      %p223 = pneg %p152
      %p224 = pneg %p149
      %p225 = scmp.lt.s32.totalorder %s16, 1
      %s226 = scalar_select %p225, %s16, 1
      %s227 = smul.addr %s226, 8
      %s228 = smul.addr %s227, 8
      %s229 = scalar_lea.vmem %s5, %s228
      %p230 = scmp.lt.s32.totalorder %s16, 1
      %s231 = scalar_select %p230, %s16, 1
      %s232 = smul.addr %s231, 20
      %s233 = smul.addr %s232, 8
      %s234 = scalar_lea.vmem %s0, %s233
      %p235 = scmp.lt.s32.totalorder %s16, 1
      %s236 = scalar_select %p235, %s16, 1
      %s237 = smul.addr %s236, 20
      %s238 = smul.addr %s237, 8
      %s239 = scalar_lea.vmem %s1, %s238
      %p240 = scmp.lt.s32.totalorder %s16, 1
      %s241 = scalar_select %p240, %s16, 1
      %s242 = smul.addr %s241, 8
      %s243 = smul.addr %s242, 8
      %s244 = scalar_lea.vmem %s5, %s243
      %v245 = vld [vmem:[%s234] sm:$0xff]
      %v246 = vld [vmem:[%s234 + $0x8] sm:$0x3]
      %v247 = vld [vmem:[%s234 + $0x10] sm:$0xff]
      %v248 = vld [vmem:[%s234 + $0x18] sm:$0x3]
      %v249 = vld [vmem:[%s234 + $0x20] sm:$0xff]
      %v250 = vld [vmem:[%s234 + $0x28] sm:$0x3]
      %v251 = vld [vmem:[%s234 + $0x30] sm:$0xff]
      %v252 = vld [vmem:[%s234 + $0x38] sm:$0x3]
      %v253 = vld [vmem:[%s234 + $0x40] sm:$0xff]
      %v254 = vld [vmem:[%s234 + $0x48] sm:$0x3]
      %v255 = vld [vmem:[%s234 + $0x50] sm:$0xff]
      %v256 = vld [vmem:[%s234 + $0x58] sm:$0x3]
      %v257 = vld [vmem:[%s234 + $0x60] sm:$0xff]
      %v258 = vld [vmem:[%s234 + $0x68] sm:$0x3]
      %v259 = vld [vmem:[%s234 + $0x70] sm:$0xff]
      %v260 = vld [vmem:[%s234 + $0x78] sm:$0x3]
      %v261 = vld [vmem:[%s234 + $0x80] sm:$0xff]
      %v262 = vld [vmem:[%s234 + $0x88] sm:$0x3]
      %v263 = vld [vmem:[%s234 + $0x90] sm:$0xff]
      %v264 = vld [vmem:[%s234 + $0x98] sm:$0x3]
      %v265 = vld [vmem:[%s2] sm:$0xff]
      %vm282 = vcmask 1046528
      %v283 = vrot.slane %v245, 1
      %v284 = vrot.slane %v246, 1
      %v285 = vsel %vm282, %v283, %v284
      %v286 = vrot.slane %v247, 1
      %v287 = vrot.slane %v248, 1
      %v288 = vsel %vm282, %v286, %v287
      %v289 = vrot.slane %v249, 1
      %v290 = vrot.slane %v250, 1
      %v291 = vsel %vm282, %v289, %v290
      %v292 = vrot.slane %v251, 1
      %v293 = vrot.slane %v252, 1
      %v294 = vsel %vm282, %v292, %v293
      %v295 = vrot.slane %v253, 1
      %v296 = vrot.slane %v254, 1
      %v297 = vsel %vm282, %v295, %v296
      %v298 = vrot.slane %v255, 1
      %v299 = vrot.slane %v256, 1
      %v300 = vsel %vm282, %v298, %v299
      %v301 = vrot.slane %v257, 1
      %v302 = vrot.slane %v258, 1
      %v303 = vsel %vm282, %v301, %v302
      %v304 = vrot.slane %v259, 1
      %v305 = vrot.slane %v260, 1
      %v306 = vsel %vm282, %v304, %v305
      %s307 = scalar_lea.vmem %s2, 8
      %v308 = vld [vmem:[%s307] sm:$0xff]
      %vm309 = vcmask 64512
      %v310 = vsel %vm309, %v285, 0
      %v312 = vsel %vm309, %v288, 0
      %v314 = vsel %vm309, %v291, 0
      %v316 = vsel %vm309, %v294, 0
      %v318 = vsel %vm309, %v297, 0
      %v320 = vsel %vm309, %v300, 0
      %v322 = vsel %vm309, %v303, 0
      %v324 = vsel %vm309, %v306, 0
      %326 = vmatprep.subr.mxu0 0.0
      %327 = vmatpush1.msra.mxu0 %v308
      %328 = vmatprep.subr.mxu0 0.0
      %329 = vmatpush1.msra.mxu0 0.0
      %330 = vmatprep.subr.mxu0 0.0
      %331 = vmatpush1.msra.mxu0 0.0
      %332 = vmatprep.subr.mxu0 0.0
      %333 = vmatpush1.msra.mxu0 0.0
      %334 = vmatprep.subr.mxu0 0.0
      %335 = vmatpush1.msra.mxu0 0.0
      %336 = vmatprep.subr.mxu0 0.0
      %337 = vmatpush1.msra.mxu0 0.0
      %338 = vmatprep.subr.mxu0 0.0
      %339 = vmatpush1.msra.mxu0 0.0
      %340 = vmatprep.subr.mxu0 0.0
      %341 = vmatpush1.msra.mxu0 0.0
      %342 = vmatprep.subr.mxu0 0.0
      %343 = vmatpush1.msra.mxu0 0.0
      %344 = vmatprep.subr.mxu0 0.0
      %345 = vmatpush1.msra.mxu0 0.0
      %346 = vmatprep.subr.mxu0 0.0
      %347 = vmatpush1.msra.mxu0 0.0
      %348 = vmatprep.subr.mxu0 0.0
      %349 = vmatpush1.msra.mxu0 0.0
      %350 = vmatprep.subr.mxu0 0.0
      %351 = vmatpush1.msra.mxu0 0.0
      %352 = vmatprep.subr.mxu0 0.0
      %353 = vmatpush1.msra.mxu0 0.0
      %354 = vmatprep.subr.mxu0 0.0
      %355 = vmatpush1.msra.mxu0 0.0
      %356 = vmatprep.subr.mxu0 0.0
      %357 = vmatpush1.msra.mxu0 0.0
      %358 = vmatprep.subr.mxu0 0.0
      %359 = vmatpush1.msra.mxu0 0.0
      %360 = vmatprep.subr.mxu0 0.0
      %361 = vmatpush1.msra.mxu0 0.0
      %362 = vmatprep.subr.mxu0 0.0
      %363 = vmatpush1.msra.mxu0 0.0
      %364 = vmatprep.subr.mxu0 0.0
      %365 = vmatpush1.msra.mxu0 0.0
      %366 = vmatprep.subr.mxu0 0.0
      %367 = vmatpush1.msra.mxu0 0.0
      %368 = vmatprep.subr.mxu0 0.0
      %369 = vmatpush1.msra.mxu0 0.0
      %370 = vmatprep.subr.mxu0 0.0
      %371 = vmatpush1.msra.mxu0 0.0
      %372 = vmatprep.subr.mxu0 0.0
      %373 = vmatpush1.msra.mxu0 0.0
      %374 = vmatprep.subr.mxu0 0.0
      %375 = vmatpush1.msra.mxu0 0.0
      %376 = vmatprep.subr.mxu0 0.0
      %377 = vmatpush1.msra.mxu0 0.0
      %378 = vmatprep.subr.mxu0 0.0
      %379 = vmatpush1.msra.mxu0 0.0
      %380 = vmatprep.subr.mxu0 0.0
      %381 = vmatpush1.msra.mxu0 0.0
      %382 = vmatprep.subr.mxu0 0.0
      %383 = vmatpush1.msra.mxu0 0.0
      %384 = vmatprep.subr.mxu0 0.0
      %385 = vmatpush1.msra.mxu0 0.0
      %386 = vmatprep.subr.mxu0 0.0
      %387 = vmatpush1.msra.mxu0 0.0
      %388 = vmatprep.subr.mxu0 0.0
      %389 = vmatpush1.msra.mxu0 0.0
      %390 = vmatprep.mubr.f32.mxu0 0.0
      %391 = vmatmul.mubr.f32.gmra.mrb[0].mxu0 %v310
      %v392 = vpop.f32.mrb[0].mxu0
      %v393 = vadd.f32 0.0, %v392
      %v394 = vpop.f32.mrb[0].mxu0
      %395 = vmatprep.mubr.f32.mxu0 0.0
      %396 = vmatmul.mubr.f32.gmra.mrb[0].mxu0 %v312
      %v397 = vpop.f32.mrb[0].mxu0
      %v398 = vadd.f32 0.0, %v397
      %v399 = vpop.f32.mrb[0].mxu0
      %400 = vmatprep.mubr.f32.mxu0 0.0
      %401 = vmatmul.mubr.f32.gmra.mrb[0].mxu0 %v314
      %v402 = vpop.f32.mrb[0].mxu0
      %v403 = vadd.f32 0.0, %v402
      %v404 = vpop.f32.mrb[0].mxu0
      %405 = vmatprep.mubr.f32.mxu0 0.0
      %406 = vmatmul.mubr.f32.gmra.mrb[0].mxu0 %v316
      %v407 = vpop.f32.mrb[0].mxu0
      %v408 = vadd.f32 0.0, %v407
      %v409 = vpop.f32.mrb[0].mxu0
      %410 = vmatprep.mubr.f32.mxu0 0.0
      %411 = vmatmul.mubr.f32.gmra.mrb[0].mxu0 %v318
      %v412 = vpop.f32.mrb[0].mxu0
      %v413 = vadd.f32 0.0, %v412
      %v414 = vpop.f32.mrb[0].mxu0
      %415 = vmatprep.mubr.f32.mxu0 0.0
      %416 = vmatmul.mubr.f32.gmra.mrb[0].mxu0 %v320
      %v417 = vpop.f32.mrb[0].mxu0
      %v418 = vadd.f32 0.0, %v417
      %v419 = vpop.f32.mrb[0].mxu0
      %420 = vmatprep.mubr.f32.mxu0 0.0
      %421 = vmatmul.mubr.f32.gmra.mrb[0].mxu0 %v322
      %v422 = vpop.f32.mrb[0].mxu0
      %v423 = vadd.f32 0.0, %v422
      %v424 = vpop.f32.mrb[0].mxu0
      %425 = vmatprep.mubr.f32.mxu0 0.0
      %426 = vmatmul.mubr.f32.gmra.mrb[0].mxu0 %v324
      %v427 = vpop.f32.mrb[0].mxu0
      %v428 = vadd.f32 0.0, %v427
      %v429 = vpop.f32.mrb[0].mxu0
      %430 = vdwg.mxu0
      %v431 = vsel %vm309, %v245, 0
      %v433 = vsel %vm309, %v247, 0
      %v435 = vsel %vm309, %v249, 0
      %v437 = vsel %vm309, %v251, 0
      %v439 = vsel %vm309, %v253, 0
      %v441 = vsel %vm309, %v255, 0
      %v443 = vsel %vm309, %v257, 0
      %v445 = vsel %vm309, %v259, 0
      %447 = vmatprep.subr.mxu0 0.0
      %448 = vmatpush1.msra.mxu0 %v265
      %449 = vmatprep.subr.mxu0 0.0
      %450 = vmatpush1.msra.mxu0 0.0
      %451 = vmatprep.subr.mxu0 0.0
      %452 = vmatpush1.msra.mxu0 0.0
      %453 = vmatprep.subr.mxu0 0.0
      %454 = vmatpush1.msra.mxu0 0.0
      %455 = vmatprep.subr.mxu0 0.0
      %456 = vmatpush1.msra.mxu0 0.0
      %457 = vmatprep.subr.mxu0 0.0
      %458 = vmatpush1.msra.mxu0 0.0
      %459 = vmatprep.subr.mxu0 0.0
      %460 = vmatpush1.msra.mxu0 0.0
      %461 = vmatprep.subr.mxu0 0.0
      %462 = vmatpush1.msra.mxu0 0.0
      %463 = vmatprep.subr.mxu0 0.0
      %464 = vmatpush1.msra.mxu0 0.0
      %465 = vmatprep.subr.mxu0 0.0
      %466 = vmatpush1.msra.mxu0 0.0
      %467 = vmatprep.subr.mxu0 0.0
      %468 = vmatpush1.msra.mxu0 0.0
      %469 = vmatprep.subr.mxu0 0.0
      %470 = vmatpush1.msra.mxu0 0.0
      %471 = vmatprep.subr.mxu0 0.0
      %472 = vmatpush1.msra.mxu0 0.0
      %473 = vmatprep.subr.mxu0 0.0
      %474 = vmatpush1.msra.mxu0 0.0
      %475 = vmatprep.subr.mxu0 0.0
      %476 = vmatpush1.msra.mxu0 0.0
      %477 = vmatprep.subr.mxu0 0.0
      %478 = vmatpush1.msra.mxu0 0.0
      %479 = vmatprep.subr.mxu0 0.0
      %480 = vmatpush1.msra.mxu0 0.0
      %481 = vmatprep.subr.mxu0 0.0
      %482 = vmatpush1.msra.mxu0 0.0
      %483 = vmatprep.subr.mxu0 0.0
      %484 = vmatpush1.msra.mxu0 0.0
      %485 = vmatprep.subr.mxu0 0.0
      %486 = vmatpush1.msra.mxu0 0.0
      %487 = vmatprep.subr.mxu0 0.0
      %488 = vmatpush1.msra.mxu0 0.0
      %489 = vmatprep.subr.mxu0 0.0
      %490 = vmatpush1.msra.mxu0 0.0
      %491 = vmatprep.subr.mxu0 0.0
      %492 = vmatpush1.msra.mxu0 0.0
      %493 = vmatprep.subr.mxu0 0.0
      %494 = vmatpush1.msra.mxu0 0.0
      %495 = vmatprep.subr.mxu0 0.0
      %496 = vmatpush1.msra.mxu0 0.0
      %497 = vmatprep.subr.mxu0 0.0
      %498 = vmatpush1.msra.mxu0 0.0
      %499 = vmatprep.subr.mxu0 0.0
      %500 = vmatpush1.msra.mxu0 0.0
      %501 = vmatprep.subr.mxu0 0.0
      %502 = vmatpush1.msra.mxu0 0.0
      %503 = vmatprep.subr.mxu0 0.0
      %504 = vmatpush1.msra.mxu0 0.0
      %505 = vmatprep.subr.mxu0 0.0
      %506 = vmatpush1.msra.mxu0 0.0
      %507 = vmatprep.subr.mxu0 0.0
      %508 = vmatpush1.msra.mxu0 0.0
      %509 = vmatprep.subr.mxu0 0.0
      %510 = vmatpush1.msra.mxu0 0.0
      %511 = vmatprep.mubr.f32.mxu0 0.0
      %512 = vmatmul.mubr.f32.gmra.mrb[0].mxu0 %v431
      %v513 = vpop.f32.mrb[0].mxu0
      %v514 = vadd.f32 %v393, %v513
      %v515 = vpop.f32.mrb[0].mxu0
      %516 = vmatprep.mubr.f32.mxu0 0.0
      %517 = vmatmul.mubr.f32.gmra.mrb[0].mxu0 %v433
      %v518 = vpop.f32.mrb[0].mxu0
      %v519 = vadd.f32 %v398, %v518
      %v520 = vpop.f32.mrb[0].mxu0
      %521 = vmatprep.mubr.f32.mxu0 0.0
      %522 = vmatmul.mubr.f32.gmra.mrb[0].mxu0 %v435
      %v523 = vpop.f32.mrb[0].mxu0
      %v524 = vadd.f32 %v403, %v523
      %v525 = vpop.f32.mrb[0].mxu0
      %526 = vmatprep.mubr.f32.mxu0 0.0
      %527 = vmatmul.mubr.f32.gmra.mrb[0].mxu0 %v437
      %v528 = vpop.f32.mrb[0].mxu0
      %v529 = vadd.f32 %v408, %v528
      %v530 = vpop.f32.mrb[0].mxu0
      %531 = vmatprep.mubr.f32.mxu0 0.0
      %532 = vmatmul.mubr.f32.gmra.mrb[0].mxu0 %v439
      %v533 = vpop.f32.mrb[0].mxu0
      %v534 = vadd.f32 %v413, %v533
      %v535 = vpop.f32.mrb[0].mxu0
      %536 = vmatprep.mubr.f32.mxu0 0.0
      %537 = vmatmul.mubr.f32.gmra.mrb[0].mxu0 %v441
      %v538 = vpop.f32.mrb[0].mxu0
      %v539 = vadd.f32 %v418, %v538
      %v540 = vpop.f32.mrb[0].mxu0
      %541 = vmatprep.mubr.f32.mxu0 0.0
      %542 = vmatmul.mubr.f32.gmra.mrb[0].mxu0 %v443
      %v543 = vpop.f32.mrb[0].mxu0
      %v544 = vadd.f32 %v423, %v543
      %v545 = vpop.f32.mrb[0].mxu0
      %546 = vmatprep.mubr.f32.mxu0 0.0
      %547 = vmatmul.mubr.f32.gmra.mrb[0].mxu0 %v445
      %v548 = vpop.f32.mrb[0].mxu0
      %v549 = vadd.f32 %v428, %v548
      %v550 = vpop.f32.mrb[0].mxu0
      %551 = vdwg.mxu0
      %vm552 = vcmask 1045504
      %v553 = vrot.slane %v245, 2
      %v554 = vrot.slane %v246, 2
      %v555 = vsel %vm552, %v553, %v554
      %v556 = vrot.slane %v247, 2
      %v557 = vrot.slane %v248, 2
      %v558 = vsel %vm552, %v556, %v557
      %v559 = vrot.slane %v249, 2
      %v560 = vrot.slane %v250, 2
      %v561 = vsel %vm552, %v559, %v560
      %v562 = vrot.slane %v251, 2
      %v563 = vrot.slane %v252, 2
      %v564 = vsel %vm552, %v562, %v563
      %v565 = vrot.slane %v253, 2
      %v566 = vrot.slane %v254, 2
      %v567 = vsel %vm552, %v565, %v566
      %v568 = vrot.slane %v255, 2
      %v569 = vrot.slane %v256, 2
      %v570 = vsel %vm552, %v568, %v569
      %v571 = vrot.slane %v257, 2
      %v572 = vrot.slane %v258, 2
      %v573 = vsel %vm552, %v571, %v572
      %v574 = vrot.slane %v259, 2
      %v575 = vrot.slane %v260, 2
      %v576 = vsel %vm552, %v574, %v575
      %s577 = scalar_lea.vmem %s2, 16
      %v578 = vld [vmem:[%s577] sm:$0xff]
      %v579 = vsel %vm309, %v555, 0
      %v581 = vsel %vm309, %v558, 0
      %v583 = vsel %vm309, %v561, 0
      %v585 = vsel %vm309, %v564, 0
      %v587 = vsel %vm309, %v567, 0
      %v589 = vsel %vm309, %v570, 0
      %v591 = vsel %vm309, %v573, 0
      %v593 = vsel %vm309, %v576, 0
      %595 = vmatprep.subr.mxu0 0.0
      %596 = vmatpush1.msra.mxu0 %v578
      %597 = vmatprep.subr.mxu0 0.0
      %598 = vmatpush1.msra.mxu0 0.0
      %599 = vmatprep.subr.mxu0 0.0
      %600 = vmatpush1.msra.mxu0 0.0
      %601 = vmatprep.subr.mxu0 0.0
      %602 = vmatpush1.msra.mxu0 0.0
      %603 = vmatprep.subr.mxu0 0.0
      %604 = vmatpush1.msra.mxu0 0.0
      %605 = vmatprep.subr.mxu0 0.0
      %606 = vmatpush1.msra.mxu0 0.0
      %607 = vmatprep.subr.mxu0 0.0
      %608 = vmatpush1.msra.mxu0 0.0
      %609 = vmatprep.subr.mxu0 0.0
      %610 = vmatpush1.msra.mxu0 0.0
      %611 = vmatprep.subr.mxu0 0.0
      %612 = vmatpush1.msra.mxu0 0.0
      %613 = vmatprep.subr.mxu0 0.0
      %614 = vmatpush1.msra.mxu0 0.0
      %615 = vmatprep.subr.mxu0 0.0
      %616 = vmatpush1.msra.mxu0 0.0
      %617 = vmatprep.subr.mxu0 0.0
      %618 = vmatpush1.msra.mxu0 0.0
      %619 = vmatprep.subr.mxu0 0.0
      %620 = vmatpush1.msra.mxu0 0.0
      %621 = vmatprep.subr.mxu0 0.0
      %622 = vmatpush1.msra.mxu0 0.0
      %623 = vmatprep.subr.mxu0 0.0
      %624 = vmatpush1.msra.mxu0 0.0
      %625 = vmatprep.subr.mxu0 0.0
      %626 = vmatpush1.msra.mxu0 0.0
      %627 = vmatprep.subr.mxu0 0.0
      %628 = vmatpush1.msra.mxu0 0.0
      %629 = vmatprep.subr.mxu0 0.0
      %630 = vmatpush1.msra.mxu0 0.0
      %631 = vmatprep.subr.mxu0 0.0
      %632 = vmatpush1.msra.mxu0 0.0
      %633 = vmatprep.subr.mxu0 0.0
      %634 = vmatpush1.msra.mxu0 0.0
      %635 = vmatprep.subr.mxu0 0.0
      %636 = vmatpush1.msra.mxu0 0.0
      %637 = vmatprep.subr.mxu0 0.0
      %638 = vmatpush1.msra.mxu0 0.0
      %639 = vmatprep.subr.mxu0 0.0
      %640 = vmatpush1.msra.mxu0 0.0
      %641 = vmatprep.subr.mxu0 0.0
      %642 = vmatpush1.msra.mxu0 0.0
      %643 = vmatprep.subr.mxu0 0.0
      %644 = vmatpush1.msra.mxu0 0.0
      %645 = vmatprep.subr.mxu0 0.0
      %646 = vmatpush1.msra.mxu0 0.0
      %647 = vmatprep.subr.mxu0 0.0
      %648 = vmatpush1.msra.mxu0 0.0
      %649 = vmatprep.subr.mxu0 0.0
      %650 = vmatpush1.msra.mxu0 0.0
      %651 = vmatprep.subr.mxu0 0.0
      %652 = vmatpush1.msra.mxu0 0.0
      %653 = vmatprep.subr.mxu0 0.0
      %654 = vmatpush1.msra.mxu0 0.0
      %655 = vmatprep.subr.mxu0 0.0
      %656 = vmatpush1.msra.mxu0 0.0
      %657 = vmatprep.subr.mxu0 0.0
      %658 = vmatpush1.msra.mxu0 0.0
      %659 = vmatprep.mubr.f32.mxu0 0.0
      %660 = vmatmul.mubr.f32.gmra.mrb[0].mxu0 %v579
      %v661 = vpop.f32.mrb[0].mxu0
      %v662 = vadd.f32 0.0, %v661
      %v663 = vpop.f32.mrb[0].mxu0
      %664 = vmatprep.mubr.f32.mxu0 0.0
      %665 = vmatmul.mubr.f32.gmra.mrb[0].mxu0 %v581
      %v666 = vpop.f32.mrb[0].mxu0
      %v667 = vadd.f32 0.0, %v666
      %v668 = vpop.f32.mrb[0].mxu0
      %669 = vmatprep.mubr.f32.mxu0 0.0
      %670 = vmatmul.mubr.f32.gmra.mrb[0].mxu0 %v583
      %v671 = vpop.f32.mrb[0].mxu0
      %v672 = vadd.f32 0.0, %v671
      %v673 = vpop.f32.mrb[0].mxu0
      %674 = vmatprep.mubr.f32.mxu0 0.0
      %675 = vmatmul.mubr.f32.gmra.mrb[0].mxu0 %v585
      %v676 = vpop.f32.mrb[0].mxu0
      %v677 = vadd.f32 0.0, %v676
      %v678 = vpop.f32.mrb[0].mxu0
      %679 = vmatprep.mubr.f32.mxu0 0.0
      %680 = vmatmul.mubr.f32.gmra.mrb[0].mxu0 %v587
      %v681 = vpop.f32.mrb[0].mxu0
      %v682 = vadd.f32 0.0, %v681
      %v683 = vpop.f32.mrb[0].mxu0
      %684 = vmatprep.mubr.f32.mxu0 0.0
      %685 = vmatmul.mubr.f32.gmra.mrb[0].mxu0 %v589
      %v686 = vpop.f32.mrb[0].mxu0
      %v687 = vadd.f32 0.0, %v686
      %v688 = vpop.f32.mrb[0].mxu0
      %689 = vmatprep.mubr.f32.mxu0 0.0
      %690 = vmatmul.mubr.f32.gmra.mrb[0].mxu0 %v591
      %v691 = vpop.f32.mrb[0].mxu0
      %v692 = vadd.f32 0.0, %v691
      %v693 = vpop.f32.mrb[0].mxu0
      %694 = vmatprep.mubr.f32.mxu0 0.0
      %695 = vmatmul.mubr.f32.gmra.mrb[0].mxu0 %v593
      %v696 = vpop.f32.mrb[0].mxu0
      %v697 = vadd.f32 0.0, %v696
      %v698 = vpop.f32.mrb[0].mxu0
      %699 = vdwg.mxu0
      %v700 = vadd.f32 %v514, %v662
      %v701 = vadd.f32 %v519, %v667
      %v702 = vadd.f32 %v524, %v672
      %v703 = vadd.f32 %v529, %v677
      %v704 = vadd.f32 %v534, %v682
      %v705 = vadd.f32 %v539, %v687
      %v706 = vadd.f32 %v544, %v692
      %v707 = vadd.f32 %v549, %v697
      %s708 = scalar_lea.vmem %s2, 24
      %v709 = vld [vmem:[%s708] sm:$0xff]
      %v711 = vsel %vm309, %v261, 0
      %713 = vmatprep.subr.mxu0 0.0
      %714 = vmatpush1.msra.mxu0 %v709
      %715 = vmatprep.subr.mxu0 0.0
      %716 = vmatpush1.msra.mxu0 0.0
      %717 = vmatprep.subr.mxu0 0.0
      %718 = vmatpush1.msra.mxu0 0.0
      %719 = vmatprep.subr.mxu0 0.0
      %720 = vmatpush1.msra.mxu0 0.0
      %721 = vmatprep.subr.mxu0 0.0
      %722 = vmatpush1.msra.mxu0 0.0
      %723 = vmatprep.subr.mxu0 0.0
      %724 = vmatpush1.msra.mxu0 0.0
      %725 = vmatprep.subr.mxu0 0.0
      %726 = vmatpush1.msra.mxu0 0.0
      %727 = vmatprep.subr.mxu0 0.0
      %728 = vmatpush1.msra.mxu0 0.0
      %729 = vmatprep.subr.mxu0 0.0
      %730 = vmatpush1.msra.mxu0 0.0
      %731 = vmatprep.subr.mxu0 0.0
      %732 = vmatpush1.msra.mxu0 0.0
      %733 = vmatprep.subr.mxu0 0.0
      %734 = vmatpush1.msra.mxu0 0.0
      %735 = vmatprep.subr.mxu0 0.0
      %736 = vmatpush1.msra.mxu0 0.0
      %737 = vmatprep.subr.mxu0 0.0
      %738 = vmatpush1.msra.mxu0 0.0
      %739 = vmatprep.subr.mxu0 0.0
      %740 = vmatpush1.msra.mxu0 0.0
      %741 = vmatprep.subr.mxu0 0.0
      %742 = vmatpush1.msra.mxu0 0.0
      %743 = vmatprep.subr.mxu0 0.0
      %744 = vmatpush1.msra.mxu0 0.0
      %745 = vmatprep.subr.mxu0 0.0
      %746 = vmatpush1.msra.mxu0 0.0
      %747 = vmatprep.subr.mxu0 0.0
      %748 = vmatpush1.msra.mxu0 0.0
      %749 = vmatprep.subr.mxu0 0.0
      %750 = vmatpush1.msra.mxu0 0.0
      %751 = vmatprep.subr.mxu0 0.0
      %752 = vmatpush1.msra.mxu0 0.0
      %753 = vmatprep.subr.mxu0 0.0
      %754 = vmatpush1.msra.mxu0 0.0
      %755 = vmatprep.subr.mxu0 0.0
      %756 = vmatpush1.msra.mxu0 0.0
      %757 = vmatprep.subr.mxu0 0.0
      %758 = vmatpush1.msra.mxu0 0.0
      %759 = vmatprep.subr.mxu0 0.0
      %760 = vmatpush1.msra.mxu0 0.0
      %761 = vmatprep.subr.mxu0 0.0
      %762 = vmatpush1.msra.mxu0 0.0
      %763 = vmatprep.subr.mxu0 0.0
      %764 = vmatpush1.msra.mxu0 0.0
      %765 = vmatprep.subr.mxu0 0.0
      %766 = vmatpush1.msra.mxu0 0.0
      %767 = vmatprep.subr.mxu0 0.0
      %768 = vmatpush1.msra.mxu0 0.0
      %769 = vmatprep.subr.mxu0 0.0
      %770 = vmatpush1.msra.mxu0 0.0
      %771 = vmatprep.subr.mxu0 0.0
      %772 = vmatpush1.msra.mxu0 0.0
      %773 = vmatprep.subr.mxu0 0.0
      %774 = vmatpush1.msra.mxu0 0.0
      %775 = vmatprep.subr.mxu0 0.0
      %776 = vmatpush1.msra.mxu0 0.0
      %777 = vmatprep.mubr.f32.mxu0 0.0
      %778 = vmatmul.mubr.f32.gmra.mrb[0].mxu0 %v433
      %v779 = vpop.f32.mrb[0].mxu0
      %v780 = vadd.f32 0.0, %v779
      %v781 = vpop.f32.mrb[0].mxu0
      %782 = vmatprep.mubr.f32.mxu0 0.0
      %783 = vmatmul.mubr.f32.gmra.mrb[0].mxu0 %v435
      %v784 = vpop.f32.mrb[0].mxu0
      %v785 = vadd.f32 0.0, %v784
      %v786 = vpop.f32.mrb[0].mxu0
      %787 = vmatprep.mubr.f32.mxu0 0.0
      %788 = vmatmul.mubr.f32.gmra.mrb[0].mxu0 %v437
      %v789 = vpop.f32.mrb[0].mxu0
      %v790 = vadd.f32 0.0, %v789
      %v791 = vpop.f32.mrb[0].mxu0
      %792 = vmatprep.mubr.f32.mxu0 0.0
      %793 = vmatmul.mubr.f32.gmra.mrb[0].mxu0 %v439
      %v794 = vpop.f32.mrb[0].mxu0
      %v795 = vadd.f32 0.0, %v794
      %v796 = vpop.f32.mrb[0].mxu0
      %797 = vmatprep.mubr.f32.mxu0 0.0
      %798 = vmatmul.mubr.f32.gmra.mrb[0].mxu0 %v441
      %v799 = vpop.f32.mrb[0].mxu0
      %v800 = vadd.f32 0.0, %v799
      %v801 = vpop.f32.mrb[0].mxu0
      %802 = vmatprep.mubr.f32.mxu0 0.0
      %803 = vmatmul.mubr.f32.gmra.mrb[0].mxu0 %v443
      %v804 = vpop.f32.mrb[0].mxu0
      %v805 = vadd.f32 0.0, %v804
      %v806 = vpop.f32.mrb[0].mxu0
      %807 = vmatprep.mubr.f32.mxu0 0.0
      %808 = vmatmul.mubr.f32.gmra.mrb[0].mxu0 %v445
      %v809 = vpop.f32.mrb[0].mxu0
      %v810 = vadd.f32 0.0, %v809
      %v811 = vpop.f32.mrb[0].mxu0
      %812 = vmatprep.mubr.f32.mxu0 0.0
      %813 = vmatmul.mubr.f32.gmra.mrb[0].mxu0 %v711
      %v814 = vpop.f32.mrb[0].mxu0
      %v815 = vadd.f32 0.0, %v814
      %v816 = vpop.f32.mrb[0].mxu0
      %817 = vdwg.mxu0
      %v818 = vadd.f32 %v700, %v780
      %v819 = vadd.f32 %v701, %v785
      %v820 = vadd.f32 %v702, %v790
      %v821 = vadd.f32 %v703, %v795
      %v822 = vadd.f32 %v704, %v800
      %v823 = vadd.f32 %v705, %v805
      %v824 = vadd.f32 %v706, %v810
      %v825 = vadd.f32 %v707, %v815
      %v827 = vrot.slane %v261, 1
      %v828 = vrot.slane %v262, 1
      %v829 = vsel %vm282, %v827, %v828
      %s830 = scalar_lea.vmem %s2, 32
      %v831 = vld [vmem:[%s830] sm:$0xff]
      %v832 = vsel %vm309, %v829, 0
      %834 = vmatprep.subr.mxu0 0.0
      %835 = vmatpush1.msra.mxu0 %v831
      %836 = vmatprep.subr.mxu0 0.0
      %837 = vmatpush1.msra.mxu0 0.0
      %838 = vmatprep.subr.mxu0 0.0
      %839 = vmatpush1.msra.mxu0 0.0
      %840 = vmatprep.subr.mxu0 0.0
      %841 = vmatpush1.msra.mxu0 0.0
      %842 = vmatprep.subr.mxu0 0.0
      %843 = vmatpush1.msra.mxu0 0.0
      %844 = vmatprep.subr.mxu0 0.0
      %845 = vmatpush1.msra.mxu0 0.0
      %846 = vmatprep.subr.mxu0 0.0
      %847 = vmatpush1.msra.mxu0 0.0
      %848 = vmatprep.subr.mxu0 0.0
      %849 = vmatpush1.msra.mxu0 0.0
      %850 = vmatprep.subr.mxu0 0.0
      %851 = vmatpush1.msra.mxu0 0.0
      %852 = vmatprep.subr.mxu0 0.0
      %853 = vmatpush1.msra.mxu0 0.0
      %854 = vmatprep.subr.mxu0 0.0
      %855 = vmatpush1.msra.mxu0 0.0
      %856 = vmatprep.subr.mxu0 0.0
      %857 = vmatpush1.msra.mxu0 0.0
      %858 = vmatprep.subr.mxu0 0.0
      %859 = vmatpush1.msra.mxu0 0.0
      %860 = vmatprep.subr.mxu0 0.0
      %861 = vmatpush1.msra.mxu0 0.0
      %862 = vmatprep.subr.mxu0 0.0
      %863 = vmatpush1.msra.mxu0 0.0
      %864 = vmatprep.subr.mxu0 0.0
      %865 = vmatpush1.msra.mxu0 0.0
      %866 = vmatprep.subr.mxu0 0.0
      %867 = vmatpush1.msra.mxu0 0.0
      %868 = vmatprep.subr.mxu0 0.0
      %869 = vmatpush1.msra.mxu0 0.0
      %870 = vmatprep.subr.mxu0 0.0
      %871 = vmatpush1.msra.mxu0 0.0
      %872 = vmatprep.subr.mxu0 0.0
      %873 = vmatpush1.msra.mxu0 0.0
      %874 = vmatprep.subr.mxu0 0.0
      %875 = vmatpush1.msra.mxu0 0.0
      %876 = vmatprep.subr.mxu0 0.0
      %877 = vmatpush1.msra.mxu0 0.0
      %878 = vmatprep.subr.mxu0 0.0
      %879 = vmatpush1.msra.mxu0 0.0
      %880 = vmatprep.subr.mxu0 0.0
      %881 = vmatpush1.msra.mxu0 0.0
      %882 = vmatprep.subr.mxu0 0.0
      %883 = vmatpush1.msra.mxu0 0.0
      %884 = vmatprep.subr.mxu0 0.0
      %885 = vmatpush1.msra.mxu0 0.0
      %886 = vmatprep.subr.mxu0 0.0
      %887 = vmatpush1.msra.mxu0 0.0
      %888 = vmatprep.subr.mxu0 0.0
      %889 = vmatpush1.msra.mxu0 0.0
      %890 = vmatprep.subr.mxu0 0.0
      %891 = vmatpush1.msra.mxu0 0.0
      %892 = vmatprep.subr.mxu0 0.0
      %893 = vmatpush1.msra.mxu0 0.0
      %894 = vmatprep.subr.mxu0 0.0
      %895 = vmatpush1.msra.mxu0 0.0
      %896 = vmatprep.subr.mxu0 0.0
      %897 = vmatpush1.msra.mxu0 0.0
      %898 = vmatprep.mubr.f32.mxu0 0.0
      %899 = vmatmul.mubr.f32.gmra.mrb[0].mxu0 %v312
      %v900 = vpop.f32.mrb[0].mxu0
      %v901 = vadd.f32 0.0, %v900
      %v902 = vpop.f32.mrb[0].mxu0
      %903 = vmatprep.mubr.f32.mxu0 0.0
      %904 = vmatmul.mubr.f32.gmra.mrb[0].mxu0 %v314
      %v905 = vpop.f32.mrb[0].mxu0
      %v906 = vadd.f32 0.0, %v905
      %v907 = vpop.f32.mrb[0].mxu0
      %908 = vmatprep.mubr.f32.mxu0 0.0
      %909 = vmatmul.mubr.f32.gmra.mrb[0].mxu0 %v316
      %v910 = vpop.f32.mrb[0].mxu0
      %v911 = vadd.f32 0.0, %v910
      %v912 = vpop.f32.mrb[0].mxu0
      %913 = vmatprep.mubr.f32.mxu0 0.0
      %914 = vmatmul.mubr.f32.gmra.mrb[0].mxu0 %v318
      %v915 = vpop.f32.mrb[0].mxu0
      %v916 = vadd.f32 0.0, %v915
      %v917 = vpop.f32.mrb[0].mxu0
      %918 = vmatprep.mubr.f32.mxu0 0.0
      %919 = vmatmul.mubr.f32.gmra.mrb[0].mxu0 %v320
      %v920 = vpop.f32.mrb[0].mxu0
      %v921 = vadd.f32 0.0, %v920
      %v922 = vpop.f32.mrb[0].mxu0
      %923 = vmatprep.mubr.f32.mxu0 0.0
      %924 = vmatmul.mubr.f32.gmra.mrb[0].mxu0 %v322
      %v925 = vpop.f32.mrb[0].mxu0
      %v926 = vadd.f32 0.0, %v925
      %v927 = vpop.f32.mrb[0].mxu0
      %928 = vmatprep.mubr.f32.mxu0 0.0
      %929 = vmatmul.mubr.f32.gmra.mrb[0].mxu0 %v324
      %v930 = vpop.f32.mrb[0].mxu0
      %v931 = vadd.f32 0.0, %v930
      %v932 = vpop.f32.mrb[0].mxu0
      %933 = vmatprep.mubr.f32.mxu0 0.0
      %934 = vmatmul.mubr.f32.gmra.mrb[0].mxu0 %v832
      %v935 = vpop.f32.mrb[0].mxu0
      %v936 = vadd.f32 0.0, %v935
      %v937 = vpop.f32.mrb[0].mxu0
      %938 = vdwg.mxu0
      %v939 = vadd.f32 %v818, %v901
      %v940 = vadd.f32 %v819, %v906
      %v941 = vadd.f32 %v820, %v911
      %v942 = vadd.f32 %v821, %v916
      %v943 = vadd.f32 %v822, %v921
      %v944 = vadd.f32 %v823, %v926
      %v945 = vadd.f32 %v824, %v931
      %v946 = vadd.f32 %v825, %v936
      %v947 = vrot.slane %v261, 2
      %v948 = vrot.slane %v262, 2
      %v949 = vsel %vm552, %v947, %v948
      %s950 = scalar_lea.vmem %s2, 40
      %v951 = vld [vmem:[%s950] sm:$0xff]
      %v952 = vsel %vm309, %v949, 0
      %954 = vmatprep.subr.mxu0 0.0
      %955 = vmatpush1.msra.mxu0 %v951
      %956 = vmatprep.subr.mxu0 0.0
      %957 = vmatpush1.msra.mxu0 0.0
      %958 = vmatprep.subr.mxu0 0.0
      %959 = vmatpush1.msra.mxu0 0.0
      %960 = vmatprep.subr.mxu0 0.0
      %961 = vmatpush1.msra.mxu0 0.0
      %962 = vmatprep.subr.mxu0 0.0
      %963 = vmatpush1.msra.mxu0 0.0
      %964 = vmatprep.subr.mxu0 0.0
      %965 = vmatpush1.msra.mxu0 0.0
      %966 = vmatprep.subr.mxu0 0.0
      %967 = vmatpush1.msra.mxu0 0.0
      %968 = vmatprep.subr.mxu0 0.0
      %969 = vmatpush1.msra.mxu0 0.0
      %970 = vmatprep.subr.mxu0 0.0
      %971 = vmatpush1.msra.mxu0 0.0
      %972 = vmatprep.subr.mxu0 0.0
      %973 = vmatpush1.msra.mxu0 0.0
      %974 = vmatprep.subr.mxu0 0.0
      %975 = vmatpush1.msra.mxu0 0.0
      %976 = vmatprep.subr.mxu0 0.0
      %977 = vmatpush1.msra.mxu0 0.0
      %978 = vmatprep.subr.mxu0 0.0
      %979 = vmatpush1.msra.mxu0 0.0
      %980 = vmatprep.subr.mxu0 0.0
      %981 = vmatpush1.msra.mxu0 0.0
      %982 = vmatprep.subr.mxu0 0.0
      %983 = vmatpush1.msra.mxu0 0.0
      %984 = vmatprep.subr.mxu0 0.0
      %985 = vmatpush1.msra.mxu0 0.0
      %986 = vmatprep.subr.mxu0 0.0
      %987 = vmatpush1.msra.mxu0 0.0
      %988 = vmatprep.subr.mxu0 0.0
      %989 = vmatpush1.msra.mxu0 0.0
      %990 = vmatprep.subr.mxu0 0.0
      %991 = vmatpush1.msra.mxu0 0.0
      %992 = vmatprep.subr.mxu0 0.0
      %993 = vmatpush1.msra.mxu0 0.0
      %994 = vmatprep.subr.mxu0 0.0
      %995 = vmatpush1.msra.mxu0 0.0
      %996 = vmatprep.subr.mxu0 0.0
      %997 = vmatpush1.msra.mxu0 0.0
      %998 = vmatprep.subr.mxu0 0.0
      %999 = vmatpush1.msra.mxu0 0.0
      %1000 = vmatprep.subr.mxu0 0.0
      %1001 = vmatpush1.msra.mxu0 0.0
      %1002 = vmatprep.subr.mxu0 0.0
      %1003 = vmatpush1.msra.mxu0 0.0
      %1004 = vmatprep.subr.mxu0 0.0
      %1005 = vmatpush1.msra.mxu0 0.0
      %1006 = vmatprep.subr.mxu0 0.0
      %1007 = vmatpush1.msra.mxu0 0.0
      %1008 = vmatprep.subr.mxu0 0.0
      %1009 = vmatpush1.msra.mxu0 0.0
      %1010 = vmatprep.subr.mxu0 0.0
      %1011 = vmatpush1.msra.mxu0 0.0
      %1012 = vmatprep.subr.mxu0 0.0
      %1013 = vmatpush1.msra.mxu0 0.0
      %1014 = vmatprep.subr.mxu0 0.0
      %1015 = vmatpush1.msra.mxu0 0.0
      %1016 = vmatprep.subr.mxu0 0.0
      %1017 = vmatpush1.msra.mxu0 0.0
      %1018 = vmatprep.mubr.f32.mxu0 0.0
      %1019 = vmatmul.mubr.f32.gmra.mrb[0].mxu0 %v581
      %v1020 = vpop.f32.mrb[0].mxu0
      %v1021 = vadd.f32 0.0, %v1020
      %v1022 = vpop.f32.mrb[0].mxu0
      %1023 = vmatprep.mubr.f32.mxu0 0.0
      %1024 = vmatmul.mubr.f32.gmra.mrb[0].mxu0 %v583
      %v1025 = vpop.f32.mrb[0].mxu0
      %v1026 = vadd.f32 0.0, %v1025
      %v1027 = vpop.f32.mrb[0].mxu0
      %1028 = vmatprep.mubr.f32.mxu0 0.0
      %1029 = vmatmul.mubr.f32.gmra.mrb[0].mxu0 %v585
      %v1030 = vpop.f32.mrb[0].mxu0
      %v1031 = vadd.f32 0.0, %v1030
      %v1032 = vpop.f32.mrb[0].mxu0
      %1033 = vmatprep.mubr.f32.mxu0 0.0
      %1034 = vmatmul.mubr.f32.gmra.mrb[0].mxu0 %v587
      %v1035 = vpop.f32.mrb[0].mxu0
      %v1036 = vadd.f32 0.0, %v1035
      %v1037 = vpop.f32.mrb[0].mxu0
      %1038 = vmatprep.mubr.f32.mxu0 0.0
      %1039 = vmatmul.mubr.f32.gmra.mrb[0].mxu0 %v589
      %v1040 = vpop.f32.mrb[0].mxu0
      %v1041 = vadd.f32 0.0, %v1040
      %v1042 = vpop.f32.mrb[0].mxu0
      %1043 = vmatprep.mubr.f32.mxu0 0.0
      %1044 = vmatmul.mubr.f32.gmra.mrb[0].mxu0 %v591
      %v1045 = vpop.f32.mrb[0].mxu0
      %v1046 = vadd.f32 0.0, %v1045
      %v1047 = vpop.f32.mrb[0].mxu0
      %1048 = vmatprep.mubr.f32.mxu0 0.0
      %1049 = vmatmul.mubr.f32.gmra.mrb[0].mxu0 %v593
      %v1050 = vpop.f32.mrb[0].mxu0
      %v1051 = vadd.f32 0.0, %v1050
      %v1052 = vpop.f32.mrb[0].mxu0
      %1053 = vmatprep.mubr.f32.mxu0 0.0
      %1054 = vmatmul.mubr.f32.gmra.mrb[0].mxu0 %v952
      %v1055 = vpop.f32.mrb[0].mxu0
      %v1056 = vadd.f32 0.0, %v1055
      %v1057 = vpop.f32.mrb[0].mxu0
      %1058 = vdwg.mxu0
      %v1059 = vadd.f32 %v939, %v1021
      %v1060 = vadd.f32 %v940, %v1026
      %v1061 = vadd.f32 %v941, %v1031
      %v1062 = vadd.f32 %v942, %v1036
      %v1063 = vadd.f32 %v943, %v1041
      %v1064 = vadd.f32 %v944, %v1046
      %v1065 = vadd.f32 %v945, %v1051
      %v1066 = vadd.f32 %v946, %v1056
      %s1067 = scalar_lea.vmem %s2, 48
      %v1068 = vld [vmem:[%s1067] sm:$0xff]
      %v1070 = vsel %vm309, %v263, 0
      %1072 = vmatprep.subr.mxu0 0.0
      %1073 = vmatpush1.msra.mxu0 %v1068
      %1074 = vmatprep.subr.mxu0 0.0
      %1075 = vmatpush1.msra.mxu0 0.0
      %1076 = vmatprep.subr.mxu0 0.0
      %1077 = vmatpush1.msra.mxu0 0.0
      %1078 = vmatprep.subr.mxu0 0.0
      %1079 = vmatpush1.msra.mxu0 0.0
      %1080 = vmatprep.subr.mxu0 0.0
      %1081 = vmatpush1.msra.mxu0 0.0
      %1082 = vmatprep.subr.mxu0 0.0
      %1083 = vmatpush1.msra.mxu0 0.0
      %1084 = vmatprep.subr.mxu0 0.0
      %1085 = vmatpush1.msra.mxu0 0.0
      %1086 = vmatprep.subr.mxu0 0.0
      %1087 = vmatpush1.msra.mxu0 0.0
      %1088 = vmatprep.subr.mxu0 0.0
      %1089 = vmatpush1.msra.mxu0 0.0
      %1090 = vmatprep.subr.mxu0 0.0
      %1091 = vmatpush1.msra.mxu0 0.0
      %1092 = vmatprep.subr.mxu0 0.0
      %1093 = vmatpush1.msra.mxu0 0.0
      %1094 = vmatprep.subr.mxu0 0.0
      %1095 = vmatpush1.msra.mxu0 0.0
      %1096 = vmatprep.subr.mxu0 0.0
      %1097 = vmatpush1.msra.mxu0 0.0
      %1098 = vmatprep.subr.mxu0 0.0
      %1099 = vmatpush1.msra.mxu0 0.0
      %1100 = vmatprep.subr.mxu0 0.0
      %1101 = vmatpush1.msra.mxu0 0.0
      %1102 = vmatprep.subr.mxu0 0.0
      %1103 = vmatpush1.msra.mxu0 0.0
      %1104 = vmatprep.subr.mxu0 0.0
      %1105 = vmatpush1.msra.mxu0 0.0
      %1106 = vmatprep.subr.mxu0 0.0
      %1107 = vmatpush1.msra.mxu0 0.0
      %1108 = vmatprep.subr.mxu0 0.0
      %1109 = vmatpush1.msra.mxu0 0.0
      %1110 = vmatprep.subr.mxu0 0.0
      %1111 = vmatpush1.msra.mxu0 0.0
      %1112 = vmatprep.subr.mxu0 0.0
      %1113 = vmatpush1.msra.mxu0 0.0
      %1114 = vmatprep.subr.mxu0 0.0
      %1115 = vmatpush1.msra.mxu0 0.0
      %1116 = vmatprep.subr.mxu0 0.0
      %1117 = vmatpush1.msra.mxu0 0.0
      %1118 = vmatprep.subr.mxu0 0.0
      %1119 = vmatpush1.msra.mxu0 0.0
      %1120 = vmatprep.subr.mxu0 0.0
      %1121 = vmatpush1.msra.mxu0 0.0
      %1122 = vmatprep.subr.mxu0 0.0
      %1123 = vmatpush1.msra.mxu0 0.0
      %1124 = vmatprep.subr.mxu0 0.0
      %1125 = vmatpush1.msra.mxu0 0.0
      %1126 = vmatprep.subr.mxu0 0.0
      %1127 = vmatpush1.msra.mxu0 0.0
      %1128 = vmatprep.subr.mxu0 0.0
      %1129 = vmatpush1.msra.mxu0 0.0
      %1130 = vmatprep.subr.mxu0 0.0
      %1131 = vmatpush1.msra.mxu0 0.0
      %1132 = vmatprep.subr.mxu0 0.0
      %1133 = vmatpush1.msra.mxu0 0.0
      %1134 = vmatprep.subr.mxu0 0.0
      %1135 = vmatpush1.msra.mxu0 0.0
      %1136 = vmatprep.mubr.f32.mxu0 0.0
      %1137 = vmatmul.mubr.f32.gmra.mrb[0].mxu0 %v435
      %v1138 = vpop.f32.mrb[0].mxu0
      %v1139 = vadd.f32 0.0, %v1138
      %v1140 = vpop.f32.mrb[0].mxu0
      %1141 = vmatprep.mubr.f32.mxu0 0.0
      %1142 = vmatmul.mubr.f32.gmra.mrb[0].mxu0 %v437
      %v1143 = vpop.f32.mrb[0].mxu0
      %v1144 = vadd.f32 0.0, %v1143
      %v1145 = vpop.f32.mrb[0].mxu0
      %1146 = vmatprep.mubr.f32.mxu0 0.0
      %1147 = vmatmul.mubr.f32.gmra.mrb[0].mxu0 %v439
      %v1148 = vpop.f32.mrb[0].mxu0
      %v1149 = vadd.f32 0.0, %v1148
      %v1150 = vpop.f32.mrb[0].mxu0
      %1151 = vmatprep.mubr.f32.mxu0 0.0
      %1152 = vmatmul.mubr.f32.gmra.mrb[0].mxu0 %v441
      %v1153 = vpop.f32.mrb[0].mxu0
      %v1154 = vadd.f32 0.0, %v1153
      %v1155 = vpop.f32.mrb[0].mxu0
      %1156 = vmatprep.mubr.f32.mxu0 0.0
      %1157 = vmatmul.mubr.f32.gmra.mrb[0].mxu0 %v443
      %v1158 = vpop.f32.mrb[0].mxu0
      %v1159 = vadd.f32 0.0, %v1158
      %v1160 = vpop.f32.mrb[0].mxu0
      %1161 = vmatprep.mubr.f32.mxu0 0.0
      %1162 = vmatmul.mubr.f32.gmra.mrb[0].mxu0 %v445
      %v1163 = vpop.f32.mrb[0].mxu0
      %v1164 = vadd.f32 0.0, %v1163
      %v1165 = vpop.f32.mrb[0].mxu0
      %1166 = vmatprep.mubr.f32.mxu0 0.0
      %1167 = vmatmul.mubr.f32.gmra.mrb[0].mxu0 %v711
      %v1168 = vpop.f32.mrb[0].mxu0
      %v1169 = vadd.f32 0.0, %v1168
      %v1170 = vpop.f32.mrb[0].mxu0
      %1171 = vmatprep.mubr.f32.mxu0 0.0
      %1172 = vmatmul.mubr.f32.gmra.mrb[0].mxu0 %v1070
      %v1173 = vpop.f32.mrb[0].mxu0
      %v1174 = vadd.f32 0.0, %v1173
      %v1175 = vpop.f32.mrb[0].mxu0
      %1176 = vdwg.mxu0
      %v1177 = vadd.f32 %v1059, %v1139
      %v1178 = vadd.f32 %v1060, %v1144
      %v1179 = vadd.f32 %v1061, %v1149
      %v1180 = vadd.f32 %v1062, %v1154
      %v1181 = vadd.f32 %v1063, %v1159
      %v1182 = vadd.f32 %v1064, %v1164
      %v1183 = vadd.f32 %v1065, %v1169
      %v1184 = vadd.f32 %v1066, %v1174
      %v1186 = vrot.slane %v263, 1
      %v1187 = vrot.slane %v264, 1
      %v1188 = vsel %vm282, %v1186, %v1187
      %s1189 = scalar_lea.vmem %s2, 56
      %v1190 = vld [vmem:[%s1189] sm:$0xff]
      %v1191 = vsel %vm309, %v1188, 0
      %1193 = vmatprep.subr.mxu0 0.0
      %1194 = vmatpush1.msra.mxu0 %v1190
      %1195 = vmatprep.subr.mxu0 0.0
      %1196 = vmatpush1.msra.mxu0 0.0
      %1197 = vmatprep.subr.mxu0 0.0
      %1198 = vmatpush1.msra.mxu0 0.0
      %1199 = vmatprep.subr.mxu0 0.0
      %1200 = vmatpush1.msra.mxu0 0.0
      %1201 = vmatprep.subr.mxu0 0.0
      %1202 = vmatpush1.msra.mxu0 0.0
      %1203 = vmatprep.subr.mxu0 0.0
      %1204 = vmatpush1.msra.mxu0 0.0
      %1205 = vmatprep.subr.mxu0 0.0
      %1206 = vmatpush1.msra.mxu0 0.0
      %1207 = vmatprep.subr.mxu0 0.0
      %1208 = vmatpush1.msra.mxu0 0.0
      %1209 = vmatprep.subr.mxu0 0.0
      %1210 = vmatpush1.msra.mxu0 0.0
      %1211 = vmatprep.subr.mxu0 0.0
      %1212 = vmatpush1.msra.mxu0 0.0
      %1213 = vmatprep.subr.mxu0 0.0
      %1214 = vmatpush1.msra.mxu0 0.0
      %1215 = vmatprep.subr.mxu0 0.0
      %1216 = vmatpush1.msra.mxu0 0.0
      %1217 = vmatprep.subr.mxu0 0.0
      %1218 = vmatpush1.msra.mxu0 0.0
      %1219 = vmatprep.subr.mxu0 0.0
      %1220 = vmatpush1.msra.mxu0 0.0
      %1221 = vmatprep.subr.mxu0 0.0
      %1222 = vmatpush1.msra.mxu0 0.0
      %1223 = vmatprep.subr.mxu0 0.0
      %1224 = vmatpush1.msra.mxu0 0.0
      %1225 = vmatprep.subr.mxu0 0.0
      %1226 = vmatpush1.msra.mxu0 0.0
      %1227 = vmatprep.subr.mxu0 0.0
      %1228 = vmatpush1.msra.mxu0 0.0
      %1229 = vmatprep.subr.mxu0 0.0
      %1230 = vmatpush1.msra.mxu0 0.0
      %1231 = vmatprep.subr.mxu0 0.0
      %1232 = vmatpush1.msra.mxu0 0.0
      %1233 = vmatprep.subr.mxu0 0.0
      %1234 = vmatpush1.msra.mxu0 0.0
      %1235 = vmatprep.subr.mxu0 0.0
      %1236 = vmatpush1.msra.mxu0 0.0
      %1237 = vmatprep.subr.mxu0 0.0
      %1238 = vmatpush1.msra.mxu0 0.0
      %1239 = vmatprep.subr.mxu0 0.0
      %1240 = vmatpush1.msra.mxu0 0.0
      %1241 = vmatprep.subr.mxu0 0.0
      %1242 = vmatpush1.msra.mxu0 0.0
      %1243 = vmatprep.subr.mxu0 0.0
      %1244 = vmatpush1.msra.mxu0 0.0
      %1245 = vmatprep.subr.mxu0 0.0
      %1246 = vmatpush1.msra.mxu0 0.0
      %1247 = vmatprep.subr.mxu0 0.0
      %1248 = vmatpush1.msra.mxu0 0.0
      %1249 = vmatprep.subr.mxu0 0.0
      %1250 = vmatpush1.msra.mxu0 0.0
      %1251 = vmatprep.subr.mxu0 0.0
      %1252 = vmatpush1.msra.mxu0 0.0
      %1253 = vmatprep.subr.mxu0 0.0
      %1254 = vmatpush1.msra.mxu0 0.0
      %1255 = vmatprep.subr.mxu0 0.0
      %1256 = vmatpush1.msra.mxu0 0.0
      %1257 = vmatprep.mubr.f32.mxu0 0.0
      %1258 = vmatmul.mubr.f32.gmra.mrb[0].mxu0 %v314
      %v1259 = vpop.f32.mrb[0].mxu0
      %v1260 = vadd.f32 0.0, %v1259
      %v1261 = vpop.f32.mrb[0].mxu0
      %1262 = vmatprep.mubr.f32.mxu0 0.0
      %1263 = vmatmul.mubr.f32.gmra.mrb[0].mxu0 %v316
      %v1264 = vpop.f32.mrb[0].mxu0
      %v1265 = vadd.f32 0.0, %v1264
      %v1266 = vpop.f32.mrb[0].mxu0
      %1267 = vmatprep.mubr.f32.mxu0 0.0
      %1268 = vmatmul.mubr.f32.gmra.mrb[0].mxu0 %v318
      %v1269 = vpop.f32.mrb[0].mxu0
      %v1270 = vadd.f32 0.0, %v1269
      %v1271 = vpop.f32.mrb[0].mxu0
      %1272 = vmatprep.mubr.f32.mxu0 0.0
      %1273 = vmatmul.mubr.f32.gmra.mrb[0].mxu0 %v320
      %v1274 = vpop.f32.mrb[0].mxu0
      %v1275 = vadd.f32 0.0, %v1274
      %v1276 = vpop.f32.mrb[0].mxu0
      %1277 = vmatprep.mubr.f32.mxu0 0.0
      %1278 = vmatmul.mubr.f32.gmra.mrb[0].mxu0 %v322
      %v1279 = vpop.f32.mrb[0].mxu0
      %v1280 = vadd.f32 0.0, %v1279
      %v1281 = vpop.f32.mrb[0].mxu0
      %1282 = vmatprep.mubr.f32.mxu0 0.0
      %1283 = vmatmul.mubr.f32.gmra.mrb[0].mxu0 %v324
      %v1284 = vpop.f32.mrb[0].mxu0
      %v1285 = vadd.f32 0.0, %v1284
      %v1286 = vpop.f32.mrb[0].mxu0
      %1287 = vmatprep.mubr.f32.mxu0 0.0
      %1288 = vmatmul.mubr.f32.gmra.mrb[0].mxu0 %v832
      %v1289 = vpop.f32.mrb[0].mxu0
      %v1290 = vadd.f32 0.0, %v1289
      %v1291 = vpop.f32.mrb[0].mxu0
      %1292 = vmatprep.mubr.f32.mxu0 0.0
      %1293 = vmatmul.mubr.f32.gmra.mrb[0].mxu0 %v1191
      %v1294 = vpop.f32.mrb[0].mxu0
      %v1295 = vadd.f32 0.0, %v1294
      %v1296 = vpop.f32.mrb[0].mxu0
      %1297 = vdwg.mxu0
      %v1298 = vadd.f32 %v1177, %v1260
      %v1299 = vadd.f32 %v1178, %v1265
      %v1300 = vadd.f32 %v1179, %v1270
      %v1301 = vadd.f32 %v1180, %v1275
      %v1302 = vadd.f32 %v1181, %v1280
      %v1303 = vadd.f32 %v1182, %v1285
      %v1304 = vadd.f32 %v1183, %v1290
      %v1305 = vadd.f32 %v1184, %v1295
      %v1306 = vrot.slane %v263, 2
      %v1307 = vrot.slane %v264, 2
      %v1308 = vsel %vm552, %v1306, %v1307
      %s1309 = scalar_lea.vmem %s2, 64
      %v1310 = vld [vmem:[%s1309] sm:$0xff]
      %v1311 = vsel %vm309, %v1308, 0
      %1313 = vmatprep.subr.mxu0 0.0
      %1314 = vmatpush1.msra.mxu0 %v1310
      %1315 = vmatprep.subr.mxu0 0.0
      %1316 = vmatpush1.msra.mxu0 0.0
      %1317 = vmatprep.subr.mxu0 0.0
      %1318 = vmatpush1.msra.mxu0 0.0
      %1319 = vmatprep.subr.mxu0 0.0
      %1320 = vmatpush1.msra.mxu0 0.0
      %1321 = vmatprep.subr.mxu0 0.0
      %1322 = vmatpush1.msra.mxu0 0.0
      %1323 = vmatprep.subr.mxu0 0.0
      %1324 = vmatpush1.msra.mxu0 0.0
      %1325 = vmatprep.subr.mxu0 0.0
      %1326 = vmatpush1.msra.mxu0 0.0
      %1327 = vmatprep.subr.mxu0 0.0
      %1328 = vmatpush1.msra.mxu0 0.0
      %1329 = vmatprep.subr.mxu0 0.0
      %1330 = vmatpush1.msra.mxu0 0.0
      %1331 = vmatprep.subr.mxu0 0.0
      %1332 = vmatpush1.msra.mxu0 0.0
      %1333 = vmatprep.subr.mxu0 0.0
      %1334 = vmatpush1.msra.mxu0 0.0
      %1335 = vmatprep.subr.mxu0 0.0
      %1336 = vmatpush1.msra.mxu0 0.0
      %1337 = vmatprep.subr.mxu0 0.0
      %1338 = vmatpush1.msra.mxu0 0.0
      %1339 = vmatprep.subr.mxu0 0.0
      %1340 = vmatpush1.msra.mxu0 0.0
      %1341 = vmatprep.subr.mxu0 0.0
      %1342 = vmatpush1.msra.mxu0 0.0
      %1343 = vmatprep.subr.mxu0 0.0
      %1344 = vmatpush1.msra.mxu0 0.0
      %1345 = vmatprep.subr.mxu0 0.0
      %1346 = vmatpush1.msra.mxu0 0.0
      %1347 = vmatprep.subr.mxu0 0.0
      %1348 = vmatpush1.msra.mxu0 0.0
      %1349 = vmatprep.subr.mxu0 0.0
      %1350 = vmatpush1.msra.mxu0 0.0
      %1351 = vmatprep.subr.mxu0 0.0
      %1352 = vmatpush1.msra.mxu0 0.0
      %1353 = vmatprep.subr.mxu0 0.0
      %1354 = vmatpush1.msra.mxu0 0.0
      %1355 = vmatprep.subr.mxu0 0.0
      %1356 = vmatpush1.msra.mxu0 0.0
      %1357 = vmatprep.subr.mxu0 0.0
      %1358 = vmatpush1.msra.mxu0 0.0
      %1359 = vmatprep.subr.mxu0 0.0
      %1360 = vmatpush1.msra.mxu0 0.0
      %1361 = vmatprep.subr.mxu0 0.0
      %1362 = vmatpush1.msra.mxu0 0.0
      %1363 = vmatprep.subr.mxu0 0.0
      %1364 = vmatpush1.msra.mxu0 0.0
      %1365 = vmatprep.subr.mxu0 0.0
      %1366 = vmatpush1.msra.mxu0 0.0
      %1367 = vmatprep.subr.mxu0 0.0
      %1368 = vmatpush1.msra.mxu0 0.0
      %1369 = vmatprep.subr.mxu0 0.0
      %1370 = vmatpush1.msra.mxu0 0.0
      %1371 = vmatprep.subr.mxu0 0.0
      %1372 = vmatpush1.msra.mxu0 0.0
      %1373 = vmatprep.subr.mxu0 0.0
      %1374 = vmatpush1.msra.mxu0 0.0
      %1375 = vmatprep.subr.mxu0 0.0
      %1376 = vmatpush1.msra.mxu0 0.0
      %1377 = vmatprep.mubr.f32.mxu0 0.0
      %1378 = vmatmul.mubr.f32.gmra.mrb[0].mxu0 %v583
      %v1379 = vpop.f32.mrb[0].mxu0
      %v1380 = vadd.f32 0.0, %v1379
      %v1381 = vpop.f32.mrb[0].mxu0
      %1382 = vmatprep.mubr.f32.mxu0 0.0
      %1383 = vmatmul.mubr.f32.gmra.mrb[0].mxu0 %v585
      %v1384 = vpop.f32.mrb[0].mxu0
      %v1385 = vadd.f32 0.0, %v1384
      %v1386 = vpop.f32.mrb[0].mxu0
      %1387 = vmatprep.mubr.f32.mxu0 0.0
      %1388 = vmatmul.mubr.f32.gmra.mrb[0].mxu0 %v587
      %v1389 = vpop.f32.mrb[0].mxu0
      %v1390 = vadd.f32 0.0, %v1389
      %v1391 = vpop.f32.mrb[0].mxu0
      %1392 = vmatprep.mubr.f32.mxu0 0.0
      %1393 = vmatmul.mubr.f32.gmra.mrb[0].mxu0 %v589
      %v1394 = vpop.f32.mrb[0].mxu0
      %v1395 = vadd.f32 0.0, %v1394
      %v1396 = vpop.f32.mrb[0].mxu0
      %1397 = vmatprep.mubr.f32.mxu0 0.0
      %1398 = vmatmul.mubr.f32.gmra.mrb[0].mxu0 %v591
      %v1399 = vpop.f32.mrb[0].mxu0
      %v1400 = vadd.f32 0.0, %v1399
      %v1401 = vpop.f32.mrb[0].mxu0
      %1402 = vmatprep.mubr.f32.mxu0 0.0
      %1403 = vmatmul.mubr.f32.gmra.mrb[0].mxu0 %v593
      %v1404 = vpop.f32.mrb[0].mxu0
      %v1405 = vadd.f32 0.0, %v1404
      %v1406 = vpop.f32.mrb[0].mxu0
      %1407 = vmatprep.mubr.f32.mxu0 0.0
      %1408 = vmatmul.mubr.f32.gmra.mrb[0].mxu0 %v952
      %v1409 = vpop.f32.mrb[0].mxu0
      %v1410 = vadd.f32 0.0, %v1409
      %v1411 = vpop.f32.mrb[0].mxu0
      %1412 = vmatprep.mubr.f32.mxu0 0.0
      %1413 = vmatmul.mubr.f32.gmra.mrb[0].mxu0 %v1311
      %v1414 = vpop.f32.mrb[0].mxu0
      %v1415 = vadd.f32 0.0, %v1414
      %v1416 = vpop.f32.mrb[0].mxu0
      %1417 = vdwg.mxu0
      %v1418 = vadd.f32 %v1298, %v1380
      %v1419 = vadd.f32 %v1299, %v1385
      %v1420 = vadd.f32 %v1300, %v1390
      %v1421 = vadd.f32 %v1301, %v1395
      %v1422 = vadd.f32 %v1302, %v1400
      %v1423 = vadd.f32 %v1303, %v1405
      %v1424 = vadd.f32 %v1304, %v1410
      %v1425 = vadd.f32 %v1305, %v1415
      %v1426 = vld [vmem:[%s239] sm:$0xff]
      %v1427 = vld [vmem:[%s239 + $0x8] sm:$0x3]
      %v1428 = vld [vmem:[%s239 + $0x10] sm:$0xff]
      %v1429 = vld [vmem:[%s239 + $0x18] sm:$0x3]
      %v1430 = vld [vmem:[%s239 + $0x20] sm:$0xff]
      %v1431 = vld [vmem:[%s239 + $0x28] sm:$0x3]
      %v1432 = vld [vmem:[%s239 + $0x30] sm:$0xff]
      %v1433 = vld [vmem:[%s239 + $0x38] sm:$0x3]
      %v1434 = vld [vmem:[%s239 + $0x40] sm:$0xff]
      %v1435 = vld [vmem:[%s239 + $0x48] sm:$0x3]
      %v1436 = vld [vmem:[%s239 + $0x50] sm:$0xff]
      %v1437 = vld [vmem:[%s239 + $0x58] sm:$0x3]
      %v1438 = vld [vmem:[%s239 + $0x60] sm:$0xff]
      %v1439 = vld [vmem:[%s239 + $0x68] sm:$0x3]
      %v1440 = vld [vmem:[%s239 + $0x70] sm:$0xff]
      %v1441 = vld [vmem:[%s239 + $0x78] sm:$0x3]
      %v1442 = vld [vmem:[%s239 + $0x80] sm:$0xff]
      %v1443 = vld [vmem:[%s239 + $0x88] sm:$0x3]
      %v1444 = vld [vmem:[%s239 + $0x90] sm:$0xff]
      %v1445 = vld [vmem:[%s239 + $0x98] sm:$0x3]
      %s1446 = scalar_lea.vmem %s2, 72
      %v1447 = vld [vmem:[%s1446] sm:$0xff]
      %v1449 = vsel %vm309, %v1426, 0
      %v1452 = vsel %vm309, %v1428, 0
      %v1455 = vsel %vm309, %v1430, 0
      %v1458 = vsel %vm309, %v1432, 0
      %v1461 = vsel %vm309, %v1434, 0
      %v1464 = vsel %vm309, %v1436, 0
      %v1467 = vsel %vm309, %v1438, 0
      %v1470 = vsel %vm309, %v1440, 0
      %1472 = vmatprep.subr.mxu0 0.0
      %1473 = vmatpush1.msra.mxu0 %v1447
      %1474 = vmatprep.subr.mxu0 0.0
      %1475 = vmatpush1.msra.mxu0 0.0
      %1476 = vmatprep.subr.mxu0 0.0
      %1477 = vmatpush1.msra.mxu0 0.0
      %1478 = vmatprep.subr.mxu0 0.0
      %1479 = vmatpush1.msra.mxu0 0.0
      %1480 = vmatprep.subr.mxu0 0.0
      %1481 = vmatpush1.msra.mxu0 0.0
      %1482 = vmatprep.subr.mxu0 0.0
      %1483 = vmatpush1.msra.mxu0 0.0
      %1484 = vmatprep.subr.mxu0 0.0
      %1485 = vmatpush1.msra.mxu0 0.0
      %1486 = vmatprep.subr.mxu0 0.0
      %1487 = vmatpush1.msra.mxu0 0.0
      %1488 = vmatprep.subr.mxu0 0.0
      %1489 = vmatpush1.msra.mxu0 0.0
      %1490 = vmatprep.subr.mxu0 0.0
      %1491 = vmatpush1.msra.mxu0 0.0
      %1492 = vmatprep.subr.mxu0 0.0
      %1493 = vmatpush1.msra.mxu0 0.0
      %1494 = vmatprep.subr.mxu0 0.0
      %1495 = vmatpush1.msra.mxu0 0.0
      %1496 = vmatprep.subr.mxu0 0.0
      %1497 = vmatpush1.msra.mxu0 0.0
      %1498 = vmatprep.subr.mxu0 0.0
      %1499 = vmatpush1.msra.mxu0 0.0
      %1500 = vmatprep.subr.mxu0 0.0
      %1501 = vmatpush1.msra.mxu0 0.0
      %1502 = vmatprep.subr.mxu0 0.0
      %1503 = vmatpush1.msra.mxu0 0.0
      %1504 = vmatprep.subr.mxu0 0.0
      %1505 = vmatpush1.msra.mxu0 0.0
      %1506 = vmatprep.subr.mxu0 0.0
      %1507 = vmatpush1.msra.mxu0 0.0
      %1508 = vmatprep.subr.mxu0 0.0
      %1509 = vmatpush1.msra.mxu0 0.0
      %1510 = vmatprep.subr.mxu0 0.0
      %1511 = vmatpush1.msra.mxu0 0.0
      %1512 = vmatprep.subr.mxu0 0.0
      %1513 = vmatpush1.msra.mxu0 0.0
      %1514 = vmatprep.subr.mxu0 0.0
      %1515 = vmatpush1.msra.mxu0 0.0
      %1516 = vmatprep.subr.mxu0 0.0
      %1517 = vmatpush1.msra.mxu0 0.0
      %1518 = vmatprep.subr.mxu0 0.0
      %1519 = vmatpush1.msra.mxu0 0.0
      %1520 = vmatprep.subr.mxu0 0.0
      %1521 = vmatpush1.msra.mxu0 0.0
      %1522 = vmatprep.subr.mxu0 0.0
      %1523 = vmatpush1.msra.mxu0 0.0
      %1524 = vmatprep.subr.mxu0 0.0
      %1525 = vmatpush1.msra.mxu0 0.0
      %1526 = vmatprep.subr.mxu0 0.0
      %1527 = vmatpush1.msra.mxu0 0.0
      %1528 = vmatprep.subr.mxu0 0.0
      %1529 = vmatpush1.msra.mxu0 0.0
      %1530 = vmatprep.subr.mxu0 0.0
      %1531 = vmatpush1.msra.mxu0 0.0
      %1532 = vmatprep.subr.mxu0 0.0
      %1533 = vmatpush1.msra.mxu0 0.0
      %1534 = vmatprep.subr.mxu0 0.0
      %1535 = vmatpush1.msra.mxu0 0.0
      %1536 = vmatprep.mubr.f32.mxu0 0.0
      %1537 = vmatmul.mubr.f32.gmra.mrb[0].mxu0 %v1449
      %v1538 = vpop.f32.mrb[0].mxu0
      %v1539 = vadd.f32 0.0, %v1538
      %v1540 = vpop.f32.mrb[0].mxu0
      %1541 = vmatprep.mubr.f32.mxu0 0.0
      %1542 = vmatmul.mubr.f32.gmra.mrb[0].mxu0 %v1452
      %v1543 = vpop.f32.mrb[0].mxu0
      %v1544 = vadd.f32 0.0, %v1543
      %v1545 = vpop.f32.mrb[0].mxu0
      %1546 = vmatprep.mubr.f32.mxu0 0.0
      %1547 = vmatmul.mubr.f32.gmra.mrb[0].mxu0 %v1455
      %v1548 = vpop.f32.mrb[0].mxu0
      %v1549 = vadd.f32 0.0, %v1548
      %v1550 = vpop.f32.mrb[0].mxu0
      %1551 = vmatprep.mubr.f32.mxu0 0.0
      %1552 = vmatmul.mubr.f32.gmra.mrb[0].mxu0 %v1458
      %v1553 = vpop.f32.mrb[0].mxu0
      %v1554 = vadd.f32 0.0, %v1553
      %v1555 = vpop.f32.mrb[0].mxu0
      %1556 = vmatprep.mubr.f32.mxu0 0.0
      %1557 = vmatmul.mubr.f32.gmra.mrb[0].mxu0 %v1461
      %v1558 = vpop.f32.mrb[0].mxu0
      %v1559 = vadd.f32 0.0, %v1558
      %v1560 = vpop.f32.mrb[0].mxu0
      %1561 = vmatprep.mubr.f32.mxu0 0.0
      %1562 = vmatmul.mubr.f32.gmra.mrb[0].mxu0 %v1464
      %v1563 = vpop.f32.mrb[0].mxu0
      %v1564 = vadd.f32 0.0, %v1563
      %v1565 = vpop.f32.mrb[0].mxu0
      %1566 = vmatprep.mubr.f32.mxu0 0.0
      %1567 = vmatmul.mubr.f32.gmra.mrb[0].mxu0 %v1467
      %v1568 = vpop.f32.mrb[0].mxu0
      %v1569 = vadd.f32 0.0, %v1568
      %v1570 = vpop.f32.mrb[0].mxu0
      %1571 = vmatprep.mubr.f32.mxu0 0.0
      %1572 = vmatmul.mubr.f32.gmra.mrb[0].mxu0 %v1470
      %v1573 = vpop.f32.mrb[0].mxu0
      %v1574 = vadd.f32 0.0, %v1573
      %v1575 = vpop.f32.mrb[0].mxu0
      %1576 = vdwg.mxu0
      %v1577 = vadd.f32 %v1418, %v1539
      %v1578 = vadd.f32 %v1419, %v1544
      %v1579 = vadd.f32 %v1420, %v1549
      %v1580 = vadd.f32 %v1421, %v1554
      %v1581 = vadd.f32 %v1422, %v1559
      %v1582 = vadd.f32 %v1423, %v1564
      %v1583 = vadd.f32 %v1424, %v1569
      %v1584 = vadd.f32 %v1425, %v1574
      %v1593 = vrot.slane %v1426, 1
      %v1594 = vrot.slane %v1427, 1
      %v1595 = vsel %vm282, %v1593, %v1594
      %v1596 = vrot.slane %v1428, 1
      %v1597 = vrot.slane %v1429, 1
      %v1598 = vsel %vm282, %v1596, %v1597
      %v1599 = vrot.slane %v1430, 1
      %v1600 = vrot.slane %v1431, 1
      %v1601 = vsel %vm282, %v1599, %v1600
      %v1602 = vrot.slane %v1432, 1
      %v1603 = vrot.slane %v1433, 1
      %v1604 = vsel %vm282, %v1602, %v1603
      %v1605 = vrot.slane %v1434, 1
      %v1606 = vrot.slane %v1435, 1
      %v1607 = vsel %vm282, %v1605, %v1606
      %v1608 = vrot.slane %v1436, 1
      %v1609 = vrot.slane %v1437, 1
      %v1610 = vsel %vm282, %v1608, %v1609
      %v1611 = vrot.slane %v1438, 1
      %v1612 = vrot.slane %v1439, 1
      %v1613 = vsel %vm282, %v1611, %v1612
      %v1614 = vrot.slane %v1440, 1
      %v1615 = vrot.slane %v1441, 1
      %v1616 = vsel %vm282, %v1614, %v1615
      %s1617 = scalar_lea.vmem %s2, 80
      %v1618 = vld [vmem:[%s1617] sm:$0xff]
      %v1619 = vsel %vm309, %v1595, 0
      %v1621 = vsel %vm309, %v1598, 0
      %v1623 = vsel %vm309, %v1601, 0
      %v1625 = vsel %vm309, %v1604, 0
      %v1627 = vsel %vm309, %v1607, 0
      %v1629 = vsel %vm309, %v1610, 0
      %v1631 = vsel %vm309, %v1613, 0
      %v1633 = vsel %vm309, %v1616, 0
      %1635 = vmatprep.subr.mxu0 0.0
      %1636 = vmatpush1.msra.mxu0 %v1618
      %1637 = vmatprep.subr.mxu0 0.0
      %1638 = vmatpush1.msra.mxu0 0.0
      %1639 = vmatprep.subr.mxu0 0.0
      %1640 = vmatpush1.msra.mxu0 0.0
      %1641 = vmatprep.subr.mxu0 0.0
      %1642 = vmatpush1.msra.mxu0 0.0
      %1643 = vmatprep.subr.mxu0 0.0
      %1644 = vmatpush1.msra.mxu0 0.0
      %1645 = vmatprep.subr.mxu0 0.0
      %1646 = vmatpush1.msra.mxu0 0.0
      %1647 = vmatprep.subr.mxu0 0.0
      %1648 = vmatpush1.msra.mxu0 0.0
      %1649 = vmatprep.subr.mxu0 0.0
      %1650 = vmatpush1.msra.mxu0 0.0
      %1651 = vmatprep.subr.mxu0 0.0
      %1652 = vmatpush1.msra.mxu0 0.0
      %1653 = vmatprep.subr.mxu0 0.0
      %1654 = vmatpush1.msra.mxu0 0.0
      %1655 = vmatprep.subr.mxu0 0.0
      %1656 = vmatpush1.msra.mxu0 0.0
      %1657 = vmatprep.subr.mxu0 0.0
      %1658 = vmatpush1.msra.mxu0 0.0
      %1659 = vmatprep.subr.mxu0 0.0
      %1660 = vmatpush1.msra.mxu0 0.0
      %1661 = vmatprep.subr.mxu0 0.0
      %1662 = vmatpush1.msra.mxu0 0.0
      %1663 = vmatprep.subr.mxu0 0.0
      %1664 = vmatpush1.msra.mxu0 0.0
      %1665 = vmatprep.subr.mxu0 0.0
      %1666 = vmatpush1.msra.mxu0 0.0
      %1667 = vmatprep.subr.mxu0 0.0
      %1668 = vmatpush1.msra.mxu0 0.0
      %1669 = vmatprep.subr.mxu0 0.0
      %1670 = vmatpush1.msra.mxu0 0.0
      %1671 = vmatprep.subr.mxu0 0.0
      %1672 = vmatpush1.msra.mxu0 0.0
      %1673 = vmatprep.subr.mxu0 0.0
      %1674 = vmatpush1.msra.mxu0 0.0
      %1675 = vmatprep.subr.mxu0 0.0
      %1676 = vmatpush1.msra.mxu0 0.0
      %1677 = vmatprep.subr.mxu0 0.0
      %1678 = vmatpush1.msra.mxu0 0.0
      %1679 = vmatprep.subr.mxu0 0.0
      %1680 = vmatpush1.msra.mxu0 0.0
      %1681 = vmatprep.subr.mxu0 0.0
      %1682 = vmatpush1.msra.mxu0 0.0
      %1683 = vmatprep.subr.mxu0 0.0
      %1684 = vmatpush1.msra.mxu0 0.0
      %1685 = vmatprep.subr.mxu0 0.0
      %1686 = vmatpush1.msra.mxu0 0.0
      %1687 = vmatprep.subr.mxu0 0.0
      %1688 = vmatpush1.msra.mxu0 0.0
      %1689 = vmatprep.subr.mxu0 0.0
      %1690 = vmatpush1.msra.mxu0 0.0
      %1691 = vmatprep.subr.mxu0 0.0
      %1692 = vmatpush1.msra.mxu0 0.0
      %1693 = vmatprep.subr.mxu0 0.0
      %1694 = vmatpush1.msra.mxu0 0.0
      %1695 = vmatprep.subr.mxu0 0.0
      %1696 = vmatpush1.msra.mxu0 0.0
      %1697 = vmatprep.subr.mxu0 0.0
      %1698 = vmatpush1.msra.mxu0 0.0
      %1699 = vmatprep.mubr.f32.mxu0 0.0
      %1700 = vmatmul.mubr.f32.gmra.mrb[0].mxu0 %v1619
      %v1701 = vpop.f32.mrb[0].mxu0
      %v1702 = vadd.f32 0.0, %v1701
      %v1703 = vpop.f32.mrb[0].mxu0
      %1704 = vmatprep.mubr.f32.mxu0 0.0
      %1705 = vmatmul.mubr.f32.gmra.mrb[0].mxu0 %v1621
      %v1706 = vpop.f32.mrb[0].mxu0
      %v1707 = vadd.f32 0.0, %v1706
      %v1708 = vpop.f32.mrb[0].mxu0
      %1709 = vmatprep.mubr.f32.mxu0 0.0
      %1710 = vmatmul.mubr.f32.gmra.mrb[0].mxu0 %v1623
      %v1711 = vpop.f32.mrb[0].mxu0
      %v1712 = vadd.f32 0.0, %v1711
      %v1713 = vpop.f32.mrb[0].mxu0
      %1714 = vmatprep.mubr.f32.mxu0 0.0
      %1715 = vmatmul.mubr.f32.gmra.mrb[0].mxu0 %v1625
      %v1716 = vpop.f32.mrb[0].mxu0
      %v1717 = vadd.f32 0.0, %v1716
      %v1718 = vpop.f32.mrb[0].mxu0
      %1719 = vmatprep.mubr.f32.mxu0 0.0
      %1720 = vmatmul.mubr.f32.gmra.mrb[0].mxu0 %v1627
      %v1721 = vpop.f32.mrb[0].mxu0
      %v1722 = vadd.f32 0.0, %v1721
      %v1723 = vpop.f32.mrb[0].mxu0
      %1724 = vmatprep.mubr.f32.mxu0 0.0
      %1725 = vmatmul.mubr.f32.gmra.mrb[0].mxu0 %v1629
      %v1726 = vpop.f32.mrb[0].mxu0
      %v1727 = vadd.f32 0.0, %v1726
      %v1728 = vpop.f32.mrb[0].mxu0
      %1729 = vmatprep.mubr.f32.mxu0 0.0
      %1730 = vmatmul.mubr.f32.gmra.mrb[0].mxu0 %v1631
      %v1731 = vpop.f32.mrb[0].mxu0
      %v1732 = vadd.f32 0.0, %v1731
      %v1733 = vpop.f32.mrb[0].mxu0
      %1734 = vmatprep.mubr.f32.mxu0 0.0
      %1735 = vmatmul.mubr.f32.gmra.mrb[0].mxu0 %v1633
      %v1736 = vpop.f32.mrb[0].mxu0
      %v1737 = vadd.f32 0.0, %v1736
      %v1738 = vpop.f32.mrb[0].mxu0
      %1739 = vdwg.mxu0
      %v1740 = vadd.f32 %v1577, %v1702
      %v1741 = vadd.f32 %v1578, %v1707
      %v1742 = vadd.f32 %v1579, %v1712
      %v1743 = vadd.f32 %v1580, %v1717
      %v1744 = vadd.f32 %v1581, %v1722
      %v1745 = vadd.f32 %v1582, %v1727
      %v1746 = vadd.f32 %v1583, %v1732
      %v1747 = vadd.f32 %v1584, %v1737
      %v1748 = vrot.slane %v1426, 2
      %v1749 = vrot.slane %v1427, 2
      %v1750 = vsel %vm552, %v1748, %v1749
      %v1751 = vrot.slane %v1428, 2
      %v1752 = vrot.slane %v1429, 2
      %v1753 = vsel %vm552, %v1751, %v1752
      %v1754 = vrot.slane %v1430, 2
      %v1755 = vrot.slane %v1431, 2
      %v1756 = vsel %vm552, %v1754, %v1755
      %v1757 = vrot.slane %v1432, 2
      %v1758 = vrot.slane %v1433, 2
      %v1759 = vsel %vm552, %v1757, %v1758
      %v1760 = vrot.slane %v1434, 2
      %v1761 = vrot.slane %v1435, 2
      %v1762 = vsel %vm552, %v1760, %v1761
      %v1763 = vrot.slane %v1436, 2
      %v1764 = vrot.slane %v1437, 2
      %v1765 = vsel %vm552, %v1763, %v1764
      %v1766 = vrot.slane %v1438, 2
      %v1767 = vrot.slane %v1439, 2
      %v1768 = vsel %vm552, %v1766, %v1767
      %v1769 = vrot.slane %v1440, 2
      %v1770 = vrot.slane %v1441, 2
      %v1771 = vsel %vm552, %v1769, %v1770
      %s1772 = scalar_lea.vmem %s2, 88
      %v1773 = vld [vmem:[%s1772] sm:$0xff]
      %v1774 = vsel %vm309, %v1750, 0
      %v1776 = vsel %vm309, %v1753, 0
      %v1778 = vsel %vm309, %v1756, 0
      %v1780 = vsel %vm309, %v1759, 0
      %v1782 = vsel %vm309, %v1762, 0
      %v1784 = vsel %vm309, %v1765, 0
      %v1786 = vsel %vm309, %v1768, 0
      %v1788 = vsel %vm309, %v1771, 0
      %1790 = vmatprep.subr.mxu0 0.0
      %1791 = vmatpush1.msra.mxu0 %v1773
      %1792 = vmatprep.subr.mxu0 0.0
      %1793 = vmatpush1.msra.mxu0 0.0
      %1794 = vmatprep.subr.mxu0 0.0
      %1795 = vmatpush1.msra.mxu0 0.0
      %1796 = vmatprep.subr.mxu0 0.0
      %1797 = vmatpush1.msra.mxu0 0.0
      %1798 = vmatprep.subr.mxu0 0.0
      %1799 = vmatpush1.msra.mxu0 0.0
      %1800 = vmatprep.subr.mxu0 0.0
      %1801 = vmatpush1.msra.mxu0 0.0
      %1802 = vmatprep.subr.mxu0 0.0
      %1803 = vmatpush1.msra.mxu0 0.0
      %1804 = vmatprep.subr.mxu0 0.0
      %1805 = vmatpush1.msra.mxu0 0.0
      %1806 = vmatprep.subr.mxu0 0.0
      %1807 = vmatpush1.msra.mxu0 0.0
      %1808 = vmatprep.subr.mxu0 0.0
      %1809 = vmatpush1.msra.mxu0 0.0
      %1810 = vmatprep.subr.mxu0 0.0
      %1811 = vmatpush1.msra.mxu0 0.0
      %1812 = vmatprep.subr.mxu0 0.0
      %1813 = vmatpush1.msra.mxu0 0.0
      %1814 = vmatprep.subr.mxu0 0.0
      %1815 = vmatpush1.msra.mxu0 0.0
      %1816 = vmatprep.subr.mxu0 0.0
      %1817 = vmatpush1.msra.mxu0 0.0
      %1818 = vmatprep.subr.mxu0 0.0
      %1819 = vmatpush1.msra.mxu0 0.0
      %1820 = vmatprep.subr.mxu0 0.0
      %1821 = vmatpush1.msra.mxu0 0.0
      %1822 = vmatprep.subr.mxu0 0.0
      %1823 = vmatpush1.msra.mxu0 0.0
      %1824 = vmatprep.subr.mxu0 0.0
      %1825 = vmatpush1.msra.mxu0 0.0
      %1826 = vmatprep.subr.mxu0 0.0
      %1827 = vmatpush1.msra.mxu0 0.0
      %1828 = vmatprep.subr.mxu0 0.0
      %1829 = vmatpush1.msra.mxu0 0.0
      %1830 = vmatprep.subr.mxu0 0.0
      %1831 = vmatpush1.msra.mxu0 0.0
      %1832 = vmatprep.subr.mxu0 0.0
      %1833 = vmatpush1.msra.mxu0 0.0
      %1834 = vmatprep.subr.mxu0 0.0
      %1835 = vmatpush1.msra.mxu0 0.0
      %1836 = vmatprep.subr.mxu0 0.0
      %1837 = vmatpush1.msra.mxu0 0.0
      %1838 = vmatprep.subr.mxu0 0.0
      %1839 = vmatpush1.msra.mxu0 0.0
      %1840 = vmatprep.subr.mxu0 0.0
      %1841 = vmatpush1.msra.mxu0 0.0
      %1842 = vmatprep.subr.mxu0 0.0
      %1843 = vmatpush1.msra.mxu0 0.0
      %1844 = vmatprep.subr.mxu0 0.0
      %1845 = vmatpush1.msra.mxu0 0.0
      %1846 = vmatprep.subr.mxu0 0.0
      %1847 = vmatpush1.msra.mxu0 0.0
      %1848 = vmatprep.subr.mxu0 0.0
      %1849 = vmatpush1.msra.mxu0 0.0
      %1850 = vmatprep.subr.mxu0 0.0
      %1851 = vmatpush1.msra.mxu0 0.0
      %1852 = vmatprep.subr.mxu0 0.0
      %1853 = vmatpush1.msra.mxu0 0.0
      %1854 = vmatprep.mubr.f32.mxu0 0.0
      %1855 = vmatmul.mubr.f32.gmra.mrb[0].mxu0 %v1774
      %v1856 = vpop.f32.mrb[0].mxu0
      %v1857 = vadd.f32 0.0, %v1856
      %v1858 = vpop.f32.mrb[0].mxu0
      %1859 = vmatprep.mubr.f32.mxu0 0.0
      %1860 = vmatmul.mubr.f32.gmra.mrb[0].mxu0 %v1776
      %v1861 = vpop.f32.mrb[0].mxu0
      %v1862 = vadd.f32 0.0, %v1861
      %v1863 = vpop.f32.mrb[0].mxu0
      %1864 = vmatprep.mubr.f32.mxu0 0.0
      %1865 = vmatmul.mubr.f32.gmra.mrb[0].mxu0 %v1778
      %v1866 = vpop.f32.mrb[0].mxu0
      %v1867 = vadd.f32 0.0, %v1866
      %v1868 = vpop.f32.mrb[0].mxu0
      %1869 = vmatprep.mubr.f32.mxu0 0.0
      %1870 = vmatmul.mubr.f32.gmra.mrb[0].mxu0 %v1780
      %v1871 = vpop.f32.mrb[0].mxu0
      %v1872 = vadd.f32 0.0, %v1871
      %v1873 = vpop.f32.mrb[0].mxu0
      %1874 = vmatprep.mubr.f32.mxu0 0.0
      %1875 = vmatmul.mubr.f32.gmra.mrb[0].mxu0 %v1782
      %v1876 = vpop.f32.mrb[0].mxu0
      %v1877 = vadd.f32 0.0, %v1876
      %v1878 = vpop.f32.mrb[0].mxu0
      %1879 = vmatprep.mubr.f32.mxu0 0.0
      %1880 = vmatmul.mubr.f32.gmra.mrb[0].mxu0 %v1784
      %v1881 = vpop.f32.mrb[0].mxu0
      %v1882 = vadd.f32 0.0, %v1881
      %v1883 = vpop.f32.mrb[0].mxu0
      %1884 = vmatprep.mubr.f32.mxu0 0.0
      %1885 = vmatmul.mubr.f32.gmra.mrb[0].mxu0 %v1786
      %v1886 = vpop.f32.mrb[0].mxu0
      %v1887 = vadd.f32 0.0, %v1886
      %v1888 = vpop.f32.mrb[0].mxu0
      %1889 = vmatprep.mubr.f32.mxu0 0.0
      %1890 = vmatmul.mubr.f32.gmra.mrb[0].mxu0 %v1788
      %v1891 = vpop.f32.mrb[0].mxu0
      %v1892 = vadd.f32 0.0, %v1891
      %v1893 = vpop.f32.mrb[0].mxu0
      %1894 = vdwg.mxu0
      %v1895 = vadd.f32 %v1740, %v1857
      %v1896 = vadd.f32 %v1741, %v1862
      %v1897 = vadd.f32 %v1742, %v1867
      %v1898 = vadd.f32 %v1743, %v1872
      %v1899 = vadd.f32 %v1744, %v1877
      %v1900 = vadd.f32 %v1745, %v1882
      %v1901 = vadd.f32 %v1746, %v1887
      %v1902 = vadd.f32 %v1747, %v1892
      %s1903 = scalar_lea.vmem %s2, 96
      %v1904 = vld [vmem:[%s1903] sm:$0xff]
      %v1906 = vsel %vm309, %v1442, 0
      %1908 = vmatprep.subr.mxu0 0.0
      %1909 = vmatpush1.msra.mxu0 %v1904
      %1910 = vmatprep.subr.mxu0 0.0
      %1911 = vmatpush1.msra.mxu0 0.0
      %1912 = vmatprep.subr.mxu0 0.0
      %1913 = vmatpush1.msra.mxu0 0.0
      %1914 = vmatprep.subr.mxu0 0.0
      %1915 = vmatpush1.msra.mxu0 0.0
      %1916 = vmatprep.subr.mxu0 0.0
      %1917 = vmatpush1.msra.mxu0 0.0
      %1918 = vmatprep.subr.mxu0 0.0
      %1919 = vmatpush1.msra.mxu0 0.0
      %1920 = vmatprep.subr.mxu0 0.0
      %1921 = vmatpush1.msra.mxu0 0.0
      %1922 = vmatprep.subr.mxu0 0.0
      %1923 = vmatpush1.msra.mxu0 0.0
      %1924 = vmatprep.subr.mxu0 0.0
      %1925 = vmatpush1.msra.mxu0 0.0
      %1926 = vmatprep.subr.mxu0 0.0
      %1927 = vmatpush1.msra.mxu0 0.0
      %1928 = vmatprep.subr.mxu0 0.0
      %1929 = vmatpush1.msra.mxu0 0.0
      %1930 = vmatprep.subr.mxu0 0.0
      %1931 = vmatpush1.msra.mxu0 0.0
      %1932 = vmatprep.subr.mxu0 0.0
      %1933 = vmatpush1.msra.mxu0 0.0
      %1934 = vmatprep.subr.mxu0 0.0
      %1935 = vmatpush1.msra.mxu0 0.0
      %1936 = vmatprep.subr.mxu0 0.0
      %1937 = vmatpush1.msra.mxu0 0.0
      %1938 = vmatprep.subr.mxu0 0.0
      %1939 = vmatpush1.msra.mxu0 0.0
      %1940 = vmatprep.subr.mxu0 0.0
      %1941 = vmatpush1.msra.mxu0 0.0
      %1942 = vmatprep.subr.mxu0 0.0
      %1943 = vmatpush1.msra.mxu0 0.0
      %1944 = vmatprep.subr.mxu0 0.0
      %1945 = vmatpush1.msra.mxu0 0.0
      %1946 = vmatprep.subr.mxu0 0.0
      %1947 = vmatpush1.msra.mxu0 0.0
      %1948 = vmatprep.subr.mxu0 0.0
      %1949 = vmatpush1.msra.mxu0 0.0
      %1950 = vmatprep.subr.mxu0 0.0
      %1951 = vmatpush1.msra.mxu0 0.0
      %1952 = vmatprep.subr.mxu0 0.0
      %1953 = vmatpush1.msra.mxu0 0.0
      %1954 = vmatprep.subr.mxu0 0.0
      %1955 = vmatpush1.msra.mxu0 0.0
      %1956 = vmatprep.subr.mxu0 0.0
      %1957 = vmatpush1.msra.mxu0 0.0
      %1958 = vmatprep.subr.mxu0 0.0
      %1959 = vmatpush1.msra.mxu0 0.0
      %1960 = vmatprep.subr.mxu0 0.0
      %1961 = vmatpush1.msra.mxu0 0.0
      %1962 = vmatprep.subr.mxu0 0.0
      %1963 = vmatpush1.msra.mxu0 0.0
      %1964 = vmatprep.subr.mxu0 0.0
      %1965 = vmatpush1.msra.mxu0 0.0
      %1966 = vmatprep.subr.mxu0 0.0
      %1967 = vmatpush1.msra.mxu0 0.0
      %1968 = vmatprep.subr.mxu0 0.0
      %1969 = vmatpush1.msra.mxu0 0.0
      %1970 = vmatprep.subr.mxu0 0.0
      %1971 = vmatpush1.msra.mxu0 0.0
      %1972 = vmatprep.mubr.f32.mxu0 0.0
      %1973 = vmatmul.mubr.f32.gmra.mrb[0].mxu0 %v1452
      %v1974 = vpop.f32.mrb[0].mxu0
      %v1975 = vadd.f32 0.0, %v1974
      %v1976 = vpop.f32.mrb[0].mxu0
      %1977 = vmatprep.mubr.f32.mxu0 0.0
      %1978 = vmatmul.mubr.f32.gmra.mrb[0].mxu0 %v1455
      %v1979 = vpop.f32.mrb[0].mxu0
      %v1980 = vadd.f32 0.0, %v1979
      %v1981 = vpop.f32.mrb[0].mxu0
      %1982 = vmatprep.mubr.f32.mxu0 0.0
      %1983 = vmatmul.mubr.f32.gmra.mrb[0].mxu0 %v1458
      %v1984 = vpop.f32.mrb[0].mxu0
      %v1985 = vadd.f32 0.0, %v1984
      %v1986 = vpop.f32.mrb[0].mxu0
      %1987 = vmatprep.mubr.f32.mxu0 0.0
      %1988 = vmatmul.mubr.f32.gmra.mrb[0].mxu0 %v1461
      %v1989 = vpop.f32.mrb[0].mxu0
      %v1990 = vadd.f32 0.0, %v1989
      %v1991 = vpop.f32.mrb[0].mxu0
      %1992 = vmatprep.mubr.f32.mxu0 0.0
      %1993 = vmatmul.mubr.f32.gmra.mrb[0].mxu0 %v1464
      %v1994 = vpop.f32.mrb[0].mxu0
      %v1995 = vadd.f32 0.0, %v1994
      %v1996 = vpop.f32.mrb[0].mxu0
      %1997 = vmatprep.mubr.f32.mxu0 0.0
      %1998 = vmatmul.mubr.f32.gmra.mrb[0].mxu0 %v1467
      %v1999 = vpop.f32.mrb[0].mxu0
      %v2000 = vadd.f32 0.0, %v1999
      %v2001 = vpop.f32.mrb[0].mxu0
      %2002 = vmatprep.mubr.f32.mxu0 0.0
      %2003 = vmatmul.mubr.f32.gmra.mrb[0].mxu0 %v1470
      %v2004 = vpop.f32.mrb[0].mxu0
      %v2005 = vadd.f32 0.0, %v2004
      %v2006 = vpop.f32.mrb[0].mxu0
      %2007 = vmatprep.mubr.f32.mxu0 0.0
      %2008 = vmatmul.mubr.f32.gmra.mrb[0].mxu0 %v1906
      %v2009 = vpop.f32.mrb[0].mxu0
      %v2010 = vadd.f32 0.0, %v2009
      %v2011 = vpop.f32.mrb[0].mxu0
      %2012 = vdwg.mxu0
      %v2013 = vadd.f32 %v1895, %v1975
      %v2014 = vadd.f32 %v1896, %v1980
      %v2015 = vadd.f32 %v1897, %v1985
      %v2016 = vadd.f32 %v1898, %v1990
      %v2017 = vadd.f32 %v1899, %v1995
      %v2018 = vadd.f32 %v1900, %v2000
      %v2019 = vadd.f32 %v1901, %v2005
      %v2020 = vadd.f32 %v1902, %v2010
      %v2022 = vrot.slane %v1442, 1
      %v2023 = vrot.slane %v1443, 1
      %v2024 = vsel %vm282, %v2022, %v2023
      %s2025 = scalar_lea.vmem %s2, 104
      %v2026 = vld [vmem:[%s2025] sm:$0xff]
      %v2027 = vsel %vm309, %v2024, 0
      %2029 = vmatprep.subr.mxu0 0.0
      %2030 = vmatpush1.msra.mxu0 %v2026
      %2031 = vmatprep.subr.mxu0 0.0
      %2032 = vmatpush1.msra.mxu0 0.0
      %2033 = vmatprep.subr.mxu0 0.0
      %2034 = vmatpush1.msra.mxu0 0.0
      %2035 = vmatprep.subr.mxu0 0.0
      %2036 = vmatpush1.msra.mxu0 0.0
      %2037 = vmatprep.subr.mxu0 0.0
      %2038 = vmatpush1.msra.mxu0 0.0
      %2039 = vmatprep.subr.mxu0 0.0
      %2040 = vmatpush1.msra.mxu0 0.0
      %2041 = vmatprep.subr.mxu0 0.0
      %2042 = vmatpush1.msra.mxu0 0.0
      %2043 = vmatprep.subr.mxu0 0.0
      %2044 = vmatpush1.msra.mxu0 0.0
      %2045 = vmatprep.subr.mxu0 0.0
      %2046 = vmatpush1.msra.mxu0 0.0
      %2047 = vmatprep.subr.mxu0 0.0
      %2048 = vmatpush1.msra.mxu0 0.0
      %2049 = vmatprep.subr.mxu0 0.0
      %2050 = vmatpush1.msra.mxu0 0.0
      %2051 = vmatprep.subr.mxu0 0.0
      %2052 = vmatpush1.msra.mxu0 0.0
      %2053 = vmatprep.subr.mxu0 0.0
      %2054 = vmatpush1.msra.mxu0 0.0
      %2055 = vmatprep.subr.mxu0 0.0
      %2056 = vmatpush1.msra.mxu0 0.0
      %2057 = vmatprep.subr.mxu0 0.0
      %2058 = vmatpush1.msra.mxu0 0.0
      %2059 = vmatprep.subr.mxu0 0.0
      %2060 = vmatpush1.msra.mxu0 0.0
      %2061 = vmatprep.subr.mxu0 0.0
      %2062 = vmatpush1.msra.mxu0 0.0
      %2063 = vmatprep.subr.mxu0 0.0
      %2064 = vmatpush1.msra.mxu0 0.0
      %2065 = vmatprep.subr.mxu0 0.0
      %2066 = vmatpush1.msra.mxu0 0.0
      %2067 = vmatprep.subr.mxu0 0.0
      %2068 = vmatpush1.msra.mxu0 0.0
      %2069 = vmatprep.subr.mxu0 0.0
      %2070 = vmatpush1.msra.mxu0 0.0
      %2071 = vmatprep.subr.mxu0 0.0
      %2072 = vmatpush1.msra.mxu0 0.0
      %2073 = vmatprep.subr.mxu0 0.0
      %2074 = vmatpush1.msra.mxu0 0.0
      %2075 = vmatprep.subr.mxu0 0.0
      %2076 = vmatpush1.msra.mxu0 0.0
      %2077 = vmatprep.subr.mxu0 0.0
      %2078 = vmatpush1.msra.mxu0 0.0
      %2079 = vmatprep.subr.mxu0 0.0
      %2080 = vmatpush1.msra.mxu0 0.0
      %2081 = vmatprep.subr.mxu0 0.0
      %2082 = vmatpush1.msra.mxu0 0.0
      %2083 = vmatprep.subr.mxu0 0.0
      %2084 = vmatpush1.msra.mxu0 0.0
      %2085 = vmatprep.subr.mxu0 0.0
      %2086 = vmatpush1.msra.mxu0 0.0
      %2087 = vmatprep.subr.mxu0 0.0
      %2088 = vmatpush1.msra.mxu0 0.0
      %2089 = vmatprep.subr.mxu0 0.0
      %2090 = vmatpush1.msra.mxu0 0.0
      %2091 = vmatprep.subr.mxu0 0.0
      %2092 = vmatpush1.msra.mxu0 0.0
      %2093 = vmatprep.mubr.f32.mxu0 0.0
      %2094 = vmatmul.mubr.f32.gmra.mrb[0].mxu0 %v1621
      %v2095 = vpop.f32.mrb[0].mxu0
      %v2096 = vadd.f32 0.0, %v2095
      %v2097 = vpop.f32.mrb[0].mxu0
      %2098 = vmatprep.mubr.f32.mxu0 0.0
      %2099 = vmatmul.mubr.f32.gmra.mrb[0].mxu0 %v1623
      %v2100 = vpop.f32.mrb[0].mxu0
      %v2101 = vadd.f32 0.0, %v2100
      %v2102 = vpop.f32.mrb[0].mxu0
      %2103 = vmatprep.mubr.f32.mxu0 0.0
      %2104 = vmatmul.mubr.f32.gmra.mrb[0].mxu0 %v1625
      %v2105 = vpop.f32.mrb[0].mxu0
      %v2106 = vadd.f32 0.0, %v2105
      %v2107 = vpop.f32.mrb[0].mxu0
      %2108 = vmatprep.mubr.f32.mxu0 0.0
      %2109 = vmatmul.mubr.f32.gmra.mrb[0].mxu0 %v1627
      %v2110 = vpop.f32.mrb[0].mxu0
      %v2111 = vadd.f32 0.0, %v2110
      %v2112 = vpop.f32.mrb[0].mxu0
      %2113 = vmatprep.mubr.f32.mxu0 0.0
      %2114 = vmatmul.mubr.f32.gmra.mrb[0].mxu0 %v1629
      %v2115 = vpop.f32.mrb[0].mxu0
      %v2116 = vadd.f32 0.0, %v2115
      %v2117 = vpop.f32.mrb[0].mxu0
      %2118 = vmatprep.mubr.f32.mxu0 0.0
      %2119 = vmatmul.mubr.f32.gmra.mrb[0].mxu0 %v1631
      %v2120 = vpop.f32.mrb[0].mxu0
      %v2121 = vadd.f32 0.0, %v2120
      %v2122 = vpop.f32.mrb[0].mxu0
      %2123 = vmatprep.mubr.f32.mxu0 0.0
      %2124 = vmatmul.mubr.f32.gmra.mrb[0].mxu0 %v1633
      %v2125 = vpop.f32.mrb[0].mxu0
      %v2126 = vadd.f32 0.0, %v2125
      %v2127 = vpop.f32.mrb[0].mxu0
      %2128 = vmatprep.mubr.f32.mxu0 0.0
      %2129 = vmatmul.mubr.f32.gmra.mrb[0].mxu0 %v2027
      %v2130 = vpop.f32.mrb[0].mxu0
      %v2131 = vadd.f32 0.0, %v2130
      %v2132 = vpop.f32.mrb[0].mxu0
      %2133 = vdwg.mxu0
      %v2134 = vadd.f32 %v2013, %v2096
      %v2135 = vadd.f32 %v2014, %v2101
      %v2136 = vadd.f32 %v2015, %v2106
      %v2137 = vadd.f32 %v2016, %v2111
      %v2138 = vadd.f32 %v2017, %v2116
      %v2139 = vadd.f32 %v2018, %v2121
      %v2140 = vadd.f32 %v2019, %v2126
      %v2141 = vadd.f32 %v2020, %v2131
      %v2142 = vrot.slane %v1442, 2
      %v2143 = vrot.slane %v1443, 2
      %v2144 = vsel %vm552, %v2142, %v2143
      %s2145 = scalar_lea.vmem %s2, 112
      %v2146 = vld [vmem:[%s2145] sm:$0xff]
      %v2147 = vsel %vm309, %v2144, 0
      %2149 = vmatprep.subr.mxu0 0.0
      %2150 = vmatpush1.msra.mxu0 %v2146
      %2151 = vmatprep.subr.mxu0 0.0
      %2152 = vmatpush1.msra.mxu0 0.0
      %2153 = vmatprep.subr.mxu0 0.0
      %2154 = vmatpush1.msra.mxu0 0.0
      %2155 = vmatprep.subr.mxu0 0.0
      %2156 = vmatpush1.msra.mxu0 0.0
      %2157 = vmatprep.subr.mxu0 0.0
      %2158 = vmatpush1.msra.mxu0 0.0
      %2159 = vmatprep.subr.mxu0 0.0
      %2160 = vmatpush1.msra.mxu0 0.0
      %2161 = vmatprep.subr.mxu0 0.0
      %2162 = vmatpush1.msra.mxu0 0.0
      %2163 = vmatprep.subr.mxu0 0.0
      %2164 = vmatpush1.msra.mxu0 0.0
      %2165 = vmatprep.subr.mxu0 0.0
      %2166 = vmatpush1.msra.mxu0 0.0
      %2167 = vmatprep.subr.mxu0 0.0
      %2168 = vmatpush1.msra.mxu0 0.0
      %2169 = vmatprep.subr.mxu0 0.0
      %2170 = vmatpush1.msra.mxu0 0.0
      %2171 = vmatprep.subr.mxu0 0.0
      %2172 = vmatpush1.msra.mxu0 0.0
      %2173 = vmatprep.subr.mxu0 0.0
      %2174 = vmatpush1.msra.mxu0 0.0
      %2175 = vmatprep.subr.mxu0 0.0
      %2176 = vmatpush1.msra.mxu0 0.0
      %2177 = vmatprep.subr.mxu0 0.0
      %2178 = vmatpush1.msra.mxu0 0.0
      %2179 = vmatprep.subr.mxu0 0.0
      %2180 = vmatpush1.msra.mxu0 0.0
      %2181 = vmatprep.subr.mxu0 0.0
      %2182 = vmatpush1.msra.mxu0 0.0
      %2183 = vmatprep.subr.mxu0 0.0
      %2184 = vmatpush1.msra.mxu0 0.0
      %2185 = vmatprep.subr.mxu0 0.0
      %2186 = vmatpush1.msra.mxu0 0.0
      %2187 = vmatprep.subr.mxu0 0.0
      %2188 = vmatpush1.msra.mxu0 0.0
      %2189 = vmatprep.subr.mxu0 0.0
      %2190 = vmatpush1.msra.mxu0 0.0
      %2191 = vmatprep.subr.mxu0 0.0
      %2192 = vmatpush1.msra.mxu0 0.0
      %2193 = vmatprep.subr.mxu0 0.0
      %2194 = vmatpush1.msra.mxu0 0.0
      %2195 = vmatprep.subr.mxu0 0.0
      %2196 = vmatpush1.msra.mxu0 0.0
      %2197 = vmatprep.subr.mxu0 0.0
      %2198 = vmatpush1.msra.mxu0 0.0
      %2199 = vmatprep.subr.mxu0 0.0
      %2200 = vmatpush1.msra.mxu0 0.0
      %2201 = vmatprep.subr.mxu0 0.0
      %2202 = vmatpush1.msra.mxu0 0.0
      %2203 = vmatprep.subr.mxu0 0.0
      %2204 = vmatpush1.msra.mxu0 0.0
      %2205 = vmatprep.subr.mxu0 0.0
      %2206 = vmatpush1.msra.mxu0 0.0
      %2207 = vmatprep.subr.mxu0 0.0
      %2208 = vmatpush1.msra.mxu0 0.0
      %2209 = vmatprep.subr.mxu0 0.0
      %2210 = vmatpush1.msra.mxu0 0.0
      %2211 = vmatprep.subr.mxu0 0.0
      %2212 = vmatpush1.msra.mxu0 0.0
      %2213 = vmatprep.mubr.f32.mxu0 0.0
      %2214 = vmatmul.mubr.f32.gmra.mrb[0].mxu0 %v1776
      %v2215 = vpop.f32.mrb[0].mxu0
      %v2216 = vadd.f32 0.0, %v2215
      %v2217 = vpop.f32.mrb[0].mxu0
      %2218 = vmatprep.mubr.f32.mxu0 0.0
      %2219 = vmatmul.mubr.f32.gmra.mrb[0].mxu0 %v1778
      %v2220 = vpop.f32.mrb[0].mxu0
      %v2221 = vadd.f32 0.0, %v2220
      %v2222 = vpop.f32.mrb[0].mxu0
      %2223 = vmatprep.mubr.f32.mxu0 0.0
      %2224 = vmatmul.mubr.f32.gmra.mrb[0].mxu0 %v1780
      %v2225 = vpop.f32.mrb[0].mxu0
      %v2226 = vadd.f32 0.0, %v2225
      %v2227 = vpop.f32.mrb[0].mxu0
      %2228 = vmatprep.mubr.f32.mxu0 0.0
      %2229 = vmatmul.mubr.f32.gmra.mrb[0].mxu0 %v1782
      %v2230 = vpop.f32.mrb[0].mxu0
      %v2231 = vadd.f32 0.0, %v2230
      %v2232 = vpop.f32.mrb[0].mxu0
      %2233 = vmatprep.mubr.f32.mxu0 0.0
      %2234 = vmatmul.mubr.f32.gmra.mrb[0].mxu0 %v1784
      %v2235 = vpop.f32.mrb[0].mxu0
      %v2236 = vadd.f32 0.0, %v2235
      %v2237 = vpop.f32.mrb[0].mxu0
      %2238 = vmatprep.mubr.f32.mxu0 0.0
      %2239 = vmatmul.mubr.f32.gmra.mrb[0].mxu0 %v1786
      %v2240 = vpop.f32.mrb[0].mxu0
      %v2241 = vadd.f32 0.0, %v2240
      %v2242 = vpop.f32.mrb[0].mxu0
      %2243 = vmatprep.mubr.f32.mxu0 0.0
      %2244 = vmatmul.mubr.f32.gmra.mrb[0].mxu0 %v1788
      %v2245 = vpop.f32.mrb[0].mxu0
      %v2246 = vadd.f32 0.0, %v2245
      %v2247 = vpop.f32.mrb[0].mxu0
      %2248 = vmatprep.mubr.f32.mxu0 0.0
      %2249 = vmatmul.mubr.f32.gmra.mrb[0].mxu0 %v2147
      %v2250 = vpop.f32.mrb[0].mxu0
      %v2251 = vadd.f32 0.0, %v2250
      %v2252 = vpop.f32.mrb[0].mxu0
      %2253 = vdwg.mxu0
      %v2254 = vadd.f32 %v2134, %v2216
      %v2255 = vadd.f32 %v2135, %v2221
      %v2256 = vadd.f32 %v2136, %v2226
      %v2257 = vadd.f32 %v2137, %v2231
      %v2258 = vadd.f32 %v2138, %v2236
      %v2259 = vadd.f32 %v2139, %v2241
      %v2260 = vadd.f32 %v2140, %v2246
      %v2261 = vadd.f32 %v2141, %v2251
      %s2262 = scalar_lea.vmem %s2, 120
      %v2263 = vld [vmem:[%s2262] sm:$0xff]
      %v2265 = vsel %vm309, %v1444, 0
      %2267 = vmatprep.subr.mxu0 0.0
      %2268 = vmatpush1.msra.mxu0 %v2263
      %2269 = vmatprep.subr.mxu0 0.0
      %2270 = vmatpush1.msra.mxu0 0.0
      %2271 = vmatprep.subr.mxu0 0.0
      %2272 = vmatpush1.msra.mxu0 0.0
      %2273 = vmatprep.subr.mxu0 0.0
      %2274 = vmatpush1.msra.mxu0 0.0
      %2275 = vmatprep.subr.mxu0 0.0
      %2276 = vmatpush1.msra.mxu0 0.0
      %2277 = vmatprep.subr.mxu0 0.0
      %2278 = vmatpush1.msra.mxu0 0.0
      %2279 = vmatprep.subr.mxu0 0.0
      %2280 = vmatpush1.msra.mxu0 0.0
      %2281 = vmatprep.subr.mxu0 0.0
      %2282 = vmatpush1.msra.mxu0 0.0
      %2283 = vmatprep.subr.mxu0 0.0
      %2284 = vmatpush1.msra.mxu0 0.0
      %2285 = vmatprep.subr.mxu0 0.0
      %2286 = vmatpush1.msra.mxu0 0.0
      %2287 = vmatprep.subr.mxu0 0.0
      %2288 = vmatpush1.msra.mxu0 0.0
      %2289 = vmatprep.subr.mxu0 0.0
      %2290 = vmatpush1.msra.mxu0 0.0
      %2291 = vmatprep.subr.mxu0 0.0
      %2292 = vmatpush1.msra.mxu0 0.0
      %2293 = vmatprep.subr.mxu0 0.0
      %2294 = vmatpush1.msra.mxu0 0.0
      %2295 = vmatprep.subr.mxu0 0.0
      %2296 = vmatpush1.msra.mxu0 0.0
      %2297 = vmatprep.subr.mxu0 0.0
      %2298 = vmatpush1.msra.mxu0 0.0
      %2299 = vmatprep.subr.mxu0 0.0
      %2300 = vmatpush1.msra.mxu0 0.0
      %2301 = vmatprep.subr.mxu0 0.0
      %2302 = vmatpush1.msra.mxu0 0.0
      %2303 = vmatprep.subr.mxu0 0.0
      %2304 = vmatpush1.msra.mxu0 0.0
      %2305 = vmatprep.subr.mxu0 0.0
      %2306 = vmatpush1.msra.mxu0 0.0
      %2307 = vmatprep.subr.mxu0 0.0
      %2308 = vmatpush1.msra.mxu0 0.0
      %2309 = vmatprep.subr.mxu0 0.0
      %2310 = vmatpush1.msra.mxu0 0.0
      %2311 = vmatprep.subr.mxu0 0.0
      %2312 = vmatpush1.msra.mxu0 0.0
      %2313 = vmatprep.subr.mxu0 0.0
      %2314 = vmatpush1.msra.mxu0 0.0
      %2315 = vmatprep.subr.mxu0 0.0
      %2316 = vmatpush1.msra.mxu0 0.0
      %2317 = vmatprep.subr.mxu0 0.0
      %2318 = vmatpush1.msra.mxu0 0.0
      %2319 = vmatprep.subr.mxu0 0.0
      %2320 = vmatpush1.msra.mxu0 0.0
      %2321 = vmatprep.subr.mxu0 0.0
      %2322 = vmatpush1.msra.mxu0 0.0
      %2323 = vmatprep.subr.mxu0 0.0
      %2324 = vmatpush1.msra.mxu0 0.0
      %2325 = vmatprep.subr.mxu0 0.0
      %2326 = vmatpush1.msra.mxu0 0.0
      %2327 = vmatprep.subr.mxu0 0.0
      %2328 = vmatpush1.msra.mxu0 0.0
      %2329 = vmatprep.subr.mxu0 0.0
      %2330 = vmatpush1.msra.mxu0 0.0
      %2331 = vmatprep.mubr.f32.mxu0 0.0
      %2332 = vmatmul.mubr.f32.gmra.mrb[0].mxu0 %v1455
      %v2333 = vpop.f32.mrb[0].mxu0
      %v2334 = vadd.f32 0.0, %v2333
      %v2335 = vpop.f32.mrb[0].mxu0
      %2336 = vmatprep.mubr.f32.mxu0 0.0
      %2337 = vmatmul.mubr.f32.gmra.mrb[0].mxu0 %v1458
      %v2338 = vpop.f32.mrb[0].mxu0
      %v2339 = vadd.f32 0.0, %v2338
      %v2340 = vpop.f32.mrb[0].mxu0
      %2341 = vmatprep.mubr.f32.mxu0 0.0
      %2342 = vmatmul.mubr.f32.gmra.mrb[0].mxu0 %v1461
      %v2343 = vpop.f32.mrb[0].mxu0
      %v2344 = vadd.f32 0.0, %v2343
      %v2345 = vpop.f32.mrb[0].mxu0
      %2346 = vmatprep.mubr.f32.mxu0 0.0
      %2347 = vmatmul.mubr.f32.gmra.mrb[0].mxu0 %v1464
      %v2348 = vpop.f32.mrb[0].mxu0
      %v2349 = vadd.f32 0.0, %v2348
      %v2350 = vpop.f32.mrb[0].mxu0
      %2351 = vmatprep.mubr.f32.mxu0 0.0
      %2352 = vmatmul.mubr.f32.gmra.mrb[0].mxu0 %v1467
      %v2353 = vpop.f32.mrb[0].mxu0
      %v2354 = vadd.f32 0.0, %v2353
      %v2355 = vpop.f32.mrb[0].mxu0
      %2356 = vmatprep.mubr.f32.mxu0 0.0
      %2357 = vmatmul.mubr.f32.gmra.mrb[0].mxu0 %v1470
      %v2358 = vpop.f32.mrb[0].mxu0
      %v2359 = vadd.f32 0.0, %v2358
      %v2360 = vpop.f32.mrb[0].mxu0
      %2361 = vmatprep.mubr.f32.mxu0 0.0
      %2362 = vmatmul.mubr.f32.gmra.mrb[0].mxu0 %v1906
      %v2363 = vpop.f32.mrb[0].mxu0
      %v2364 = vadd.f32 0.0, %v2363
      %v2365 = vpop.f32.mrb[0].mxu0
      %2366 = vmatprep.mubr.f32.mxu0 0.0
      %2367 = vmatmul.mubr.f32.gmra.mrb[0].mxu0 %v2265
      %v2368 = vpop.f32.mrb[0].mxu0
      %v2369 = vadd.f32 0.0, %v2368
      %v2370 = vpop.f32.mrb[0].mxu0
      %2371 = vdwg.mxu0
      %v2372 = vadd.f32 %v2254, %v2334
      %v2373 = vadd.f32 %v2255, %v2339
      %v2374 = vadd.f32 %v2256, %v2344
      %v2375 = vadd.f32 %v2257, %v2349
      %v2376 = vadd.f32 %v2258, %v2354
      %v2377 = vadd.f32 %v2259, %v2359
      %v2378 = vadd.f32 %v2260, %v2364
      %v2379 = vadd.f32 %v2261, %v2369
      %v2381 = vrot.slane %v1444, 1
      %v2382 = vrot.slane %v1445, 1
      %v2383 = vsel %vm282, %v2381, %v2382
      %s2384 = scalar_lea.vmem %s2, 128
      %v2385 = vld [vmem:[%s2384] sm:$0xff]
      %v2386 = vsel %vm309, %v2383, 0
      %2388 = vmatprep.subr.mxu0 0.0
      %2389 = vmatpush1.msra.mxu0 %v2385
      %2390 = vmatprep.subr.mxu0 0.0
      %2391 = vmatpush1.msra.mxu0 0.0
      %2392 = vmatprep.subr.mxu0 0.0
      %2393 = vmatpush1.msra.mxu0 0.0
      %2394 = vmatprep.subr.mxu0 0.0
      %2395 = vmatpush1.msra.mxu0 0.0
      %2396 = vmatprep.subr.mxu0 0.0
      %2397 = vmatpush1.msra.mxu0 0.0
      %2398 = vmatprep.subr.mxu0 0.0
      %2399 = vmatpush1.msra.mxu0 0.0
      %2400 = vmatprep.subr.mxu0 0.0
      %2401 = vmatpush1.msra.mxu0 0.0
      %2402 = vmatprep.subr.mxu0 0.0
      %2403 = vmatpush1.msra.mxu0 0.0
      %2404 = vmatprep.subr.mxu0 0.0
      %2405 = vmatpush1.msra.mxu0 0.0
      %2406 = vmatprep.subr.mxu0 0.0
      %2407 = vmatpush1.msra.mxu0 0.0
      %2408 = vmatprep.subr.mxu0 0.0
      %2409 = vmatpush1.msra.mxu0 0.0
      %2410 = vmatprep.subr.mxu0 0.0
      %2411 = vmatpush1.msra.mxu0 0.0
      %2412 = vmatprep.subr.mxu0 0.0
      %2413 = vmatpush1.msra.mxu0 0.0
      %2414 = vmatprep.subr.mxu0 0.0
      %2415 = vmatpush1.msra.mxu0 0.0
      %2416 = vmatprep.subr.mxu0 0.0
      %2417 = vmatpush1.msra.mxu0 0.0
      %2418 = vmatprep.subr.mxu0 0.0
      %2419 = vmatpush1.msra.mxu0 0.0
      %2420 = vmatprep.subr.mxu0 0.0
      %2421 = vmatpush1.msra.mxu0 0.0
      %2422 = vmatprep.subr.mxu0 0.0
      %2423 = vmatpush1.msra.mxu0 0.0
      %2424 = vmatprep.subr.mxu0 0.0
      %2425 = vmatpush1.msra.mxu0 0.0
      %2426 = vmatprep.subr.mxu0 0.0
      %2427 = vmatpush1.msra.mxu0 0.0
      %2428 = vmatprep.subr.mxu0 0.0
      %2429 = vmatpush1.msra.mxu0 0.0
      %2430 = vmatprep.subr.mxu0 0.0
      %2431 = vmatpush1.msra.mxu0 0.0
      %2432 = vmatprep.subr.mxu0 0.0
      %2433 = vmatpush1.msra.mxu0 0.0
      %2434 = vmatprep.subr.mxu0 0.0
      %2435 = vmatpush1.msra.mxu0 0.0
      %2436 = vmatprep.subr.mxu0 0.0
      %2437 = vmatpush1.msra.mxu0 0.0
      %2438 = vmatprep.subr.mxu0 0.0
      %2439 = vmatpush1.msra.mxu0 0.0
      %2440 = vmatprep.subr.mxu0 0.0
      %2441 = vmatpush1.msra.mxu0 0.0
      %2442 = vmatprep.subr.mxu0 0.0
      %2443 = vmatpush1.msra.mxu0 0.0
      %2444 = vmatprep.subr.mxu0 0.0
      %2445 = vmatpush1.msra.mxu0 0.0
      %2446 = vmatprep.subr.mxu0 0.0
      %2447 = vmatpush1.msra.mxu0 0.0
      %2448 = vmatprep.subr.mxu0 0.0
      %2449 = vmatpush1.msra.mxu0 0.0
      %2450 = vmatprep.subr.mxu0 0.0
      %2451 = vmatpush1.msra.mxu0 0.0
      %2452 = vmatprep.mubr.f32.mxu0 0.0
      %2453 = vmatmul.mubr.f32.gmra.mrb[0].mxu0 %v1623
      %v2454 = vpop.f32.mrb[0].mxu0
      %v2455 = vadd.f32 0.0, %v2454
      %v2456 = vpop.f32.mrb[0].mxu0
      %2457 = vmatprep.mubr.f32.mxu0 0.0
      %2458 = vmatmul.mubr.f32.gmra.mrb[0].mxu0 %v1625
      %v2459 = vpop.f32.mrb[0].mxu0
      %v2460 = vadd.f32 0.0, %v2459
      %v2461 = vpop.f32.mrb[0].mxu0
      %2462 = vmatprep.mubr.f32.mxu0 0.0
      %2463 = vmatmul.mubr.f32.gmra.mrb[0].mxu0 %v1627
      %v2464 = vpop.f32.mrb[0].mxu0
      %v2465 = vadd.f32 0.0, %v2464
      %v2466 = vpop.f32.mrb[0].mxu0
      %2467 = vmatprep.mubr.f32.mxu0 0.0
      %2468 = vmatmul.mubr.f32.gmra.mrb[0].mxu0 %v1629
      %v2469 = vpop.f32.mrb[0].mxu0
      %v2470 = vadd.f32 0.0, %v2469
      %v2471 = vpop.f32.mrb[0].mxu0
      %2472 = vmatprep.mubr.f32.mxu0 0.0
      %2473 = vmatmul.mubr.f32.gmra.mrb[0].mxu0 %v1631
      %v2474 = vpop.f32.mrb[0].mxu0
      %v2475 = vadd.f32 0.0, %v2474
      %v2476 = vpop.f32.mrb[0].mxu0
      %2477 = vmatprep.mubr.f32.mxu0 0.0
      %2478 = vmatmul.mubr.f32.gmra.mrb[0].mxu0 %v1633
      %v2479 = vpop.f32.mrb[0].mxu0
      %v2480 = vadd.f32 0.0, %v2479
      %v2481 = vpop.f32.mrb[0].mxu0
      %2482 = vmatprep.mubr.f32.mxu0 0.0
      %2483 = vmatmul.mubr.f32.gmra.mrb[0].mxu0 %v2027
      %v2484 = vpop.f32.mrb[0].mxu0
      %v2485 = vadd.f32 0.0, %v2484
      %v2486 = vpop.f32.mrb[0].mxu0
      %2487 = vmatprep.mubr.f32.mxu0 0.0
      %2488 = vmatmul.mubr.f32.gmra.mrb[0].mxu0 %v2386
      %v2489 = vpop.f32.mrb[0].mxu0
      %v2490 = vadd.f32 0.0, %v2489
      %v2491 = vpop.f32.mrb[0].mxu0
      %2492 = vdwg.mxu0
      %v2493 = vadd.f32 %v2372, %v2455
      %v2494 = vadd.f32 %v2373, %v2460
      %v2495 = vadd.f32 %v2374, %v2465
      %v2496 = vadd.f32 %v2375, %v2470
      %v2497 = vadd.f32 %v2376, %v2475
      %v2498 = vadd.f32 %v2377, %v2480
      %v2499 = vadd.f32 %v2378, %v2485
      %v2500 = vadd.f32 %v2379, %v2490
      %v2501 = vrot.slane %v1444, 2
      %v2502 = vrot.slane %v1445, 2
      %v2503 = vsel %vm552, %v2501, %v2502
      %s2504 = scalar_lea.vmem %s2, 136
      %v2505 = vld [vmem:[%s2504] sm:$0xff]
      %v2506 = vsel %vm309, %v2503, 0
      %2508 = vmatprep.subr.mxu0 0.0
      %2509 = vmatpush1.msra.mxu0 %v2505
      %2510 = vmatprep.subr.mxu0 0.0
      %2511 = vmatpush1.msra.mxu0 0.0
      %2512 = vmatprep.subr.mxu0 0.0
      %2513 = vmatpush1.msra.mxu0 0.0
      %2514 = vmatprep.subr.mxu0 0.0
      %2515 = vmatpush1.msra.mxu0 0.0
      %2516 = vmatprep.subr.mxu0 0.0
      %2517 = vmatpush1.msra.mxu0 0.0
      %2518 = vmatprep.subr.mxu0 0.0
      %2519 = vmatpush1.msra.mxu0 0.0
      %2520 = vmatprep.subr.mxu0 0.0
      %2521 = vmatpush1.msra.mxu0 0.0
      %2522 = vmatprep.subr.mxu0 0.0
      %2523 = vmatpush1.msra.mxu0 0.0
      %2524 = vmatprep.subr.mxu0 0.0
      %2525 = vmatpush1.msra.mxu0 0.0
      %2526 = vmatprep.subr.mxu0 0.0
      %2527 = vmatpush1.msra.mxu0 0.0
      %2528 = vmatprep.subr.mxu0 0.0
      %2529 = vmatpush1.msra.mxu0 0.0
      %2530 = vmatprep.subr.mxu0 0.0
      %2531 = vmatpush1.msra.mxu0 0.0
      %2532 = vmatprep.subr.mxu0 0.0
      %2533 = vmatpush1.msra.mxu0 0.0
      %2534 = vmatprep.subr.mxu0 0.0
      %2535 = vmatpush1.msra.mxu0 0.0
      %2536 = vmatprep.subr.mxu0 0.0
      %2537 = vmatpush1.msra.mxu0 0.0
      %2538 = vmatprep.subr.mxu0 0.0
      %2539 = vmatpush1.msra.mxu0 0.0
      %2540 = vmatprep.subr.mxu0 0.0
      %2541 = vmatpush1.msra.mxu0 0.0
      %2542 = vmatprep.subr.mxu0 0.0
      %2543 = vmatpush1.msra.mxu0 0.0
      %2544 = vmatprep.subr.mxu0 0.0
      %2545 = vmatpush1.msra.mxu0 0.0
      %2546 = vmatprep.subr.mxu0 0.0
      %2547 = vmatpush1.msra.mxu0 0.0
      %2548 = vmatprep.subr.mxu0 0.0
      %2549 = vmatpush1.msra.mxu0 0.0
      %2550 = vmatprep.subr.mxu0 0.0
      %2551 = vmatpush1.msra.mxu0 0.0
      %2552 = vmatprep.subr.mxu0 0.0
      %2553 = vmatpush1.msra.mxu0 0.0
      %2554 = vmatprep.subr.mxu0 0.0
      %2555 = vmatpush1.msra.mxu0 0.0
      %2556 = vmatprep.subr.mxu0 0.0
      %2557 = vmatpush1.msra.mxu0 0.0
      %2558 = vmatprep.subr.mxu0 0.0
      %2559 = vmatpush1.msra.mxu0 0.0
      %2560 = vmatprep.subr.mxu0 0.0
      %2561 = vmatpush1.msra.mxu0 0.0
      %2562 = vmatprep.subr.mxu0 0.0
      %2563 = vmatpush1.msra.mxu0 0.0
      %2564 = vmatprep.subr.mxu0 0.0
      %2565 = vmatpush1.msra.mxu0 0.0
      %2566 = vmatprep.subr.mxu0 0.0
      %2567 = vmatpush1.msra.mxu0 0.0
      %2568 = vmatprep.subr.mxu0 0.0
      %2569 = vmatpush1.msra.mxu0 0.0
      %2570 = vmatprep.subr.mxu0 0.0
      %2571 = vmatpush1.msra.mxu0 0.0
      %2572 = vmatprep.mubr.f32.mxu0 0.0
      %2573 = vmatmul.mubr.f32.gmra.mrb[0].mxu0 %v1778
      %v2574 = vpop.f32.mrb[0].mxu0
      %v2575 = vadd.f32 0.0, %v2574
      %v2576 = vpop.f32.mrb[0].mxu0
      %2577 = vmatprep.mubr.f32.mxu0 0.0
      %2578 = vmatmul.mubr.f32.gmra.mrb[0].mxu0 %v1780
      %v2579 = vpop.f32.mrb[0].mxu0
      %v2580 = vadd.f32 0.0, %v2579
      %v2581 = vpop.f32.mrb[0].mxu0
      %2582 = vmatprep.mubr.f32.mxu0 0.0
      %2583 = vmatmul.mubr.f32.gmra.mrb[0].mxu0 %v1782
      %v2584 = vpop.f32.mrb[0].mxu0
      %v2585 = vadd.f32 0.0, %v2584
      %v2586 = vpop.f32.mrb[0].mxu0
      %2587 = vmatprep.mubr.f32.mxu0 0.0
      %2588 = vmatmul.mubr.f32.gmra.mrb[0].mxu0 %v1784
      %v2589 = vpop.f32.mrb[0].mxu0
      %v2590 = vadd.f32 0.0, %v2589
      %v2591 = vpop.f32.mrb[0].mxu0
      %2592 = vmatprep.mubr.f32.mxu0 0.0
      %2593 = vmatmul.mubr.f32.gmra.mrb[0].mxu0 %v1786
      %v2594 = vpop.f32.mrb[0].mxu0
      %v2595 = vadd.f32 0.0, %v2594
      %v2596 = vpop.f32.mrb[0].mxu0
      %2597 = vmatprep.mubr.f32.mxu0 0.0
      %2598 = vmatmul.mubr.f32.gmra.mrb[0].mxu0 %v1788
      %v2599 = vpop.f32.mrb[0].mxu0
      %v2600 = vadd.f32 0.0, %v2599
      %v2601 = vpop.f32.mrb[0].mxu0
      %2602 = vmatprep.mubr.f32.mxu0 0.0
      %2603 = vmatmul.mubr.f32.gmra.mrb[0].mxu0 %v2147
      %v2604 = vpop.f32.mrb[0].mxu0
      %v2605 = vadd.f32 0.0, %v2604
      %v2606 = vpop.f32.mrb[0].mxu0
      %2607 = vmatprep.mubr.f32.mxu0 0.0
      %2608 = vmatmul.mubr.f32.gmra.mrb[0].mxu0 %v2506
      %v2609 = vpop.f32.mrb[0].mxu0
      %v2610 = vadd.f32 0.0, %v2609
      %v2611 = vpop.f32.mrb[0].mxu0
      %2612 = vdwg.mxu0
      %v2613 = vadd.f32 %v2493, %v2575
      %v2614 = vadd.f32 %v2494, %v2580
      %v2615 = vadd.f32 %v2495, %v2585
      %v2616 = vadd.f32 %v2496, %v2590
      %v2617 = vadd.f32 %v2497, %v2595
      %v2618 = vadd.f32 %v2498, %v2600
      %v2619 = vadd.f32 %v2499, %v2605
      %v2620 = vadd.f32 %v2500, %v2610
      %v2621 = vld [vmem:[%s3] sm:$0x1]
      %v2623 = vlaneseq
      %v2624 = vshrl.u32 %v2623, 7
      %v2625 = vsub.s32 0, %v2624
      %v2626 = vrot.slane %v2621, %v2625
      %v2628 = vmul.f32 %v2613, %v2626
      %v2629 = vmul.f32 %v2614, %v2626
      %v2630 = vmul.f32 %v2615, %v2626
      %v2631 = vmul.f32 %v2616, %v2626
      %v2632 = vmul.f32 %v2617, %v2626
      %v2633 = vmul.f32 %v2618, %v2626
      %v2634 = vmul.f32 %v2619, %v2626
      %v2635 = vmul.f32 %v2620, %v2626
      %v2636 = vld [vmem:[%s4] sm:$0x1]
      %v2638 = vlaneseq
      %v2639 = vshrl.u32 %v2638, 7
      %v2640 = vsub.s32 0, %v2639
      %v2641 = vrot.slane %v2636, %v2640
      %v2643 = vadd.f32 %v2628, %v2641
      %v2644 = vadd.f32 %v2629, %v2641
      %v2645 = vadd.f32 %v2630, %v2641
      %v2646 = vadd.f32 %v2631, %v2641
      %v2647 = vadd.f32 %v2632, %v2641
      %v2648 = vadd.f32 %v2633, %v2641
      %v2649 = vadd.f32 %v2634, %v2641
      %v2650 = vadd.f32 %v2635, %v2641
      %v2651 = vmax.f32 %v2643, 0.0
      %v2652 = vmax.f32 %v2644, 0.0
      %v2653 = vmax.f32 %v2645, 0.0
      %v2654 = vmax.f32 %v2646, 0.0
      %v2655 = vmax.f32 %v2647, 0.0
      %v2656 = vmax.f32 %v2648, 0.0
      %v2657 = vmax.f32 %v2649, 0.0
      %v2658 = vmax.f32 %v2650, 0.0
      %2659 = vst.msk [vmem:[%s244] sm:$0xff] %vm309, %v2651
      %2660 = vst.msk [vmem:[%s244 + $0x8] sm:$0xff] %vm309, %v2652
      %2661 = vst.msk [vmem:[%s244 + $0x10] sm:$0xff] %vm309, %v2653
      %2662 = vst.msk [vmem:[%s244 + $0x18] sm:$0xff] %vm309, %v2654
      %2663 = vst.msk [vmem:[%s244 + $0x20] sm:$0xff] %vm309, %v2655
      %2664 = vst.msk [vmem:[%s244 + $0x28] sm:$0xff] %vm309, %v2656
      %2665 = vst.msk [vmem:[%s244 + $0x30] sm:$0xff] %vm309, %v2657
      %2666 = vst.msk [vmem:[%s244 + $0x38] sm:$0xff] %vm309, %v2658
      %p2667 = scmp.lt.s32.totalorder %s16, 1
      %s2668 = scalar_select %p2667, %s16, 1
      %s2669 = smul.addr %s2668, 8
      %s2670 = smul.addr %s2669, 8
      %s2671 = scalar_lea.vmem %s5, %s2670
      // Predicated region
      $region41: #{cssu_forward.11} parent=39 // pred_check
        %p2672 = pneg %p149
      $region42: #{cssu_forward.11} parent=39 // pred_check_branch
        %2674 = sbr.rel (%p2672) target = $region44
      $region43: #{cssu_forward.11} parent=39 // pred_region
        _
      $region44: #{cssu_forward.11} parent=39 // pred_fallthru
        _
    $region40: #{cssu_forward.11} parent=5 // pred_fallthru
      _
    %p2675 = scmp.le.s32.totalorder 2, %s11
    // Predicated region
    $region45: #{cssu_forward.11} parent=5 // pred_check
      %p2676 = pneg %p2675
    $region46: #{cssu_forward.11} parent=5 // pred_check_branch
      %2678 = sbr.rel (%p2676) target = $region48
    $region47: #{cssu_forward.11} parent=5 // pred_region
      %s2679 = ssub.s32 %s11, 2
      // Predicated region
      $region49: #{cssu_forward.11} parent=47 // pred_check
        %p2680 = pneg %p155
      $region50: #{cssu_forward.11} parent=47 // pred_check_branch
        %2682 = sbr.rel (%p2680) target = $region52
      $region51: #{cssu_forward.11} parent=47 // pred_region
        %p2683 = scmp.lt.s32.totalorder %s17, 1
        %s2684 = scalar_select %p2683, %s17, 1
        %s2685 = smul.addr %s2684, 8
        %s2686 = smul.addr %s2685, 8
        %s2687 = scalar_lea.vmem %s5, %s2686
      $region52: #{cssu_forward.11} parent=47 // pred_fallthru
        _
    $region48: #{cssu_forward.11} parent=5 // pred_fallthru
      _
  $region6: #{cssu_forward.11} parent=0 // loop_footer
    %s15 = sadd.s32 1, %s11
  $region7: #{cssu_forward.11} parent=0 // loop_footer_branch
    %10 = sbr.rel target = $region3
  $region8: #{cssu_forward.11} parent=0 // loop_exit
    _

// kernel: cssu_forward.15
$region0: #{cssu_forward.15}
  #allocation0 [shape = 'u32[]', space=smem, size = 0x4, offset = 0x4, fixed_abs, tag = 'smem constant byte address 0x4 - core index']
  #allocation1 [shape = 'u32[144,128]{1,0:T(1,128)}', space=vmem, size = 0x12000, scoped, tag = 'internal scratch']
  #allocation2 [shape = 'f32[10,10,8]{2,1,0:T(8,128)}', space=vmem, size = 0x14000, scoped, tag = 'scratch operand']
  #allocation3 [shape = 'f32[10,10,8]{2,1,0:T(8,128)}', space=vmem, size = 0x14000, scoped, tag = 'scratch operand']
  %s0 = inlined_call_operand.vmem [shape: f32[2,8,8,8], index: 0, kind: input, shape index: {}]
  %s1 = inlined_call_operand.vmem [shape: f32[2,8,8,8], index: 1, kind: input, shape index: {}]
  %s2 = inlined_call_operand.vmem [shape: f32[2,8,8,8], index: 2, kind: output, shape index: {}]
  %s3 = sld [smem:[#allocation0]]
  $region41: #{cssu_forward.15} parent=0
    _
  %s5 = ssub.s32 1, %s3
  %s6 = scalar_select 0, %s5, %s3
  loop: start=0, step=1, limit=4
  $region2: #{cssu_forward.15} parent=0 // loop_pre_header
    _
  $region3: #{cssu_forward.15} parent=0 // loop_header
    %s8 = sphi 0, %s12
    %p9 = scmp.ge.s32.totalorder %s8, 4
    %s18 = sphi 0, %s20
    %s21 = sphi 0, %s18
    %s22 = sphi 0, %s21
    %s38 = sphi 0, %s22
    %s44 = sphi 0, %s46
    %s47 = sphi 0, %s44
    %s48 = sphi 0, %s47
    %s64 = sphi 0, %s48
    %s70 = sphi 0, %s72
    %s73 = sphi 0, %s70
    %s74 = sphi 0, %s73
    %s90 = sphi 0, %s74
  $region4: #{cssu_forward.15} parent=0 // loop_header_branch
    %11 = sbr.rel (%p9) target = $region8
  $region5: #{cssu_forward.15} parent=0 // loop_body
    %s13 = ssub.s32 %s8, 1
    %s14 = ssub.s32 %s8, 2
    %s15 = sadd.s32 %s8, 1
    %s16 = ssub.s32 %s8, %s15
    %p17 = scmp.eq.s32.totalorder %s16, 0
    %s19 = sadd.s32 %s18, 1
    %s20 = scalar_select %p17, %s18, %s19
    %p23 = pneg %p17
    %p24 = scmp.eq.s32.totalorder %s8, 1
    %p25 = por %p23, %p24
    %p26 = scmp.ne.s32.totalorder %s18, %s21
    %p27 = scmp.eq.s32.totalorder %s8, 0
    %p28 = por %p26, %p27
    %p29 = scmp.ne.s32.totalorder %s18, %s21
    %p30 = scmp.eq.s32.totalorder %s13, 1
    %p31 = por %p29, %p30
    %p32 = scmp.ne.s32.totalorder %s21, %s22
    %p33 = scmp.eq.s32.totalorder %s13, 0
    %p34 = por %p32, %p33
    %p35 = scmp.ne.s32.totalorder %s21, %s22
    %p36 = scmp.eq.s32.totalorder %s14, 1
    %p37 = por %p35, %p36
    %p39 = scmp.ne.s32.totalorder %s22, %s38
    %p40 = scmp.eq.s32.totalorder %s14, 0
    %p41 = por %p39, %p40
    %s42 = ssub.s32 %s8, %s15
    %p43 = scmp.eq.s32.totalorder %s42, 0
    %s45 = sadd.s32 %s44, 1
    %s46 = scalar_select %p43, %s44, %s45
    %p49 = pneg %p43
    %p50 = scmp.eq.s32.totalorder %s8, 1
    %p51 = por %p49, %p50
    %p52 = scmp.ne.s32.totalorder %s44, %s47
    %p53 = scmp.eq.s32.totalorder %s8, 0
    %p54 = por %p52, %p53
    %p55 = scmp.ne.s32.totalorder %s44, %s47
    %p56 = scmp.eq.s32.totalorder %s13, 1
    %p57 = por %p55, %p56
    %p58 = scmp.ne.s32.totalorder %s47, %s48
    %p59 = scmp.eq.s32.totalorder %s13, 0
    %p60 = por %p58, %p59
    %p61 = scmp.ne.s32.totalorder %s47, %s48
    %p62 = scmp.eq.s32.totalorder %s14, 1
    %p63 = por %p61, %p62
    %p65 = scmp.ne.s32.totalorder %s48, %s64
    %p66 = scmp.eq.s32.totalorder %s14, 0
    %p67 = por %p65, %p66
    %s68 = ssub.s32 %s8, %s15
    %p69 = scmp.eq.s32.totalorder %s68, 0
    %s71 = sadd.s32 %s70, 1
    %s72 = scalar_select %p69, %s70, %s71
    %p75 = pneg %p69
    %p76 = scmp.eq.s32.totalorder %s8, 1
    %p77 = por %p75, %p76
    %p78 = scmp.ne.s32.totalorder %s70, %s73
    %p79 = scmp.eq.s32.totalorder %s8, 0
    %p80 = por %p78, %p79
    %p81 = scmp.ne.s32.totalorder %s70, %s73
    %p82 = scmp.eq.s32.totalorder %s13, 1
    %p83 = por %p81, %p82
    %p84 = scmp.ne.s32.totalorder %s73, %s74
    %p85 = scmp.eq.s32.totalorder %s13, 0
    %p86 = por %p84, %p85
    %p87 = scmp.ne.s32.totalorder %s73, %s74
    %p88 = scmp.eq.s32.totalorder %s14, 1
    %p89 = por %p87, %p88
    %p91 = scmp.ne.s32.totalorder %s74, %s90
    %p92 = scmp.eq.s32.totalorder %s14, 0
    %p93 = por %p91, %p92
    %p94 = scmp.le.s32.totalorder 1, %s8
    %p95 = scmp.lt.s32.totalorder %s8, 3
    %p96 = pnand %p94, %p95
    %p97 = pneg %p96
    // Predicated region
    $region9: #{cssu_forward.15} parent=5 // pred_check
      _
    $region10: #{cssu_forward.15} parent=5 // pred_check_branch
      %99 = sbr.rel (%p96) target = $region12
    $region11: #{cssu_forward.15} parent=5 // pred_region
      %s100 = ssub.s32 %s8, 1
    $region12: #{cssu_forward.15} parent=5 // pred_fallthru
      _
    %p101 = scmp.lt.s32.totalorder %s8, 2
    // Predicated region
    $region13: #{cssu_forward.15} parent=5 // pred_check
      %p102 = pneg %p101
    $region14: #{cssu_forward.15} parent=5 // pred_check_branch
      %104 = sbr.rel (%p102) target = $region16
    $region15: #{cssu_forward.15} parent=5 // pred_region
      // Predicated region
      $region17: #{cssu_forward.15} parent=15 // pred_check
        %p105 = pneg %p28
      $region18: #{cssu_forward.15} parent=15 // pred_check_branch
        %107 = sbr.rel (%p105) target = $region20
      $region19: #{cssu_forward.15} parent=15 // pred_region
        %p108 = scmp.lt.s32.totalorder %s8, 1
        %s109 = scalar_select %p108, %s8, 1
        %s110 = smul.addr %s109, 8
        %s111 = smul.addr %s110, 8
        %s112 = scalar_lea.vmem %s0, %s111
      $region20: #{cssu_forward.15} parent=15 // pred_fallthru
        _
      // Predicated region
      $region21: #{cssu_forward.15} parent=15 // pred_check
        %p113 = pneg %p54
      $region22: #{cssu_forward.15} parent=15 // pred_check_branch
        %115 = sbr.rel (%p113) target = $region24
      $region23: #{cssu_forward.15} parent=15 // pred_region
        %p116 = scmp.lt.s32.totalorder %s8, 1
        %s117 = scalar_select %p116, %s8, 1
        %s118 = smul.addr %s117, 8
        %s119 = smul.addr %s118, 8
        %s120 = scalar_lea.vmem %s1, %s119
      $region24: #{cssu_forward.15} parent=15 // pred_fallthru
        _
    $region16: #{cssu_forward.15} parent=5 // pred_fallthru
      _
    %p121 = scmp.le.s32.totalorder 1, %s8
    %p122 = scmp.lt.s32.totalorder %s8, 3
    %p123 = pnand %p121, %p122
    %p124 = pneg %p123
    // Predicated region
    $region25: #{cssu_forward.15} parent=5 // pred_check
      _
    $region26: #{cssu_forward.15} parent=5 // pred_check_branch
      %126 = sbr.rel (%p123) target = $region28
    $region27: #{cssu_forward.15} parent=5 // pred_region
      %s127 = ssub.s32 %s8, 1
      %p128 = scmp.lt.s32.totalorder %s13, 1
      %s129 = scalar_select %p128, %s13, 1
      %s130 = smul.addr %s129, 8
      %s131 = smul.addr %s130, 8
      %s132 = scalar_lea.vmem %s0, %s131
      %p133 = pneg %p34
      %p134 = pneg %p31
      %p135 = scmp.lt.s32.totalorder %s13, 1
      %s136 = scalar_select %p135, %s13, 1
      %s137 = smul.addr %s136, 8
      %s138 = smul.addr %s137, 8
      %s139 = scalar_lea.vmem %s1, %s138
      %p140 = pneg %p60
      %p141 = pneg %p57
      %p142 = pneg %p86
      %p143 = pneg %p83
      %p144 = scmp.lt.s32.totalorder %s13, 1
      %s145 = scalar_select %p144, %s13, 1
      %s146 = smul.addr %s145, 8
      %s147 = smul.addr %s146, 8
      %s148 = scalar_lea.vmem %s2, %s147
      %p149 = scmp.lt.s32.totalorder %s13, 1
      %s150 = scalar_select %p149, %s13, 1
      %s151 = smul.addr %s150, 8
      %s152 = smul.addr %s151, 8
      %s153 = scalar_lea.vmem %s0, %s152
      %p154 = scmp.lt.s32.totalorder %s13, 1
      %s155 = scalar_select %p154, %s13, 1
      %s156 = smul.addr %s155, 8
      %s157 = smul.addr %s156, 8
      %s158 = scalar_lea.vmem %s1, %s157
      %p159 = scmp.lt.s32.totalorder %s13, 1
      %s160 = scalar_select %p159, %s13, 1
      %s161 = smul.addr %s160, 8
      %s162 = smul.addr %s161, 8
      %s163 = scalar_lea.vmem %s2, %s162
      %v164 = vld [vmem:[%s153] sm:$0xff]
      %v165 = vld [vmem:[%s153 + $0x8] sm:$0xff]
      %v166 = vld [vmem:[%s153 + $0x10] sm:$0xff]
      %v167 = vld [vmem:[%s153 + $0x18] sm:$0xff]
      %v168 = vld [vmem:[%s153 + $0x20] sm:$0xff]
      %v169 = vld [vmem:[%s153 + $0x28] sm:$0xff]
      %v170 = vld [vmem:[%s153 + $0x30] sm:$0xff]
      %v171 = vld [vmem:[%s153 + $0x38] sm:$0xff]
      %vm172 = vcmask 64512
      %173 = vst.msk [vmem:[#allocation2] sm:$0xff] %vm172, 0.0
      %vm174 = vcmask 58368
      %175 = vst.msk [vmem:[#allocation2 + $0x8] sm:$0x3] %vm174, 0.0
      %176 = vst.msk [vmem:[#allocation2 + $0x10] sm:$0xff] %vm172, 0.0
      %177 = vst.msk [vmem:[#allocation2 + $0x18] sm:$0x3] %vm174, 0.0
      %178 = vst.msk [vmem:[#allocation2 + $0x20] sm:$0xff] %vm172, 0.0
      %179 = vst.msk [vmem:[#allocation2 + $0x28] sm:$0x3] %vm174, 0.0
      %180 = vst.msk [vmem:[#allocation2 + $0x30] sm:$0xff] %vm172, 0.0
      %181 = vst.msk [vmem:[#allocation2 + $0x38] sm:$0x3] %vm174, 0.0
      %182 = vst.msk [vmem:[#allocation2 + $0x40] sm:$0xff] %vm172, 0.0
      %183 = vst.msk [vmem:[#allocation2 + $0x48] sm:$0x3] %vm174, 0.0
      %184 = vst.msk [vmem:[#allocation2 + $0x50] sm:$0xff] %vm172, 0.0
      %185 = vst.msk [vmem:[#allocation2 + $0x58] sm:$0x3] %vm174, 0.0
      %186 = vst.msk [vmem:[#allocation2 + $0x60] sm:$0xff] %vm172, 0.0
      %187 = vst.msk [vmem:[#allocation2 + $0x68] sm:$0x3] %vm174, 0.0
      %188 = vst.msk [vmem:[#allocation2 + $0x70] sm:$0xff] %vm172, 0.0
      %189 = vst.msk [vmem:[#allocation2 + $0x78] sm:$0x3] %vm174, 0.0
      %190 = vst.msk [vmem:[#allocation2 + $0x80] sm:$0xff] %vm172, 0.0
      %191 = vst.msk [vmem:[#allocation2 + $0x88] sm:$0x3] %vm174, 0.0
      %192 = vst.msk [vmem:[#allocation2 + $0x90] sm:$0xff] %vm172, 0.0
      %193 = vst.msk [vmem:[#allocation2 + $0x98] sm:$0x3] %vm174, 0.0
      %194 = vst.msk [vmem:[#allocation3] sm:$0xff] %vm172, -3e+38
      %195 = vst.msk [vmem:[#allocation3 + $0x8] sm:$0x3] %vm174, -3e+38
      %196 = vst.msk [vmem:[#allocation3 + $0x10] sm:$0xff] %vm172, -3e+38
      %197 = vst.msk [vmem:[#allocation3 + $0x18] sm:$0x3] %vm174, -3e+38
      %198 = vst.msk [vmem:[#allocation3 + $0x20] sm:$0xff] %vm172, -3e+38
      %199 = vst.msk [vmem:[#allocation3 + $0x28] sm:$0x3] %vm174, -3e+38
      %200 = vst.msk [vmem:[#allocation3 + $0x30] sm:$0xff] %vm172, -3e+38
      %201 = vst.msk [vmem:[#allocation3 + $0x38] sm:$0x3] %vm174, -3e+38
      %202 = vst.msk [vmem:[#allocation3 + $0x40] sm:$0xff] %vm172, -3e+38
      %203 = vst.msk [vmem:[#allocation3 + $0x48] sm:$0x3] %vm174, -3e+38
      %204 = vst.msk [vmem:[#allocation3 + $0x50] sm:$0xff] %vm172, -3e+38
      %205 = vst.msk [vmem:[#allocation3 + $0x58] sm:$0x3] %vm174, -3e+38
      %206 = vst.msk [vmem:[#allocation3 + $0x60] sm:$0xff] %vm172, -3e+38
      %207 = vst.msk [vmem:[#allocation3 + $0x68] sm:$0x3] %vm174, -3e+38
      %208 = vst.msk [vmem:[#allocation3 + $0x70] sm:$0xff] %vm172, -3e+38
      %209 = vst.msk [vmem:[#allocation3 + $0x78] sm:$0x3] %vm174, -3e+38
      %210 = vst.msk [vmem:[#allocation3 + $0x80] sm:$0xff] %vm172, -3e+38
      %211 = vst.msk [vmem:[#allocation3 + $0x88] sm:$0x3] %vm174, -3e+38
      %212 = vst.msk [vmem:[#allocation3 + $0x90] sm:$0xff] %vm172, -3e+38
      %213 = vst.msk [vmem:[#allocation3 + $0x98] sm:$0x3] %vm174, -3e+38
      %s214 = scalar_lea.vmem [#allocation2], 16
      %215 = vst.msk [vmem:[%s214 + $0x1] sm:$0xff] %vm172, %v164
      %216 = vst.msk [vmem:[%s214 + $0x11] sm:$0xff] %vm172, %v165
      %217 = vst.msk [vmem:[%s214 + $0x21] sm:$0xff] %vm172, %v166
      %218 = vst.msk [vmem:[%s214 + $0x31] sm:$0xff] %vm172, %v167
      %219 = vst.msk [vmem:[%s214 + $0x41] sm:$0xff] %vm172, %v168
      %220 = vst.msk [vmem:[%s214 + $0x51] sm:$0xff] %vm172, %v169
      %221 = vst.msk [vmem:[%s214 + $0x61] sm:$0xff] %vm172, %v170
      %222 = vst.msk [vmem:[%s214 + $0x71] sm:$0xff] %vm172, %v171
      %s223 = scalar_lea.vmem [#allocation3], 16
      %224 = vst.msk [vmem:[%s223 + $0x1] sm:$0xff] %vm172, %v164
      %225 = vst.msk [vmem:[%s223 + $0x11] sm:$0xff] %vm172, %v165
      %226 = vst.msk [vmem:[%s223 + $0x21] sm:$0xff] %vm172, %v166
      %227 = vst.msk [vmem:[%s223 + $0x31] sm:$0xff] %vm172, %v167
      %228 = vst.msk [vmem:[%s223 + $0x41] sm:$0xff] %vm172, %v168
      %229 = vst.msk [vmem:[%s223 + $0x51] sm:$0xff] %vm172, %v169
      %230 = vst.msk [vmem:[%s223 + $0x61] sm:$0xff] %vm172, %v170
      %231 = vst.msk [vmem:[%s223 + $0x71] sm:$0xff] %vm172, %v171
      %v232 = vld [vmem:[#allocation2] sm:$0xff]
      %v233 = vld [vmem:[#allocation2 + $0x10] sm:$0xff]
      %v234 = vld [vmem:[#allocation2 + $0x20] sm:$0xff]
      %v235 = vld [vmem:[#allocation2 + $0x30] sm:$0xff]
      %v236 = vld [vmem:[#allocation2 + $0x40] sm:$0xff]
      %v237 = vld [vmem:[#allocation2 + $0x50] sm:$0xff]
      %v238 = vld [vmem:[#allocation2 + $0x60] sm:$0xff]
      %v239 = vld [vmem:[#allocation2 + $0x70] sm:$0xff]
      %v240 = vadd.f32 %v232, 0.0
      %v241 = vadd.f32 %v233, 0.0
      %v242 = vadd.f32 %v234, 0.0
      %v243 = vadd.f32 %v235, 0.0
      %v244 = vadd.f32 %v236, 0.0
      %v245 = vadd.f32 %v237, 0.0
      %v246 = vadd.f32 %v238, 0.0
      %v247 = vadd.f32 %v239, 0.0
      %v248 = vld [vmem:[#allocation3] sm:$0xff]
      %v249 = vld [vmem:[#allocation3 + $0x10] sm:$0xff]
      %v250 = vld [vmem:[#allocation3 + $0x20] sm:$0xff]
      %v251 = vld [vmem:[#allocation3 + $0x30] sm:$0xff]
      %v252 = vld [vmem:[#allocation3 + $0x40] sm:$0xff]
      %v253 = vld [vmem:[#allocation3 + $0x50] sm:$0xff]
      %v254 = vld [vmem:[#allocation3 + $0x60] sm:$0xff]
      %v255 = vld [vmem:[#allocation3 + $0x70] sm:$0xff]
      %v256 = vmax.f32 %v248, -3e+38
      %v257 = vmax.f32 %v249, -3e+38
      %v258 = vmax.f32 %v250, -3e+38
      %v259 = vmax.f32 %v251, -3e+38
      %v260 = vmax.f32 %v252, -3e+38
      %v261 = vmax.f32 %v253, -3e+38
      %v262 = vmax.f32 %v254, -3e+38
      %v263 = vmax.f32 %v255, -3e+38
      %v264 = vld [vmem:[#allocation2 + $0x1] sm:$0xff]
      %v265 = vld [vmem:[#allocation2 + $0x11] sm:$0xff]
      %v266 = vld [vmem:[#allocation2 + $0x21] sm:$0xff]
      %v267 = vld [vmem:[#allocation2 + $0x31] sm:$0xff]
      %v268 = vld [vmem:[#allocation2 + $0x41] sm:$0xff]
      %v269 = vld [vmem:[#allocation2 + $0x51] sm:$0xff]
      %v270 = vld [vmem:[#allocation2 + $0x61] sm:$0xff]
      %v271 = vld [vmem:[#allocation2 + $0x71] sm:$0xff]
      %v272 = vadd.f32 %v240, %v264
      %v273 = vadd.f32 %v241, %v265
      %v274 = vadd.f32 %v242, %v266
      %v275 = vadd.f32 %v243, %v267
      %v276 = vadd.f32 %v244, %v268
      %v277 = vadd.f32 %v245, %v269
      %v278 = vadd.f32 %v246, %v270
      %v279 = vadd.f32 %v247, %v271
      %v280 = vld [vmem:[#allocation3 + $0x1] sm:$0xff]
      %v281 = vld [vmem:[#allocation3 + $0x11] sm:$0xff]
      %v282 = vld [vmem:[#allocation3 + $0x21] sm:$0xff]
      %v283 = vld [vmem:[#allocation3 + $0x31] sm:$0xff]
      %v284 = vld [vmem:[#allocation3 + $0x41] sm:$0xff]
      %v285 = vld [vmem:[#allocation3 + $0x51] sm:$0xff]
      %v286 = vld [vmem:[#allocation3 + $0x61] sm:$0xff]
      %v287 = vld [vmem:[#allocation3 + $0x71] sm:$0xff]
      %v288 = vmax.f32 %v256, %v280
      %v289 = vmax.f32 %v257, %v281
      %v290 = vmax.f32 %v258, %v282
      %v291 = vmax.f32 %v259, %v283
      %v292 = vmax.f32 %v260, %v284
      %v293 = vmax.f32 %v261, %v285
      %v294 = vmax.f32 %v262, %v286
      %v295 = vmax.f32 %v263, %v287
      %v296 = vld [vmem:[#allocation2 + $0x2] sm:$0xff]
      %v297 = vld [vmem:[#allocation2 + $0x12] sm:$0xff]
      %v298 = vld [vmem:[#allocation2 + $0x22] sm:$0xff]
      %v299 = vld [vmem:[#allocation2 + $0x32] sm:$0xff]
      %v300 = vld [vmem:[#allocation2 + $0x42] sm:$0xff]
      %v301 = vld [vmem:[#allocation2 + $0x52] sm:$0xff]
      %v302 = vld [vmem:[#allocation2 + $0x62] sm:$0xff]
      %v303 = vld [vmem:[#allocation2 + $0x72] sm:$0xff]
      %v304 = vadd.f32 %v272, %v296
      %v305 = vadd.f32 %v273, %v297
      %v306 = vadd.f32 %v274, %v298
      %v307 = vadd.f32 %v275, %v299
      %v308 = vadd.f32 %v276, %v300
      %v309 = vadd.f32 %v277, %v301
      %v310 = vadd.f32 %v278, %v302
      %v311 = vadd.f32 %v279, %v303
      %v312 = vld [vmem:[#allocation3 + $0x2] sm:$0xff]
      %v313 = vld [vmem:[#allocation3 + $0x12] sm:$0xff]
      %v314 = vld [vmem:[#allocation3 + $0x22] sm:$0xff]
      %v315 = vld [vmem:[#allocation3 + $0x32] sm:$0xff]
      %v316 = vld [vmem:[#allocation3 + $0x42] sm:$0xff]
      %v317 = vld [vmem:[#allocation3 + $0x52] sm:$0xff]
      %v318 = vld [vmem:[#allocation3 + $0x62] sm:$0xff]
      %v319 = vld [vmem:[#allocation3 + $0x72] sm:$0xff]
      %v320 = vmax.f32 %v288, %v312
      %v321 = vmax.f32 %v289, %v313
      %v322 = vmax.f32 %v290, %v314
      %v323 = vmax.f32 %v291, %v315
      %v324 = vmax.f32 %v292, %v316
      %v325 = vmax.f32 %v293, %v317
      %v326 = vmax.f32 %v294, %v318
      %v327 = vmax.f32 %v295, %v319
      %v328 = vld [vmem:[%s214] sm:$0xff]
      %v329 = vld [vmem:[%s214 + $0x10] sm:$0xff]
      %v330 = vld [vmem:[%s214 + $0x20] sm:$0xff]
      %v331 = vld [vmem:[%s214 + $0x30] sm:$0xff]
      %v332 = vld [vmem:[%s214 + $0x40] sm:$0xff]
      %v333 = vld [vmem:[%s214 + $0x50] sm:$0xff]
      %v334 = vld [vmem:[%s214 + $0x60] sm:$0xff]
      %v335 = vld [vmem:[%s214 + $0x70] sm:$0xff]
      %v336 = vadd.f32 %v304, %v328
      %v337 = vadd.f32 %v305, %v329
      %v338 = vadd.f32 %v306, %v330
      %v339 = vadd.f32 %v307, %v331
      %v340 = vadd.f32 %v308, %v332
      %v341 = vadd.f32 %v309, %v333
      %v342 = vadd.f32 %v310, %v334
      %v343 = vadd.f32 %v311, %v335
      %v344 = vld [vmem:[%s223] sm:$0xff]
      %v345 = vld [vmem:[%s223 + $0x10] sm:$0xff]
      %v346 = vld [vmem:[%s223 + $0x20] sm:$0xff]
      %v347 = vld [vmem:[%s223 + $0x30] sm:$0xff]
      %v348 = vld [vmem:[%s223 + $0x40] sm:$0xff]
      %v349 = vld [vmem:[%s223 + $0x50] sm:$0xff]
      %v350 = vld [vmem:[%s223 + $0x60] sm:$0xff]
      %v351 = vld [vmem:[%s223 + $0x70] sm:$0xff]
      %v352 = vmax.f32 %v320, %v344
      %v353 = vmax.f32 %v321, %v345
      %v354 = vmax.f32 %v322, %v346
      %v355 = vmax.f32 %v323, %v347
      %v356 = vmax.f32 %v324, %v348
      %v357 = vmax.f32 %v325, %v349
      %v358 = vmax.f32 %v326, %v350
      %v359 = vmax.f32 %v327, %v351
      %v360 = vld [vmem:[%s214 + $0x1] sm:$0xff]
      %v361 = vld [vmem:[%s214 + $0x11] sm:$0xff]
      %v362 = vld [vmem:[%s214 + $0x21] sm:$0xff]
      %v363 = vld [vmem:[%s214 + $0x31] sm:$0xff]
      %v364 = vld [vmem:[%s214 + $0x41] sm:$0xff]
      %v365 = vld [vmem:[%s214 + $0x51] sm:$0xff]
      %v366 = vld [vmem:[%s214 + $0x61] sm:$0xff]
      %v367 = vld [vmem:[%s214 + $0x71] sm:$0xff]
      %v368 = vadd.f32 %v336, %v360
      %v369 = vadd.f32 %v337, %v361
      %v370 = vadd.f32 %v338, %v362
      %v371 = vadd.f32 %v339, %v363
      %v372 = vadd.f32 %v340, %v364
      %v373 = vadd.f32 %v341, %v365
      %v374 = vadd.f32 %v342, %v366
      %v375 = vadd.f32 %v343, %v367
      %v376 = vld [vmem:[%s223 + $0x1] sm:$0xff]
      %v377 = vld [vmem:[%s223 + $0x11] sm:$0xff]
      %v378 = vld [vmem:[%s223 + $0x21] sm:$0xff]
      %v379 = vld [vmem:[%s223 + $0x31] sm:$0xff]
      %v380 = vld [vmem:[%s223 + $0x41] sm:$0xff]
      %v381 = vld [vmem:[%s223 + $0x51] sm:$0xff]
      %v382 = vld [vmem:[%s223 + $0x61] sm:$0xff]
      %v383 = vld [vmem:[%s223 + $0x71] sm:$0xff]
      %v384 = vmax.f32 %v352, %v376
      %v385 = vmax.f32 %v353, %v377
      %v386 = vmax.f32 %v354, %v378
      %v387 = vmax.f32 %v355, %v379
      %v388 = vmax.f32 %v356, %v380
      %v389 = vmax.f32 %v357, %v381
      %v390 = vmax.f32 %v358, %v382
      %v391 = vmax.f32 %v359, %v383
      %v392 = vld [vmem:[%s214 + $0x2] sm:$0xff]
      %v393 = vld [vmem:[%s214 + $0x12] sm:$0xff]
      %v394 = vld [vmem:[%s214 + $0x22] sm:$0xff]
      %v395 = vld [vmem:[%s214 + $0x32] sm:$0xff]
      %v396 = vld [vmem:[%s214 + $0x42] sm:$0xff]
      %v397 = vld [vmem:[%s214 + $0x52] sm:$0xff]
      %v398 = vld [vmem:[%s214 + $0x62] sm:$0xff]
      %v399 = vld [vmem:[%s214 + $0x72] sm:$0xff]
      %v400 = vadd.f32 %v368, %v392
      %v401 = vadd.f32 %v369, %v393
      %v402 = vadd.f32 %v370, %v394
      %v403 = vadd.f32 %v371, %v395
      %v404 = vadd.f32 %v372, %v396
      %v405 = vadd.f32 %v373, %v397
      %v406 = vadd.f32 %v374, %v398
      %v407 = vadd.f32 %v375, %v399
      %v408 = vld [vmem:[%s223 + $0x2] sm:$0xff]
      %v409 = vld [vmem:[%s223 + $0x12] sm:$0xff]
      %v410 = vld [vmem:[%s223 + $0x22] sm:$0xff]
      %v411 = vld [vmem:[%s223 + $0x32] sm:$0xff]
      %v412 = vld [vmem:[%s223 + $0x42] sm:$0xff]
      %v413 = vld [vmem:[%s223 + $0x52] sm:$0xff]
      %v414 = vld [vmem:[%s223 + $0x62] sm:$0xff]
      %v415 = vld [vmem:[%s223 + $0x72] sm:$0xff]
      %v416 = vmax.f32 %v384, %v408
      %v417 = vmax.f32 %v385, %v409
      %v418 = vmax.f32 %v386, %v410
      %v419 = vmax.f32 %v387, %v411
      %v420 = vmax.f32 %v388, %v412
      %v421 = vmax.f32 %v389, %v413
      %v422 = vmax.f32 %v390, %v414
      %v423 = vmax.f32 %v391, %v415
      %s424 = scalar_lea.vmem [#allocation2], 32
      %v425 = vld [vmem:[%s424] sm:$0xff]
      %v426 = vld [vmem:[%s424 + $0x10] sm:$0xff]
      %v427 = vld [vmem:[%s424 + $0x20] sm:$0xff]
      %v428 = vld [vmem:[%s424 + $0x30] sm:$0xff]
      %v429 = vld [vmem:[%s424 + $0x40] sm:$0xff]
      %v430 = vld [vmem:[%s424 + $0x50] sm:$0xff]
      %v431 = vld [vmem:[%s424 + $0x60] sm:$0xff]
      %v432 = vld [vmem:[%s424 + $0x70] sm:$0xff]
      %v433 = vadd.f32 %v400, %v425
      %v434 = vadd.f32 %v401, %v426
      %v435 = vadd.f32 %v402, %v427
      %v436 = vadd.f32 %v403, %v428
      %v437 = vadd.f32 %v404, %v429
      %v438 = vadd.f32 %v405, %v430
      %v439 = vadd.f32 %v406, %v431
      %v440 = vadd.f32 %v407, %v432
      %s441 = scalar_lea.vmem [#allocation3], 32
      %v442 = vld [vmem:[%s441] sm:$0xff]
      %v443 = vld [vmem:[%s441 + $0x10] sm:$0xff]
      %v444 = vld [vmem:[%s441 + $0x20] sm:$0xff]
      %v445 = vld [vmem:[%s441 + $0x30] sm:$0xff]
      %v446 = vld [vmem:[%s441 + $0x40] sm:$0xff]
      %v447 = vld [vmem:[%s441 + $0x50] sm:$0xff]
      %v448 = vld [vmem:[%s441 + $0x60] sm:$0xff]
      %v449 = vld [vmem:[%s441 + $0x70] sm:$0xff]
      %v450 = vmax.f32 %v416, %v442
      %v451 = vmax.f32 %v417, %v443
      %v452 = vmax.f32 %v418, %v444
      %v453 = vmax.f32 %v419, %v445
      %v454 = vmax.f32 %v420, %v446
      %v455 = vmax.f32 %v421, %v447
      %v456 = vmax.f32 %v422, %v448
      %v457 = vmax.f32 %v423, %v449
      %v458 = vld [vmem:[%s424 + $0x1] sm:$0xff]
      %v459 = vld [vmem:[%s424 + $0x11] sm:$0xff]
      %v460 = vld [vmem:[%s424 + $0x21] sm:$0xff]
      %v461 = vld [vmem:[%s424 + $0x31] sm:$0xff]
      %v462 = vld [vmem:[%s424 + $0x41] sm:$0xff]
      %v463 = vld [vmem:[%s424 + $0x51] sm:$0xff]
      %v464 = vld [vmem:[%s424 + $0x61] sm:$0xff]
      %v465 = vld [vmem:[%s424 + $0x71] sm:$0xff]
      %v466 = vadd.f32 %v433, %v458
      %v467 = vadd.f32 %v434, %v459
      %v468 = vadd.f32 %v435, %v460
      %v469 = vadd.f32 %v436, %v461
      %v470 = vadd.f32 %v437, %v462
      %v471 = vadd.f32 %v438, %v463
      %v472 = vadd.f32 %v439, %v464
      %v473 = vadd.f32 %v440, %v465
      %v474 = vld [vmem:[%s441 + $0x1] sm:$0xff]
      %v475 = vld [vmem:[%s441 + $0x11] sm:$0xff]
      %v476 = vld [vmem:[%s441 + $0x21] sm:$0xff]
      %v477 = vld [vmem:[%s441 + $0x31] sm:$0xff]
      %v478 = vld [vmem:[%s441 + $0x41] sm:$0xff]
      %v479 = vld [vmem:[%s441 + $0x51] sm:$0xff]
      %v480 = vld [vmem:[%s441 + $0x61] sm:$0xff]
      %v481 = vld [vmem:[%s441 + $0x71] sm:$0xff]
      %v482 = vmax.f32 %v450, %v474
      %v483 = vmax.f32 %v451, %v475
      %v484 = vmax.f32 %v452, %v476
      %v485 = vmax.f32 %v453, %v477
      %v486 = vmax.f32 %v454, %v478
      %v487 = vmax.f32 %v455, %v479
      %v488 = vmax.f32 %v456, %v480
      %v489 = vmax.f32 %v457, %v481
      %v490 = vld [vmem:[%s424 + $0x2] sm:$0xff]
      %v491 = vld [vmem:[%s424 + $0x12] sm:$0xff]
      %v492 = vld [vmem:[%s424 + $0x22] sm:$0xff]
      %v493 = vld [vmem:[%s424 + $0x32] sm:$0xff]
      %v494 = vld [vmem:[%s424 + $0x42] sm:$0xff]
      %v495 = vld [vmem:[%s424 + $0x52] sm:$0xff]
      %v496 = vld [vmem:[%s424 + $0x62] sm:$0xff]
      %v497 = vld [vmem:[%s424 + $0x72] sm:$0xff]
      %v498 = vadd.f32 %v466, %v490
      %v499 = vadd.f32 %v467, %v491
      %v500 = vadd.f32 %v468, %v492
      %v501 = vadd.f32 %v469, %v493
      %v502 = vadd.f32 %v470, %v494
      %v503 = vadd.f32 %v471, %v495
      %v504 = vadd.f32 %v472, %v496
      %v505 = vadd.f32 %v473, %v497
      %v506 = vld [vmem:[%s441 + $0x2] sm:$0xff]
      %v507 = vld [vmem:[%s441 + $0x12] sm:$0xff]
      %v508 = vld [vmem:[%s441 + $0x22] sm:$0xff]
      %v509 = vld [vmem:[%s441 + $0x32] sm:$0xff]
      %v510 = vld [vmem:[%s441 + $0x42] sm:$0xff]
      %v511 = vld [vmem:[%s441 + $0x52] sm:$0xff]
      %v512 = vld [vmem:[%s441 + $0x62] sm:$0xff]
      %v513 = vld [vmem:[%s441 + $0x72] sm:$0xff]
      %v514 = vmax.f32 %v482, %v506
      %v515 = vmax.f32 %v483, %v507
      %v516 = vmax.f32 %v484, %v508
      %v517 = vmax.f32 %v485, %v509
      %v518 = vmax.f32 %v486, %v510
      %v519 = vmax.f32 %v487, %v511
      %v520 = vmax.f32 %v488, %v512
      %v521 = vmax.f32 %v489, %v513
      %v522 = vmul.f32 %v498, 0.11111111
      %v523 = vmul.f32 %v499, 0.11111111
      %v524 = vmul.f32 %v500, 0.11111111
      %v525 = vmul.f32 %v501, 0.11111111
      %v526 = vmul.f32 %v502, 0.11111111
      %v527 = vmul.f32 %v503, 0.11111111
      %v528 = vmul.f32 %v504, 0.11111111
      %v529 = vmul.f32 %v505, 0.11111111
      %v530 = vadd.f32 %v522, %v514
      %v531 = vadd.f32 %v523, %v515
      %v532 = vadd.f32 %v524, %v516
      %v533 = vadd.f32 %v525, %v517
      %v534 = vadd.f32 %v526, %v518
      %v535 = vadd.f32 %v527, %v519
      %v536 = vadd.f32 %v528, %v520
      %v537 = vadd.f32 %v529, %v521
      %v538 = vld [vmem:[%s158] sm:$0xff]
      %v539 = vld [vmem:[%s158 + $0x8] sm:$0xff]
      %v540 = vld [vmem:[%s158 + $0x10] sm:$0xff]
      %v541 = vld [vmem:[%s158 + $0x18] sm:$0xff]
      %v542 = vld [vmem:[%s158 + $0x20] sm:$0xff]
      %v543 = vld [vmem:[%s158 + $0x28] sm:$0xff]
      %v544 = vld [vmem:[%s158 + $0x30] sm:$0xff]
      %v545 = vld [vmem:[%s158 + $0x38] sm:$0xff]
      %v546 = vmul.f32 %v530, %v538
      %v547 = vmul.f32 %v531, %v539
      %v548 = vmul.f32 %v532, %v540
      %v549 = vmul.f32 %v533, %v541
      %v550 = vmul.f32 %v534, %v542
      %v551 = vmul.f32 %v535, %v543
      %v552 = vmul.f32 %v536, %v544
      %v553 = vmul.f32 %v537, %v545
      %554 = vst.msk [vmem:[%s163] sm:$0xff] %vm172, %v546
      %555 = vst.msk [vmem:[%s163 + $0x8] sm:$0xff] %vm172, %v547
      %556 = vst.msk [vmem:[%s163 + $0x10] sm:$0xff] %vm172, %v548
      %557 = vst.msk [vmem:[%s163 + $0x18] sm:$0xff] %vm172, %v549
      %558 = vst.msk [vmem:[%s163 + $0x20] sm:$0xff] %vm172, %v550
      %559 = vst.msk [vmem:[%s163 + $0x28] sm:$0xff] %vm172, %v551
      %560 = vst.msk [vmem:[%s163 + $0x30] sm:$0xff] %vm172, %v552
      %561 = vst.msk [vmem:[%s163 + $0x38] sm:$0xff] %vm172, %v553
      %p562 = scmp.lt.s32.totalorder %s13, 1
      %s563 = scalar_select %p562, %s13, 1
      %s564 = smul.addr %s563, 8
      %s565 = smul.addr %s564, 8
      %s566 = scalar_lea.vmem %s2, %s565
      // Predicated region
      $region29: #{cssu_forward.15} parent=27 // pred_check
        %p567 = pneg %p83
      $region30: #{cssu_forward.15} parent=27 // pred_check_branch
        %569 = sbr.rel (%p567) target = $region32
      $region31: #{cssu_forward.15} parent=27 // pred_region
        _
      $region32: #{cssu_forward.15} parent=27 // pred_fallthru
        _
    $region28: #{cssu_forward.15} parent=5 // pred_fallthru
      _
    %p570 = scmp.le.s32.totalorder 2, %s8
    // Predicated region
    $region33: #{cssu_forward.15} parent=5 // pred_check
      %p571 = pneg %p570
    $region34: #{cssu_forward.15} parent=5 // pred_check_branch
      %573 = sbr.rel (%p571) target = $region36
    $region35: #{cssu_forward.15} parent=5 // pred_region
      %s574 = ssub.s32 %s8, 2
      // Predicated region
      $region37: #{cssu_forward.15} parent=35 // pred_check
        %p575 = pneg %p89
      $region38: #{cssu_forward.15} parent=35 // pred_check_branch
        %577 = sbr.rel (%p575) target = $region40
      $region39: #{cssu_forward.15} parent=35 // pred_region
        %p578 = scmp.lt.s32.totalorder %s14, 1
        %s579 = scalar_select %p578, %s14, 1
        %s580 = smul.addr %s579, 8
        %s581 = smul.addr %s580, 8
        %s582 = scalar_lea.vmem %s2, %s581
      $region40: #{cssu_forward.15} parent=35 // pred_fallthru
        _
    $region36: #{cssu_forward.15} parent=5 // pred_fallthru
      _
  $region6: #{cssu_forward.15} parent=0 // loop_footer
    %s12 = sadd.s32 1, %s8
  $region7: #{cssu_forward.15} parent=0 // loop_footer_branch
    %7 = sbr.rel target = $region3
  $region8: #{cssu_forward.15} parent=0 // loop_exit
    _

// kernel: cssu_forward.14
$region0: #{cssu_forward.14}
  #allocation0 [shape = 'u32[]', space=smem, size = 0x4, offset = 0x4, fixed_abs, tag = 'smem constant byte address 0x4 - core index']
  #allocation1 [shape = 'u32[144,128]{1,0:T(1,128)}', space=vmem, size = 0x12000, scoped, tag = 'internal scratch']
  %s0 = inlined_call_operand.vmem [shape: f32[2,10,10,8], index: 0, kind: input, shape index: {}]
  %s1 = inlined_call_operand.vmem [shape: f32[9,8,8], index: 1, kind: input, shape index: {}]
  %s2 = inlined_call_operand.vmem [shape: f32[1,8], index: 2, kind: input, shape index: {}]
  %s3 = inlined_call_operand.vmem [shape: f32[1,8], index: 3, kind: input, shape index: {}]
  %s4 = inlined_call_operand.vmem [shape: f32[2,8,8,8], index: 4, kind: output, shape index: {}]
  %s5 = sld [smem:[#allocation0]]
  $region49: #{cssu_forward.14} parent=0
    _
  %s7 = ssub.s32 1, %s5
  %s8 = scalar_select 0, %s7, %s5
  loop: start=0, step=1, limit=4
  $region2: #{cssu_forward.14} parent=0 // loop_pre_header
    _
  $region3: #{cssu_forward.14} parent=0 // loop_header
    %s10 = sphi 0, %s14
    %p11 = scmp.ge.s32.totalorder %s10, 4
    %s20 = sphi 0, %s22
    %s23 = sphi 0, %s20
    %s24 = sphi 0, %s23
    %s40 = sphi 0, %s24
    %s44 = sphi 0, %s44
    %s46 = sphi 0, %s44
    %s47 = sphi 0, %s46
    %s61 = sphi 0, %s47
    %s65 = sphi 0, %s65
    %s67 = sphi 0, %s65
    %s68 = sphi 0, %s67
    %s82 = sphi 0, %s68
    %s86 = sphi 0, %s86
    %s88 = sphi 0, %s86
    %s89 = sphi 0, %s88
    %s103 = sphi 0, %s89
    %s109 = sphi 0, %s111
    %s112 = sphi 0, %s109
    %s113 = sphi 0, %s112
    %s129 = sphi 0, %s113
  $region4: #{cssu_forward.14} parent=0 // loop_header_branch
    %13 = sbr.rel (%p11) target = $region8
  $region5: #{cssu_forward.14} parent=0 // loop_body
    %s15 = ssub.s32 %s10, 1
    %s16 = ssub.s32 %s10, 2
    %s17 = sadd.s32 %s10, 1
    %s18 = ssub.s32 %s10, %s17
    %p19 = scmp.eq.s32.totalorder %s18, 0
    %s21 = sadd.s32 %s20, 1
    %s22 = scalar_select %p19, %s20, %s21
    %p25 = pneg %p19
    %p26 = scmp.eq.s32.totalorder %s10, 1
    %p27 = por %p25, %p26
    %p28 = scmp.ne.s32.totalorder %s20, %s23
    %p29 = scmp.eq.s32.totalorder %s10, 0
    %p30 = por %p28, %p29
    %p31 = scmp.ne.s32.totalorder %s20, %s23
    %p32 = scmp.eq.s32.totalorder %s15, 1
    %p33 = por %p31, %p32
    %p34 = scmp.ne.s32.totalorder %s23, %s24
    %p35 = scmp.eq.s32.totalorder %s15, 0
    %p36 = por %p34, %p35
    %p37 = scmp.ne.s32.totalorder %s23, %s24
    %p38 = scmp.eq.s32.totalorder %s16, 1
    %p39 = por %p37, %p38
    %p41 = scmp.ne.s32.totalorder %s24, %s40
    %p42 = scmp.eq.s32.totalorder %s16, 0
    %p43 = por %p41, %p42
    %s45 = sadd.s32 %s44, 1
    %p48 = scmp.eq.s32.totalorder %s10, 1
    %p49 = scmp.ne.s32.totalorder %s44, %s46
    %p50 = scmp.eq.s32.totalorder %s10, 0
    %p51 = por %p49, %p50
    %p52 = scmp.ne.s32.totalorder %s44, %s46
    %p53 = scmp.eq.s32.totalorder %s15, 1
    %p54 = por %p52, %p53
    %p55 = scmp.ne.s32.totalorder %s46, %s47
    %p56 = scmp.eq.s32.totalorder %s15, 0
    %p57 = por %p55, %p56
    %p58 = scmp.ne.s32.totalorder %s46, %s47
    %p59 = scmp.eq.s32.totalorder %s16, 1
    %p60 = por %p58, %p59
    %p62 = scmp.ne.s32.totalorder %s47, %s61
    %p63 = scmp.eq.s32.totalorder %s16, 0
    %p64 = por %p62, %p63
    %s66 = sadd.s32 %s65, 1
    %p69 = scmp.eq.s32.totalorder %s10, 1
    %p70 = scmp.ne.s32.totalorder %s65, %s67
    %p71 = scmp.eq.s32.totalorder %s10, 0
    %p72 = por %p70, %p71
    %p73 = scmp.ne.s32.totalorder %s65, %s67
    %p74 = scmp.eq.s32.totalorder %s15, 1
    %p75 = por %p73, %p74
    %p76 = scmp.ne.s32.totalorder %s67, %s68
    %p77 = scmp.eq.s32.totalorder %s15, 0
    %p78 = por %p76, %p77
    %p79 = scmp.ne.s32.totalorder %s67, %s68
    %p80 = scmp.eq.s32.totalorder %s16, 1
    %p81 = por %p79, %p80
    %p83 = scmp.ne.s32.totalorder %s68, %s82
    %p84 = scmp.eq.s32.totalorder %s16, 0
    %p85 = por %p83, %p84
    %s87 = sadd.s32 %s86, 1
    %p90 = scmp.eq.s32.totalorder %s10, 1
    %p91 = scmp.ne.s32.totalorder %s86, %s88
    %p92 = scmp.eq.s32.totalorder %s10, 0
    %p93 = por %p91, %p92
    %p94 = scmp.ne.s32.totalorder %s86, %s88
    %p95 = scmp.eq.s32.totalorder %s15, 1
    %p96 = por %p94, %p95
    %p97 = scmp.ne.s32.totalorder %s88, %s89
    %p98 = scmp.eq.s32.totalorder %s15, 0
    %p99 = por %p97, %p98
    %p100 = scmp.ne.s32.totalorder %s88, %s89
    %p101 = scmp.eq.s32.totalorder %s16, 1
    %p102 = por %p100, %p101
    %p104 = scmp.ne.s32.totalorder %s89, %s103
    %p105 = scmp.eq.s32.totalorder %s16, 0
    %p106 = por %p104, %p105
    %s107 = ssub.s32 %s10, %s17
    %p108 = scmp.eq.s32.totalorder %s107, 0
    %s110 = sadd.s32 %s109, 1
    %s111 = scalar_select %p108, %s109, %s110
    %p114 = pneg %p108
    %p115 = scmp.eq.s32.totalorder %s10, 1
    %p116 = por %p114, %p115
    %p117 = scmp.ne.s32.totalorder %s109, %s112
    %p118 = scmp.eq.s32.totalorder %s10, 0
    %p119 = por %p117, %p118
    %p120 = scmp.ne.s32.totalorder %s109, %s112
    %p121 = scmp.eq.s32.totalorder %s15, 1
    %p122 = por %p120, %p121
    %p123 = scmp.ne.s32.totalorder %s112, %s113
    %p124 = scmp.eq.s32.totalorder %s15, 0
    %p125 = por %p123, %p124
    %p126 = scmp.ne.s32.totalorder %s112, %s113
    %p127 = scmp.eq.s32.totalorder %s16, 1
    %p128 = por %p126, %p127
    %p130 = scmp.ne.s32.totalorder %s113, %s129
    %p131 = scmp.eq.s32.totalorder %s16, 0
    %p132 = por %p130, %p131
    %p133 = scmp.le.s32.totalorder 1, %s10
    %p134 = scmp.lt.s32.totalorder %s10, 3
    %p135 = pnand %p133, %p134
    %p136 = pneg %p135
    // Predicated region
    $region9: #{cssu_forward.14} parent=5 // pred_check
      _
    $region10: #{cssu_forward.14} parent=5 // pred_check_branch
      %138 = sbr.rel (%p135) target = $region12
    $region11: #{cssu_forward.14} parent=5 // pred_region
      %s139 = ssub.s32 %s10, 1
      // Predicated region
      $region13: #{cssu_forward.14} parent=11 // pred_check
        %p140 = pneg %p57
      $region14: #{cssu_forward.14} parent=11 // pred_check_branch
        %142 = sbr.rel (%p140) target = $region16
      $region15: #{cssu_forward.14} parent=11 // pred_region
        _
      $region16: #{cssu_forward.14} parent=11 // pred_fallthru
        _
      // Predicated region
      $region17: #{cssu_forward.14} parent=11 // pred_check
        %p143 = pneg %p78
      $region18: #{cssu_forward.14} parent=11 // pred_check_branch
        %145 = sbr.rel (%p143) target = $region20
      $region19: #{cssu_forward.14} parent=11 // pred_region
        _
      $region20: #{cssu_forward.14} parent=11 // pred_fallthru
        _
      // Predicated region
      $region21: #{cssu_forward.14} parent=11 // pred_check
        %p146 = pneg %p99
      $region22: #{cssu_forward.14} parent=11 // pred_check_branch
        %148 = sbr.rel (%p146) target = $region24
      $region23: #{cssu_forward.14} parent=11 // pred_region
        _
      $region24: #{cssu_forward.14} parent=11 // pred_fallthru
        _
    $region12: #{cssu_forward.14} parent=5 // pred_fallthru
      _
    %p149 = scmp.lt.s32.totalorder %s10, 2
    // Predicated region
    $region25: #{cssu_forward.14} parent=5 // pred_check
      %p150 = pneg %p149
    $region26: #{cssu_forward.14} parent=5 // pred_check_branch
      %152 = sbr.rel (%p150) target = $region28
    $region27: #{cssu_forward.14} parent=5 // pred_region
      // Predicated region
      $region29: #{cssu_forward.14} parent=27 // pred_check
        %p153 = pneg %p30
      $region30: #{cssu_forward.14} parent=27 // pred_check_branch
        %155 = sbr.rel (%p153) target = $region32
      $region31: #{cssu_forward.14} parent=27 // pred_region
        %p156 = scmp.lt.s32.totalorder %s10, 1
        %s157 = scalar_select %p156, %s10, 1
        %s158 = smul.addr %s157, 20
        %s159 = smul.addr %s158, 8
        %s160 = scalar_lea.vmem %s0, %s159
      $region32: #{cssu_forward.14} parent=27 // pred_fallthru
        _
    $region28: #{cssu_forward.14} parent=5 // pred_fallthru
      _
    %p161 = scmp.le.s32.totalorder 1, %s10
    %p162 = scmp.lt.s32.totalorder %s10, 3
    %p163 = pnand %p161, %p162
    %p164 = pneg %p163
    // Predicated region
    $region33: #{cssu_forward.14} parent=5 // pred_check
      _
    $region34: #{cssu_forward.14} parent=5 // pred_check_branch
      %166 = sbr.rel (%p163) target = $region36
    $region35: #{cssu_forward.14} parent=5 // pred_region
      %s167 = ssub.s32 %s10, 1
      %p168 = scmp.lt.s32.totalorder %s15, 1
      %s169 = scalar_select %p168, %s15, 1
      %s170 = smul.addr %s169, 20
      %s171 = smul.addr %s170, 8
      %s172 = scalar_lea.vmem %s0, %s171
      %p173 = pneg %p36
      %p174 = pneg %p33
      %p175 = pneg %p57
      %p176 = pneg %p54
      %p177 = pneg %p78
      %p178 = pneg %p75
      %p179 = pneg %p99
      %p180 = pneg %p96
      %p181 = pneg %p125
      %p182 = pneg %p122
      %p183 = scmp.lt.s32.totalorder %s15, 1
      %s184 = scalar_select %p183, %s15, 1
      %s185 = smul.addr %s184, 8
      %s186 = smul.addr %s185, 8
      %s187 = scalar_lea.vmem %s4, %s186
      %p188 = scmp.lt.s32.totalorder %s15, 1
      %s189 = scalar_select %p188, %s15, 1
      %s190 = smul.addr %s189, 20
      %s191 = smul.addr %s190, 8
      %s192 = scalar_lea.vmem %s0, %s191
      %p193 = scmp.lt.s32.totalorder %s15, 1
      %s194 = scalar_select %p193, %s15, 1
      %s195 = smul.addr %s194, 8
      %s196 = smul.addr %s195, 8
      %s197 = scalar_lea.vmem %s4, %s196
      %v198 = vld [vmem:[%s192] sm:$0xff]
      %v199 = vld [vmem:[%s192 + $0x8] sm:$0x3]
      %v200 = vld [vmem:[%s192 + $0x10] sm:$0xff]
      %v201 = vld [vmem:[%s192 + $0x18] sm:$0x3]
      %v202 = vld [vmem:[%s192 + $0x20] sm:$0xff]
      %v203 = vld [vmem:[%s192 + $0x28] sm:$0x3]
      %v204 = vld [vmem:[%s192 + $0x30] sm:$0xff]
      %v205 = vld [vmem:[%s192 + $0x38] sm:$0x3]
      %v206 = vld [vmem:[%s192 + $0x40] sm:$0xff]
      %v207 = vld [vmem:[%s192 + $0x48] sm:$0x3]
      %v208 = vld [vmem:[%s192 + $0x50] sm:$0xff]
      %v209 = vld [vmem:[%s192 + $0x58] sm:$0x3]
      %v210 = vld [vmem:[%s192 + $0x60] sm:$0xff]
      %v211 = vld [vmem:[%s192 + $0x68] sm:$0x3]
      %v212 = vld [vmem:[%s192 + $0x70] sm:$0xff]
      %v213 = vld [vmem:[%s192 + $0x78] sm:$0x3]
      %v214 = vld [vmem:[%s192 + $0x80] sm:$0xff]
      %v215 = vld [vmem:[%s192 + $0x88] sm:$0x3]
      %v216 = vld [vmem:[%s192 + $0x90] sm:$0xff]
      %v217 = vld [vmem:[%s192 + $0x98] sm:$0x3]
      %v218 = vld [vmem:[%s1] sm:$0xff]
      %vm235 = vcmask 1046528
      %v236 = vrot.slane %v198, 1
      %v237 = vrot.slane %v199, 1
      %v238 = vsel %vm235, %v236, %v237
      %v239 = vrot.slane %v200, 1
      %v240 = vrot.slane %v201, 1
      %v241 = vsel %vm235, %v239, %v240
      %v242 = vrot.slane %v202, 1
      %v243 = vrot.slane %v203, 1
      %v244 = vsel %vm235, %v242, %v243
      %v245 = vrot.slane %v204, 1
      %v246 = vrot.slane %v205, 1
      %v247 = vsel %vm235, %v245, %v246
      %v248 = vrot.slane %v206, 1
      %v249 = vrot.slane %v207, 1
      %v250 = vsel %vm235, %v248, %v249
      %v251 = vrot.slane %v208, 1
      %v252 = vrot.slane %v209, 1
      %v253 = vsel %vm235, %v251, %v252
      %v254 = vrot.slane %v210, 1
      %v255 = vrot.slane %v211, 1
      %v256 = vsel %vm235, %v254, %v255
      %v257 = vrot.slane %v212, 1
      %v258 = vrot.slane %v213, 1
      %v259 = vsel %vm235, %v257, %v258
      %s260 = scalar_lea.vmem %s1, 8
      %v261 = vld [vmem:[%s260] sm:$0xff]
      %vm262 = vcmask 64512
      %v263 = vsel %vm262, %v238, 0
      %v265 = vsel %vm262, %v241, 0
      %v267 = vsel %vm262, %v244, 0
      %v269 = vsel %vm262, %v247, 0
      %v271 = vsel %vm262, %v250, 0
      %v273 = vsel %vm262, %v253, 0
      %v275 = vsel %vm262, %v256, 0
      %v277 = vsel %vm262, %v259, 0
      %279 = vmatprep.subr.mxu0 0.0
      %280 = vmatpush1.msra.mxu0 %v261
      %281 = vmatprep.subr.mxu0 0.0
      %282 = vmatpush1.msra.mxu0 0.0
      %283 = vmatprep.subr.mxu0 0.0
      %284 = vmatpush1.msra.mxu0 0.0
      %285 = vmatprep.subr.mxu0 0.0
      %286 = vmatpush1.msra.mxu0 0.0
      %287 = vmatprep.subr.mxu0 0.0
      %288 = vmatpush1.msra.mxu0 0.0
      %289 = vmatprep.subr.mxu0 0.0
      %290 = vmatpush1.msra.mxu0 0.0
      %291 = vmatprep.subr.mxu0 0.0
      %292 = vmatpush1.msra.mxu0 0.0
      %293 = vmatprep.subr.mxu0 0.0
      %294 = vmatpush1.msra.mxu0 0.0
      %295 = vmatprep.subr.mxu0 0.0
      %296 = vmatpush1.msra.mxu0 0.0
      %297 = vmatprep.subr.mxu0 0.0
      %298 = vmatpush1.msra.mxu0 0.0
      %299 = vmatprep.subr.mxu0 0.0
      %300 = vmatpush1.msra.mxu0 0.0
      %301 = vmatprep.subr.mxu0 0.0
      %302 = vmatpush1.msra.mxu0 0.0
      %303 = vmatprep.subr.mxu0 0.0
      %304 = vmatpush1.msra.mxu0 0.0
      %305 = vmatprep.subr.mxu0 0.0
      %306 = vmatpush1.msra.mxu0 0.0
      %307 = vmatprep.subr.mxu0 0.0
      %308 = vmatpush1.msra.mxu0 0.0
      %309 = vmatprep.subr.mxu0 0.0
      %310 = vmatpush1.msra.mxu0 0.0
      %311 = vmatprep.subr.mxu0 0.0
      %312 = vmatpush1.msra.mxu0 0.0
      %313 = vmatprep.subr.mxu0 0.0
      %314 = vmatpush1.msra.mxu0 0.0
      %315 = vmatprep.subr.mxu0 0.0
      %316 = vmatpush1.msra.mxu0 0.0
      %317 = vmatprep.subr.mxu0 0.0
      %318 = vmatpush1.msra.mxu0 0.0
      %319 = vmatprep.subr.mxu0 0.0
      %320 = vmatpush1.msra.mxu0 0.0
      %321 = vmatprep.subr.mxu0 0.0
      %322 = vmatpush1.msra.mxu0 0.0
      %323 = vmatprep.subr.mxu0 0.0
      %324 = vmatpush1.msra.mxu0 0.0
      %325 = vmatprep.subr.mxu0 0.0
      %326 = vmatpush1.msra.mxu0 0.0
      %327 = vmatprep.subr.mxu0 0.0
      %328 = vmatpush1.msra.mxu0 0.0
      %329 = vmatprep.subr.mxu0 0.0
      %330 = vmatpush1.msra.mxu0 0.0
      %331 = vmatprep.subr.mxu0 0.0
      %332 = vmatpush1.msra.mxu0 0.0
      %333 = vmatprep.subr.mxu0 0.0
      %334 = vmatpush1.msra.mxu0 0.0
      %335 = vmatprep.subr.mxu0 0.0
      %336 = vmatpush1.msra.mxu0 0.0
      %337 = vmatprep.subr.mxu0 0.0
      %338 = vmatpush1.msra.mxu0 0.0
      %339 = vmatprep.subr.mxu0 0.0
      %340 = vmatpush1.msra.mxu0 0.0
      %341 = vmatprep.subr.mxu0 0.0
      %342 = vmatpush1.msra.mxu0 0.0
      %343 = vmatprep.mubr.f32.mxu0 0.0
      %344 = vmatmul.mubr.f32.gmra.mrb[0].mxu0 %v263
      %v345 = vpop.f32.mrb[0].mxu0
      %v346 = vadd.f32 0.0, %v345
      %v347 = vpop.f32.mrb[0].mxu0
      %348 = vmatprep.mubr.f32.mxu0 0.0
      %349 = vmatmul.mubr.f32.gmra.mrb[0].mxu0 %v265
      %v350 = vpop.f32.mrb[0].mxu0
      %v351 = vadd.f32 0.0, %v350
      %v352 = vpop.f32.mrb[0].mxu0
      %353 = vmatprep.mubr.f32.mxu0 0.0
      %354 = vmatmul.mubr.f32.gmra.mrb[0].mxu0 %v267
      %v355 = vpop.f32.mrb[0].mxu0
      %v356 = vadd.f32 0.0, %v355
      %v357 = vpop.f32.mrb[0].mxu0
      %358 = vmatprep.mubr.f32.mxu0 0.0
      %359 = vmatmul.mubr.f32.gmra.mrb[0].mxu0 %v269
      %v360 = vpop.f32.mrb[0].mxu0
      %v361 = vadd.f32 0.0, %v360
      %v362 = vpop.f32.mrb[0].mxu0
      %363 = vmatprep.mubr.f32.mxu0 0.0
      %364 = vmatmul.mubr.f32.gmra.mrb[0].mxu0 %v271
      %v365 = vpop.f32.mrb[0].mxu0
      %v366 = vadd.f32 0.0, %v365
      %v367 = vpop.f32.mrb[0].mxu0
      %368 = vmatprep.mubr.f32.mxu0 0.0
      %369 = vmatmul.mubr.f32.gmra.mrb[0].mxu0 %v273
      %v370 = vpop.f32.mrb[0].mxu0
      %v371 = vadd.f32 0.0, %v370
      %v372 = vpop.f32.mrb[0].mxu0
      %373 = vmatprep.mubr.f32.mxu0 0.0
      %374 = vmatmul.mubr.f32.gmra.mrb[0].mxu0 %v275
      %v375 = vpop.f32.mrb[0].mxu0
      %v376 = vadd.f32 0.0, %v375
      %v377 = vpop.f32.mrb[0].mxu0
      %378 = vmatprep.mubr.f32.mxu0 0.0
      %379 = vmatmul.mubr.f32.gmra.mrb[0].mxu0 %v277
      %v380 = vpop.f32.mrb[0].mxu0
      %v381 = vadd.f32 0.0, %v380
      %v382 = vpop.f32.mrb[0].mxu0
      %383 = vdwg.mxu0
      %v384 = vsel %vm262, %v198, 0
      %v386 = vsel %vm262, %v200, 0
      %v388 = vsel %vm262, %v202, 0
      %v390 = vsel %vm262, %v204, 0
      %v392 = vsel %vm262, %v206, 0
      %v394 = vsel %vm262, %v208, 0
      %v396 = vsel %vm262, %v210, 0
      %v398 = vsel %vm262, %v212, 0
      %400 = vmatprep.subr.mxu0 0.0
      %401 = vmatpush1.msra.mxu0 %v218
      %402 = vmatprep.subr.mxu0 0.0
      %403 = vmatpush1.msra.mxu0 0.0
      %404 = vmatprep.subr.mxu0 0.0
      %405 = vmatpush1.msra.mxu0 0.0
      %406 = vmatprep.subr.mxu0 0.0
      %407 = vmatpush1.msra.mxu0 0.0
      %408 = vmatprep.subr.mxu0 0.0
      %409 = vmatpush1.msra.mxu0 0.0
      %410 = vmatprep.subr.mxu0 0.0
      %411 = vmatpush1.msra.mxu0 0.0
      %412 = vmatprep.subr.mxu0 0.0
      %413 = vmatpush1.msra.mxu0 0.0
      %414 = vmatprep.subr.mxu0 0.0
      %415 = vmatpush1.msra.mxu0 0.0
      %416 = vmatprep.subr.mxu0 0.0
      %417 = vmatpush1.msra.mxu0 0.0
      %418 = vmatprep.subr.mxu0 0.0
      %419 = vmatpush1.msra.mxu0 0.0
      %420 = vmatprep.subr.mxu0 0.0
      %421 = vmatpush1.msra.mxu0 0.0
      %422 = vmatprep.subr.mxu0 0.0
      %423 = vmatpush1.msra.mxu0 0.0
      %424 = vmatprep.subr.mxu0 0.0
      %425 = vmatpush1.msra.mxu0 0.0
      %426 = vmatprep.subr.mxu0 0.0
      %427 = vmatpush1.msra.mxu0 0.0
      %428 = vmatprep.subr.mxu0 0.0
      %429 = vmatpush1.msra.mxu0 0.0
      %430 = vmatprep.subr.mxu0 0.0
      %431 = vmatpush1.msra.mxu0 0.0
      %432 = vmatprep.subr.mxu0 0.0
      %433 = vmatpush1.msra.mxu0 0.0
      %434 = vmatprep.subr.mxu0 0.0
      %435 = vmatpush1.msra.mxu0 0.0
      %436 = vmatprep.subr.mxu0 0.0
      %437 = vmatpush1.msra.mxu0 0.0
      %438 = vmatprep.subr.mxu0 0.0
      %439 = vmatpush1.msra.mxu0 0.0
      %440 = vmatprep.subr.mxu0 0.0
      %441 = vmatpush1.msra.mxu0 0.0
      %442 = vmatprep.subr.mxu0 0.0
      %443 = vmatpush1.msra.mxu0 0.0
      %444 = vmatprep.subr.mxu0 0.0
      %445 = vmatpush1.msra.mxu0 0.0
      %446 = vmatprep.subr.mxu0 0.0
      %447 = vmatpush1.msra.mxu0 0.0
      %448 = vmatprep.subr.mxu0 0.0
      %449 = vmatpush1.msra.mxu0 0.0
      %450 = vmatprep.subr.mxu0 0.0
      %451 = vmatpush1.msra.mxu0 0.0
      %452 = vmatprep.subr.mxu0 0.0
      %453 = vmatpush1.msra.mxu0 0.0
      %454 = vmatprep.subr.mxu0 0.0
      %455 = vmatpush1.msra.mxu0 0.0
      %456 = vmatprep.subr.mxu0 0.0
      %457 = vmatpush1.msra.mxu0 0.0
      %458 = vmatprep.subr.mxu0 0.0
      %459 = vmatpush1.msra.mxu0 0.0
      %460 = vmatprep.subr.mxu0 0.0
      %461 = vmatpush1.msra.mxu0 0.0
      %462 = vmatprep.subr.mxu0 0.0
      %463 = vmatpush1.msra.mxu0 0.0
      %464 = vmatprep.mubr.f32.mxu0 0.0
      %465 = vmatmul.mubr.f32.gmra.mrb[0].mxu0 %v384
      %v466 = vpop.f32.mrb[0].mxu0
      %v467 = vadd.f32 %v346, %v466
      %v468 = vpop.f32.mrb[0].mxu0
      %469 = vmatprep.mubr.f32.mxu0 0.0
      %470 = vmatmul.mubr.f32.gmra.mrb[0].mxu0 %v386
      %v471 = vpop.f32.mrb[0].mxu0
      %v472 = vadd.f32 %v351, %v471
      %v473 = vpop.f32.mrb[0].mxu0
      %474 = vmatprep.mubr.f32.mxu0 0.0
      %475 = vmatmul.mubr.f32.gmra.mrb[0].mxu0 %v388
      %v476 = vpop.f32.mrb[0].mxu0
      %v477 = vadd.f32 %v356, %v476
      %v478 = vpop.f32.mrb[0].mxu0
      %479 = vmatprep.mubr.f32.mxu0 0.0
      %480 = vmatmul.mubr.f32.gmra.mrb[0].mxu0 %v390
      %v481 = vpop.f32.mrb[0].mxu0
      %v482 = vadd.f32 %v361, %v481
      %v483 = vpop.f32.mrb[0].mxu0
      %484 = vmatprep.mubr.f32.mxu0 0.0
      %485 = vmatmul.mubr.f32.gmra.mrb[0].mxu0 %v392
      %v486 = vpop.f32.mrb[0].mxu0
      %v487 = vadd.f32 %v366, %v486
      %v488 = vpop.f32.mrb[0].mxu0
      %489 = vmatprep.mubr.f32.mxu0 0.0
      %490 = vmatmul.mubr.f32.gmra.mrb[0].mxu0 %v394
      %v491 = vpop.f32.mrb[0].mxu0
      %v492 = vadd.f32 %v371, %v491
      %v493 = vpop.f32.mrb[0].mxu0
      %494 = vmatprep.mubr.f32.mxu0 0.0
      %495 = vmatmul.mubr.f32.gmra.mrb[0].mxu0 %v396
      %v496 = vpop.f32.mrb[0].mxu0
      %v497 = vadd.f32 %v376, %v496
      %v498 = vpop.f32.mrb[0].mxu0
      %499 = vmatprep.mubr.f32.mxu0 0.0
      %500 = vmatmul.mubr.f32.gmra.mrb[0].mxu0 %v398
      %v501 = vpop.f32.mrb[0].mxu0
      %v502 = vadd.f32 %v381, %v501
      %v503 = vpop.f32.mrb[0].mxu0
      %504 = vdwg.mxu0
      %vm505 = vcmask 1045504
      %v506 = vrot.slane %v198, 2
      %v507 = vrot.slane %v199, 2
      %v508 = vsel %vm505, %v506, %v507
      %v509 = vrot.slane %v200, 2
      %v510 = vrot.slane %v201, 2
      %v511 = vsel %vm505, %v509, %v510
      %v512 = vrot.slane %v202, 2
      %v513 = vrot.slane %v203, 2
      %v514 = vsel %vm505, %v512, %v513
      %v515 = vrot.slane %v204, 2
      %v516 = vrot.slane %v205, 2
      %v517 = vsel %vm505, %v515, %v516
      %v518 = vrot.slane %v206, 2
      %v519 = vrot.slane %v207, 2
      %v520 = vsel %vm505, %v518, %v519
      %v521 = vrot.slane %v208, 2
      %v522 = vrot.slane %v209, 2
      %v523 = vsel %vm505, %v521, %v522
      %v524 = vrot.slane %v210, 2
      %v525 = vrot.slane %v211, 2
      %v526 = vsel %vm505, %v524, %v525
      %v527 = vrot.slane %v212, 2
      %v528 = vrot.slane %v213, 2
      %v529 = vsel %vm505, %v527, %v528
      %s530 = scalar_lea.vmem %s1, 16
      %v531 = vld [vmem:[%s530] sm:$0xff]
      %v532 = vsel %vm262, %v508, 0
      %v534 = vsel %vm262, %v511, 0
      %v536 = vsel %vm262, %v514, 0
      %v538 = vsel %vm262, %v517, 0
      %v540 = vsel %vm262, %v520, 0
      %v542 = vsel %vm262, %v523, 0
      %v544 = vsel %vm262, %v526, 0
      %v546 = vsel %vm262, %v529, 0
      %548 = vmatprep.subr.mxu0 0.0
      %549 = vmatpush1.msra.mxu0 %v531
      %550 = vmatprep.subr.mxu0 0.0
      %551 = vmatpush1.msra.mxu0 0.0
      %552 = vmatprep.subr.mxu0 0.0
      %553 = vmatpush1.msra.mxu0 0.0
      %554 = vmatprep.subr.mxu0 0.0
      %555 = vmatpush1.msra.mxu0 0.0
      %556 = vmatprep.subr.mxu0 0.0
      %557 = vmatpush1.msra.mxu0 0.0
      %558 = vmatprep.subr.mxu0 0.0
      %559 = vmatpush1.msra.mxu0 0.0
      %560 = vmatprep.subr.mxu0 0.0
      %561 = vmatpush1.msra.mxu0 0.0
      %562 = vmatprep.subr.mxu0 0.0
      %563 = vmatpush1.msra.mxu0 0.0
      %564 = vmatprep.subr.mxu0 0.0
      %565 = vmatpush1.msra.mxu0 0.0
      %566 = vmatprep.subr.mxu0 0.0
      %567 = vmatpush1.msra.mxu0 0.0
      %568 = vmatprep.subr.mxu0 0.0
      %569 = vmatpush1.msra.mxu0 0.0
      %570 = vmatprep.subr.mxu0 0.0
      %571 = vmatpush1.msra.mxu0 0.0
      %572 = vmatprep.subr.mxu0 0.0
      %573 = vmatpush1.msra.mxu0 0.0
      %574 = vmatprep.subr.mxu0 0.0
      %575 = vmatpush1.msra.mxu0 0.0
      %576 = vmatprep.subr.mxu0 0.0
      %577 = vmatpush1.msra.mxu0 0.0
      %578 = vmatprep.subr.mxu0 0.0
      %579 = vmatpush1.msra.mxu0 0.0
      %580 = vmatprep.subr.mxu0 0.0
      %581 = vmatpush1.msra.mxu0 0.0
      %582 = vmatprep.subr.mxu0 0.0
      %583 = vmatpush1.msra.mxu0 0.0
      %584 = vmatprep.subr.mxu0 0.0
      %585 = vmatpush1.msra.mxu0 0.0
      %586 = vmatprep.subr.mxu0 0.0
      %587 = vmatpush1.msra.mxu0 0.0
      %588 = vmatprep.subr.mxu0 0.0
      %589 = vmatpush1.msra.mxu0 0.0
      %590 = vmatprep.subr.mxu0 0.0
      %591 = vmatpush1.msra.mxu0 0.0
      %592 = vmatprep.subr.mxu0 0.0
      %593 = vmatpush1.msra.mxu0 0.0
      %594 = vmatprep.subr.mxu0 0.0
      %595 = vmatpush1.msra.mxu0 0.0
      %596 = vmatprep.subr.mxu0 0.0
      %597 = vmatpush1.msra.mxu0 0.0
      %598 = vmatprep.subr.mxu0 0.0
      %599 = vmatpush1.msra.mxu0 0.0
      %600 = vmatprep.subr.mxu0 0.0
      %601 = vmatpush1.msra.mxu0 0.0
      %602 = vmatprep.subr.mxu0 0.0
      %603 = vmatpush1.msra.mxu0 0.0
      %604 = vmatprep.subr.mxu0 0.0
      %605 = vmatpush1.msra.mxu0 0.0
      %606 = vmatprep.subr.mxu0 0.0
      %607 = vmatpush1.msra.mxu0 0.0
      %608 = vmatprep.subr.mxu0 0.0
      %609 = vmatpush1.msra.mxu0 0.0
      %610 = vmatprep.subr.mxu0 0.0
      %611 = vmatpush1.msra.mxu0 0.0
      %612 = vmatprep.mubr.f32.mxu0 0.0
      %613 = vmatmul.mubr.f32.gmra.mrb[0].mxu0 %v532
      %v614 = vpop.f32.mrb[0].mxu0
      %v615 = vadd.f32 0.0, %v614
      %v616 = vpop.f32.mrb[0].mxu0
      %617 = vmatprep.mubr.f32.mxu0 0.0
      %618 = vmatmul.mubr.f32.gmra.mrb[0].mxu0 %v534
      %v619 = vpop.f32.mrb[0].mxu0
      %v620 = vadd.f32 0.0, %v619
      %v621 = vpop.f32.mrb[0].mxu0
      %622 = vmatprep.mubr.f32.mxu0 0.0
      %623 = vmatmul.mubr.f32.gmra.mrb[0].mxu0 %v536
      %v624 = vpop.f32.mrb[0].mxu0
      %v625 = vadd.f32 0.0, %v624
      %v626 = vpop.f32.mrb[0].mxu0
      %627 = vmatprep.mubr.f32.mxu0 0.0
      %628 = vmatmul.mubr.f32.gmra.mrb[0].mxu0 %v538
      %v629 = vpop.f32.mrb[0].mxu0
      %v630 = vadd.f32 0.0, %v629
      %v631 = vpop.f32.mrb[0].mxu0
      %632 = vmatprep.mubr.f32.mxu0 0.0
      %633 = vmatmul.mubr.f32.gmra.mrb[0].mxu0 %v540
      %v634 = vpop.f32.mrb[0].mxu0
      %v635 = vadd.f32 0.0, %v634
      %v636 = vpop.f32.mrb[0].mxu0
      %637 = vmatprep.mubr.f32.mxu0 0.0
      %638 = vmatmul.mubr.f32.gmra.mrb[0].mxu0 %v542
      %v639 = vpop.f32.mrb[0].mxu0
      %v640 = vadd.f32 0.0, %v639
      %v641 = vpop.f32.mrb[0].mxu0
      %642 = vmatprep.mubr.f32.mxu0 0.0
      %643 = vmatmul.mubr.f32.gmra.mrb[0].mxu0 %v544
      %v644 = vpop.f32.mrb[0].mxu0
      %v645 = vadd.f32 0.0, %v644
      %v646 = vpop.f32.mrb[0].mxu0
      %647 = vmatprep.mubr.f32.mxu0 0.0
      %648 = vmatmul.mubr.f32.gmra.mrb[0].mxu0 %v546
      %v649 = vpop.f32.mrb[0].mxu0
      %v650 = vadd.f32 0.0, %v649
      %v651 = vpop.f32.mrb[0].mxu0
      %652 = vdwg.mxu0
      %v653 = vadd.f32 %v467, %v615
      %v654 = vadd.f32 %v472, %v620
      %v655 = vadd.f32 %v477, %v625
      %v656 = vadd.f32 %v482, %v630
      %v657 = vadd.f32 %v487, %v635
      %v658 = vadd.f32 %v492, %v640
      %v659 = vadd.f32 %v497, %v645
      %v660 = vadd.f32 %v502, %v650
      %s661 = scalar_lea.vmem %s1, 24
      %v662 = vld [vmem:[%s661] sm:$0xff]
      %v664 = vsel %vm262, %v214, 0
      %666 = vmatprep.subr.mxu0 0.0
      %667 = vmatpush1.msra.mxu0 %v662
      %668 = vmatprep.subr.mxu0 0.0
      %669 = vmatpush1.msra.mxu0 0.0
      %670 = vmatprep.subr.mxu0 0.0
      %671 = vmatpush1.msra.mxu0 0.0
      %672 = vmatprep.subr.mxu0 0.0
      %673 = vmatpush1.msra.mxu0 0.0
      %674 = vmatprep.subr.mxu0 0.0
      %675 = vmatpush1.msra.mxu0 0.0
      %676 = vmatprep.subr.mxu0 0.0
      %677 = vmatpush1.msra.mxu0 0.0
      %678 = vmatprep.subr.mxu0 0.0
      %679 = vmatpush1.msra.mxu0 0.0
      %680 = vmatprep.subr.mxu0 0.0
      %681 = vmatpush1.msra.mxu0 0.0
      %682 = vmatprep.subr.mxu0 0.0
      %683 = vmatpush1.msra.mxu0 0.0
      %684 = vmatprep.subr.mxu0 0.0
      %685 = vmatpush1.msra.mxu0 0.0
      %686 = vmatprep.subr.mxu0 0.0
      %687 = vmatpush1.msra.mxu0 0.0
      %688 = vmatprep.subr.mxu0 0.0
      %689 = vmatpush1.msra.mxu0 0.0
      %690 = vmatprep.subr.mxu0 0.0
      %691 = vmatpush1.msra.mxu0 0.0
      %692 = vmatprep.subr.mxu0 0.0
      %693 = vmatpush1.msra.mxu0 0.0
      %694 = vmatprep.subr.mxu0 0.0
      %695 = vmatpush1.msra.mxu0 0.0
      %696 = vmatprep.subr.mxu0 0.0
      %697 = vmatpush1.msra.mxu0 0.0
      %698 = vmatprep.subr.mxu0 0.0
      %699 = vmatpush1.msra.mxu0 0.0
      %700 = vmatprep.subr.mxu0 0.0
      %701 = vmatpush1.msra.mxu0 0.0
      %702 = vmatprep.subr.mxu0 0.0
      %703 = vmatpush1.msra.mxu0 0.0
      %704 = vmatprep.subr.mxu0 0.0
      %705 = vmatpush1.msra.mxu0 0.0
      %706 = vmatprep.subr.mxu0 0.0
      %707 = vmatpush1.msra.mxu0 0.0
      %708 = vmatprep.subr.mxu0 0.0
      %709 = vmatpush1.msra.mxu0 0.0
      %710 = vmatprep.subr.mxu0 0.0
      %711 = vmatpush1.msra.mxu0 0.0
      %712 = vmatprep.subr.mxu0 0.0
      %713 = vmatpush1.msra.mxu0 0.0
      %714 = vmatprep.subr.mxu0 0.0
      %715 = vmatpush1.msra.mxu0 0.0
      %716 = vmatprep.subr.mxu0 0.0
      %717 = vmatpush1.msra.mxu0 0.0
      %718 = vmatprep.subr.mxu0 0.0
      %719 = vmatpush1.msra.mxu0 0.0
      %720 = vmatprep.subr.mxu0 0.0
      %721 = vmatpush1.msra.mxu0 0.0
      %722 = vmatprep.subr.mxu0 0.0
      %723 = vmatpush1.msra.mxu0 0.0
      %724 = vmatprep.subr.mxu0 0.0
      %725 = vmatpush1.msra.mxu0 0.0
      %726 = vmatprep.subr.mxu0 0.0
      %727 = vmatpush1.msra.mxu0 0.0
      %728 = vmatprep.subr.mxu0 0.0
      %729 = vmatpush1.msra.mxu0 0.0
      %730 = vmatprep.mubr.f32.mxu0 0.0
      %731 = vmatmul.mubr.f32.gmra.mrb[0].mxu0 %v386
      %v732 = vpop.f32.mrb[0].mxu0
      %v733 = vadd.f32 0.0, %v732
      %v734 = vpop.f32.mrb[0].mxu0
      %735 = vmatprep.mubr.f32.mxu0 0.0
      %736 = vmatmul.mubr.f32.gmra.mrb[0].mxu0 %v388
      %v737 = vpop.f32.mrb[0].mxu0
      %v738 = vadd.f32 0.0, %v737
      %v739 = vpop.f32.mrb[0].mxu0
      %740 = vmatprep.mubr.f32.mxu0 0.0
      %741 = vmatmul.mubr.f32.gmra.mrb[0].mxu0 %v390
      %v742 = vpop.f32.mrb[0].mxu0
      %v743 = vadd.f32 0.0, %v742
      %v744 = vpop.f32.mrb[0].mxu0
      %745 = vmatprep.mubr.f32.mxu0 0.0
      %746 = vmatmul.mubr.f32.gmra.mrb[0].mxu0 %v392
      %v747 = vpop.f32.mrb[0].mxu0
      %v748 = vadd.f32 0.0, %v747
      %v749 = vpop.f32.mrb[0].mxu0
      %750 = vmatprep.mubr.f32.mxu0 0.0
      %751 = vmatmul.mubr.f32.gmra.mrb[0].mxu0 %v394
      %v752 = vpop.f32.mrb[0].mxu0
      %v753 = vadd.f32 0.0, %v752
      %v754 = vpop.f32.mrb[0].mxu0
      %755 = vmatprep.mubr.f32.mxu0 0.0
      %756 = vmatmul.mubr.f32.gmra.mrb[0].mxu0 %v396
      %v757 = vpop.f32.mrb[0].mxu0
      %v758 = vadd.f32 0.0, %v757
      %v759 = vpop.f32.mrb[0].mxu0
      %760 = vmatprep.mubr.f32.mxu0 0.0
      %761 = vmatmul.mubr.f32.gmra.mrb[0].mxu0 %v398
      %v762 = vpop.f32.mrb[0].mxu0
      %v763 = vadd.f32 0.0, %v762
      %v764 = vpop.f32.mrb[0].mxu0
      %765 = vmatprep.mubr.f32.mxu0 0.0
      %766 = vmatmul.mubr.f32.gmra.mrb[0].mxu0 %v664
      %v767 = vpop.f32.mrb[0].mxu0
      %v768 = vadd.f32 0.0, %v767
      %v769 = vpop.f32.mrb[0].mxu0
      %770 = vdwg.mxu0
      %v771 = vadd.f32 %v653, %v733
      %v772 = vadd.f32 %v654, %v738
      %v773 = vadd.f32 %v655, %v743
      %v774 = vadd.f32 %v656, %v748
      %v775 = vadd.f32 %v657, %v753
      %v776 = vadd.f32 %v658, %v758
      %v777 = vadd.f32 %v659, %v763
      %v778 = vadd.f32 %v660, %v768
      %v780 = vrot.slane %v214, 1
      %v781 = vrot.slane %v215, 1
      %v782 = vsel %vm235, %v780, %v781
      %s783 = scalar_lea.vmem %s1, 32
      %v784 = vld [vmem:[%s783] sm:$0xff]
      %v785 = vsel %vm262, %v782, 0
      %787 = vmatprep.subr.mxu0 0.0
      %788 = vmatpush1.msra.mxu0 %v784
      %789 = vmatprep.subr.mxu0 0.0
      %790 = vmatpush1.msra.mxu0 0.0
      %791 = vmatprep.subr.mxu0 0.0
      %792 = vmatpush1.msra.mxu0 0.0
      %793 = vmatprep.subr.mxu0 0.0
      %794 = vmatpush1.msra.mxu0 0.0
      %795 = vmatprep.subr.mxu0 0.0
      %796 = vmatpush1.msra.mxu0 0.0
      %797 = vmatprep.subr.mxu0 0.0
      %798 = vmatpush1.msra.mxu0 0.0
      %799 = vmatprep.subr.mxu0 0.0
      %800 = vmatpush1.msra.mxu0 0.0
      %801 = vmatprep.subr.mxu0 0.0
      %802 = vmatpush1.msra.mxu0 0.0
      %803 = vmatprep.subr.mxu0 0.0
      %804 = vmatpush1.msra.mxu0 0.0
      %805 = vmatprep.subr.mxu0 0.0
      %806 = vmatpush1.msra.mxu0 0.0
      %807 = vmatprep.subr.mxu0 0.0
      %808 = vmatpush1.msra.mxu0 0.0
      %809 = vmatprep.subr.mxu0 0.0
      %810 = vmatpush1.msra.mxu0 0.0
      %811 = vmatprep.subr.mxu0 0.0
      %812 = vmatpush1.msra.mxu0 0.0
      %813 = vmatprep.subr.mxu0 0.0
      %814 = vmatpush1.msra.mxu0 0.0
      %815 = vmatprep.subr.mxu0 0.0
      %816 = vmatpush1.msra.mxu0 0.0
      %817 = vmatprep.subr.mxu0 0.0
      %818 = vmatpush1.msra.mxu0 0.0
      %819 = vmatprep.subr.mxu0 0.0
      %820 = vmatpush1.msra.mxu0 0.0
      %821 = vmatprep.subr.mxu0 0.0
      %822 = vmatpush1.msra.mxu0 0.0
      %823 = vmatprep.subr.mxu0 0.0
      %824 = vmatpush1.msra.mxu0 0.0
      %825 = vmatprep.subr.mxu0 0.0
      %826 = vmatpush1.msra.mxu0 0.0
      %827 = vmatprep.subr.mxu0 0.0
      %828 = vmatpush1.msra.mxu0 0.0
      %829 = vmatprep.subr.mxu0 0.0
      %830 = vmatpush1.msra.mxu0 0.0
      %831 = vmatprep.subr.mxu0 0.0
      %832 = vmatpush1.msra.mxu0 0.0
      %833 = vmatprep.subr.mxu0 0.0
      %834 = vmatpush1.msra.mxu0 0.0
      %835 = vmatprep.subr.mxu0 0.0
      %836 = vmatpush1.msra.mxu0 0.0
      %837 = vmatprep.subr.mxu0 0.0
      %838 = vmatpush1.msra.mxu0 0.0
      %839 = vmatprep.subr.mxu0 0.0
      %840 = vmatpush1.msra.mxu0 0.0
      %841 = vmatprep.subr.mxu0 0.0
      %842 = vmatpush1.msra.mxu0 0.0
      %843 = vmatprep.subr.mxu0 0.0
      %844 = vmatpush1.msra.mxu0 0.0
      %845 = vmatprep.subr.mxu0 0.0
      %846 = vmatpush1.msra.mxu0 0.0
      %847 = vmatprep.subr.mxu0 0.0
      %848 = vmatpush1.msra.mxu0 0.0
      %849 = vmatprep.subr.mxu0 0.0
      %850 = vmatpush1.msra.mxu0 0.0
      %851 = vmatprep.mubr.f32.mxu0 0.0
      %852 = vmatmul.mubr.f32.gmra.mrb[0].mxu0 %v265
      %v853 = vpop.f32.mrb[0].mxu0
      %v854 = vadd.f32 0.0, %v853
      %v855 = vpop.f32.mrb[0].mxu0
      %856 = vmatprep.mubr.f32.mxu0 0.0
      %857 = vmatmul.mubr.f32.gmra.mrb[0].mxu0 %v267
      %v858 = vpop.f32.mrb[0].mxu0
      %v859 = vadd.f32 0.0, %v858
      %v860 = vpop.f32.mrb[0].mxu0
      %861 = vmatprep.mubr.f32.mxu0 0.0
      %862 = vmatmul.mubr.f32.gmra.mrb[0].mxu0 %v269
      %v863 = vpop.f32.mrb[0].mxu0
      %v864 = vadd.f32 0.0, %v863
      %v865 = vpop.f32.mrb[0].mxu0
      %866 = vmatprep.mubr.f32.mxu0 0.0
      %867 = vmatmul.mubr.f32.gmra.mrb[0].mxu0 %v271
      %v868 = vpop.f32.mrb[0].mxu0
      %v869 = vadd.f32 0.0, %v868
      %v870 = vpop.f32.mrb[0].mxu0
      %871 = vmatprep.mubr.f32.mxu0 0.0
      %872 = vmatmul.mubr.f32.gmra.mrb[0].mxu0 %v273
      %v873 = vpop.f32.mrb[0].mxu0
      %v874 = vadd.f32 0.0, %v873
      %v875 = vpop.f32.mrb[0].mxu0
      %876 = vmatprep.mubr.f32.mxu0 0.0
      %877 = vmatmul.mubr.f32.gmra.mrb[0].mxu0 %v275
      %v878 = vpop.f32.mrb[0].mxu0
      %v879 = vadd.f32 0.0, %v878
      %v880 = vpop.f32.mrb[0].mxu0
      %881 = vmatprep.mubr.f32.mxu0 0.0
      %882 = vmatmul.mubr.f32.gmra.mrb[0].mxu0 %v277
      %v883 = vpop.f32.mrb[0].mxu0
      %v884 = vadd.f32 0.0, %v883
      %v885 = vpop.f32.mrb[0].mxu0
      %886 = vmatprep.mubr.f32.mxu0 0.0
      %887 = vmatmul.mubr.f32.gmra.mrb[0].mxu0 %v785
      %v888 = vpop.f32.mrb[0].mxu0
      %v889 = vadd.f32 0.0, %v888
      %v890 = vpop.f32.mrb[0].mxu0
      %891 = vdwg.mxu0
      %v892 = vadd.f32 %v771, %v854
      %v893 = vadd.f32 %v772, %v859
      %v894 = vadd.f32 %v773, %v864
      %v895 = vadd.f32 %v774, %v869
      %v896 = vadd.f32 %v775, %v874
      %v897 = vadd.f32 %v776, %v879
      %v898 = vadd.f32 %v777, %v884
      %v899 = vadd.f32 %v778, %v889
      %v900 = vrot.slane %v214, 2
      %v901 = vrot.slane %v215, 2
      %v902 = vsel %vm505, %v900, %v901
      %s903 = scalar_lea.vmem %s1, 40
      %v904 = vld [vmem:[%s903] sm:$0xff]
      %v905 = vsel %vm262, %v902, 0
      %907 = vmatprep.subr.mxu0 0.0
      %908 = vmatpush1.msra.mxu0 %v904
      %909 = vmatprep.subr.mxu0 0.0
      %910 = vmatpush1.msra.mxu0 0.0
      %911 = vmatprep.subr.mxu0 0.0
      %912 = vmatpush1.msra.mxu0 0.0
      %913 = vmatprep.subr.mxu0 0.0
      %914 = vmatpush1.msra.mxu0 0.0
      %915 = vmatprep.subr.mxu0 0.0
      %916 = vmatpush1.msra.mxu0 0.0
      %917 = vmatprep.subr.mxu0 0.0
      %918 = vmatpush1.msra.mxu0 0.0
      %919 = vmatprep.subr.mxu0 0.0
      %920 = vmatpush1.msra.mxu0 0.0
      %921 = vmatprep.subr.mxu0 0.0
      %922 = vmatpush1.msra.mxu0 0.0
      %923 = vmatprep.subr.mxu0 0.0
      %924 = vmatpush1.msra.mxu0 0.0
      %925 = vmatprep.subr.mxu0 0.0
      %926 = vmatpush1.msra.mxu0 0.0
      %927 = vmatprep.subr.mxu0 0.0
      %928 = vmatpush1.msra.mxu0 0.0
      %929 = vmatprep.subr.mxu0 0.0
      %930 = vmatpush1.msra.mxu0 0.0
      %931 = vmatprep.subr.mxu0 0.0
      %932 = vmatpush1.msra.mxu0 0.0
      %933 = vmatprep.subr.mxu0 0.0
      %934 = vmatpush1.msra.mxu0 0.0
      %935 = vmatprep.subr.mxu0 0.0
      %936 = vmatpush1.msra.mxu0 0.0
      %937 = vmatprep.subr.mxu0 0.0
      %938 = vmatpush1.msra.mxu0 0.0
      %939 = vmatprep.subr.mxu0 0.0
      %940 = vmatpush1.msra.mxu0 0.0
      %941 = vmatprep.subr.mxu0 0.0
      %942 = vmatpush1.msra.mxu0 0.0
      %943 = vmatprep.subr.mxu0 0.0
      %944 = vmatpush1.msra.mxu0 0.0
      %945 = vmatprep.subr.mxu0 0.0
      %946 = vmatpush1.msra.mxu0 0.0
      %947 = vmatprep.subr.mxu0 0.0
      %948 = vmatpush1.msra.mxu0 0.0
      %949 = vmatprep.subr.mxu0 0.0
      %950 = vmatpush1.msra.mxu0 0.0
      %951 = vmatprep.subr.mxu0 0.0
      %952 = vmatpush1.msra.mxu0 0.0
      %953 = vmatprep.subr.mxu0 0.0
      %954 = vmatpush1.msra.mxu0 0.0
      %955 = vmatprep.subr.mxu0 0.0
      %956 = vmatpush1.msra.mxu0 0.0
      %957 = vmatprep.subr.mxu0 0.0
      %958 = vmatpush1.msra.mxu0 0.0
      %959 = vmatprep.subr.mxu0 0.0
      %960 = vmatpush1.msra.mxu0 0.0
      %961 = vmatprep.subr.mxu0 0.0
      %962 = vmatpush1.msra.mxu0 0.0
      %963 = vmatprep.subr.mxu0 0.0
      %964 = vmatpush1.msra.mxu0 0.0
      %965 = vmatprep.subr.mxu0 0.0
      %966 = vmatpush1.msra.mxu0 0.0
      %967 = vmatprep.subr.mxu0 0.0
      %968 = vmatpush1.msra.mxu0 0.0
      %969 = vmatprep.subr.mxu0 0.0
      %970 = vmatpush1.msra.mxu0 0.0
      %971 = vmatprep.mubr.f32.mxu0 0.0
      %972 = vmatmul.mubr.f32.gmra.mrb[0].mxu0 %v534
      %v973 = vpop.f32.mrb[0].mxu0
      %v974 = vadd.f32 0.0, %v973
      %v975 = vpop.f32.mrb[0].mxu0
      %976 = vmatprep.mubr.f32.mxu0 0.0
      %977 = vmatmul.mubr.f32.gmra.mrb[0].mxu0 %v536
      %v978 = vpop.f32.mrb[0].mxu0
      %v979 = vadd.f32 0.0, %v978
      %v980 = vpop.f32.mrb[0].mxu0
      %981 = vmatprep.mubr.f32.mxu0 0.0
      %982 = vmatmul.mubr.f32.gmra.mrb[0].mxu0 %v538
      %v983 = vpop.f32.mrb[0].mxu0
      %v984 = vadd.f32 0.0, %v983
      %v985 = vpop.f32.mrb[0].mxu0
      %986 = vmatprep.mubr.f32.mxu0 0.0
      %987 = vmatmul.mubr.f32.gmra.mrb[0].mxu0 %v540
      %v988 = vpop.f32.mrb[0].mxu0
      %v989 = vadd.f32 0.0, %v988
      %v990 = vpop.f32.mrb[0].mxu0
      %991 = vmatprep.mubr.f32.mxu0 0.0
      %992 = vmatmul.mubr.f32.gmra.mrb[0].mxu0 %v542
      %v993 = vpop.f32.mrb[0].mxu0
      %v994 = vadd.f32 0.0, %v993
      %v995 = vpop.f32.mrb[0].mxu0
      %996 = vmatprep.mubr.f32.mxu0 0.0
      %997 = vmatmul.mubr.f32.gmra.mrb[0].mxu0 %v544
      %v998 = vpop.f32.mrb[0].mxu0
      %v999 = vadd.f32 0.0, %v998
      %v1000 = vpop.f32.mrb[0].mxu0
      %1001 = vmatprep.mubr.f32.mxu0 0.0
      %1002 = vmatmul.mubr.f32.gmra.mrb[0].mxu0 %v546
      %v1003 = vpop.f32.mrb[0].mxu0
      %v1004 = vadd.f32 0.0, %v1003
      %v1005 = vpop.f32.mrb[0].mxu0
      %1006 = vmatprep.mubr.f32.mxu0 0.0
      %1007 = vmatmul.mubr.f32.gmra.mrb[0].mxu0 %v905
      %v1008 = vpop.f32.mrb[0].mxu0
      %v1009 = vadd.f32 0.0, %v1008
      %v1010 = vpop.f32.mrb[0].mxu0
      %1011 = vdwg.mxu0
      %v1012 = vadd.f32 %v892, %v974
      %v1013 = vadd.f32 %v893, %v979
      %v1014 = vadd.f32 %v894, %v984
      %v1015 = vadd.f32 %v895, %v989
      %v1016 = vadd.f32 %v896, %v994
      %v1017 = vadd.f32 %v897, %v999
      %v1018 = vadd.f32 %v898, %v1004
      %v1019 = vadd.f32 %v899, %v1009
      %s1020 = scalar_lea.vmem %s1, 48
      %v1021 = vld [vmem:[%s1020] sm:$0xff]
      %v1023 = vsel %vm262, %v216, 0
      %1025 = vmatprep.subr.mxu0 0.0
      %1026 = vmatpush1.msra.mxu0 %v1021
      %1027 = vmatprep.subr.mxu0 0.0
      %1028 = vmatpush1.msra.mxu0 0.0
      %1029 = vmatprep.subr.mxu0 0.0
      %1030 = vmatpush1.msra.mxu0 0.0
      %1031 = vmatprep.subr.mxu0 0.0
      %1032 = vmatpush1.msra.mxu0 0.0
      %1033 = vmatprep.subr.mxu0 0.0
      %1034 = vmatpush1.msra.mxu0 0.0
      %1035 = vmatprep.subr.mxu0 0.0
      %1036 = vmatpush1.msra.mxu0 0.0
      %1037 = vmatprep.subr.mxu0 0.0
      %1038 = vmatpush1.msra.mxu0 0.0
      %1039 = vmatprep.subr.mxu0 0.0
      %1040 = vmatpush1.msra.mxu0 0.0
      %1041 = vmatprep.subr.mxu0 0.0
      %1042 = vmatpush1.msra.mxu0 0.0
      %1043 = vmatprep.subr.mxu0 0.0
      %1044 = vmatpush1.msra.mxu0 0.0
      %1045 = vmatprep.subr.mxu0 0.0
      %1046 = vmatpush1.msra.mxu0 0.0
      %1047 = vmatprep.subr.mxu0 0.0
      %1048 = vmatpush1.msra.mxu0 0.0
      %1049 = vmatprep.subr.mxu0 0.0
      %1050 = vmatpush1.msra.mxu0 0.0
      %1051 = vmatprep.subr.mxu0 0.0
      %1052 = vmatpush1.msra.mxu0 0.0
      %1053 = vmatprep.subr.mxu0 0.0
      %1054 = vmatpush1.msra.mxu0 0.0
      %1055 = vmatprep.subr.mxu0 0.0
      %1056 = vmatpush1.msra.mxu0 0.0
      %1057 = vmatprep.subr.mxu0 0.0
      %1058 = vmatpush1.msra.mxu0 0.0
      %1059 = vmatprep.subr.mxu0 0.0
      %1060 = vmatpush1.msra.mxu0 0.0
      %1061 = vmatprep.subr.mxu0 0.0
      %1062 = vmatpush1.msra.mxu0 0.0
      %1063 = vmatprep.subr.mxu0 0.0
      %1064 = vmatpush1.msra.mxu0 0.0
      %1065 = vmatprep.subr.mxu0 0.0
      %1066 = vmatpush1.msra.mxu0 0.0
      %1067 = vmatprep.subr.mxu0 0.0
      %1068 = vmatpush1.msra.mxu0 0.0
      %1069 = vmatprep.subr.mxu0 0.0
      %1070 = vmatpush1.msra.mxu0 0.0
      %1071 = vmatprep.subr.mxu0 0.0
      %1072 = vmatpush1.msra.mxu0 0.0
      %1073 = vmatprep.subr.mxu0 0.0
      %1074 = vmatpush1.msra.mxu0 0.0
      %1075 = vmatprep.subr.mxu0 0.0
      %1076 = vmatpush1.msra.mxu0 0.0
      %1077 = vmatprep.subr.mxu0 0.0
      %1078 = vmatpush1.msra.mxu0 0.0
      %1079 = vmatprep.subr.mxu0 0.0
      %1080 = vmatpush1.msra.mxu0 0.0
      %1081 = vmatprep.subr.mxu0 0.0
      %1082 = vmatpush1.msra.mxu0 0.0
      %1083 = vmatprep.subr.mxu0 0.0
      %1084 = vmatpush1.msra.mxu0 0.0
      %1085 = vmatprep.subr.mxu0 0.0
      %1086 = vmatpush1.msra.mxu0 0.0
      %1087 = vmatprep.subr.mxu0 0.0
      %1088 = vmatpush1.msra.mxu0 0.0
      %1089 = vmatprep.mubr.f32.mxu0 0.0
      %1090 = vmatmul.mubr.f32.gmra.mrb[0].mxu0 %v388
      %v1091 = vpop.f32.mrb[0].mxu0
      %v1092 = vadd.f32 0.0, %v1091
      %v1093 = vpop.f32.mrb[0].mxu0
      %1094 = vmatprep.mubr.f32.mxu0 0.0
      %1095 = vmatmul.mubr.f32.gmra.mrb[0].mxu0 %v390
      %v1096 = vpop.f32.mrb[0].mxu0
      %v1097 = vadd.f32 0.0, %v1096
      %v1098 = vpop.f32.mrb[0].mxu0
      %1099 = vmatprep.mubr.f32.mxu0 0.0
      %1100 = vmatmul.mubr.f32.gmra.mrb[0].mxu0 %v392
      %v1101 = vpop.f32.mrb[0].mxu0
      %v1102 = vadd.f32 0.0, %v1101
      %v1103 = vpop.f32.mrb[0].mxu0
      %1104 = vmatprep.mubr.f32.mxu0 0.0
      %1105 = vmatmul.mubr.f32.gmra.mrb[0].mxu0 %v394
      %v1106 = vpop.f32.mrb[0].mxu0
      %v1107 = vadd.f32 0.0, %v1106
      %v1108 = vpop.f32.mrb[0].mxu0
      %1109 = vmatprep.mubr.f32.mxu0 0.0
      %1110 = vmatmul.mubr.f32.gmra.mrb[0].mxu0 %v396
      %v1111 = vpop.f32.mrb[0].mxu0
      %v1112 = vadd.f32 0.0, %v1111
      %v1113 = vpop.f32.mrb[0].mxu0
      %1114 = vmatprep.mubr.f32.mxu0 0.0
      %1115 = vmatmul.mubr.f32.gmra.mrb[0].mxu0 %v398
      %v1116 = vpop.f32.mrb[0].mxu0
      %v1117 = vadd.f32 0.0, %v1116
      %v1118 = vpop.f32.mrb[0].mxu0
      %1119 = vmatprep.mubr.f32.mxu0 0.0
      %1120 = vmatmul.mubr.f32.gmra.mrb[0].mxu0 %v664
      %v1121 = vpop.f32.mrb[0].mxu0
      %v1122 = vadd.f32 0.0, %v1121
      %v1123 = vpop.f32.mrb[0].mxu0
      %1124 = vmatprep.mubr.f32.mxu0 0.0
      %1125 = vmatmul.mubr.f32.gmra.mrb[0].mxu0 %v1023
      %v1126 = vpop.f32.mrb[0].mxu0
      %v1127 = vadd.f32 0.0, %v1126
      %v1128 = vpop.f32.mrb[0].mxu0
      %1129 = vdwg.mxu0
      %v1130 = vadd.f32 %v1012, %v1092
      %v1131 = vadd.f32 %v1013, %v1097
      %v1132 = vadd.f32 %v1014, %v1102
      %v1133 = vadd.f32 %v1015, %v1107
      %v1134 = vadd.f32 %v1016, %v1112
      %v1135 = vadd.f32 %v1017, %v1117
      %v1136 = vadd.f32 %v1018, %v1122
      %v1137 = vadd.f32 %v1019, %v1127
      %v1139 = vrot.slane %v216, 1
      %v1140 = vrot.slane %v217, 1
      %v1141 = vsel %vm235, %v1139, %v1140
      %s1142 = scalar_lea.vmem %s1, 56
      %v1143 = vld [vmem:[%s1142] sm:$0xff]
      %v1144 = vsel %vm262, %v1141, 0
      %1146 = vmatprep.subr.mxu0 0.0
      %1147 = vmatpush1.msra.mxu0 %v1143
      %1148 = vmatprep.subr.mxu0 0.0
      %1149 = vmatpush1.msra.mxu0 0.0
      %1150 = vmatprep.subr.mxu0 0.0
      %1151 = vmatpush1.msra.mxu0 0.0
      %1152 = vmatprep.subr.mxu0 0.0
      %1153 = vmatpush1.msra.mxu0 0.0
      %1154 = vmatprep.subr.mxu0 0.0
      %1155 = vmatpush1.msra.mxu0 0.0
      %1156 = vmatprep.subr.mxu0 0.0
      %1157 = vmatpush1.msra.mxu0 0.0
      %1158 = vmatprep.subr.mxu0 0.0
      %1159 = vmatpush1.msra.mxu0 0.0
      %1160 = vmatprep.subr.mxu0 0.0
      %1161 = vmatpush1.msra.mxu0 0.0
      %1162 = vmatprep.subr.mxu0 0.0
      %1163 = vmatpush1.msra.mxu0 0.0
      %1164 = vmatprep.subr.mxu0 0.0
      %1165 = vmatpush1.msra.mxu0 0.0
      %1166 = vmatprep.subr.mxu0 0.0
      %1167 = vmatpush1.msra.mxu0 0.0
      %1168 = vmatprep.subr.mxu0 0.0
      %1169 = vmatpush1.msra.mxu0 0.0
      %1170 = vmatprep.subr.mxu0 0.0
      %1171 = vmatpush1.msra.mxu0 0.0
      %1172 = vmatprep.subr.mxu0 0.0
      %1173 = vmatpush1.msra.mxu0 0.0
      %1174 = vmatprep.subr.mxu0 0.0
      %1175 = vmatpush1.msra.mxu0 0.0
      %1176 = vmatprep.subr.mxu0 0.0
      %1177 = vmatpush1.msra.mxu0 0.0
      %1178 = vmatprep.subr.mxu0 0.0
      %1179 = vmatpush1.msra.mxu0 0.0
      %1180 = vmatprep.subr.mxu0 0.0
      %1181 = vmatpush1.msra.mxu0 0.0
      %1182 = vmatprep.subr.mxu0 0.0
      %1183 = vmatpush1.msra.mxu0 0.0
      %1184 = vmatprep.subr.mxu0 0.0
      %1185 = vmatpush1.msra.mxu0 0.0
      %1186 = vmatprep.subr.mxu0 0.0
      %1187 = vmatpush1.msra.mxu0 0.0
      %1188 = vmatprep.subr.mxu0 0.0
      %1189 = vmatpush1.msra.mxu0 0.0
      %1190 = vmatprep.subr.mxu0 0.0
      %1191 = vmatpush1.msra.mxu0 0.0
      %1192 = vmatprep.subr.mxu0 0.0
      %1193 = vmatpush1.msra.mxu0 0.0
      %1194 = vmatprep.subr.mxu0 0.0
      %1195 = vmatpush1.msra.mxu0 0.0
      %1196 = vmatprep.subr.mxu0 0.0
      %1197 = vmatpush1.msra.mxu0 0.0
      %1198 = vmatprep.subr.mxu0 0.0
      %1199 = vmatpush1.msra.mxu0 0.0
      %1200 = vmatprep.subr.mxu0 0.0
      %1201 = vmatpush1.msra.mxu0 0.0
      %1202 = vmatprep.subr.mxu0 0.0
      %1203 = vmatpush1.msra.mxu0 0.0
      %1204 = vmatprep.subr.mxu0 0.0
      %1205 = vmatpush1.msra.mxu0 0.0
      %1206 = vmatprep.subr.mxu0 0.0
      %1207 = vmatpush1.msra.mxu0 0.0
      %1208 = vmatprep.subr.mxu0 0.0
      %1209 = vmatpush1.msra.mxu0 0.0
      %1210 = vmatprep.mubr.f32.mxu0 0.0
      %1211 = vmatmul.mubr.f32.gmra.mrb[0].mxu0 %v267
      %v1212 = vpop.f32.mrb[0].mxu0
      %v1213 = vadd.f32 0.0, %v1212
      %v1214 = vpop.f32.mrb[0].mxu0
      %1215 = vmatprep.mubr.f32.mxu0 0.0
      %1216 = vmatmul.mubr.f32.gmra.mrb[0].mxu0 %v269
      %v1217 = vpop.f32.mrb[0].mxu0
      %v1218 = vadd.f32 0.0, %v1217
      %v1219 = vpop.f32.mrb[0].mxu0
      %1220 = vmatprep.mubr.f32.mxu0 0.0
      %1221 = vmatmul.mubr.f32.gmra.mrb[0].mxu0 %v271
      %v1222 = vpop.f32.mrb[0].mxu0
      %v1223 = vadd.f32 0.0, %v1222
      %v1224 = vpop.f32.mrb[0].mxu0
      %1225 = vmatprep.mubr.f32.mxu0 0.0
      %1226 = vmatmul.mubr.f32.gmra.mrb[0].mxu0 %v273
      %v1227 = vpop.f32.mrb[0].mxu0
      %v1228 = vadd.f32 0.0, %v1227
      %v1229 = vpop.f32.mrb[0].mxu0
      %1230 = vmatprep.mubr.f32.mxu0 0.0
      %1231 = vmatmul.mubr.f32.gmra.mrb[0].mxu0 %v275
      %v1232 = vpop.f32.mrb[0].mxu0
      %v1233 = vadd.f32 0.0, %v1232
      %v1234 = vpop.f32.mrb[0].mxu0
      %1235 = vmatprep.mubr.f32.mxu0 0.0
      %1236 = vmatmul.mubr.f32.gmra.mrb[0].mxu0 %v277
      %v1237 = vpop.f32.mrb[0].mxu0
      %v1238 = vadd.f32 0.0, %v1237
      %v1239 = vpop.f32.mrb[0].mxu0
      %1240 = vmatprep.mubr.f32.mxu0 0.0
      %1241 = vmatmul.mubr.f32.gmra.mrb[0].mxu0 %v785
      %v1242 = vpop.f32.mrb[0].mxu0
      %v1243 = vadd.f32 0.0, %v1242
      %v1244 = vpop.f32.mrb[0].mxu0
      %1245 = vmatprep.mubr.f32.mxu0 0.0
      %1246 = vmatmul.mubr.f32.gmra.mrb[0].mxu0 %v1144
      %v1247 = vpop.f32.mrb[0].mxu0
      %v1248 = vadd.f32 0.0, %v1247
      %v1249 = vpop.f32.mrb[0].mxu0
      %1250 = vdwg.mxu0
      %v1251 = vadd.f32 %v1130, %v1213
      %v1252 = vadd.f32 %v1131, %v1218
      %v1253 = vadd.f32 %v1132, %v1223
      %v1254 = vadd.f32 %v1133, %v1228
      %v1255 = vadd.f32 %v1134, %v1233
      %v1256 = vadd.f32 %v1135, %v1238
      %v1257 = vadd.f32 %v1136, %v1243
      %v1258 = vadd.f32 %v1137, %v1248
      %v1259 = vrot.slane %v216, 2
      %v1260 = vrot.slane %v217, 2
      %v1261 = vsel %vm505, %v1259, %v1260
      %s1262 = scalar_lea.vmem %s1, 64
      %v1263 = vld [vmem:[%s1262] sm:$0xff]
      %v1264 = vsel %vm262, %v1261, 0
      %1266 = vmatprep.subr.mxu0 0.0
      %1267 = vmatpush1.msra.mxu0 %v1263
      %1268 = vmatprep.subr.mxu0 0.0
      %1269 = vmatpush1.msra.mxu0 0.0
      %1270 = vmatprep.subr.mxu0 0.0
      %1271 = vmatpush1.msra.mxu0 0.0
      %1272 = vmatprep.subr.mxu0 0.0
      %1273 = vmatpush1.msra.mxu0 0.0
      %1274 = vmatprep.subr.mxu0 0.0
      %1275 = vmatpush1.msra.mxu0 0.0
      %1276 = vmatprep.subr.mxu0 0.0
      %1277 = vmatpush1.msra.mxu0 0.0
      %1278 = vmatprep.subr.mxu0 0.0
      %1279 = vmatpush1.msra.mxu0 0.0
      %1280 = vmatprep.subr.mxu0 0.0
      %1281 = vmatpush1.msra.mxu0 0.0
      %1282 = vmatprep.subr.mxu0 0.0
      %1283 = vmatpush1.msra.mxu0 0.0
      %1284 = vmatprep.subr.mxu0 0.0
      %1285 = vmatpush1.msra.mxu0 0.0
      %1286 = vmatprep.subr.mxu0 0.0
      %1287 = vmatpush1.msra.mxu0 0.0
      %1288 = vmatprep.subr.mxu0 0.0
      %1289 = vmatpush1.msra.mxu0 0.0
      %1290 = vmatprep.subr.mxu0 0.0
      %1291 = vmatpush1.msra.mxu0 0.0
      %1292 = vmatprep.subr.mxu0 0.0
      %1293 = vmatpush1.msra.mxu0 0.0
      %1294 = vmatprep.subr.mxu0 0.0
      %1295 = vmatpush1.msra.mxu0 0.0
      %1296 = vmatprep.subr.mxu0 0.0
      %1297 = vmatpush1.msra.mxu0 0.0
      %1298 = vmatprep.subr.mxu0 0.0
      %1299 = vmatpush1.msra.mxu0 0.0
      %1300 = vmatprep.subr.mxu0 0.0
      %1301 = vmatpush1.msra.mxu0 0.0
      %1302 = vmatprep.subr.mxu0 0.0
      %1303 = vmatpush1.msra.mxu0 0.0
      %1304 = vmatprep.subr.mxu0 0.0
      %1305 = vmatpush1.msra.mxu0 0.0
      %1306 = vmatprep.subr.mxu0 0.0
      %1307 = vmatpush1.msra.mxu0 0.0
      %1308 = vmatprep.subr.mxu0 0.0
      %1309 = vmatpush1.msra.mxu0 0.0
      %1310 = vmatprep.subr.mxu0 0.0
      %1311 = vmatpush1.msra.mxu0 0.0
      %1312 = vmatprep.subr.mxu0 0.0
      %1313 = vmatpush1.msra.mxu0 0.0
      %1314 = vmatprep.subr.mxu0 0.0
      %1315 = vmatpush1.msra.mxu0 0.0
      %1316 = vmatprep.subr.mxu0 0.0
      %1317 = vmatpush1.msra.mxu0 0.0
      %1318 = vmatprep.subr.mxu0 0.0
      %1319 = vmatpush1.msra.mxu0 0.0
      %1320 = vmatprep.subr.mxu0 0.0
      %1321 = vmatpush1.msra.mxu0 0.0
      %1322 = vmatprep.subr.mxu0 0.0
      %1323 = vmatpush1.msra.mxu0 0.0
      %1324 = vmatprep.subr.mxu0 0.0
      %1325 = vmatpush1.msra.mxu0 0.0
      %1326 = vmatprep.subr.mxu0 0.0
      %1327 = vmatpush1.msra.mxu0 0.0
      %1328 = vmatprep.subr.mxu0 0.0
      %1329 = vmatpush1.msra.mxu0 0.0
      %1330 = vmatprep.mubr.f32.mxu0 0.0
      %1331 = vmatmul.mubr.f32.gmra.mrb[0].mxu0 %v536
      %v1332 = vpop.f32.mrb[0].mxu0
      %v1333 = vadd.f32 0.0, %v1332
      %v1334 = vpop.f32.mrb[0].mxu0
      %1335 = vmatprep.mubr.f32.mxu0 0.0
      %1336 = vmatmul.mubr.f32.gmra.mrb[0].mxu0 %v538
      %v1337 = vpop.f32.mrb[0].mxu0
      %v1338 = vadd.f32 0.0, %v1337
      %v1339 = vpop.f32.mrb[0].mxu0
      %1340 = vmatprep.mubr.f32.mxu0 0.0
      %1341 = vmatmul.mubr.f32.gmra.mrb[0].mxu0 %v540
      %v1342 = vpop.f32.mrb[0].mxu0
      %v1343 = vadd.f32 0.0, %v1342
      %v1344 = vpop.f32.mrb[0].mxu0
      %1345 = vmatprep.mubr.f32.mxu0 0.0
      %1346 = vmatmul.mubr.f32.gmra.mrb[0].mxu0 %v542
      %v1347 = vpop.f32.mrb[0].mxu0
      %v1348 = vadd.f32 0.0, %v1347
      %v1349 = vpop.f32.mrb[0].mxu0
      %1350 = vmatprep.mubr.f32.mxu0 0.0
      %1351 = vmatmul.mubr.f32.gmra.mrb[0].mxu0 %v544
      %v1352 = vpop.f32.mrb[0].mxu0
      %v1353 = vadd.f32 0.0, %v1352
      %v1354 = vpop.f32.mrb[0].mxu0
      %1355 = vmatprep.mubr.f32.mxu0 0.0
      %1356 = vmatmul.mubr.f32.gmra.mrb[0].mxu0 %v546
      %v1357 = vpop.f32.mrb[0].mxu0
      %v1358 = vadd.f32 0.0, %v1357
      %v1359 = vpop.f32.mrb[0].mxu0
      %1360 = vmatprep.mubr.f32.mxu0 0.0
      %1361 = vmatmul.mubr.f32.gmra.mrb[0].mxu0 %v905
      %v1362 = vpop.f32.mrb[0].mxu0
      %v1363 = vadd.f32 0.0, %v1362
      %v1364 = vpop.f32.mrb[0].mxu0
      %1365 = vmatprep.mubr.f32.mxu0 0.0
      %1366 = vmatmul.mubr.f32.gmra.mrb[0].mxu0 %v1264
      %v1367 = vpop.f32.mrb[0].mxu0
      %v1368 = vadd.f32 0.0, %v1367
      %v1369 = vpop.f32.mrb[0].mxu0
      %1370 = vdwg.mxu0
      %v1371 = vadd.f32 %v1251, %v1333
      %v1372 = vadd.f32 %v1252, %v1338
      %v1373 = vadd.f32 %v1253, %v1343
      %v1374 = vadd.f32 %v1254, %v1348
      %v1375 = vadd.f32 %v1255, %v1353
      %v1376 = vadd.f32 %v1256, %v1358
      %v1377 = vadd.f32 %v1257, %v1363
      %v1378 = vadd.f32 %v1258, %v1368
      %v1379 = vld [vmem:[%s2] sm:$0x1]
      %v1381 = vlaneseq
      %v1382 = vshrl.u32 %v1381, 7
      %v1383 = vsub.s32 0, %v1382
      %v1384 = vrot.slane %v1379, %v1383
      %v1386 = vmul.f32 %v1371, %v1384
      %v1387 = vmul.f32 %v1372, %v1384
      %v1388 = vmul.f32 %v1373, %v1384
      %v1389 = vmul.f32 %v1374, %v1384
      %v1390 = vmul.f32 %v1375, %v1384
      %v1391 = vmul.f32 %v1376, %v1384
      %v1392 = vmul.f32 %v1377, %v1384
      %v1393 = vmul.f32 %v1378, %v1384
      %v1394 = vld [vmem:[%s3] sm:$0x1]
      %v1396 = vlaneseq
      %v1397 = vshrl.u32 %v1396, 7
      %v1398 = vsub.s32 0, %v1397
      %v1399 = vrot.slane %v1394, %v1398
      %v1401 = vadd.f32 %v1386, %v1399
      %v1402 = vadd.f32 %v1387, %v1399
      %v1403 = vadd.f32 %v1388, %v1399
      %v1404 = vadd.f32 %v1389, %v1399
      %v1405 = vadd.f32 %v1390, %v1399
      %v1406 = vadd.f32 %v1391, %v1399
      %v1407 = vadd.f32 %v1392, %v1399
      %v1408 = vadd.f32 %v1393, %v1399
      %v1409 = vmax.f32 %v1401, 0.0
      %v1410 = vmax.f32 %v1402, 0.0
      %v1411 = vmax.f32 %v1403, 0.0
      %v1412 = vmax.f32 %v1404, 0.0
      %v1413 = vmax.f32 %v1405, 0.0
      %v1414 = vmax.f32 %v1406, 0.0
      %v1415 = vmax.f32 %v1407, 0.0
      %v1416 = vmax.f32 %v1408, 0.0
      %v1417 = vxor.u32 %v1409, 2147483648
      %v1418 = vxor.u32 %v1410, 2147483648
      %v1419 = vxor.u32 %v1411, 2147483648
      %v1420 = vxor.u32 %v1412, 2147483648
      %v1421 = vxor.u32 %v1413, 2147483648
      %v1422 = vxor.u32 %v1414, 2147483648
      %v1423 = vxor.u32 %v1415, 2147483648
      %v1424 = vxor.u32 %v1416, 2147483648
      %v1425 = vmul.f32 %v1417, 1.442695
      %v1426 = vpow.pop %v1425
      %v1427 = vmul.f32 %v1418, 1.442695
      %v1428 = vpow.pop %v1427
      %v1429 = vmul.f32 %v1419, 1.442695
      %v1430 = vpow.pop %v1429
      %v1431 = vmul.f32 %v1420, 1.442695
      %v1432 = vpow.pop %v1431
      %v1433 = vmul.f32 %v1421, 1.442695
      %v1434 = vpow.pop %v1433
      %v1435 = vmul.f32 %v1422, 1.442695
      %v1436 = vpow.pop %v1435
      %v1437 = vmul.f32 %v1423, 1.442695
      %v1438 = vpow.pop %v1437
      %v1439 = vmul.f32 %v1424, 1.442695
      %v1440 = vpow.pop %v1439
      %v1441 = vadd.f32 %v1426, 1.0
      %v1442 = vadd.f32 %v1428, 1.0
      %v1443 = vadd.f32 %v1430, 1.0
      %v1444 = vadd.f32 %v1432, 1.0
      %v1445 = vadd.f32 %v1434, 1.0
      %v1446 = vadd.f32 %v1436, 1.0
      %v1447 = vadd.f32 %v1438, 1.0
      %v1448 = vadd.f32 %v1440, 1.0
      %v1449 = vrcp.pop %v1441
      %v1450 = vmul.f32 1.0, %v1449
      %v1451 = vrcp.pop %v1442
      %v1452 = vmul.f32 1.0, %v1451
      %v1453 = vrcp.pop %v1443
      %v1454 = vmul.f32 1.0, %v1453
      %v1455 = vrcp.pop %v1444
      %v1456 = vmul.f32 1.0, %v1455
      %v1457 = vrcp.pop %v1445
      %v1458 = vmul.f32 1.0, %v1457
      %v1459 = vrcp.pop %v1446
      %v1460 = vmul.f32 1.0, %v1459
      %v1461 = vrcp.pop %v1447
      %v1462 = vmul.f32 1.0, %v1461
      %v1463 = vrcp.pop %v1448
      %v1464 = vmul.f32 1.0, %v1463
      %1465 = vst.msk [vmem:[%s197] sm:$0xff] %vm262, %v1450
      %1466 = vst.msk [vmem:[%s197 + $0x8] sm:$0xff] %vm262, %v1452
      %1467 = vst.msk [vmem:[%s197 + $0x10] sm:$0xff] %vm262, %v1454
      %1468 = vst.msk [vmem:[%s197 + $0x18] sm:$0xff] %vm262, %v1456
      %1469 = vst.msk [vmem:[%s197 + $0x20] sm:$0xff] %vm262, %v1458
      %1470 = vst.msk [vmem:[%s197 + $0x28] sm:$0xff] %vm262, %v1460
      %1471 = vst.msk [vmem:[%s197 + $0x30] sm:$0xff] %vm262, %v1462
      %1472 = vst.msk [vmem:[%s197 + $0x38] sm:$0xff] %vm262, %v1464
      %p1473 = scmp.lt.s32.totalorder %s15, 1
      %s1474 = scalar_select %p1473, %s15, 1
      %s1475 = smul.addr %s1474, 8
      %s1476 = smul.addr %s1475, 8
      %s1477 = scalar_lea.vmem %s4, %s1476
      // Predicated region
      $region37: #{cssu_forward.14} parent=35 // pred_check
        %p1478 = pneg %p122
      $region38: #{cssu_forward.14} parent=35 // pred_check_branch
        %1480 = sbr.rel (%p1478) target = $region40
      $region39: #{cssu_forward.14} parent=35 // pred_region
        _
      $region40: #{cssu_forward.14} parent=35 // pred_fallthru
        _
    $region36: #{cssu_forward.14} parent=5 // pred_fallthru
      _
    %p1481 = scmp.le.s32.totalorder 2, %s10
    // Predicated region
    $region41: #{cssu_forward.14} parent=5 // pred_check
      %p1482 = pneg %p1481
    $region42: #{cssu_forward.14} parent=5 // pred_check_branch
      %1484 = sbr.rel (%p1482) target = $region44
    $region43: #{cssu_forward.14} parent=5 // pred_region
      %s1485 = ssub.s32 %s10, 2
      // Predicated region
      $region45: #{cssu_forward.14} parent=43 // pred_check
        %p1486 = pneg %p128
      $region46: #{cssu_forward.14} parent=43 // pred_check_branch
        %1488 = sbr.rel (%p1486) target = $region48
      $region47: #{cssu_forward.14} parent=43 // pred_region
        %p1489 = scmp.lt.s32.totalorder %s16, 1
        %s1490 = scalar_select %p1489, %s16, 1
        %s1491 = smul.addr %s1490, 8
        %s1492 = smul.addr %s1491, 8
        %s1493 = scalar_lea.vmem %s4, %s1492
      $region48: #{cssu_forward.14} parent=43 // pred_fallthru
        _
    $region44: #{cssu_forward.14} parent=5 // pred_fallthru
      _
  $region6: #{cssu_forward.14} parent=0 // loop_footer
    %s14 = sadd.s32 1, %s10
  $region7: #{cssu_forward.14} parent=0 // loop_footer_branch
    %9 = sbr.rel target = $region3
  $region8: #{cssu_forward.14} parent=0 // loop_exit
    _

// kernel: cssu_forward.18
$region0: #{cssu_forward.18}
  #allocation0 [shape = 'u32[]', space=smem, size = 0x4, offset = 0x4, fixed_abs, tag = 'smem constant byte address 0x4 - core index']
  #allocation1 [shape = 'u32[144,128]{1,0:T(1,128)}', space=vmem, size = 0x12000, scoped, tag = 'internal scratch']
  %s0 = inlined_call_operand.vmem [shape: f32[2,64,8], index: 0, kind: input, shape index: {}]
  %s1 = inlined_call_operand.vmem [shape: f32[8,2], index: 1, kind: input, shape index: {}]
  %s2 = inlined_call_operand.vmem [shape: f32[2,8], index: 2, kind: input, shape index: {}]
  %s3 = inlined_call_operand.vmem [shape: f32[2,64,8], index: 3, kind: output, shape index: {}]
  %s4 = sld [smem:[#allocation0]]
  $region45: #{cssu_forward.18} parent=0
    _
  %s6 = ssub.s32 1, %s4
  %s7 = scalar_select 0, %s6, %s4
  loop: start=0, step=1, limit=4
  $region2: #{cssu_forward.18} parent=0 // loop_pre_header
    _
  $region3: #{cssu_forward.18} parent=0 // loop_header
    %s9 = sphi 0, %s13
    %p10 = scmp.ge.s32.totalorder %s9, 4
    %s19 = sphi 0, %s21
    %s22 = sphi 0, %s19
    %s23 = sphi 0, %s22
    %s39 = sphi 0, %s23
    %s43 = sphi 0, %s43
    %s45 = sphi 0, %s43
    %s46 = sphi 0, %s45
    %s60 = sphi 0, %s46
    %s64 = sphi 0, %s64
    %s66 = sphi 0, %s64
    %s67 = sphi 0, %s66
    %s81 = sphi 0, %s67
    %s87 = sphi 0, %s89
    %s90 = sphi 0, %s87
    %s91 = sphi 0, %s90
    %s107 = sphi 0, %s91
  $region4: #{cssu_forward.18} parent=0 // loop_header_branch
    %12 = sbr.rel (%p10) target = $region8
  $region5: #{cssu_forward.18} parent=0 // loop_body
    %s14 = ssub.s32 %s9, 1
    %s15 = ssub.s32 %s9, 2
    %s16 = sadd.s32 %s9, 1
    %s17 = ssub.s32 %s9, %s16
    %p18 = scmp.eq.s32.totalorder %s17, 0
    %s20 = sadd.s32 %s19, 1
    %s21 = scalar_select %p18, %s19, %s20
    %p24 = pneg %p18
    %p25 = scmp.eq.s32.totalorder %s9, 1
    %p26 = por %p24, %p25
    %p27 = scmp.ne.s32.totalorder %s19, %s22
    %p28 = scmp.eq.s32.totalorder %s9, 0
    %p29 = por %p27, %p28
    %p30 = scmp.ne.s32.totalorder %s19, %s22
    %p31 = scmp.eq.s32.totalorder %s14, 1
    %p32 = por %p30, %p31
    %p33 = scmp.ne.s32.totalorder %s22, %s23
    %p34 = scmp.eq.s32.totalorder %s14, 0
    %p35 = por %p33, %p34
    %p36 = scmp.ne.s32.totalorder %s22, %s23
    %p37 = scmp.eq.s32.totalorder %s15, 1
    %p38 = por %p36, %p37
    %p40 = scmp.ne.s32.totalorder %s23, %s39
    %p41 = scmp.eq.s32.totalorder %s15, 0
    %p42 = por %p40, %p41
    %s44 = sadd.s32 %s43, 1
    %p47 = scmp.eq.s32.totalorder %s9, 1
    %p48 = scmp.ne.s32.totalorder %s43, %s45
    %p49 = scmp.eq.s32.totalorder %s9, 0
    %p50 = por %p48, %p49
    %p51 = scmp.ne.s32.totalorder %s43, %s45
    %p52 = scmp.eq.s32.totalorder %s14, 1
    %p53 = por %p51, %p52
    %p54 = scmp.ne.s32.totalorder %s45, %s46
    %p55 = scmp.eq.s32.totalorder %s14, 0
    %p56 = por %p54, %p55
    %p57 = scmp.ne.s32.totalorder %s45, %s46
    %p58 = scmp.eq.s32.totalorder %s15, 1
    %p59 = por %p57, %p58
    %p61 = scmp.ne.s32.totalorder %s46, %s60
    %p62 = scmp.eq.s32.totalorder %s15, 0
    %p63 = por %p61, %p62
    %s65 = sadd.s32 %s64, 1
    %p68 = scmp.eq.s32.totalorder %s9, 1
    %p69 = scmp.ne.s32.totalorder %s64, %s66
    %p70 = scmp.eq.s32.totalorder %s9, 0
    %p71 = por %p69, %p70
    %p72 = scmp.ne.s32.totalorder %s64, %s66
    %p73 = scmp.eq.s32.totalorder %s14, 1
    %p74 = por %p72, %p73
    %p75 = scmp.ne.s32.totalorder %s66, %s67
    %p76 = scmp.eq.s32.totalorder %s14, 0
    %p77 = por %p75, %p76
    %p78 = scmp.ne.s32.totalorder %s66, %s67
    %p79 = scmp.eq.s32.totalorder %s15, 1
    %p80 = por %p78, %p79
    %p82 = scmp.ne.s32.totalorder %s67, %s81
    %p83 = scmp.eq.s32.totalorder %s15, 0
    %p84 = por %p82, %p83
    %s85 = ssub.s32 %s9, %s16
    %p86 = scmp.eq.s32.totalorder %s85, 0
    %s88 = sadd.s32 %s87, 1
    %s89 = scalar_select %p86, %s87, %s88
    %p92 = pneg %p86
    %p93 = scmp.eq.s32.totalorder %s9, 1
    %p94 = por %p92, %p93
    %p95 = scmp.ne.s32.totalorder %s87, %s90
    %p96 = scmp.eq.s32.totalorder %s9, 0
    %p97 = por %p95, %p96
    %p98 = scmp.ne.s32.totalorder %s87, %s90
    %p99 = scmp.eq.s32.totalorder %s14, 1
    %p100 = por %p98, %p99
    %p101 = scmp.ne.s32.totalorder %s90, %s91
    %p102 = scmp.eq.s32.totalorder %s14, 0
    %p103 = por %p101, %p102
    %p104 = scmp.ne.s32.totalorder %s90, %s91
    %p105 = scmp.eq.s32.totalorder %s15, 1
    %p106 = por %p104, %p105
    %p108 = scmp.ne.s32.totalorder %s91, %s107
    %p109 = scmp.eq.s32.totalorder %s15, 0
    %p110 = por %p108, %p109
    %p111 = scmp.le.s32.totalorder 1, %s9
    %p112 = scmp.lt.s32.totalorder %s9, 3
    %p113 = pnand %p111, %p112
    %p114 = pneg %p113
    // Predicated region
    $region9: #{cssu_forward.18} parent=5 // pred_check
      _
    $region10: #{cssu_forward.18} parent=5 // pred_check_branch
      %116 = sbr.rel (%p113) target = $region12
    $region11: #{cssu_forward.18} parent=5 // pred_region
      %s117 = ssub.s32 %s9, 1
      // Predicated region
      $region13: #{cssu_forward.18} parent=11 // pred_check
        %p118 = pneg %p56
      $region14: #{cssu_forward.18} parent=11 // pred_check_branch
        %120 = sbr.rel (%p118) target = $region16
      $region15: #{cssu_forward.18} parent=11 // pred_region
        _
      $region16: #{cssu_forward.18} parent=11 // pred_fallthru
        _
      // Predicated region
      $region17: #{cssu_forward.18} parent=11 // pred_check
        %p121 = pneg %p77
      $region18: #{cssu_forward.18} parent=11 // pred_check_branch
        %123 = sbr.rel (%p121) target = $region20
      $region19: #{cssu_forward.18} parent=11 // pred_region
        _
      $region20: #{cssu_forward.18} parent=11 // pred_fallthru
        _
    $region12: #{cssu_forward.18} parent=5 // pred_fallthru
      _
    %p124 = scmp.lt.s32.totalorder %s9, 2
    // Predicated region
    $region21: #{cssu_forward.18} parent=5 // pred_check
      %p125 = pneg %p124
    $region22: #{cssu_forward.18} parent=5 // pred_check_branch
      %127 = sbr.rel (%p125) target = $region24
    $region23: #{cssu_forward.18} parent=5 // pred_region
      // Predicated region
      $region25: #{cssu_forward.18} parent=23 // pred_check
        %p128 = pneg %p29
      $region26: #{cssu_forward.18} parent=23 // pred_check_branch
        %130 = sbr.rel (%p128) target = $region28
      $region27: #{cssu_forward.18} parent=23 // pred_region
        %p131 = scmp.lt.s32.totalorder %s9, 1
        %s132 = scalar_select %p131, %s9, 1
        %s133 = smul.addr %s132, 8
        %s134 = smul.addr %s133, 8
        %s135 = scalar_lea.vmem %s0, %s134
      $region28: #{cssu_forward.18} parent=23 // pred_fallthru
        _
    $region24: #{cssu_forward.18} parent=5 // pred_fallthru
      _
    %p136 = scmp.le.s32.totalorder 1, %s9
    %p137 = scmp.lt.s32.totalorder %s9, 3
    %p138 = pnand %p136, %p137
    %p139 = pneg %p138
    // Predicated region
    $region29: #{cssu_forward.18} parent=5 // pred_check
      _
    $region30: #{cssu_forward.18} parent=5 // pred_check_branch
      %141 = sbr.rel (%p138) target = $region32
    $region31: #{cssu_forward.18} parent=5 // pred_region
      %s142 = ssub.s32 %s9, 1
      %p143 = scmp.lt.s32.totalorder %s14, 1
      %s144 = scalar_select %p143, %s14, 1
      %s145 = smul.addr %s144, 8
      %s146 = smul.addr %s145, 8
      %s147 = scalar_lea.vmem %s0, %s146
      %p148 = pneg %p35
      %p149 = pneg %p32
      %p150 = pneg %p56
      %p151 = pneg %p53
      %p152 = pneg %p77
      %p153 = pneg %p74
      %p154 = pneg %p103
      %p155 = pneg %p100
      %p156 = scmp.lt.s32.totalorder %s14, 1
      %s157 = scalar_select %p156, %s14, 1
      %s158 = smul.addr %s157, 8
      %s159 = smul.addr %s158, 8
      %s160 = scalar_lea.vmem %s3, %s159
      %p161 = scmp.lt.s32.totalorder %s14, 1
      %s162 = scalar_select %p161, %s14, 1
      %s163 = smul.addr %s162, 8
      %s164 = smul.addr %s163, 8
      %s165 = scalar_lea.vmem %s0, %s164
      %p166 = scmp.lt.s32.totalorder %s14, 1
      %s167 = scalar_select %p166, %s14, 1
      %s168 = smul.addr %s167, 8
      %s169 = smul.addr %s168, 8
      %s170 = scalar_lea.vmem %s3, %s169
      %v171 = vld [vmem:[%s165] sm:$0xff]
      %v172 = vld [vmem:[%s165 + $0x8] sm:$0xff]
      %v173 = vld [vmem:[%s165 + $0x10] sm:$0xff]
      %v174 = vld [vmem:[%s165 + $0x18] sm:$0xff]
      %v175 = vld [vmem:[%s165 + $0x20] sm:$0xff]
      %v176 = vld [vmem:[%s165 + $0x28] sm:$0xff]
      %v177 = vld [vmem:[%s165 + $0x30] sm:$0xff]
      %v178 = vld [vmem:[%s165 + $0x38] sm:$0xff]
      %vm179 = vcmask 64512
      %v180 = vsel %vm179, %v171, -inf
      %v181 = vsel %vm179, %v172, -inf
      %v182 = vsel %vm179, %v173, -inf
      %v183 = vsel %vm179, %v174, -inf
      %v184 = vsel %vm179, %v175, -inf
      %v185 = vmax.f32 %v180, %v184
      %v186 = vsel %vm179, %v176, -inf
      %v187 = vmax.f32 %v181, %v186
      %v188 = vsel %vm179, %v177, -inf
      %v189 = vmax.f32 %v182, %v188
      %v190 = vsel %vm179, %v178, -inf
      %v191 = vmax.f32 %v183, %v190
      %v192 = vmax.f32 %v185, %v187
      %v193 = vmax.f32 %v189, %v191
      %v194 = vmax.f32 %v192, %v193
      %v195 = vrot.slane %v194, 4
      %v196 = vmax.f32 %v194, %v195
      %v197 = vrot.slane %v196, 2
      %v198 = vmax.f32 %v196, %v197
      %v199 = vrot.slane %v198, 1
      %v200 = vmax.f32 %v198, %v199
      %v201 = vld [vmem:[%s1] sm:$0xff]
      %v203 = vsel %vm179, %v200, 0
      %205 = vmatprep.subr.mxu0 0.0
      %206 = vmatpush1.msra.mxu0 %v201
      %207 = vmatprep.subr.mxu0 0.0
      %208 = vmatpush1.msra.mxu0 0.0
      %209 = vmatprep.subr.mxu0 0.0
      %210 = vmatpush1.msra.mxu0 0.0
      %211 = vmatprep.subr.mxu0 0.0
      %212 = vmatpush1.msra.mxu0 0.0
      %213 = vmatprep.subr.mxu0 0.0
      %214 = vmatpush1.msra.mxu0 0.0
      %215 = vmatprep.subr.mxu0 0.0
      %216 = vmatpush1.msra.mxu0 0.0
      %217 = vmatprep.subr.mxu0 0.0
      %218 = vmatpush1.msra.mxu0 0.0
      %219 = vmatprep.subr.mxu0 0.0
      %220 = vmatpush1.msra.mxu0 0.0
      %221 = vmatprep.subr.mxu0 0.0
      %222 = vmatpush1.msra.mxu0 0.0
      %223 = vmatprep.subr.mxu0 0.0
      %224 = vmatpush1.msra.mxu0 0.0
      %225 = vmatprep.subr.mxu0 0.0
      %226 = vmatpush1.msra.mxu0 0.0
      %227 = vmatprep.subr.mxu0 0.0
      %228 = vmatpush1.msra.mxu0 0.0
      %229 = vmatprep.subr.mxu0 0.0
      %230 = vmatpush1.msra.mxu0 0.0
      %231 = vmatprep.subr.mxu0 0.0
      %232 = vmatpush1.msra.mxu0 0.0
      %233 = vmatprep.subr.mxu0 0.0
      %234 = vmatpush1.msra.mxu0 0.0
      %235 = vmatprep.subr.mxu0 0.0
      %236 = vmatpush1.msra.mxu0 0.0
      %237 = vmatprep.subr.mxu0 0.0
      %238 = vmatpush1.msra.mxu0 0.0
      %239 = vmatprep.subr.mxu0 0.0
      %240 = vmatpush1.msra.mxu0 0.0
      %241 = vmatprep.subr.mxu0 0.0
      %242 = vmatpush1.msra.mxu0 0.0
      %243 = vmatprep.subr.mxu0 0.0
      %244 = vmatpush1.msra.mxu0 0.0
      %245 = vmatprep.subr.mxu0 0.0
      %246 = vmatpush1.msra.mxu0 0.0
      %247 = vmatprep.subr.mxu0 0.0
      %248 = vmatpush1.msra.mxu0 0.0
      %249 = vmatprep.subr.mxu0 0.0
      %250 = vmatpush1.msra.mxu0 0.0
      %251 = vmatprep.subr.mxu0 0.0
      %252 = vmatpush1.msra.mxu0 0.0
      %253 = vmatprep.subr.mxu0 0.0
      %254 = vmatpush1.msra.mxu0 0.0
      %255 = vmatprep.subr.mxu0 0.0
      %256 = vmatpush1.msra.mxu0 0.0
      %257 = vmatprep.subr.mxu0 0.0
      %258 = vmatpush1.msra.mxu0 0.0
      %259 = vmatprep.subr.mxu0 0.0
      %260 = vmatpush1.msra.mxu0 0.0
      %261 = vmatprep.subr.mxu0 0.0
      %262 = vmatpush1.msra.mxu0 0.0
      %263 = vmatprep.subr.mxu0 0.0
      %264 = vmatpush1.msra.mxu0 0.0
      %265 = vmatprep.subr.mxu0 0.0
      %266 = vmatpush1.msra.mxu0 0.0
      %267 = vmatprep.subr.mxu0 0.0
      %268 = vmatpush1.msra.mxu0 0.0
      %269 = vmatprep.mubr.f32.mxu0 0.0
      %270 = vmatmul.mubr.f32.gmra.mrb[0].mxu0 %v203
      %v271 = vpop.f32.mrb[0].mxu0
      %v272 = vadd.f32 0.0, %v271
      %v273 = vpop.f32.mrb[0].mxu0
      %274 = vdwg.mxu0
      %v275 = vmax.f32 %v272, 0.0
      %v276 = vld [vmem:[%s2] sm:$0x3]
      %vm277 = vcmask 15360
      %v279 = vsel %vm277, %v275, 0
      %vm281 = vcmask 1041408
      %v283 = vsel %vm281, %v276, 0
      %285 = vmatprep.subr.mxu0 0.0
      %286 = vmatpush1.msra.mxu0 %v283
      %287 = vmatprep.subr.mxu0 0.0
      %288 = vmatpush1.msra.mxu0 0.0
      %289 = vmatprep.subr.mxu0 0.0
      %290 = vmatpush1.msra.mxu0 0.0
      %291 = vmatprep.subr.mxu0 0.0
      %292 = vmatpush1.msra.mxu0 0.0
      %293 = vmatprep.subr.mxu0 0.0
      %294 = vmatpush1.msra.mxu0 0.0
      %295 = vmatprep.subr.mxu0 0.0
      %296 = vmatpush1.msra.mxu0 0.0
      %297 = vmatprep.subr.mxu0 0.0
      %298 = vmatpush1.msra.mxu0 0.0
      %299 = vmatprep.subr.mxu0 0.0
      %300 = vmatpush1.msra.mxu0 0.0
      %301 = vmatprep.subr.mxu0 0.0
      %302 = vmatpush1.msra.mxu0 0.0
      %303 = vmatprep.subr.mxu0 0.0
      %304 = vmatpush1.msra.mxu0 0.0
      %305 = vmatprep.subr.mxu0 0.0
      %306 = vmatpush1.msra.mxu0 0.0
      %307 = vmatprep.subr.mxu0 0.0
      %308 = vmatpush1.msra.mxu0 0.0
      %309 = vmatprep.subr.mxu0 0.0
      %310 = vmatpush1.msra.mxu0 0.0
      %311 = vmatprep.subr.mxu0 0.0
      %312 = vmatpush1.msra.mxu0 0.0
      %313 = vmatprep.subr.mxu0 0.0
      %314 = vmatpush1.msra.mxu0 0.0
      %315 = vmatprep.subr.mxu0 0.0
      %316 = vmatpush1.msra.mxu0 0.0
      %317 = vmatprep.subr.mxu0 0.0
      %318 = vmatpush1.msra.mxu0 0.0
      %319 = vmatprep.subr.mxu0 0.0
      %320 = vmatpush1.msra.mxu0 0.0
      %321 = vmatprep.subr.mxu0 0.0
      %322 = vmatpush1.msra.mxu0 0.0
      %323 = vmatprep.subr.mxu0 0.0
      %324 = vmatpush1.msra.mxu0 0.0
      %325 = vmatprep.subr.mxu0 0.0
      %326 = vmatpush1.msra.mxu0 0.0
      %327 = vmatprep.subr.mxu0 0.0
      %328 = vmatpush1.msra.mxu0 0.0
      %329 = vmatprep.subr.mxu0 0.0
      %330 = vmatpush1.msra.mxu0 0.0
      %331 = vmatprep.subr.mxu0 0.0
      %332 = vmatpush1.msra.mxu0 0.0
      %333 = vmatprep.subr.mxu0 0.0
      %334 = vmatpush1.msra.mxu0 0.0
      %335 = vmatprep.subr.mxu0 0.0
      %336 = vmatpush1.msra.mxu0 0.0
      %337 = vmatprep.subr.mxu0 0.0
      %338 = vmatpush1.msra.mxu0 0.0
      %339 = vmatprep.subr.mxu0 0.0
      %340 = vmatpush1.msra.mxu0 0.0
      %341 = vmatprep.subr.mxu0 0.0
      %342 = vmatpush1.msra.mxu0 0.0
      %343 = vmatprep.subr.mxu0 0.0
      %344 = vmatpush1.msra.mxu0 0.0
      %345 = vmatprep.subr.mxu0 0.0
      %346 = vmatpush1.msra.mxu0 0.0
      %347 = vmatprep.subr.mxu0 0.0
      %348 = vmatpush1.msra.mxu0 0.0
      %349 = vmatprep.mubr.f32.mxu0 0.0
      %350 = vmatmul.mubr.f32.gmra.mrb[0].mxu0 %v279
      %v351 = vpop.f32.mrb[0].mxu0
      %v352 = vadd.f32 0.0, %v351
      %v353 = vpop.f32.mrb[0].mxu0
      %354 = vdwg.mxu0
      %v355 = vxor.u32 %v352, 2147483648
      %v356 = vmul.f32 %v355, 1.442695
      %v357 = vpow.pop %v356
      %v358 = vadd.f32 %v357, 1.0
      %v359 = vrcp.pop %v358
      %v360 = vmul.f32 1.0, %v359
      %v361 = vlaneseq
      %v362 = vshrl.u32 %v361, 7
      %v363 = vsub.s32 0, %v362
      %v364 = vrot.slane %v360, %v363
      %v365 = vmul.f32 %v171, %v364
      %v366 = vmul.f32 %v172, %v364
      %v367 = vmul.f32 %v173, %v364
      %v368 = vmul.f32 %v174, %v364
      %v369 = vmul.f32 %v175, %v364
      %v370 = vmul.f32 %v176, %v364
      %v371 = vmul.f32 %v177, %v364
      %v372 = vmul.f32 %v178, %v364
      %373 = vst.msk [vmem:[%s170] sm:$0xff] %vm179, %v365
      %374 = vst.msk [vmem:[%s170 + $0x8] sm:$0xff] %vm179, %v366
      %375 = vst.msk [vmem:[%s170 + $0x10] sm:$0xff] %vm179, %v367
      %376 = vst.msk [vmem:[%s170 + $0x18] sm:$0xff] %vm179, %v368
      %377 = vst.msk [vmem:[%s170 + $0x20] sm:$0xff] %vm179, %v369
      %378 = vst.msk [vmem:[%s170 + $0x28] sm:$0xff] %vm179, %v370
      %379 = vst.msk [vmem:[%s170 + $0x30] sm:$0xff] %vm179, %v371
      %380 = vst.msk [vmem:[%s170 + $0x38] sm:$0xff] %vm179, %v372
      %p381 = scmp.lt.s32.totalorder %s14, 1
      %s382 = scalar_select %p381, %s14, 1
      %s383 = smul.addr %s382, 8
      %s384 = smul.addr %s383, 8
      %s385 = scalar_lea.vmem %s3, %s384
      // Predicated region
      $region33: #{cssu_forward.18} parent=31 // pred_check
        %p386 = pneg %p100
      $region34: #{cssu_forward.18} parent=31 // pred_check_branch
        %388 = sbr.rel (%p386) target = $region36
      $region35: #{cssu_forward.18} parent=31 // pred_region
        _
      $region36: #{cssu_forward.18} parent=31 // pred_fallthru
        _
    $region32: #{cssu_forward.18} parent=5 // pred_fallthru
      _
    %p389 = scmp.le.s32.totalorder 2, %s9
    // Predicated region
    $region37: #{cssu_forward.18} parent=5 // pred_check
      %p390 = pneg %p389
    $region38: #{cssu_forward.18} parent=5 // pred_check_branch
      %392 = sbr.rel (%p390) target = $region40
    $region39: #{cssu_forward.18} parent=5 // pred_region
      %s393 = ssub.s32 %s9, 2
      // Predicated region
      $region41: #{cssu_forward.18} parent=39 // pred_check
        %p394 = pneg %p106
      $region42: #{cssu_forward.18} parent=39 // pred_check_branch
        %396 = sbr.rel (%p394) target = $region44
      $region43: #{cssu_forward.18} parent=39 // pred_region
        %p397 = scmp.lt.s32.totalorder %s15, 1
        %s398 = scalar_select %p397, %s15, 1
        %s399 = smul.addr %s398, 8
        %s400 = smul.addr %s399, 8
        %s401 = scalar_lea.vmem %s3, %s400
      $region44: #{cssu_forward.18} parent=39 // pred_fallthru
        _
    $region40: #{cssu_forward.18} parent=5 // pred_fallthru
      _
  $region6: #{cssu_forward.18} parent=0 // loop_footer
    %s13 = sadd.s32 1, %s9
  $region7: #{cssu_forward.18} parent=0 // loop_footer_branch
    %8 = sbr.rel target = $region3
  $region8: #{cssu_forward.18} parent=0 // loop_exit
    _

// kernel: cssu_forward.16
$region0: #{cssu_forward.16}
  #allocation0 [shape = 'u32[]', space=smem, size = 0x4, offset = 0x4, fixed_abs, tag = 'smem constant byte address 0x4 - core index']
  #allocation1 [shape = 'u32[144,128]{1,0:T(1,128)}', space=vmem, size = 0x12000, scoped, tag = 'internal scratch']
  %s0 = inlined_call_operand.vmem [shape: f32[2,10,10,8], index: 0, kind: input, shape index: {}]
  %s1 = inlined_call_operand.vmem [shape: f32[9,8,8], index: 1, kind: input, shape index: {}]
  %s2 = inlined_call_operand.vmem [shape: f32[1,8], index: 2, kind: input, shape index: {}]
  %s3 = inlined_call_operand.vmem [shape: f32[1,8], index: 3, kind: input, shape index: {}]
  %s4 = inlined_call_operand.vmem [shape: f32[2,8,8,8], index: 4, kind: output, shape index: {}]
  %s5 = sld [smem:[#allocation0]]
  $region49: #{cssu_forward.16} parent=0
    _
  %s7 = ssub.s32 1, %s5
  %s8 = scalar_select 0, %s7, %s5
  loop: start=0, step=1, limit=4
  $region2: #{cssu_forward.16} parent=0 // loop_pre_header
    _
  $region3: #{cssu_forward.16} parent=0 // loop_header
    %s10 = sphi 0, %s14
    %p11 = scmp.ge.s32.totalorder %s10, 4
    %s20 = sphi 0, %s22
    %s23 = sphi 0, %s20
    %s24 = sphi 0, %s23
    %s40 = sphi 0, %s24
    %s44 = sphi 0, %s44
    %s46 = sphi 0, %s44
    %s47 = sphi 0, %s46
    %s61 = sphi 0, %s47
    %s65 = sphi 0, %s65
    %s67 = sphi 0, %s65
    %s68 = sphi 0, %s67
    %s82 = sphi 0, %s68
    %s86 = sphi 0, %s86
    %s88 = sphi 0, %s86
    %s89 = sphi 0, %s88
    %s103 = sphi 0, %s89
    %s109 = sphi 0, %s111
    %s112 = sphi 0, %s109
    %s113 = sphi 0, %s112
    %s129 = sphi 0, %s113
  $region4: #{cssu_forward.16} parent=0 // loop_header_branch
    %13 = sbr.rel (%p11) target = $region8
  $region5: #{cssu_forward.16} parent=0 // loop_body
    %s15 = ssub.s32 %s10, 1
    %s16 = ssub.s32 %s10, 2
    %s17 = sadd.s32 %s10, 1
    %s18 = ssub.s32 %s10, %s17
    %p19 = scmp.eq.s32.totalorder %s18, 0
    %s21 = sadd.s32 %s20, 1
    %s22 = scalar_select %p19, %s20, %s21
    %p25 = pneg %p19
    %p26 = scmp.eq.s32.totalorder %s10, 1
    %p27 = por %p25, %p26
    %p28 = scmp.ne.s32.totalorder %s20, %s23
    %p29 = scmp.eq.s32.totalorder %s10, 0
    %p30 = por %p28, %p29
    %p31 = scmp.ne.s32.totalorder %s20, %s23
    %p32 = scmp.eq.s32.totalorder %s15, 1
    %p33 = por %p31, %p32
    %p34 = scmp.ne.s32.totalorder %s23, %s24
    %p35 = scmp.eq.s32.totalorder %s15, 0
    %p36 = por %p34, %p35
    %p37 = scmp.ne.s32.totalorder %s23, %s24
    %p38 = scmp.eq.s32.totalorder %s16, 1
    %p39 = por %p37, %p38
    %p41 = scmp.ne.s32.totalorder %s24, %s40
    %p42 = scmp.eq.s32.totalorder %s16, 0
    %p43 = por %p41, %p42
    %s45 = sadd.s32 %s44, 1
    %p48 = scmp.eq.s32.totalorder %s10, 1
    %p49 = scmp.ne.s32.totalorder %s44, %s46
    %p50 = scmp.eq.s32.totalorder %s10, 0
    %p51 = por %p49, %p50
    %p52 = scmp.ne.s32.totalorder %s44, %s46
    %p53 = scmp.eq.s32.totalorder %s15, 1
    %p54 = por %p52, %p53
    %p55 = scmp.ne.s32.totalorder %s46, %s47
    %p56 = scmp.eq.s32.totalorder %s15, 0
    %p57 = por %p55, %p56
    %p58 = scmp.ne.s32.totalorder %s46, %s47
    %p59 = scmp.eq.s32.totalorder %s16, 1
    %p60 = por %p58, %p59
    %p62 = scmp.ne.s32.totalorder %s47, %s61
    %p63 = scmp.eq.s32.totalorder %s16, 0
    %p64 = por %p62, %p63
    %s66 = sadd.s32 %s65, 1
    %p69 = scmp.eq.s32.totalorder %s10, 1
    %p70 = scmp.ne.s32.totalorder %s65, %s67
    %p71 = scmp.eq.s32.totalorder %s10, 0
    %p72 = por %p70, %p71
    %p73 = scmp.ne.s32.totalorder %s65, %s67
    %p74 = scmp.eq.s32.totalorder %s15, 1
    %p75 = por %p73, %p74
    %p76 = scmp.ne.s32.totalorder %s67, %s68
    %p77 = scmp.eq.s32.totalorder %s15, 0
    %p78 = por %p76, %p77
    %p79 = scmp.ne.s32.totalorder %s67, %s68
    %p80 = scmp.eq.s32.totalorder %s16, 1
    %p81 = por %p79, %p80
    %p83 = scmp.ne.s32.totalorder %s68, %s82
    %p84 = scmp.eq.s32.totalorder %s16, 0
    %p85 = por %p83, %p84
    %s87 = sadd.s32 %s86, 1
    %p90 = scmp.eq.s32.totalorder %s10, 1
    %p91 = scmp.ne.s32.totalorder %s86, %s88
    %p92 = scmp.eq.s32.totalorder %s10, 0
    %p93 = por %p91, %p92
    %p94 = scmp.ne.s32.totalorder %s86, %s88
    %p95 = scmp.eq.s32.totalorder %s15, 1
    %p96 = por %p94, %p95
    %p97 = scmp.ne.s32.totalorder %s88, %s89
    %p98 = scmp.eq.s32.totalorder %s15, 0
    %p99 = por %p97, %p98
    %p100 = scmp.ne.s32.totalorder %s88, %s89
    %p101 = scmp.eq.s32.totalorder %s16, 1
    %p102 = por %p100, %p101
    %p104 = scmp.ne.s32.totalorder %s89, %s103
    %p105 = scmp.eq.s32.totalorder %s16, 0
    %p106 = por %p104, %p105
    %s107 = ssub.s32 %s10, %s17
    %p108 = scmp.eq.s32.totalorder %s107, 0
    %s110 = sadd.s32 %s109, 1
    %s111 = scalar_select %p108, %s109, %s110
    %p114 = pneg %p108
    %p115 = scmp.eq.s32.totalorder %s10, 1
    %p116 = por %p114, %p115
    %p117 = scmp.ne.s32.totalorder %s109, %s112
    %p118 = scmp.eq.s32.totalorder %s10, 0
    %p119 = por %p117, %p118
    %p120 = scmp.ne.s32.totalorder %s109, %s112
    %p121 = scmp.eq.s32.totalorder %s15, 1
    %p122 = por %p120, %p121
    %p123 = scmp.ne.s32.totalorder %s112, %s113
    %p124 = scmp.eq.s32.totalorder %s15, 0
    %p125 = por %p123, %p124
    %p126 = scmp.ne.s32.totalorder %s112, %s113
    %p127 = scmp.eq.s32.totalorder %s16, 1
    %p128 = por %p126, %p127
    %p130 = scmp.ne.s32.totalorder %s113, %s129
    %p131 = scmp.eq.s32.totalorder %s16, 0
    %p132 = por %p130, %p131
    %p133 = scmp.le.s32.totalorder 1, %s10
    %p134 = scmp.lt.s32.totalorder %s10, 3
    %p135 = pnand %p133, %p134
    %p136 = pneg %p135
    // Predicated region
    $region9: #{cssu_forward.16} parent=5 // pred_check
      _
    $region10: #{cssu_forward.16} parent=5 // pred_check_branch
      %138 = sbr.rel (%p135) target = $region12
    $region11: #{cssu_forward.16} parent=5 // pred_region
      %s139 = ssub.s32 %s10, 1
      // Predicated region
      $region13: #{cssu_forward.16} parent=11 // pred_check
        %p140 = pneg %p57
      $region14: #{cssu_forward.16} parent=11 // pred_check_branch
        %142 = sbr.rel (%p140) target = $region16
      $region15: #{cssu_forward.16} parent=11 // pred_region
        _
      $region16: #{cssu_forward.16} parent=11 // pred_fallthru
        _
      // Predicated region
      $region17: #{cssu_forward.16} parent=11 // pred_check
        %p143 = pneg %p78
      $region18: #{cssu_forward.16} parent=11 // pred_check_branch
        %145 = sbr.rel (%p143) target = $region20
      $region19: #{cssu_forward.16} parent=11 // pred_region
        _
      $region20: #{cssu_forward.16} parent=11 // pred_fallthru
        _
      // Predicated region
      $region21: #{cssu_forward.16} parent=11 // pred_check
        %p146 = pneg %p99
      $region22: #{cssu_forward.16} parent=11 // pred_check_branch
        %148 = sbr.rel (%p146) target = $region24
      $region23: #{cssu_forward.16} parent=11 // pred_region
        _
      $region24: #{cssu_forward.16} parent=11 // pred_fallthru
        _
    $region12: #{cssu_forward.16} parent=5 // pred_fallthru
      _
    %p149 = scmp.lt.s32.totalorder %s10, 2
    // Predicated region
    $region25: #{cssu_forward.16} parent=5 // pred_check
      %p150 = pneg %p149
    $region26: #{cssu_forward.16} parent=5 // pred_check_branch
      %152 = sbr.rel (%p150) target = $region28
    $region27: #{cssu_forward.16} parent=5 // pred_region
      // Predicated region
      $region29: #{cssu_forward.16} parent=27 // pred_check
        %p153 = pneg %p30
      $region30: #{cssu_forward.16} parent=27 // pred_check_branch
        %155 = sbr.rel (%p153) target = $region32
      $region31: #{cssu_forward.16} parent=27 // pred_region
        %p156 = scmp.lt.s32.totalorder %s10, 1
        %s157 = scalar_select %p156, %s10, 1
        %s158 = smul.addr %s157, 20
        %s159 = smul.addr %s158, 8
        %s160 = scalar_lea.vmem %s0, %s159
      $region32: #{cssu_forward.16} parent=27 // pred_fallthru
        _
    $region28: #{cssu_forward.16} parent=5 // pred_fallthru
      _
    %p161 = scmp.le.s32.totalorder 1, %s10
    %p162 = scmp.lt.s32.totalorder %s10, 3
    %p163 = pnand %p161, %p162
    %p164 = pneg %p163
    // Predicated region
    $region33: #{cssu_forward.16} parent=5 // pred_check
      _
    $region34: #{cssu_forward.16} parent=5 // pred_check_branch
      %166 = sbr.rel (%p163) target = $region36
    $region35: #{cssu_forward.16} parent=5 // pred_region
      %s167 = ssub.s32 %s10, 1
      %p168 = scmp.lt.s32.totalorder %s15, 1
      %s169 = scalar_select %p168, %s15, 1
      %s170 = smul.addr %s169, 20
      %s171 = smul.addr %s170, 8
      %s172 = scalar_lea.vmem %s0, %s171
      %p173 = pneg %p36
      %p174 = pneg %p33
      %p175 = pneg %p57
      %p176 = pneg %p54
      %p177 = pneg %p78
      %p178 = pneg %p75
      %p179 = pneg %p99
      %p180 = pneg %p96
      %p181 = pneg %p125
      %p182 = pneg %p122
      %p183 = scmp.lt.s32.totalorder %s15, 1
      %s184 = scalar_select %p183, %s15, 1
      %s185 = smul.addr %s184, 8
      %s186 = smul.addr %s185, 8
      %s187 = scalar_lea.vmem %s4, %s186
      %p188 = scmp.lt.s32.totalorder %s15, 1
      %s189 = scalar_select %p188, %s15, 1
      %s190 = smul.addr %s189, 20
      %s191 = smul.addr %s190, 8
      %s192 = scalar_lea.vmem %s0, %s191
      %p193 = scmp.lt.s32.totalorder %s15, 1
      %s194 = scalar_select %p193, %s15, 1
      %s195 = smul.addr %s194, 8
      %s196 = smul.addr %s195, 8
      %s197 = scalar_lea.vmem %s4, %s196
      %v198 = vld [vmem:[%s192] sm:$0xff]
      %v199 = vld [vmem:[%s192 + $0x8] sm:$0x3]
      %v200 = vld [vmem:[%s192 + $0x10] sm:$0xff]
      %v201 = vld [vmem:[%s192 + $0x18] sm:$0x3]
      %v202 = vld [vmem:[%s192 + $0x20] sm:$0xff]
      %v203 = vld [vmem:[%s192 + $0x28] sm:$0x3]
      %v204 = vld [vmem:[%s192 + $0x30] sm:$0xff]
      %v205 = vld [vmem:[%s192 + $0x38] sm:$0x3]
      %v206 = vld [vmem:[%s192 + $0x40] sm:$0xff]
      %v207 = vld [vmem:[%s192 + $0x48] sm:$0x3]
      %v208 = vld [vmem:[%s192 + $0x50] sm:$0xff]
      %v209 = vld [vmem:[%s192 + $0x58] sm:$0x3]
      %v210 = vld [vmem:[%s192 + $0x60] sm:$0xff]
      %v211 = vld [vmem:[%s192 + $0x68] sm:$0x3]
      %v212 = vld [vmem:[%s192 + $0x70] sm:$0xff]
      %v213 = vld [vmem:[%s192 + $0x78] sm:$0x3]
      %v214 = vld [vmem:[%s192 + $0x80] sm:$0xff]
      %v215 = vld [vmem:[%s192 + $0x88] sm:$0x3]
      %v216 = vld [vmem:[%s192 + $0x90] sm:$0xff]
      %v217 = vld [vmem:[%s192 + $0x98] sm:$0x3]
      %v218 = vld [vmem:[%s1] sm:$0xff]
      %vm235 = vcmask 1046528
      %v236 = vrot.slane %v198, 1
      %v237 = vrot.slane %v199, 1
      %v238 = vsel %vm235, %v236, %v237
      %v239 = vrot.slane %v200, 1
      %v240 = vrot.slane %v201, 1
      %v241 = vsel %vm235, %v239, %v240
      %v242 = vrot.slane %v202, 1
      %v243 = vrot.slane %v203, 1
      %v244 = vsel %vm235, %v242, %v243
      %v245 = vrot.slane %v204, 1
      %v246 = vrot.slane %v205, 1
      %v247 = vsel %vm235, %v245, %v246
      %v248 = vrot.slane %v206, 1
      %v249 = vrot.slane %v207, 1
      %v250 = vsel %vm235, %v248, %v249
      %v251 = vrot.slane %v208, 1
      %v252 = vrot.slane %v209, 1
      %v253 = vsel %vm235, %v251, %v252
      %v254 = vrot.slane %v210, 1
      %v255 = vrot.slane %v211, 1
      %v256 = vsel %vm235, %v254, %v255
      %v257 = vrot.slane %v212, 1
      %v258 = vrot.slane %v213, 1
      %v259 = vsel %vm235, %v257, %v258
      %s260 = scalar_lea.vmem %s1, 8
      %v261 = vld [vmem:[%s260] sm:$0xff]
      %vm262 = vcmask 64512
      %v263 = vsel %vm262, %v238, 0
      %v265 = vsel %vm262, %v241, 0
      %v267 = vsel %vm262, %v244, 0
      %v269 = vsel %vm262, %v247, 0
      %v271 = vsel %vm262, %v250, 0
      %v273 = vsel %vm262, %v253, 0
      %v275 = vsel %vm262, %v256, 0
      %v277 = vsel %vm262, %v259, 0
      %279 = vmatprep.subr.mxu0 0.0
      %280 = vmatpush1.msra.mxu0 %v261
      %281 = vmatprep.subr.mxu0 0.0
      %282 = vmatpush1.msra.mxu0 0.0
      %283 = vmatprep.subr.mxu0 0.0
      %284 = vmatpush1.msra.mxu0 0.0
      %285 = vmatprep.subr.mxu0 0.0
      %286 = vmatpush1.msra.mxu0 0.0
      %287 = vmatprep.subr.mxu0 0.0
      %288 = vmatpush1.msra.mxu0 0.0
      %289 = vmatprep.subr.mxu0 0.0
      %290 = vmatpush1.msra.mxu0 0.0
      %291 = vmatprep.subr.mxu0 0.0
      %292 = vmatpush1.msra.mxu0 0.0
      %293 = vmatprep.subr.mxu0 0.0
      %294 = vmatpush1.msra.mxu0 0.0
      %295 = vmatprep.subr.mxu0 0.0
      %296 = vmatpush1.msra.mxu0 0.0
      %297 = vmatprep.subr.mxu0 0.0
      %298 = vmatpush1.msra.mxu0 0.0
      %299 = vmatprep.subr.mxu0 0.0
      %300 = vmatpush1.msra.mxu0 0.0
      %301 = vmatprep.subr.mxu0 0.0
      %302 = vmatpush1.msra.mxu0 0.0
      %303 = vmatprep.subr.mxu0 0.0
      %304 = vmatpush1.msra.mxu0 0.0
      %305 = vmatprep.subr.mxu0 0.0
      %306 = vmatpush1.msra.mxu0 0.0
      %307 = vmatprep.subr.mxu0 0.0
      %308 = vmatpush1.msra.mxu0 0.0
      %309 = vmatprep.subr.mxu0 0.0
      %310 = vmatpush1.msra.mxu0 0.0
      %311 = vmatprep.subr.mxu0 0.0
      %312 = vmatpush1.msra.mxu0 0.0
      %313 = vmatprep.subr.mxu0 0.0
      %314 = vmatpush1.msra.mxu0 0.0
      %315 = vmatprep.subr.mxu0 0.0
      %316 = vmatpush1.msra.mxu0 0.0
      %317 = vmatprep.subr.mxu0 0.0
      %318 = vmatpush1.msra.mxu0 0.0
      %319 = vmatprep.subr.mxu0 0.0
      %320 = vmatpush1.msra.mxu0 0.0
      %321 = vmatprep.subr.mxu0 0.0
      %322 = vmatpush1.msra.mxu0 0.0
      %323 = vmatprep.subr.mxu0 0.0
      %324 = vmatpush1.msra.mxu0 0.0
      %325 = vmatprep.subr.mxu0 0.0
      %326 = vmatpush1.msra.mxu0 0.0
      %327 = vmatprep.subr.mxu0 0.0
      %328 = vmatpush1.msra.mxu0 0.0
      %329 = vmatprep.subr.mxu0 0.0
      %330 = vmatpush1.msra.mxu0 0.0
      %331 = vmatprep.subr.mxu0 0.0
      %332 = vmatpush1.msra.mxu0 0.0
      %333 = vmatprep.subr.mxu0 0.0
      %334 = vmatpush1.msra.mxu0 0.0
      %335 = vmatprep.subr.mxu0 0.0
      %336 = vmatpush1.msra.mxu0 0.0
      %337 = vmatprep.subr.mxu0 0.0
      %338 = vmatpush1.msra.mxu0 0.0
      %339 = vmatprep.subr.mxu0 0.0
      %340 = vmatpush1.msra.mxu0 0.0
      %341 = vmatprep.subr.mxu0 0.0
      %342 = vmatpush1.msra.mxu0 0.0
      %343 = vmatprep.mubr.f32.mxu0 0.0
      %344 = vmatmul.mubr.f32.gmra.mrb[0].mxu0 %v263
      %v345 = vpop.f32.mrb[0].mxu0
      %v346 = vadd.f32 0.0, %v345
      %v347 = vpop.f32.mrb[0].mxu0
      %348 = vmatprep.mubr.f32.mxu0 0.0
      %349 = vmatmul.mubr.f32.gmra.mrb[0].mxu0 %v265
      %v350 = vpop.f32.mrb[0].mxu0
      %v351 = vadd.f32 0.0, %v350
      %v352 = vpop.f32.mrb[0].mxu0
      %353 = vmatprep.mubr.f32.mxu0 0.0
      %354 = vmatmul.mubr.f32.gmra.mrb[0].mxu0 %v267
      %v355 = vpop.f32.mrb[0].mxu0
      %v356 = vadd.f32 0.0, %v355
      %v357 = vpop.f32.mrb[0].mxu0
      %358 = vmatprep.mubr.f32.mxu0 0.0
      %359 = vmatmul.mubr.f32.gmra.mrb[0].mxu0 %v269
      %v360 = vpop.f32.mrb[0].mxu0
      %v361 = vadd.f32 0.0, %v360
      %v362 = vpop.f32.mrb[0].mxu0
      %363 = vmatprep.mubr.f32.mxu0 0.0
      %364 = vmatmul.mubr.f32.gmra.mrb[0].mxu0 %v271
      %v365 = vpop.f32.mrb[0].mxu0
      %v366 = vadd.f32 0.0, %v365
      %v367 = vpop.f32.mrb[0].mxu0
      %368 = vmatprep.mubr.f32.mxu0 0.0
      %369 = vmatmul.mubr.f32.gmra.mrb[0].mxu0 %v273
      %v370 = vpop.f32.mrb[0].mxu0
      %v371 = vadd.f32 0.0, %v370
      %v372 = vpop.f32.mrb[0].mxu0
      %373 = vmatprep.mubr.f32.mxu0 0.0
      %374 = vmatmul.mubr.f32.gmra.mrb[0].mxu0 %v275
      %v375 = vpop.f32.mrb[0].mxu0
      %v376 = vadd.f32 0.0, %v375
      %v377 = vpop.f32.mrb[0].mxu0
      %378 = vmatprep.mubr.f32.mxu0 0.0
      %379 = vmatmul.mubr.f32.gmra.mrb[0].mxu0 %v277
      %v380 = vpop.f32.mrb[0].mxu0
      %v381 = vadd.f32 0.0, %v380
      %v382 = vpop.f32.mrb[0].mxu0
      %383 = vdwg.mxu0
      %v384 = vsel %vm262, %v198, 0
      %v386 = vsel %vm262, %v200, 0
      %v388 = vsel %vm262, %v202, 0
      %v390 = vsel %vm262, %v204, 0
      %v392 = vsel %vm262, %v206, 0
      %v394 = vsel %vm262, %v208, 0
      %v396 = vsel %vm262, %v210, 0
      %v398 = vsel %vm262, %v212, 0
      %400 = vmatprep.subr.mxu0 0.0
      %401 = vmatpush1.msra.mxu0 %v218
      %402 = vmatprep.subr.mxu0 0.0
      %403 = vmatpush1.msra.mxu0 0.0
      %404 = vmatprep.subr.mxu0 0.0
      %405 = vmatpush1.msra.mxu0 0.0
      %406 = vmatprep.subr.mxu0 0.0
      %407 = vmatpush1.msra.mxu0 0.0
      %408 = vmatprep.subr.mxu0 0.0
      %409 = vmatpush1.msra.mxu0 0.0
      %410 = vmatprep.subr.mxu0 0.0
      %411 = vmatpush1.msra.mxu0 0.0
      %412 = vmatprep.subr.mxu0 0.0
      %413 = vmatpush1.msra.mxu0 0.0
      %414 = vmatprep.subr.mxu0 0.0
      %415 = vmatpush1.msra.mxu0 0.0
      %416 = vmatprep.subr.mxu0 0.0
      %417 = vmatpush1.msra.mxu0 0.0
      %418 = vmatprep.subr.mxu0 0.0
      %419 = vmatpush1.msra.mxu0 0.0
      %420 = vmatprep.subr.mxu0 0.0
      %421 = vmatpush1.msra.mxu0 0.0
      %422 = vmatprep.subr.mxu0 0.0
      %423 = vmatpush1.msra.mxu0 0.0
      %424 = vmatprep.subr.mxu0 0.0
      %425 = vmatpush1.msra.mxu0 0.0
      %426 = vmatprep.subr.mxu0 0.0
      %427 = vmatpush1.msra.mxu0 0.0
      %428 = vmatprep.subr.mxu0 0.0
      %429 = vmatpush1.msra.mxu0 0.0
      %430 = vmatprep.subr.mxu0 0.0
      %431 = vmatpush1.msra.mxu0 0.0
      %432 = vmatprep.subr.mxu0 0.0
      %433 = vmatpush1.msra.mxu0 0.0
      %434 = vmatprep.subr.mxu0 0.0
      %435 = vmatpush1.msra.mxu0 0.0
      %436 = vmatprep.subr.mxu0 0.0
      %437 = vmatpush1.msra.mxu0 0.0
      %438 = vmatprep.subr.mxu0 0.0
      %439 = vmatpush1.msra.mxu0 0.0
      %440 = vmatprep.subr.mxu0 0.0
      %441 = vmatpush1.msra.mxu0 0.0
      %442 = vmatprep.subr.mxu0 0.0
      %443 = vmatpush1.msra.mxu0 0.0
      %444 = vmatprep.subr.mxu0 0.0
      %445 = vmatpush1.msra.mxu0 0.0
      %446 = vmatprep.subr.mxu0 0.0
      %447 = vmatpush1.msra.mxu0 0.0
      %448 = vmatprep.subr.mxu0 0.0
      %449 = vmatpush1.msra.mxu0 0.0
      %450 = vmatprep.subr.mxu0 0.0
      %451 = vmatpush1.msra.mxu0 0.0
      %452 = vmatprep.subr.mxu0 0.0
      %453 = vmatpush1.msra.mxu0 0.0
      %454 = vmatprep.subr.mxu0 0.0
      %455 = vmatpush1.msra.mxu0 0.0
      %456 = vmatprep.subr.mxu0 0.0
      %457 = vmatpush1.msra.mxu0 0.0
      %458 = vmatprep.subr.mxu0 0.0
      %459 = vmatpush1.msra.mxu0 0.0
      %460 = vmatprep.subr.mxu0 0.0
      %461 = vmatpush1.msra.mxu0 0.0
      %462 = vmatprep.subr.mxu0 0.0
      %463 = vmatpush1.msra.mxu0 0.0
      %464 = vmatprep.mubr.f32.mxu0 0.0
      %465 = vmatmul.mubr.f32.gmra.mrb[0].mxu0 %v384
      %v466 = vpop.f32.mrb[0].mxu0
      %v467 = vadd.f32 %v346, %v466
      %v468 = vpop.f32.mrb[0].mxu0
      %469 = vmatprep.mubr.f32.mxu0 0.0
      %470 = vmatmul.mubr.f32.gmra.mrb[0].mxu0 %v386
      %v471 = vpop.f32.mrb[0].mxu0
      %v472 = vadd.f32 %v351, %v471
      %v473 = vpop.f32.mrb[0].mxu0
      %474 = vmatprep.mubr.f32.mxu0 0.0
      %475 = vmatmul.mubr.f32.gmra.mrb[0].mxu0 %v388
      %v476 = vpop.f32.mrb[0].mxu0
      %v477 = vadd.f32 %v356, %v476
      %v478 = vpop.f32.mrb[0].mxu0
      %479 = vmatprep.mubr.f32.mxu0 0.0
      %480 = vmatmul.mubr.f32.gmra.mrb[0].mxu0 %v390
      %v481 = vpop.f32.mrb[0].mxu0
      %v482 = vadd.f32 %v361, %v481
      %v483 = vpop.f32.mrb[0].mxu0
      %484 = vmatprep.mubr.f32.mxu0 0.0
      %485 = vmatmul.mubr.f32.gmra.mrb[0].mxu0 %v392
      %v486 = vpop.f32.mrb[0].mxu0
      %v487 = vadd.f32 %v366, %v486
      %v488 = vpop.f32.mrb[0].mxu0
      %489 = vmatprep.mubr.f32.mxu0 0.0
      %490 = vmatmul.mubr.f32.gmra.mrb[0].mxu0 %v394
      %v491 = vpop.f32.mrb[0].mxu0
      %v492 = vadd.f32 %v371, %v491
      %v493 = vpop.f32.mrb[0].mxu0
      %494 = vmatprep.mubr.f32.mxu0 0.0
      %495 = vmatmul.mubr.f32.gmra.mrb[0].mxu0 %v396
      %v496 = vpop.f32.mrb[0].mxu0
      %v497 = vadd.f32 %v376, %v496
      %v498 = vpop.f32.mrb[0].mxu0
      %499 = vmatprep.mubr.f32.mxu0 0.0
      %500 = vmatmul.mubr.f32.gmra.mrb[0].mxu0 %v398
      %v501 = vpop.f32.mrb[0].mxu0
      %v502 = vadd.f32 %v381, %v501
      %v503 = vpop.f32.mrb[0].mxu0
      %504 = vdwg.mxu0
      %vm505 = vcmask 1045504
      %v506 = vrot.slane %v198, 2
      %v507 = vrot.slane %v199, 2
      %v508 = vsel %vm505, %v506, %v507
      %v509 = vrot.slane %v200, 2
      %v510 = vrot.slane %v201, 2
      %v511 = vsel %vm505, %v509, %v510
      %v512 = vrot.slane %v202, 2
      %v513 = vrot.slane %v203, 2
      %v514 = vsel %vm505, %v512, %v513
      %v515 = vrot.slane %v204, 2
      %v516 = vrot.slane %v205, 2
      %v517 = vsel %vm505, %v515, %v516
      %v518 = vrot.slane %v206, 2
      %v519 = vrot.slane %v207, 2
      %v520 = vsel %vm505, %v518, %v519
      %v521 = vrot.slane %v208, 2
      %v522 = vrot.slane %v209, 2
      %v523 = vsel %vm505, %v521, %v522
      %v524 = vrot.slane %v210, 2
      %v525 = vrot.slane %v211, 2
      %v526 = vsel %vm505, %v524, %v525
      %v527 = vrot.slane %v212, 2
      %v528 = vrot.slane %v213, 2
      %v529 = vsel %vm505, %v527, %v528
      %s530 = scalar_lea.vmem %s1, 16
      %v531 = vld [vmem:[%s530] sm:$0xff]
      %v532 = vsel %vm262, %v508, 0
      %v534 = vsel %vm262, %v511, 0
      %v536 = vsel %vm262, %v514, 0
      %v538 = vsel %vm262, %v517, 0
      %v540 = vsel %vm262, %v520, 0
      %v542 = vsel %vm262, %v523, 0
      %v544 = vsel %vm262, %v526, 0
      %v546 = vsel %vm262, %v529, 0
      %548 = vmatprep.subr.mxu0 0.0
      %549 = vmatpush1.msra.mxu0 %v531
      %550 = vmatprep.subr.mxu0 0.0
      %551 = vmatpush1.msra.mxu0 0.0
      %552 = vmatprep.subr.mxu0 0.0
      %553 = vmatpush1.msra.mxu0 0.0
      %554 = vmatprep.subr.mxu0 0.0
      %555 = vmatpush1.msra.mxu0 0.0
      %556 = vmatprep.subr.mxu0 0.0
      %557 = vmatpush1.msra.mxu0 0.0
      %558 = vmatprep.subr.mxu0 0.0
      %559 = vmatpush1.msra.mxu0 0.0
      %560 = vmatprep.subr.mxu0 0.0
      %561 = vmatpush1.msra.mxu0 0.0
      %562 = vmatprep.subr.mxu0 0.0
      %563 = vmatpush1.msra.mxu0 0.0
      %564 = vmatprep.subr.mxu0 0.0
      %565 = vmatpush1.msra.mxu0 0.0
      %566 = vmatprep.subr.mxu0 0.0
      %567 = vmatpush1.msra.mxu0 0.0
      %568 = vmatprep.subr.mxu0 0.0
      %569 = vmatpush1.msra.mxu0 0.0
      %570 = vmatprep.subr.mxu0 0.0
      %571 = vmatpush1.msra.mxu0 0.0
      %572 = vmatprep.subr.mxu0 0.0
      %573 = vmatpush1.msra.mxu0 0.0
      %574 = vmatprep.subr.mxu0 0.0
      %575 = vmatpush1.msra.mxu0 0.0
      %576 = vmatprep.subr.mxu0 0.0
      %577 = vmatpush1.msra.mxu0 0.0
      %578 = vmatprep.subr.mxu0 0.0
      %579 = vmatpush1.msra.mxu0 0.0
      %580 = vmatprep.subr.mxu0 0.0
      %581 = vmatpush1.msra.mxu0 0.0
      %582 = vmatprep.subr.mxu0 0.0
      %583 = vmatpush1.msra.mxu0 0.0
      %584 = vmatprep.subr.mxu0 0.0
      %585 = vmatpush1.msra.mxu0 0.0
      %586 = vmatprep.subr.mxu0 0.0
      %587 = vmatpush1.msra.mxu0 0.0
      %588 = vmatprep.subr.mxu0 0.0
      %589 = vmatpush1.msra.mxu0 0.0
      %590 = vmatprep.subr.mxu0 0.0
      %591 = vmatpush1.msra.mxu0 0.0
      %592 = vmatprep.subr.mxu0 0.0
      %593 = vmatpush1.msra.mxu0 0.0
      %594 = vmatprep.subr.mxu0 0.0
      %595 = vmatpush1.msra.mxu0 0.0
      %596 = vmatprep.subr.mxu0 0.0
      %597 = vmatpush1.msra.mxu0 0.0
      %598 = vmatprep.subr.mxu0 0.0
      %599 = vmatpush1.msra.mxu0 0.0
      %600 = vmatprep.subr.mxu0 0.0
      %601 = vmatpush1.msra.mxu0 0.0
      %602 = vmatprep.subr.mxu0 0.0
      %603 = vmatpush1.msra.mxu0 0.0
      %604 = vmatprep.subr.mxu0 0.0
      %605 = vmatpush1.msra.mxu0 0.0
      %606 = vmatprep.subr.mxu0 0.0
      %607 = vmatpush1.msra.mxu0 0.0
      %608 = vmatprep.subr.mxu0 0.0
      %609 = vmatpush1.msra.mxu0 0.0
      %610 = vmatprep.subr.mxu0 0.0
      %611 = vmatpush1.msra.mxu0 0.0
      %612 = vmatprep.mubr.f32.mxu0 0.0
      %613 = vmatmul.mubr.f32.gmra.mrb[0].mxu0 %v532
      %v614 = vpop.f32.mrb[0].mxu0
      %v615 = vadd.f32 0.0, %v614
      %v616 = vpop.f32.mrb[0].mxu0
      %617 = vmatprep.mubr.f32.mxu0 0.0
      %618 = vmatmul.mubr.f32.gmra.mrb[0].mxu0 %v534
      %v619 = vpop.f32.mrb[0].mxu0
      %v620 = vadd.f32 0.0, %v619
      %v621 = vpop.f32.mrb[0].mxu0
      %622 = vmatprep.mubr.f32.mxu0 0.0
      %623 = vmatmul.mubr.f32.gmra.mrb[0].mxu0 %v536
      %v624 = vpop.f32.mrb[0].mxu0
      %v625 = vadd.f32 0.0, %v624
      %v626 = vpop.f32.mrb[0].mxu0
      %627 = vmatprep.mubr.f32.mxu0 0.0
      %628 = vmatmul.mubr.f32.gmra.mrb[0].mxu0 %v538
      %v629 = vpop.f32.mrb[0].mxu0
      %v630 = vadd.f32 0.0, %v629
      %v631 = vpop.f32.mrb[0].mxu0
      %632 = vmatprep.mubr.f32.mxu0 0.0
      %633 = vmatmul.mubr.f32.gmra.mrb[0].mxu0 %v540
      %v634 = vpop.f32.mrb[0].mxu0
      %v635 = vadd.f32 0.0, %v634
      %v636 = vpop.f32.mrb[0].mxu0
      %637 = vmatprep.mubr.f32.mxu0 0.0
      %638 = vmatmul.mubr.f32.gmra.mrb[0].mxu0 %v542
      %v639 = vpop.f32.mrb[0].mxu0
      %v640 = vadd.f32 0.0, %v639
      %v641 = vpop.f32.mrb[0].mxu0
      %642 = vmatprep.mubr.f32.mxu0 0.0
      %643 = vmatmul.mubr.f32.gmra.mrb[0].mxu0 %v544
      %v644 = vpop.f32.mrb[0].mxu0
      %v645 = vadd.f32 0.0, %v644
      %v646 = vpop.f32.mrb[0].mxu0
      %647 = vmatprep.mubr.f32.mxu0 0.0
      %648 = vmatmul.mubr.f32.gmra.mrb[0].mxu0 %v546
      %v649 = vpop.f32.mrb[0].mxu0
      %v650 = vadd.f32 0.0, %v649
      %v651 = vpop.f32.mrb[0].mxu0
      %652 = vdwg.mxu0
      %v653 = vadd.f32 %v467, %v615
      %v654 = vadd.f32 %v472, %v620
      %v655 = vadd.f32 %v477, %v625
      %v656 = vadd.f32 %v482, %v630
      %v657 = vadd.f32 %v487, %v635
      %v658 = vadd.f32 %v492, %v640
      %v659 = vadd.f32 %v497, %v645
      %v660 = vadd.f32 %v502, %v650
      %s661 = scalar_lea.vmem %s1, 24
      %v662 = vld [vmem:[%s661] sm:$0xff]
      %v664 = vsel %vm262, %v214, 0
      %666 = vmatprep.subr.mxu0 0.0
      %667 = vmatpush1.msra.mxu0 %v662
      %668 = vmatprep.subr.mxu0 0.0
      %669 = vmatpush1.msra.mxu0 0.0
      %670 = vmatprep.subr.mxu0 0.0
      %671 = vmatpush1.msra.mxu0 0.0
      %672 = vmatprep.subr.mxu0 0.0
      %673 = vmatpush1.msra.mxu0 0.0
      %674 = vmatprep.subr.mxu0 0.0
      %675 = vmatpush1.msra.mxu0 0.0
      %676 = vmatprep.subr.mxu0 0.0
      %677 = vmatpush1.msra.mxu0 0.0
      %678 = vmatprep.subr.mxu0 0.0
      %679 = vmatpush1.msra.mxu0 0.0
      %680 = vmatprep.subr.mxu0 0.0
      %681 = vmatpush1.msra.mxu0 0.0
      %682 = vmatprep.subr.mxu0 0.0
      %683 = vmatpush1.msra.mxu0 0.0
      %684 = vmatprep.subr.mxu0 0.0
      %685 = vmatpush1.msra.mxu0 0.0
      %686 = vmatprep.subr.mxu0 0.0
      %687 = vmatpush1.msra.mxu0 0.0
      %688 = vmatprep.subr.mxu0 0.0
      %689 = vmatpush1.msra.mxu0 0.0
      %690 = vmatprep.subr.mxu0 0.0
      %691 = vmatpush1.msra.mxu0 0.0
      %692 = vmatprep.subr.mxu0 0.0
      %693 = vmatpush1.msra.mxu0 0.0
      %694 = vmatprep.subr.mxu0 0.0
      %695 = vmatpush1.msra.mxu0 0.0
      %696 = vmatprep.subr.mxu0 0.0
      %697 = vmatpush1.msra.mxu0 0.0
      %698 = vmatprep.subr.mxu0 0.0
      %699 = vmatpush1.msra.mxu0 0.0
      %700 = vmatprep.subr.mxu0 0.0
      %701 = vmatpush1.msra.mxu0 0.0
      %702 = vmatprep.subr.mxu0 0.0
      %703 = vmatpush1.msra.mxu0 0.0
      %704 = vmatprep.subr.mxu0 0.0
      %705 = vmatpush1.msra.mxu0 0.0
      %706 = vmatprep.subr.mxu0 0.0
      %707 = vmatpush1.msra.mxu0 0.0
      %708 = vmatprep.subr.mxu0 0.0
      %709 = vmatpush1.msra.mxu0 0.0
      %710 = vmatprep.subr.mxu0 0.0
      %711 = vmatpush1.msra.mxu0 0.0
      %712 = vmatprep.subr.mxu0 0.0
      %713 = vmatpush1.msra.mxu0 0.0
      %714 = vmatprep.subr.mxu0 0.0
      %715 = vmatpush1.msra.mxu0 0.0
      %716 = vmatprep.subr.mxu0 0.0
      %717 = vmatpush1.msra.mxu0 0.0
      %718 = vmatprep.subr.mxu0 0.0
      %719 = vmatpush1.msra.mxu0 0.0
      %720 = vmatprep.subr.mxu0 0.0
      %721 = vmatpush1.msra.mxu0 0.0
      %722 = vmatprep.subr.mxu0 0.0
      %723 = vmatpush1.msra.mxu0 0.0
      %724 = vmatprep.subr.mxu0 0.0
      %725 = vmatpush1.msra.mxu0 0.0
      %726 = vmatprep.subr.mxu0 0.0
      %727 = vmatpush1.msra.mxu0 0.0
      %728 = vmatprep.subr.mxu0 0.0
      %729 = vmatpush1.msra.mxu0 0.0
      %730 = vmatprep.mubr.f32.mxu0 0.0
      %731 = vmatmul.mubr.f32.gmra.mrb[0].mxu0 %v386
      %v732 = vpop.f32.mrb[0].mxu0
      %v733 = vadd.f32 0.0, %v732
      %v734 = vpop.f32.mrb[0].mxu0
      %735 = vmatprep.mubr.f32.mxu0 0.0
      %736 = vmatmul.mubr.f32.gmra.mrb[0].mxu0 %v388
      %v737 = vpop.f32.mrb[0].mxu0
      %v738 = vadd.f32 0.0, %v737
      %v739 = vpop.f32.mrb[0].mxu0
      %740 = vmatprep.mubr.f32.mxu0 0.0
      %741 = vmatmul.mubr.f32.gmra.mrb[0].mxu0 %v390
      %v742 = vpop.f32.mrb[0].mxu0
      %v743 = vadd.f32 0.0, %v742
      %v744 = vpop.f32.mrb[0].mxu0
      %745 = vmatprep.mubr.f32.mxu0 0.0
      %746 = vmatmul.mubr.f32.gmra.mrb[0].mxu0 %v392
      %v747 = vpop.f32.mrb[0].mxu0
      %v748 = vadd.f32 0.0, %v747
      %v749 = vpop.f32.mrb[0].mxu0
      %750 = vmatprep.mubr.f32.mxu0 0.0
      %751 = vmatmul.mubr.f32.gmra.mrb[0].mxu0 %v394
      %v752 = vpop.f32.mrb[0].mxu0
      %v753 = vadd.f32 0.0, %v752
      %v754 = vpop.f32.mrb[0].mxu0
      %755 = vmatprep.mubr.f32.mxu0 0.0
      %756 = vmatmul.mubr.f32.gmra.mrb[0].mxu0 %v396
      %v757 = vpop.f32.mrb[0].mxu0
      %v758 = vadd.f32 0.0, %v757
      %v759 = vpop.f32.mrb[0].mxu0
      %760 = vmatprep.mubr.f32.mxu0 0.0
      %761 = vmatmul.mubr.f32.gmra.mrb[0].mxu0 %v398
      %v762 = vpop.f32.mrb[0].mxu0
      %v763 = vadd.f32 0.0, %v762
      %v764 = vpop.f32.mrb[0].mxu0
      %765 = vmatprep.mubr.f32.mxu0 0.0
      %766 = vmatmul.mubr.f32.gmra.mrb[0].mxu0 %v664
      %v767 = vpop.f32.mrb[0].mxu0
      %v768 = vadd.f32 0.0, %v767
      %v769 = vpop.f32.mrb[0].mxu0
      %770 = vdwg.mxu0
      %v771 = vadd.f32 %v653, %v733
      %v772 = vadd.f32 %v654, %v738
      %v773 = vadd.f32 %v655, %v743
      %v774 = vadd.f32 %v656, %v748
      %v775 = vadd.f32 %v657, %v753
      %v776 = vadd.f32 %v658, %v758
      %v777 = vadd.f32 %v659, %v763
      %v778 = vadd.f32 %v660, %v768
      %v780 = vrot.slane %v214, 1
      %v781 = vrot.slane %v215, 1
      %v782 = vsel %vm235, %v780, %v781
      %s783 = scalar_lea.vmem %s1, 32
      %v784 = vld [vmem:[%s783] sm:$0xff]
      %v785 = vsel %vm262, %v782, 0
      %787 = vmatprep.subr.mxu0 0.0
      %788 = vmatpush1.msra.mxu0 %v784
      %789 = vmatprep.subr.mxu0 0.0
      %790 = vmatpush1.msra.mxu0 0.0
      %791 = vmatprep.subr.mxu0 0.0
      %792 = vmatpush1.msra.mxu0 0.0
      %793 = vmatprep.subr.mxu0 0.0
      %794 = vmatpush1.msra.mxu0 0.0
      %795 = vmatprep.subr.mxu0 0.0
      %796 = vmatpush1.msra.mxu0 0.0
      %797 = vmatprep.subr.mxu0 0.0
      %798 = vmatpush1.msra.mxu0 0.0
      %799 = vmatprep.subr.mxu0 0.0
      %800 = vmatpush1.msra.mxu0 0.0
      %801 = vmatprep.subr.mxu0 0.0
      %802 = vmatpush1.msra.mxu0 0.0
      %803 = vmatprep.subr.mxu0 0.0
      %804 = vmatpush1.msra.mxu0 0.0
      %805 = vmatprep.subr.mxu0 0.0
      %806 = vmatpush1.msra.mxu0 0.0
      %807 = vmatprep.subr.mxu0 0.0
      %808 = vmatpush1.msra.mxu0 0.0
      %809 = vmatprep.subr.mxu0 0.0
      %810 = vmatpush1.msra.mxu0 0.0
      %811 = vmatprep.subr.mxu0 0.0
      %812 = vmatpush1.msra.mxu0 0.0
      %813 = vmatprep.subr.mxu0 0.0
      %814 = vmatpush1.msra.mxu0 0.0
      %815 = vmatprep.subr.mxu0 0.0
      %816 = vmatpush1.msra.mxu0 0.0
      %817 = vmatprep.subr.mxu0 0.0
      %818 = vmatpush1.msra.mxu0 0.0
      %819 = vmatprep.subr.mxu0 0.0
      %820 = vmatpush1.msra.mxu0 0.0
      %821 = vmatprep.subr.mxu0 0.0
      %822 = vmatpush1.msra.mxu0 0.0
      %823 = vmatprep.subr.mxu0 0.0
      %824 = vmatpush1.msra.mxu0 0.0
      %825 = vmatprep.subr.mxu0 0.0
      %826 = vmatpush1.msra.mxu0 0.0
      %827 = vmatprep.subr.mxu0 0.0
      %828 = vmatpush1.msra.mxu0 0.0
      %829 = vmatprep.subr.mxu0 0.0
      %830 = vmatpush1.msra.mxu0 0.0
      %831 = vmatprep.subr.mxu0 0.0
      %832 = vmatpush1.msra.mxu0 0.0
      %833 = vmatprep.subr.mxu0 0.0
      %834 = vmatpush1.msra.mxu0 0.0
      %835 = vmatprep.subr.mxu0 0.0
      %836 = vmatpush1.msra.mxu0 0.0
      %837 = vmatprep.subr.mxu0 0.0
      %838 = vmatpush1.msra.mxu0 0.0
      %839 = vmatprep.subr.mxu0 0.0
      %840 = vmatpush1.msra.mxu0 0.0
      %841 = vmatprep.subr.mxu0 0.0
      %842 = vmatpush1.msra.mxu0 0.0
      %843 = vmatprep.subr.mxu0 0.0
      %844 = vmatpush1.msra.mxu0 0.0
      %845 = vmatprep.subr.mxu0 0.0
      %846 = vmatpush1.msra.mxu0 0.0
      %847 = vmatprep.subr.mxu0 0.0
      %848 = vmatpush1.msra.mxu0 0.0
      %849 = vmatprep.subr.mxu0 0.0
      %850 = vmatpush1.msra.mxu0 0.0
      %851 = vmatprep.mubr.f32.mxu0 0.0
      %852 = vmatmul.mubr.f32.gmra.mrb[0].mxu0 %v265
      %v853 = vpop.f32.mrb[0].mxu0
      %v854 = vadd.f32 0.0, %v853
      %v855 = vpop.f32.mrb[0].mxu0
      %856 = vmatprep.mubr.f32.mxu0 0.0
      %857 = vmatmul.mubr.f32.gmra.mrb[0].mxu0 %v267
      %v858 = vpop.f32.mrb[0].mxu0
      %v859 = vadd.f32 0.0, %v858
      %v860 = vpop.f32.mrb[0].mxu0
      %861 = vmatprep.mubr.f32.mxu0 0.0
      %862 = vmatmul.mubr.f32.gmra.mrb[0].mxu0 %v269
      %v863 = vpop.f32.mrb[0].mxu0
      %v864 = vadd.f32 0.0, %v863
      %v865 = vpop.f32.mrb[0].mxu0
      %866 = vmatprep.mubr.f32.mxu0 0.0
      %867 = vmatmul.mubr.f32.gmra.mrb[0].mxu0 %v271
      %v868 = vpop.f32.mrb[0].mxu0
      %v869 = vadd.f32 0.0, %v868
      %v870 = vpop.f32.mrb[0].mxu0
      %871 = vmatprep.mubr.f32.mxu0 0.0
      %872 = vmatmul.mubr.f32.gmra.mrb[0].mxu0 %v273
      %v873 = vpop.f32.mrb[0].mxu0
      %v874 = vadd.f32 0.0, %v873
      %v875 = vpop.f32.mrb[0].mxu0
      %876 = vmatprep.mubr.f32.mxu0 0.0
      %877 = vmatmul.mubr.f32.gmra.mrb[0].mxu0 %v275
      %v878 = vpop.f32.mrb[0].mxu0
      %v879 = vadd.f32 0.0, %v878
      %v880 = vpop.f32.mrb[0].mxu0
      %881 = vmatprep.mubr.f32.mxu0 0.0
      %882 = vmatmul.mubr.f32.gmra.mrb[0].mxu0 %v277
      %v883 = vpop.f32.mrb[0].mxu0
      %v884 = vadd.f32 0.0, %v883
      %v885 = vpop.f32.mrb[0].mxu0
      %886 = vmatprep.mubr.f32.mxu0 0.0
      %887 = vmatmul.mubr.f32.gmra.mrb[0].mxu0 %v785
      %v888 = vpop.f32.mrb[0].mxu0
      %v889 = vadd.f32 0.0, %v888
      %v890 = vpop.f32.mrb[0].mxu0
      %891 = vdwg.mxu0
      %v892 = vadd.f32 %v771, %v854
      %v893 = vadd.f32 %v772, %v859
      %v894 = vadd.f32 %v773, %v864
      %v895 = vadd.f32 %v774, %v869
      %v896 = vadd.f32 %v775, %v874
      %v897 = vadd.f32 %v776, %v879
      %v898 = vadd.f32 %v777, %v884
      %v899 = vadd.f32 %v778, %v889
      %v900 = vrot.slane %v214, 2
      %v901 = vrot.slane %v215, 2
      %v902 = vsel %vm505, %v900, %v901
      %s903 = scalar_lea.vmem %s1, 40
      %v904 = vld [vmem:[%s903] sm:$0xff]
      %v905 = vsel %vm262, %v902, 0
      %907 = vmatprep.subr.mxu0 0.0
      %908 = vmatpush1.msra.mxu0 %v904
      %909 = vmatprep.subr.mxu0 0.0
      %910 = vmatpush1.msra.mxu0 0.0
      %911 = vmatprep.subr.mxu0 0.0
      %912 = vmatpush1.msra.mxu0 0.0
      %913 = vmatprep.subr.mxu0 0.0
      %914 = vmatpush1.msra.mxu0 0.0
      %915 = vmatprep.subr.mxu0 0.0
      %916 = vmatpush1.msra.mxu0 0.0
      %917 = vmatprep.subr.mxu0 0.0
      %918 = vmatpush1.msra.mxu0 0.0
      %919 = vmatprep.subr.mxu0 0.0
      %920 = vmatpush1.msra.mxu0 0.0
      %921 = vmatprep.subr.mxu0 0.0
      %922 = vmatpush1.msra.mxu0 0.0
      %923 = vmatprep.subr.mxu0 0.0
      %924 = vmatpush1.msra.mxu0 0.0
      %925 = vmatprep.subr.mxu0 0.0
      %926 = vmatpush1.msra.mxu0 0.0
      %927 = vmatprep.subr.mxu0 0.0
      %928 = vmatpush1.msra.mxu0 0.0
      %929 = vmatprep.subr.mxu0 0.0
      %930 = vmatpush1.msra.mxu0 0.0
      %931 = vmatprep.subr.mxu0 0.0
      %932 = vmatpush1.msra.mxu0 0.0
      %933 = vmatprep.subr.mxu0 0.0
      %934 = vmatpush1.msra.mxu0 0.0
      %935 = vmatprep.subr.mxu0 0.0
      %936 = vmatpush1.msra.mxu0 0.0
      %937 = vmatprep.subr.mxu0 0.0
      %938 = vmatpush1.msra.mxu0 0.0
      %939 = vmatprep.subr.mxu0 0.0
      %940 = vmatpush1.msra.mxu0 0.0
      %941 = vmatprep.subr.mxu0 0.0
      %942 = vmatpush1.msra.mxu0 0.0
      %943 = vmatprep.subr.mxu0 0.0
      %944 = vmatpush1.msra.mxu0 0.0
      %945 = vmatprep.subr.mxu0 0.0
      %946 = vmatpush1.msra.mxu0 0.0
      %947 = vmatprep.subr.mxu0 0.0
      %948 = vmatpush1.msra.mxu0 0.0
      %949 = vmatprep.subr.mxu0 0.0
      %950 = vmatpush1.msra.mxu0 0.0
      %951 = vmatprep.subr.mxu0 0.0
      %952 = vmatpush1.msra.mxu0 0.0
      %953 = vmatprep.subr.mxu0 0.0
      %954 = vmatpush1.msra.mxu0 0.0
      %955 = vmatprep.subr.mxu0 0.0
      %956 = vmatpush1.msra.mxu0 0.0
      %957 = vmatprep.subr.mxu0 0.0
      %958 = vmatpush1.msra.mxu0 0.0
      %959 = vmatprep.subr.mxu0 0.0
      %960 = vmatpush1.msra.mxu0 0.0
      %961 = vmatprep.subr.mxu0 0.0
      %962 = vmatpush1.msra.mxu0 0.0
      %963 = vmatprep.subr.mxu0 0.0
      %964 = vmatpush1.msra.mxu0 0.0
      %965 = vmatprep.subr.mxu0 0.0
      %966 = vmatpush1.msra.mxu0 0.0
      %967 = vmatprep.subr.mxu0 0.0
      %968 = vmatpush1.msra.mxu0 0.0
      %969 = vmatprep.subr.mxu0 0.0
      %970 = vmatpush1.msra.mxu0 0.0
      %971 = vmatprep.mubr.f32.mxu0 0.0
      %972 = vmatmul.mubr.f32.gmra.mrb[0].mxu0 %v534
      %v973 = vpop.f32.mrb[0].mxu0
      %v974 = vadd.f32 0.0, %v973
      %v975 = vpop.f32.mrb[0].mxu0
      %976 = vmatprep.mubr.f32.mxu0 0.0
      %977 = vmatmul.mubr.f32.gmra.mrb[0].mxu0 %v536
      %v978 = vpop.f32.mrb[0].mxu0
      %v979 = vadd.f32 0.0, %v978
      %v980 = vpop.f32.mrb[0].mxu0
      %981 = vmatprep.mubr.f32.mxu0 0.0
      %982 = vmatmul.mubr.f32.gmra.mrb[0].mxu0 %v538
      %v983 = vpop.f32.mrb[0].mxu0
      %v984 = vadd.f32 0.0, %v983
      %v985 = vpop.f32.mrb[0].mxu0
      %986 = vmatprep.mubr.f32.mxu0 0.0
      %987 = vmatmul.mubr.f32.gmra.mrb[0].mxu0 %v540
      %v988 = vpop.f32.mrb[0].mxu0
      %v989 = vadd.f32 0.0, %v988
      %v990 = vpop.f32.mrb[0].mxu0
      %991 = vmatprep.mubr.f32.mxu0 0.0
      %992 = vmatmul.mubr.f32.gmra.mrb[0].mxu0 %v542
      %v993 = vpop.f32.mrb[0].mxu0
      %v994 = vadd.f32 0.0, %v993
      %v995 = vpop.f32.mrb[0].mxu0
      %996 = vmatprep.mubr.f32.mxu0 0.0
      %997 = vmatmul.mubr.f32.gmra.mrb[0].mxu0 %v544
      %v998 = vpop.f32.mrb[0].mxu0
      %v999 = vadd.f32 0.0, %v998
      %v1000 = vpop.f32.mrb[0].mxu0
      %1001 = vmatprep.mubr.f32.mxu0 0.0
      %1002 = vmatmul.mubr.f32.gmra.mrb[0].mxu0 %v546
      %v1003 = vpop.f32.mrb[0].mxu0
      %v1004 = vadd.f32 0.0, %v1003
      %v1005 = vpop.f32.mrb[0].mxu0
      %1006 = vmatprep.mubr.f32.mxu0 0.0
      %1007 = vmatmul.mubr.f32.gmra.mrb[0].mxu0 %v905
      %v1008 = vpop.f32.mrb[0].mxu0
      %v1009 = vadd.f32 0.0, %v1008
      %v1010 = vpop.f32.mrb[0].mxu0
      %1011 = vdwg.mxu0
      %v1012 = vadd.f32 %v892, %v974
      %v1013 = vadd.f32 %v893, %v979
      %v1014 = vadd.f32 %v894, %v984
      %v1015 = vadd.f32 %v895, %v989
      %v1016 = vadd.f32 %v896, %v994
      %v1017 = vadd.f32 %v897, %v999
      %v1018 = vadd.f32 %v898, %v1004
      %v1019 = vadd.f32 %v899, %v1009
      %s1020 = scalar_lea.vmem %s1, 48
      %v1021 = vld [vmem:[%s1020] sm:$0xff]
      %v1023 = vsel %vm262, %v216, 0
      %1025 = vmatprep.subr.mxu0 0.0
      %1026 = vmatpush1.msra.mxu0 %v1021
      %1027 = vmatprep.subr.mxu0 0.0
      %1028 = vmatpush1.msra.mxu0 0.0
      %1029 = vmatprep.subr.mxu0 0.0
      %1030 = vmatpush1.msra.mxu0 0.0
      %1031 = vmatprep.subr.mxu0 0.0
      %1032 = vmatpush1.msra.mxu0 0.0
      %1033 = vmatprep.subr.mxu0 0.0
      %1034 = vmatpush1.msra.mxu0 0.0
      %1035 = vmatprep.subr.mxu0 0.0
      %1036 = vmatpush1.msra.mxu0 0.0
      %1037 = vmatprep.subr.mxu0 0.0
      %1038 = vmatpush1.msra.mxu0 0.0
      %1039 = vmatprep.subr.mxu0 0.0
      %1040 = vmatpush1.msra.mxu0 0.0
      %1041 = vmatprep.subr.mxu0 0.0
      %1042 = vmatpush1.msra.mxu0 0.0
      %1043 = vmatprep.subr.mxu0 0.0
      %1044 = vmatpush1.msra.mxu0 0.0
      %1045 = vmatprep.subr.mxu0 0.0
      %1046 = vmatpush1.msra.mxu0 0.0
      %1047 = vmatprep.subr.mxu0 0.0
      %1048 = vmatpush1.msra.mxu0 0.0
      %1049 = vmatprep.subr.mxu0 0.0
      %1050 = vmatpush1.msra.mxu0 0.0
      %1051 = vmatprep.subr.mxu0 0.0
      %1052 = vmatpush1.msra.mxu0 0.0
      %1053 = vmatprep.subr.mxu0 0.0
      %1054 = vmatpush1.msra.mxu0 0.0
      %1055 = vmatprep.subr.mxu0 0.0
      %1056 = vmatpush1.msra.mxu0 0.0
      %1057 = vmatprep.subr.mxu0 0.0
      %1058 = vmatpush1.msra.mxu0 0.0
      %1059 = vmatprep.subr.mxu0 0.0
      %1060 = vmatpush1.msra.mxu0 0.0
      %1061 = vmatprep.subr.mxu0 0.0
      %1062 = vmatpush1.msra.mxu0 0.0
      %1063 = vmatprep.subr.mxu0 0.0
      %1064 = vmatpush1.msra.mxu0 0.0
      %1065 = vmatprep.subr.mxu0 0.0
      %1066 = vmatpush1.msra.mxu0 0.0
      %1067 = vmatprep.subr.mxu0 0.0
      %1068 = vmatpush1.msra.mxu0 0.0
      %1069 = vmatprep.subr.mxu0 0.0
      %1070 = vmatpush1.msra.mxu0 0.0
      %1071 = vmatprep.subr.mxu0 0.0
      %1072 = vmatpush1.msra.mxu0 0.0
      %1073 = vmatprep.subr.mxu0 0.0
      %1074 = vmatpush1.msra.mxu0 0.0
      %1075 = vmatprep.subr.mxu0 0.0
      %1076 = vmatpush1.msra.mxu0 0.0
      %1077 = vmatprep.subr.mxu0 0.0
      %1078 = vmatpush1.msra.mxu0 0.0
      %1079 = vmatprep.subr.mxu0 0.0
      %1080 = vmatpush1.msra.mxu0 0.0
      %1081 = vmatprep.subr.mxu0 0.0
      %1082 = vmatpush1.msra.mxu0 0.0
      %1083 = vmatprep.subr.mxu0 0.0
      %1084 = vmatpush1.msra.mxu0 0.0
      %1085 = vmatprep.subr.mxu0 0.0
      %1086 = vmatpush1.msra.mxu0 0.0
      %1087 = vmatprep.subr.mxu0 0.0
      %1088 = vmatpush1.msra.mxu0 0.0
      %1089 = vmatprep.mubr.f32.mxu0 0.0
      %1090 = vmatmul.mubr.f32.gmra.mrb[0].mxu0 %v388
      %v1091 = vpop.f32.mrb[0].mxu0
      %v1092 = vadd.f32 0.0, %v1091
      %v1093 = vpop.f32.mrb[0].mxu0
      %1094 = vmatprep.mubr.f32.mxu0 0.0
      %1095 = vmatmul.mubr.f32.gmra.mrb[0].mxu0 %v390
      %v1096 = vpop.f32.mrb[0].mxu0
      %v1097 = vadd.f32 0.0, %v1096
      %v1098 = vpop.f32.mrb[0].mxu0
      %1099 = vmatprep.mubr.f32.mxu0 0.0
      %1100 = vmatmul.mubr.f32.gmra.mrb[0].mxu0 %v392
      %v1101 = vpop.f32.mrb[0].mxu0
      %v1102 = vadd.f32 0.0, %v1101
      %v1103 = vpop.f32.mrb[0].mxu0
      %1104 = vmatprep.mubr.f32.mxu0 0.0
      %1105 = vmatmul.mubr.f32.gmra.mrb[0].mxu0 %v394
      %v1106 = vpop.f32.mrb[0].mxu0
      %v1107 = vadd.f32 0.0, %v1106
      %v1108 = vpop.f32.mrb[0].mxu0
      %1109 = vmatprep.mubr.f32.mxu0 0.0
      %1110 = vmatmul.mubr.f32.gmra.mrb[0].mxu0 %v396
      %v1111 = vpop.f32.mrb[0].mxu0
      %v1112 = vadd.f32 0.0, %v1111
      %v1113 = vpop.f32.mrb[0].mxu0
      %1114 = vmatprep.mubr.f32.mxu0 0.0
      %1115 = vmatmul.mubr.f32.gmra.mrb[0].mxu0 %v398
      %v1116 = vpop.f32.mrb[0].mxu0
      %v1117 = vadd.f32 0.0, %v1116
      %v1118 = vpop.f32.mrb[0].mxu0
      %1119 = vmatprep.mubr.f32.mxu0 0.0
      %1120 = vmatmul.mubr.f32.gmra.mrb[0].mxu0 %v664
      %v1121 = vpop.f32.mrb[0].mxu0
      %v1122 = vadd.f32 0.0, %v1121
      %v1123 = vpop.f32.mrb[0].mxu0
      %1124 = vmatprep.mubr.f32.mxu0 0.0
      %1125 = vmatmul.mubr.f32.gmra.mrb[0].mxu0 %v1023
      %v1126 = vpop.f32.mrb[0].mxu0
      %v1127 = vadd.f32 0.0, %v1126
      %v1128 = vpop.f32.mrb[0].mxu0
      %1129 = vdwg.mxu0
      %v1130 = vadd.f32 %v1012, %v1092
      %v1131 = vadd.f32 %v1013, %v1097
      %v1132 = vadd.f32 %v1014, %v1102
      %v1133 = vadd.f32 %v1015, %v1107
      %v1134 = vadd.f32 %v1016, %v1112
      %v1135 = vadd.f32 %v1017, %v1117
      %v1136 = vadd.f32 %v1018, %v1122
      %v1137 = vadd.f32 %v1019, %v1127
      %v1139 = vrot.slane %v216, 1
      %v1140 = vrot.slane %v217, 1
      %v1141 = vsel %vm235, %v1139, %v1140
      %s1142 = scalar_lea.vmem %s1, 56
      %v1143 = vld [vmem:[%s1142] sm:$0xff]
      %v1144 = vsel %vm262, %v1141, 0
      %1146 = vmatprep.subr.mxu0 0.0
      %1147 = vmatpush1.msra.mxu0 %v1143
      %1148 = vmatprep.subr.mxu0 0.0
      %1149 = vmatpush1.msra.mxu0 0.0
      %1150 = vmatprep.subr.mxu0 0.0
      %1151 = vmatpush1.msra.mxu0 0.0
      %1152 = vmatprep.subr.mxu0 0.0
      %1153 = vmatpush1.msra.mxu0 0.0
      %1154 = vmatprep.subr.mxu0 0.0
      %1155 = vmatpush1.msra.mxu0 0.0
      %1156 = vmatprep.subr.mxu0 0.0
      %1157 = vmatpush1.msra.mxu0 0.0
      %1158 = vmatprep.subr.mxu0 0.0
      %1159 = vmatpush1.msra.mxu0 0.0
      %1160 = vmatprep.subr.mxu0 0.0
      %1161 = vmatpush1.msra.mxu0 0.0
      %1162 = vmatprep.subr.mxu0 0.0
      %1163 = vmatpush1.msra.mxu0 0.0
      %1164 = vmatprep.subr.mxu0 0.0
      %1165 = vmatpush1.msra.mxu0 0.0
      %1166 = vmatprep.subr.mxu0 0.0
      %1167 = vmatpush1.msra.mxu0 0.0
      %1168 = vmatprep.subr.mxu0 0.0
      %1169 = vmatpush1.msra.mxu0 0.0
      %1170 = vmatprep.subr.mxu0 0.0
      %1171 = vmatpush1.msra.mxu0 0.0
      %1172 = vmatprep.subr.mxu0 0.0
      %1173 = vmatpush1.msra.mxu0 0.0
      %1174 = vmatprep.subr.mxu0 0.0
      %1175 = vmatpush1.msra.mxu0 0.0
      %1176 = vmatprep.subr.mxu0 0.0
      %1177 = vmatpush1.msra.mxu0 0.0
      %1178 = vmatprep.subr.mxu0 0.0
      %1179 = vmatpush1.msra.mxu0 0.0
      %1180 = vmatprep.subr.mxu0 0.0
      %1181 = vmatpush1.msra.mxu0 0.0
      %1182 = vmatprep.subr.mxu0 0.0
      %1183 = vmatpush1.msra.mxu0 0.0
      %1184 = vmatprep.subr.mxu0 0.0
      %1185 = vmatpush1.msra.mxu0 0.0
      %1186 = vmatprep.subr.mxu0 0.0
      %1187 = vmatpush1.msra.mxu0 0.0
      %1188 = vmatprep.subr.mxu0 0.0
      %1189 = vmatpush1.msra.mxu0 0.0
      %1190 = vmatprep.subr.mxu0 0.0
      %1191 = vmatpush1.msra.mxu0 0.0
      %1192 = vmatprep.subr.mxu0 0.0
      %1193 = vmatpush1.msra.mxu0 0.0
      %1194 = vmatprep.subr.mxu0 0.0
      %1195 = vmatpush1.msra.mxu0 0.0
      %1196 = vmatprep.subr.mxu0 0.0
      %1197 = vmatpush1.msra.mxu0 0.0
      %1198 = vmatprep.subr.mxu0 0.0
      %1199 = vmatpush1.msra.mxu0 0.0
      %1200 = vmatprep.subr.mxu0 0.0
      %1201 = vmatpush1.msra.mxu0 0.0
      %1202 = vmatprep.subr.mxu0 0.0
      %1203 = vmatpush1.msra.mxu0 0.0
      %1204 = vmatprep.subr.mxu0 0.0
      %1205 = vmatpush1.msra.mxu0 0.0
      %1206 = vmatprep.subr.mxu0 0.0
      %1207 = vmatpush1.msra.mxu0 0.0
      %1208 = vmatprep.subr.mxu0 0.0
      %1209 = vmatpush1.msra.mxu0 0.0
      %1210 = vmatprep.mubr.f32.mxu0 0.0
      %1211 = vmatmul.mubr.f32.gmra.mrb[0].mxu0 %v267
      %v1212 = vpop.f32.mrb[0].mxu0
      %v1213 = vadd.f32 0.0, %v1212
      %v1214 = vpop.f32.mrb[0].mxu0
      %1215 = vmatprep.mubr.f32.mxu0 0.0
      %1216 = vmatmul.mubr.f32.gmra.mrb[0].mxu0 %v269
      %v1217 = vpop.f32.mrb[0].mxu0
      %v1218 = vadd.f32 0.0, %v1217
      %v1219 = vpop.f32.mrb[0].mxu0
      %1220 = vmatprep.mubr.f32.mxu0 0.0
      %1221 = vmatmul.mubr.f32.gmra.mrb[0].mxu0 %v271
      %v1222 = vpop.f32.mrb[0].mxu0
      %v1223 = vadd.f32 0.0, %v1222
      %v1224 = vpop.f32.mrb[0].mxu0
      %1225 = vmatprep.mubr.f32.mxu0 0.0
      %1226 = vmatmul.mubr.f32.gmra.mrb[0].mxu0 %v273
      %v1227 = vpop.f32.mrb[0].mxu0
      %v1228 = vadd.f32 0.0, %v1227
      %v1229 = vpop.f32.mrb[0].mxu0
      %1230 = vmatprep.mubr.f32.mxu0 0.0
      %1231 = vmatmul.mubr.f32.gmra.mrb[0].mxu0 %v275
      %v1232 = vpop.f32.mrb[0].mxu0
      %v1233 = vadd.f32 0.0, %v1232
      %v1234 = vpop.f32.mrb[0].mxu0
      %1235 = vmatprep.mubr.f32.mxu0 0.0
      %1236 = vmatmul.mubr.f32.gmra.mrb[0].mxu0 %v277
      %v1237 = vpop.f32.mrb[0].mxu0
      %v1238 = vadd.f32 0.0, %v1237
      %v1239 = vpop.f32.mrb[0].mxu0
      %1240 = vmatprep.mubr.f32.mxu0 0.0
      %1241 = vmatmul.mubr.f32.gmra.mrb[0].mxu0 %v785
      %v1242 = vpop.f32.mrb[0].mxu0
      %v1243 = vadd.f32 0.0, %v1242
      %v1244 = vpop.f32.mrb[0].mxu0
      %1245 = vmatprep.mubr.f32.mxu0 0.0
      %1246 = vmatmul.mubr.f32.gmra.mrb[0].mxu0 %v1144
      %v1247 = vpop.f32.mrb[0].mxu0
      %v1248 = vadd.f32 0.0, %v1247
      %v1249 = vpop.f32.mrb[0].mxu0
      %1250 = vdwg.mxu0
      %v1251 = vadd.f32 %v1130, %v1213
      %v1252 = vadd.f32 %v1131, %v1218
      %v1253 = vadd.f32 %v1132, %v1223
      %v1254 = vadd.f32 %v1133, %v1228
      %v1255 = vadd.f32 %v1134, %v1233
      %v1256 = vadd.f32 %v1135, %v1238
      %v1257 = vadd.f32 %v1136, %v1243
      %v1258 = vadd.f32 %v1137, %v1248
      %v1259 = vrot.slane %v216, 2
      %v1260 = vrot.slane %v217, 2
      %v1261 = vsel %vm505, %v1259, %v1260
      %s1262 = scalar_lea.vmem %s1, 64
      %v1263 = vld [vmem:[%s1262] sm:$0xff]
      %v1264 = vsel %vm262, %v1261, 0
      %1266 = vmatprep.subr.mxu0 0.0
      %1267 = vmatpush1.msra.mxu0 %v1263
      %1268 = vmatprep.subr.mxu0 0.0
      %1269 = vmatpush1.msra.mxu0 0.0
      %1270 = vmatprep.subr.mxu0 0.0
      %1271 = vmatpush1.msra.mxu0 0.0
      %1272 = vmatprep.subr.mxu0 0.0
      %1273 = vmatpush1.msra.mxu0 0.0
      %1274 = vmatprep.subr.mxu0 0.0
      %1275 = vmatpush1.msra.mxu0 0.0
      %1276 = vmatprep.subr.mxu0 0.0
      %1277 = vmatpush1.msra.mxu0 0.0
      %1278 = vmatprep.subr.mxu0 0.0
      %1279 = vmatpush1.msra.mxu0 0.0
      %1280 = vmatprep.subr.mxu0 0.0
      %1281 = vmatpush1.msra.mxu0 0.0
      %1282 = vmatprep.subr.mxu0 0.0
      %1283 = vmatpush1.msra.mxu0 0.0
      %1284 = vmatprep.subr.mxu0 0.0
      %1285 = vmatpush1.msra.mxu0 0.0
      %1286 = vmatprep.subr.mxu0 0.0
      %1287 = vmatpush1.msra.mxu0 0.0
      %1288 = vmatprep.subr.mxu0 0.0
      %1289 = vmatpush1.msra.mxu0 0.0
      %1290 = vmatprep.subr.mxu0 0.0
      %1291 = vmatpush1.msra.mxu0 0.0
      %1292 = vmatprep.subr.mxu0 0.0
      %1293 = vmatpush1.msra.mxu0 0.0
      %1294 = vmatprep.subr.mxu0 0.0
      %1295 = vmatpush1.msra.mxu0 0.0
      %1296 = vmatprep.subr.mxu0 0.0
      %1297 = vmatpush1.msra.mxu0 0.0
      %1298 = vmatprep.subr.mxu0 0.0
      %1299 = vmatpush1.msra.mxu0 0.0
      %1300 = vmatprep.subr.mxu0 0.0
      %1301 = vmatpush1.msra.mxu0 0.0
      %1302 = vmatprep.subr.mxu0 0.0
      %1303 = vmatpush1.msra.mxu0 0.0
      %1304 = vmatprep.subr.mxu0 0.0
      %1305 = vmatpush1.msra.mxu0 0.0
      %1306 = vmatprep.subr.mxu0 0.0
      %1307 = vmatpush1.msra.mxu0 0.0
      %1308 = vmatprep.subr.mxu0 0.0
      %1309 = vmatpush1.msra.mxu0 0.0
      %1310 = vmatprep.subr.mxu0 0.0
      %1311 = vmatpush1.msra.mxu0 0.0
      %1312 = vmatprep.subr.mxu0 0.0
      %1313 = vmatpush1.msra.mxu0 0.0
      %1314 = vmatprep.subr.mxu0 0.0
      %1315 = vmatpush1.msra.mxu0 0.0
      %1316 = vmatprep.subr.mxu0 0.0
      %1317 = vmatpush1.msra.mxu0 0.0
      %1318 = vmatprep.subr.mxu0 0.0
      %1319 = vmatpush1.msra.mxu0 0.0
      %1320 = vmatprep.subr.mxu0 0.0
      %1321 = vmatpush1.msra.mxu0 0.0
      %1322 = vmatprep.subr.mxu0 0.0
      %1323 = vmatpush1.msra.mxu0 0.0
      %1324 = vmatprep.subr.mxu0 0.0
      %1325 = vmatpush1.msra.mxu0 0.0
      %1326 = vmatprep.subr.mxu0 0.0
      %1327 = vmatpush1.msra.mxu0 0.0
      %1328 = vmatprep.subr.mxu0 0.0
      %1329 = vmatpush1.msra.mxu0 0.0
      %1330 = vmatprep.mubr.f32.mxu0 0.0
      %1331 = vmatmul.mubr.f32.gmra.mrb[0].mxu0 %v536
      %v1332 = vpop.f32.mrb[0].mxu0
      %v1333 = vadd.f32 0.0, %v1332
      %v1334 = vpop.f32.mrb[0].mxu0
      %1335 = vmatprep.mubr.f32.mxu0 0.0
      %1336 = vmatmul.mubr.f32.gmra.mrb[0].mxu0 %v538
      %v1337 = vpop.f32.mrb[0].mxu0
      %v1338 = vadd.f32 0.0, %v1337
      %v1339 = vpop.f32.mrb[0].mxu0
      %1340 = vmatprep.mubr.f32.mxu0 0.0
      %1341 = vmatmul.mubr.f32.gmra.mrb[0].mxu0 %v540
      %v1342 = vpop.f32.mrb[0].mxu0
      %v1343 = vadd.f32 0.0, %v1342
      %v1344 = vpop.f32.mrb[0].mxu0
      %1345 = vmatprep.mubr.f32.mxu0 0.0
      %1346 = vmatmul.mubr.f32.gmra.mrb[0].mxu0 %v542
      %v1347 = vpop.f32.mrb[0].mxu0
      %v1348 = vadd.f32 0.0, %v1347
      %v1349 = vpop.f32.mrb[0].mxu0
      %1350 = vmatprep.mubr.f32.mxu0 0.0
      %1351 = vmatmul.mubr.f32.gmra.mrb[0].mxu0 %v544
      %v1352 = vpop.f32.mrb[0].mxu0
      %v1353 = vadd.f32 0.0, %v1352
      %v1354 = vpop.f32.mrb[0].mxu0
      %1355 = vmatprep.mubr.f32.mxu0 0.0
      %1356 = vmatmul.mubr.f32.gmra.mrb[0].mxu0 %v546
      %v1357 = vpop.f32.mrb[0].mxu0
      %v1358 = vadd.f32 0.0, %v1357
      %v1359 = vpop.f32.mrb[0].mxu0
      %1360 = vmatprep.mubr.f32.mxu0 0.0
      %1361 = vmatmul.mubr.f32.gmra.mrb[0].mxu0 %v905
      %v1362 = vpop.f32.mrb[0].mxu0
      %v1363 = vadd.f32 0.0, %v1362
      %v1364 = vpop.f32.mrb[0].mxu0
      %1365 = vmatprep.mubr.f32.mxu0 0.0
      %1366 = vmatmul.mubr.f32.gmra.mrb[0].mxu0 %v1264
      %v1367 = vpop.f32.mrb[0].mxu0
      %v1368 = vadd.f32 0.0, %v1367
      %v1369 = vpop.f32.mrb[0].mxu0
      %1370 = vdwg.mxu0
      %v1371 = vadd.f32 %v1251, %v1333
      %v1372 = vadd.f32 %v1252, %v1338
      %v1373 = vadd.f32 %v1253, %v1343
      %v1374 = vadd.f32 %v1254, %v1348
      %v1375 = vadd.f32 %v1255, %v1353
      %v1376 = vadd.f32 %v1256, %v1358
      %v1377 = vadd.f32 %v1257, %v1363
      %v1378 = vadd.f32 %v1258, %v1368
      %v1379 = vld [vmem:[%s2] sm:$0x1]
      %v1381 = vlaneseq
      %v1382 = vshrl.u32 %v1381, 7
      %v1383 = vsub.s32 0, %v1382
      %v1384 = vrot.slane %v1379, %v1383
      %v1386 = vmul.f32 %v1371, %v1384
      %v1387 = vmul.f32 %v1372, %v1384
      %v1388 = vmul.f32 %v1373, %v1384
      %v1389 = vmul.f32 %v1374, %v1384
      %v1390 = vmul.f32 %v1375, %v1384
      %v1391 = vmul.f32 %v1376, %v1384
      %v1392 = vmul.f32 %v1377, %v1384
      %v1393 = vmul.f32 %v1378, %v1384
      %v1394 = vld [vmem:[%s3] sm:$0x1]
      %v1396 = vlaneseq
      %v1397 = vshrl.u32 %v1396, 7
      %v1398 = vsub.s32 0, %v1397
      %v1399 = vrot.slane %v1394, %v1398
      %v1401 = vadd.f32 %v1386, %v1399
      %v1402 = vadd.f32 %v1387, %v1399
      %v1403 = vadd.f32 %v1388, %v1399
      %v1404 = vadd.f32 %v1389, %v1399
      %v1405 = vadd.f32 %v1390, %v1399
      %v1406 = vadd.f32 %v1391, %v1399
      %v1407 = vadd.f32 %v1392, %v1399
      %v1408 = vadd.f32 %v1393, %v1399
      %v1409 = vmax.f32 %v1401, 0.0
      %v1410 = vmax.f32 %v1402, 0.0
      %v1411 = vmax.f32 %v1403, 0.0
      %v1412 = vmax.f32 %v1404, 0.0
      %v1413 = vmax.f32 %v1405, 0.0
      %v1414 = vmax.f32 %v1406, 0.0
      %v1415 = vmax.f32 %v1407, 0.0
      %v1416 = vmax.f32 %v1408, 0.0
      %1417 = vst.msk [vmem:[%s197] sm:$0xff] %vm262, %v1409
      %1418 = vst.msk [vmem:[%s197 + $0x8] sm:$0xff] %vm262, %v1410
      %1419 = vst.msk [vmem:[%s197 + $0x10] sm:$0xff] %vm262, %v1411
      %1420 = vst.msk [vmem:[%s197 + $0x18] sm:$0xff] %vm262, %v1412
      %1421 = vst.msk [vmem:[%s197 + $0x20] sm:$0xff] %vm262, %v1413
      %1422 = vst.msk [vmem:[%s197 + $0x28] sm:$0xff] %vm262, %v1414
      %1423 = vst.msk [vmem:[%s197 + $0x30] sm:$0xff] %vm262, %v1415
      %1424 = vst.msk [vmem:[%s197 + $0x38] sm:$0xff] %vm262, %v1416
      %p1425 = scmp.lt.s32.totalorder %s15, 1
      %s1426 = scalar_select %p1425, %s15, 1
      %s1427 = smul.addr %s1426, 8
      %s1428 = smul.addr %s1427, 8
      %s1429 = scalar_lea.vmem %s4, %s1428
      // Predicated region
      $region37: #{cssu_forward.16} parent=35 // pred_check
        %p1430 = pneg %p122
      $region38: #{cssu_forward.16} parent=35 // pred_check_branch
        %1432 = sbr.rel (%p1430) target = $region40
      $region39: #{cssu_forward.16} parent=35 // pred_region
        _
      $region40: #{cssu_forward.16} parent=35 // pred_fallthru
        _
    $region36: #{cssu_forward.16} parent=5 // pred_fallthru
      _
    %p1433 = scmp.le.s32.totalorder 2, %s10
    // Predicated region
    $region41: #{cssu_forward.16} parent=5 // pred_check
      %p1434 = pneg %p1433
    $region42: #{cssu_forward.16} parent=5 // pred_check_branch
      %1436 = sbr.rel (%p1434) target = $region44
    $region43: #{cssu_forward.16} parent=5 // pred_region
      %s1437 = ssub.s32 %s10, 2
      // Predicated region
      $region45: #{cssu_forward.16} parent=43 // pred_check
        %p1438 = pneg %p128
      $region46: #{cssu_forward.16} parent=43 // pred_check_branch
        %1440 = sbr.rel (%p1438) target = $region48
      $region47: #{cssu_forward.16} parent=43 // pred_region
        %p1441 = scmp.lt.s32.totalorder %s16, 1
        %s1442 = scalar_select %p1441, %s16, 1
        %s1443 = smul.addr %s1442, 8
        %s1444 = smul.addr %s1443, 8
        %s1445 = scalar_lea.vmem %s4, %s1444
      $region48: #{cssu_forward.16} parent=43 // pred_fallthru
        _
    $region44: #{cssu_forward.16} parent=5 // pred_fallthru
      _
  $region6: #{cssu_forward.16} parent=0 // loop_footer
    %s14 = sadd.s32 1, %s10
  $region7: #{cssu_forward.16} parent=0 // loop_footer_branch
    %9 = sbr.rel target = $region3
  $region8: #{cssu_forward.16} parent=0 // loop_exit
    _

</llo_original>
